<compile_context>
chip_gen: v7x
topology: tpu7x:2x2x1
jax: 0.10.0
libtpu: 0.0.40
codegen_flags: <defaults>
</compile_context>

<pallas_src>
import functools

import jax
import jax.numpy as jnp
from jax.experimental import pallas as pl
from jax.experimental.pallas import tpu as pltpu

LN_EPS = 1e-5  # torch.nn.LayerNorm default

# ---- slot indices into the packed [K, H, H] weight stack (set host-side) ----
NE_W2, EE_W2, NN_W1H, NN_W1M, NN_W2, EN_W2, OW_W1S, OW_W1M, OW_W2, OW_W3 = range(10)
# ---- slots in the packed [2, H, 2H] stack (fused edge-MLP first layers) -----
EE_W1C, EN_W1C = 0, 1
# ---- row-base offsets into the packed [R, H] bias/LN stack ------------------
NE_R, EE_R, NN_R, EN_R, OW_R = 0, 4, 8, 12, 16   # OW uses 7 rows (3-layer head)


# ----------------------------------------------------------------------------- kernel

def _ln_relu(h, g, be):
    mu = jnp.mean(h, axis=-1, keepdims=True)
    var = jnp.mean((h - mu) ** 2, axis=-1, keepdims=True)
    return jnp.maximum((h - mu) * jax.lax.rsqrt(var + LN_EPS) * g + be, 0.0)


def fused_discriminator_kernel(
    # graph data
    x_ref, start_ref, end_ref, batch_ref,
    # packed parameters
    w_hh_ref,    # [10, H, H]  bf16
    w_h2h_ref,   # [2, H, 2H]  bf16 (edge-MLP first layers, [w_start | w_end])
    ne_w1_ref,   # [C, H]      bf16
    rows_ref,    # [23, H]     f32  (biases / LN gammas / betas)
    # output
    o_ref,
    *, n_graph_iters,
):
    f32, bf16 = jnp.float32, jnp.bfloat16
    hidden = w_hh_ref.shape[-1]
    n_nodes = x_ref.shape[0]
    n_edges = start_ref.shape[0]
    n_graphs = o_ref.shape[0]

    rows = rows_ref[...]                                   # [23, H] f32

    def row(i):
        return rows[i:i + 1, :]                            # [1, H]

    def mlp_tail(z, rbase, w2_slot):
        """Finish Linear -> LN -> ReLU -> Linear given first-layer matmul z."""
        hh = _ln_relu(z + row(rbase), row(rbase + 1), row(rbase + 2))
        return jnp.dot(hh.astype(bf16), w_hh_ref[w2_slot],
                       preferred_element_type=f32) + row(rbase + 3)

    # ---- graph-structure one-hots, built ONCE (0/1 exact in bf16) -----------
    col = jax.lax.broadcasted_iota(jnp.int32, (n_edges, n_nodes), 1)
    oh_s = (col == start_ref[...]).astype(bf16)            # [E, N]
    oh_e = (col == end_ref[...]).astype(bf16)              # [E, N]

    # ---- node encoder --------------------------------------------------------
    z = jnp.dot(x_ref[...].astype(bf16), ne_w1_ref[...], preferred_element_type=f32)
    h = mlp_tail(z, NE_R, NE_W2)                           # [N, H] f32

    # edge-MLP first layer: single [N,H]@[H,2H] projection, lane-split, then
    # gather projections through the one-hots (no [E,2H] intermediate / concat).
    def edge_first_layer(h_bf, w1_slot):
        p = jnp.dot(h_bf, w_h2h_ref[w1_slot], preferred_element_type=f32)   # [N,2H]
        ps = p[:, :hidden].astype(bf16)
        pe = p[:, hidden:].astype(bf16)
        return (jnp.dot(oh_s, ps, preferred_element_type=f32)
                + jnp.dot(oh_e, pe, preferred_element_type=f32))            # [E,H]

    # ---- edge encoder on cat([h[start], h[end]]) -----------------------------
    h_bf = h.astype(bf16)
    e = mlp_tail(edge_first_layer(h_bf, EE_W1C), EE_R, EE_W2)

    # ---- message passing (aggregation='sum'), statically unrolled ------------
    for _ in range(n_graph_iters):
        # scatter_add(e, end): reuse oh_e via transposed contraction over E.
        msg = jax.lax.dot_general(oh_e, e.astype(bf16), (((0,), (0,)), ((), ())),
                                  preferred_element_type=f32)               # [N,H]
        # node network on cat([h, msg]) via pre-split W1 halves, residual add
        z = (jnp.dot(h_bf, w_hh_ref[NN_W1H], preferred_element_type=f32)
             + jnp.dot(msg.astype(bf16), w_hh_ref[NN_W1M], preferred_element_type=f32))
        h = mlp_tail(z, NN_R, NN_W2) + h
        h_bf = h.astype(bf16)
        # edge network on cat([h[start], h[end]]), residual add
        e = mlp_tail(edge_first_layer(h_bf, EN_W1C), EN_R, EN_W2) + e

    # ---- output step: cat([global_add_pool, global_mean_pool]) -> MLP -> sigmoid
    rowi = jax.lax.broadcasted_iota(jnp.int32, (n_graphs, n_nodes), 0)
    oh_b = (rowi == batch_ref[...]).astype(bf16)                            # [G,N]
    sums = jnp.dot(oh_b, h_bf, preferred_element_type=f32)                  # [G,H]
    counts = jnp.sum(oh_b.astype(f32), axis=-1, keepdims=True)              # [G,1] (XLU)
    means = sums / jnp.maximum(counts, 1.0)

    # 3-layer output head: Linear(2H->H) LN ReLU, Linear(H->H) LN ReLU, Linear(H->1)
    z = (jnp.dot(sums.astype(bf16), w_hh_ref[OW_W1S], preferred_element_type=f32)
         + jnp.dot(means.astype(bf16), w_hh_ref[OW_W1M], preferred_element_type=f32))
    hg = _ln_relu(z + row(OW_R + 0), row(OW_R + 1), row(OW_R + 2))
    hg = jnp.dot(hg.astype(bf16), w_hh_ref[OW_W2],
                 preferred_element_type=f32) + row(OW_R + 3)
    hg = _ln_relu(hg, row(OW_R + 4), row(OW_R + 5))
    logits = (jnp.dot(hg.astype(bf16), w_hh_ref[OW_W3],
                      preferred_element_type=f32) + row(OW_R + 6))[:, :1]   # [G,1]
    o_ref[...] = jax.nn.sigmoid(logits)


# ----------------------------------------------------------------------------- wrapper

_VMEM = pl.BlockSpec(memory_space=pltpu.MemorySpace.VMEM)


def pack_params(params):
    """Host-side packing: split/concat W1 halves and stack everything into 4 arrays."""
    H = params["node_encoder"]["w1"].shape[1]
    bf16, f32 = jnp.bfloat16, jnp.float32

    def pad_cols(w):          # [H, k] -> [H, H]
        return jnp.pad(w, ((0, 0), (0, H - w.shape[1])))

    def pad_row(r):           # [1, k] -> [1, H]
        return jnp.pad(r, ((0, 0), (0, H - r.shape[1])))

    nn_w1 = params["node_network"]["w1"]
    ow = params["output"]
    w_hh = jnp.stack([
        params["node_encoder"]["w2"],
        params["edge_encoder"]["w2"],
        nn_w1[:H, :], nn_w1[H:, :],
        params["node_network"]["w2"],
        params["edge_network"]["w2"],
        ow["w1"][:H, :], ow["w1"][H:, :],
        ow["w2"],
        pad_cols(ow["w3"]),
    ]).astype(bf16)                                          # [10, H, H]

    ee_w1 = params["edge_encoder"]["w1"]
    en_w1 = params["edge_network"]["w1"]
    w_h2h = jnp.stack([
        jnp.concatenate([ee_w1[:H, :], ee_w1[H:, :]], axis=1),
        jnp.concatenate([en_w1[:H, :], en_w1[H:, :]], axis=1),
    ]).astype(bf16)                                          # [2, H, 2H]

    ne_w1 = params["node_encoder"]["w1"].astype(bf16)        # [C, H]

    rows = []
    for name in ("node_encoder", "edge_encoder", "node_network", "edge_network"):
        p = params[name]
        rows += [p["b1"], p["g1"], p["be1"], p["b2"]]
    rows += [ow["b1"], ow["g1"], ow["be1"], ow["b2"], ow["g2"], ow["be2"],
             pad_row(ow["b3"])]
    rows = jnp.concatenate(rows, axis=0).astype(f32)         # [23, H]
    return w_hh, w_h2h, ne_w1, rows


def discriminator_forward(params, x, edge_index, batch, num_graphs, n_graph_iters):
    start, end = edge_index[0], edge_index[1]
    start_col = start.reshape(-1, 1).astype(jnp.int32)       # [E, 1]
    end_col = end.reshape(-1, 1).astype(jnp.int32)           # [E, 1]
    batch_row = batch.reshape(1, -1).astype(jnp.int32)       # [1, N]

    w_hh, w_h2h, ne_w1, rows = pack_params(params)
    args = (x.astype(jnp.float32), start_col, end_col, batch_row,
            w_hh, w_h2h, ne_w1, rows)

    out = pl.pallas_call(
        functools.partial(fused_discriminator_kernel, n_graph_iters=n_graph_iters),
        out_shape=jax.ShapeDtypeStruct((num_graphs, 1), jnp.float32),
        in_specs=[_VMEM] * len(args),
        out_specs=_VMEM,
        compiler_params=pltpu.CompilerParams(vmem_limit_bytes=32 * 1024 * 1024),
    )(*args)
    return out.reshape(-1)

# TODO(synk): at realistic E,N, replace the [E,N] one-hot gather/scatter with
# scalar-prefetched index gathers (PrefetchScalarGridSpec), tile the E axis with
# a grid marked 'parallel' (v7x 2-TC split) and keep h/msg VMEM-resident.


# ----------------------------------------------------------------------------- params

def _linear_init(key, din, dout):
    kw, kb = jax.random.split(key)
    s = 1.0 / (din ** 0.5)
    w = jax.random.uniform(kw, (din, dout), jnp.float32, -s, s)
    b = jax.random.uniform(kb, (1, dout), jnp.float32, -s, s)
    return w, b


def init_mlp2_params(key, din, hidden, dout):
    k1, k2 = jax.random.split(key)
    w1, b1 = _linear_init(k1, din, hidden)
    w2, b2 = _linear_init(k2, hidden, dout)
    return dict(w1=w1, b1=b1, g1=jnp.ones((1, hidden), jnp.float32),
                be1=jnp.zeros((1, hidden), jnp.float32), w2=w2, b2=b2)


def init_mlp3_params(key, din, hidden, dout):
    k1, k2, k3 = jax.random.split(key, 3)
    w1, b1 = _linear_init(k1, din, hidden)
    w2, b2 = _linear_init(k2, hidden, hidden)
    w3, b3 = _linear_init(k3, hidden, dout)
    return dict(w1=w1, b1=b1, g1=jnp.ones((1, hidden), jnp.float32),
                be1=jnp.zeros((1, hidden), jnp.float32),
                w2=w2, b2=b2, g2=jnp.ones((1, hidden), jnp.float32),
                be2=jnp.zeros((1, hidden), jnp.float32),
                w3=w3, b3=b3)


def init_params(key, input_channels, hidden):
    ks = jax.random.split(key, 5)
    return dict(
        node_encoder=init_mlp2_params(ks[0], input_channels, hidden, hidden),
        edge_encoder=init_mlp2_params(ks[1], 2 * hidden, hidden, hidden),
        node_network=init_mlp2_params(ks[2], 2 * hidden, hidden, hidden),  # aggregation='sum'
        edge_network=init_mlp2_params(ks[3], 2 * hidden, hidden, hidden),
        output=init_mlp3_params(ks[4], 2 * hidden, hidden, 1),
    )


# ----------------------------------------------------------------------------- reference (pure JAX, f32)

def _ref_ln(h, g, be):
    mu = h.mean(-1, keepdims=True)
    var = ((h - mu) ** 2).mean(-1, keepdims=True)
    return (h - mu) / jnp.sqrt(var + LN_EPS) * g + be


def _ref_mlp2(x, p):
    h = jnp.maximum(_ref_ln(x @ p["w1"] + p["b1"], p["g1"], p["be1"]), 0.0)
    return h @ p["w2"] + p["b2"]


def _ref_mlp3(x, p):
    h = jnp.maximum(_ref_ln(x @ p["w1"] + p["b1"], p["g1"], p["be1"]), 0.0)
    h = jnp.maximum(_ref_ln(h @ p["w2"] + p["b2"], p["g2"], p["be2"]), 0.0)
    return h @ p["w3"] + p["b3"]


def _ref_forward(params, x, edge_index, batch, num_graphs, n_graph_iters):
    start, end = edge_index[0], edge_index[1]
    n = x.shape[0]
    h = _ref_mlp2(x, params["node_encoder"])
    e = _ref_mlp2(jnp.concatenate([h[start], h[end]], axis=-1), params["edge_encoder"])
    for _ in range(n_graph_iters):
        msg = jax.ops.segment_sum(e, end, num_segments=n)
        h = _ref_mlp2(jnp.concatenate([h, msg], axis=-1), params["node_network"]) + h
        e = _ref_mlp2(jnp.concatenate([h[start], h[end]], axis=-1), params["edge_network"]) + e
    sums = jax.ops.segment_sum(h, batch, num_segments=num_graphs)
    cnts = jax.ops.segment_sum(jnp.ones((n, 1), jnp.float32), batch, num_segments=num_graphs)
    pooled = jnp.concatenate([sums, sums / jnp.maximum(cnts, 1.0)], axis=-1)
    return jax.nn.sigmoid(_ref_mlp3(pooled, params["output"])).reshape(-1)


# ----------------------------------------------------------------------------- main

if __name__ == "__main__":
    INPUT_CHANNELS = 4
    HIDDEN = 32
    N_GRAPH_ITERS = 2
    N_NODES = 256
    N_EDGES = 512
    N_GRAPHS = 4

    key = jax.random.PRNGKey(0)
    k_par, k_x, k_s, k_e = jax.random.split(key, 4)

    params = init_params(k_par, INPUT_CHANNELS, HIDDEN)
    x = jax.random.normal(k_x, (N_NODES, INPUT_CHANNELS), jnp.float32)
    start = jax.random.randint(k_s, (N_EDGES,), 0, N_NODES, dtype=jnp.int32)
    end = jax.random.randint(k_e, (N_EDGES,), 0, N_NODES, dtype=jnp.int32)
    edge_index = jnp.stack([start, end], axis=0)                       # [2, E]
    batch = jnp.repeat(jnp.arange(N_GRAPHS, dtype=jnp.int32), N_NODES // N_GRAPHS)

    fwd = functools.partial(discriminator_forward,
                            num_graphs=N_GRAPHS, n_graph_iters=N_GRAPH_ITERS)
    out = jax.block_until_ready(jax.jit(fwd)(params, x, edge_index, batch))

    ref = _ref_forward(params, x, edge_index, batch, N_GRAPHS, N_GRAPH_ITERS)
    assert out.shape == (N_GRAPHS,)
    # bf16 MXU operands (f32 accumulation) vs the pure-f32 reference: ~1% class
    # error on the logits, far inside 3e-2 on the sigmoid output.
    assert jnp.allclose(out, ref, atol=3e-2), (out, ref)

    print("KERNEL_OK")
</pallas_src>

<mosaic_0001>
module attributes {stable_mosaic.version = 11 : i64} {
  func.func @fused_discriminator_kernel(%arg0: memref<256x4xf32, #tpu.memory_space<vmem>>, %arg1: memref<512x1xi32, #tpu.memory_space<vmem>>, %arg2: memref<512x1xi32, #tpu.memory_space<vmem>>, %arg3: memref<1x256xi32, #tpu.memory_space<vmem>>, %arg4: memref<10x32x32xbf16, #tpu.memory_space<vmem>>, %arg5: memref<2x32x64xbf16, #tpu.memory_space<vmem>>, %arg6: memref<4x32xbf16, #tpu.memory_space<vmem>>, %arg7: memref<23x32xf32, #tpu.memory_space<vmem>>, %arg8: memref<4x1xf32, #tpu.memory_space<vmem>>) attributes {dimension_semantics = [], scalar_prefetch = 0 : i64, scratch_operands = 0 : i64, tpu.core_type = #tpu.core_type<tc>} {
    %c0 = arith.constant 0 : index
    %c0_0 = arith.constant 0 : index
    %0 = vector.load %arg7[%c0, %c0_0] : memref<23x32xf32, #tpu.memory_space<vmem>>, vector<23x32xf32>
    %1 = tpu.iota {dimensions = array<i32: 1>} : vector<512x256xi32>
    %c0_1 = arith.constant 0 : index
    %c0_2 = arith.constant 0 : index
    %2 = vector.load %arg1[%c0_1, %c0_2] : memref<512x1xi32, #tpu.memory_space<vmem>>, vector<512x1xi32>
    %3 = vector.broadcast %2 : vector<512x1xi32> to vector<512x256xi32>
    %4 = arith.cmpi eq, %1, %3 : vector<512x256xi32>
    %5 = arith.extui %4 : vector<512x256xi1> to vector<512x256xi32>
    %6 = arith.sitofp %5 : vector<512x256xi32> to vector<512x256xf32>
    %7 = arith.truncf %6 : vector<512x256xf32> to vector<512x256xbf16>
    %c0_3 = arith.constant 0 : index
    %c0_4 = arith.constant 0 : index
    %8 = vector.load %arg2[%c0_3, %c0_4] : memref<512x1xi32, #tpu.memory_space<vmem>>, vector<512x1xi32>
    %9 = vector.broadcast %8 : vector<512x1xi32> to vector<512x256xi32>
    %10 = arith.cmpi eq, %1, %9 : vector<512x256xi32>
    %11 = arith.extui %10 : vector<512x256xi1> to vector<512x256xi32>
    %12 = arith.sitofp %11 : vector<512x256xi32> to vector<512x256xf32>
    %13 = arith.truncf %12 : vector<512x256xf32> to vector<512x256xbf16>
    %c0_5 = arith.constant 0 : index
    %c0_6 = arith.constant 0 : index
    %14 = vector.load %arg0[%c0_5, %c0_6] : memref<256x4xf32, #tpu.memory_space<vmem>>, vector<256x4xf32>
    %15 = arith.truncf %14 : vector<256x4xf32> to vector<256x4xbf16>
    %c0_7 = arith.constant 0 : index
    %c0_8 = arith.constant 0 : index
    %16 = vector.load %arg6[%c0_7, %c0_8] : memref<4x32xbf16, #tpu.memory_space<vmem>>, vector<4x32xbf16>
    %cst = arith.constant dense<0.000000e+00> : vector<256x32xf32>
    %17 = tpu.matmul %15, %16, %cst {dimension_numbers = #tpu.dot_dimension_numbers<[1], [0], [0], [1], [0, 0, 1, 1], [], []>} : vector<256x4xbf16>, vector<4x32xbf16>, vector<256x32xf32> -> vector<256x32xf32>
    %18 = vector.extract_strided_slice %0 {offsets = [0, 0], sizes = [1, 32], strides = [1, 1]} : vector<23x32xf32> to vector<1x32xf32>
    %19 = vector.broadcast %18 : vector<1x32xf32> to vector<256x32xf32>
    %20 = arith.addf %17, %19 : vector<256x32xf32>
    %21 = vector.extract_strided_slice %0 {offsets = [1, 0], sizes = [1, 32], strides = [1, 1]} : vector<23x32xf32> to vector<1x32xf32>
    %22 = vector.extract_strided_slice %0 {offsets = [2, 0], sizes = [1, 32], strides = [1, 1]} : vector<23x32xf32> to vector<1x32xf32>
    %cst_9 = arith.constant dense<0.000000e+00> : vector<256xf32>
    %23 = vector.multi_reduction <add>, %20, %cst_9 [1] : vector<256x32xf32> to vector<256xf32>
    %24 = vector.shape_cast %23 : vector<256xf32> to vector<256x1xf32>
    %cst_10 = arith.constant 3.200000e+01 : f32
    %25 = vector.broadcast %cst_10 : f32 to vector<256x1xf32>
    %26 = arith.divf %24, %25 : vector<256x1xf32>
    %27 = vector.broadcast %26 : vector<256x1xf32> to vector<256x32xf32>
    %28 = arith.subf %20, %27 : vector<256x32xf32>
    %29 = arith.mulf %28, %28 : vector<256x32xf32>
    %cst_11 = arith.constant dense<0.000000e+00> : vector<256xf32>
    %30 = vector.multi_reduction <add>, %29, %cst_11 [1] : vector<256x32xf32> to vector<256xf32>
    %31 = vector.shape_cast %30 : vector<256xf32> to vector<256x1xf32>
    %cst_12 = arith.constant 3.200000e+01 : f32
    %32 = vector.broadcast %cst_12 : f32 to vector<256x1xf32>
    %33 = arith.divf %31, %32 : vector<256x1xf32>
    %34 = vector.broadcast %26 : vector<256x1xf32> to vector<256x32xf32>
    %35 = arith.subf %20, %34 : vector<256x32xf32>
    %cst_13 = arith.constant 9.99999974E-6 : f32
    %36 = vector.broadcast %cst_13 : f32 to vector<256x1xf32>
    %37 = arith.addf %33, %36 : vector<256x1xf32>
    %38 = math.rsqrt %37 : vector<256x1xf32>
    %39 = vector.broadcast %38 : vector<256x1xf32> to vector<256x32xf32>
    %40 = arith.mulf %35, %39 : vector<256x32xf32>
    %41 = vector.broadcast %21 : vector<1x32xf32> to vector<256x32xf32>
    %42 = arith.mulf %40, %41 : vector<256x32xf32>
    %43 = vector.broadcast %22 : vector<1x32xf32> to vector<256x32xf32>
    %44 = arith.addf %42, %43 : vector<256x32xf32>
    %cst_14 = arith.constant 0.000000e+00 : f32
    %45 = vector.broadcast %cst_14 : f32 to vector<256x32xf32>
    %46 = arith.maximumf %44, %45 : vector<256x32xf32>
    %47 = arith.truncf %46 : vector<256x32xf32> to vector<256x32xbf16>
    %c0_15 = arith.constant 0 : index
    %c0_16 = arith.constant 0 : index
    %c0_17 = arith.constant 0 : index
    %48 = vector.load %arg4[%c0_15, %c0_16, %c0_17] : memref<10x32x32xbf16, #tpu.memory_space<vmem>>, vector<1x32x32xbf16>
    %49 = vector.shape_cast %48 : vector<1x32x32xbf16> to vector<32x32xbf16>
    %cst_18 = arith.constant dense<0.000000e+00> : vector<256x32xf32>
    %50 = tpu.matmul %47, %49, %cst_18 {dimension_numbers = #tpu.dot_dimension_numbers<[1], [0], [0], [1], [0, 0, 1, 1], [], []>} : vector<256x32xbf16>, vector<32x32xbf16>, vector<256x32xf32> -> vector<256x32xf32>
    %51 = vector.extract_strided_slice %0 {offsets = [3, 0], sizes = [1, 32], strides = [1, 1]} : vector<23x32xf32> to vector<1x32xf32>
    %52 = vector.broadcast %51 : vector<1x32xf32> to vector<256x32xf32>
    %53 = arith.addf %50, %52 : vector<256x32xf32>
    %54 = arith.truncf %53 : vector<256x32xf32> to vector<256x32xbf16>
    %c0_19 = arith.constant 0 : index
    %c0_20 = arith.constant 0 : index
    %c0_21 = arith.constant 0 : index
    %55 = vector.load %arg5[%c0_19, %c0_20, %c0_21] : memref<2x32x64xbf16, #tpu.memory_space<vmem>>, vector<1x32x64xbf16>
    %56 = vector.shape_cast %55 : vector<1x32x64xbf16> to vector<32x64xbf16>
    %cst_22 = arith.constant dense<0.000000e+00> : vector<256x64xf32>
    %57 = tpu.matmul %54, %56, %cst_22 {dimension_numbers = #tpu.dot_dimension_numbers<[1], [0], [0], [1], [0, 0, 1, 1], [], []>} : vector<256x32xbf16>, vector<32x64xbf16>, vector<256x64xf32> -> vector<256x64xf32>
    %58 = vector.extract_strided_slice %57 {offsets = [0, 0], sizes = [256, 32], strides = [1, 1]} : vector<256x64xf32> to vector<256x32xf32>
    %59 = arith.truncf %58 : vector<256x32xf32> to vector<256x32xbf16>
    %60 = vector.extract_strided_slice %57 {offsets = [0, 32], sizes = [256, 32], strides = [1, 1]} : vector<256x64xf32> to vector<256x32xf32>
    %61 = arith.truncf %60 : vector<256x32xf32> to vector<256x32xbf16>
    %cst_23 = arith.constant dense<0.000000e+00> : vector<512x32xf32>
    %62 = tpu.matmul %7, %59, %cst_23 {dimension_numbers = #tpu.dot_dimension_numbers<[1], [0], [0], [1], [0, 0, 1, 1], [], []>} : vector<512x256xbf16>, vector<256x32xbf16>, vector<512x32xf32> -> vector<512x32xf32>
    %cst_24 = arith.constant dense<0.000000e+00> : vector<512x32xf32>
    %63 = tpu.matmul %13, %61, %cst_24 {dimension_numbers = #tpu.dot_dimension_numbers<[1], [0], [0], [1], [0, 0, 1, 1], [], []>} : vector<512x256xbf16>, vector<256x32xbf16>, vector<512x32xf32> -> vector<512x32xf32>
    %64 = arith.addf %62, %63 : vector<512x32xf32>
    %65 = vector.extract_strided_slice %0 {offsets = [4, 0], sizes = [1, 32], strides = [1, 1]} : vector<23x32xf32> to vector<1x32xf32>
    %66 = vector.broadcast %65 : vector<1x32xf32> to vector<512x32xf32>
    %67 = arith.addf %64, %66 : vector<512x32xf32>
    %68 = vector.extract_strided_slice %0 {offsets = [5, 0], sizes = [1, 32], strides = [1, 1]} : vector<23x32xf32> to vector<1x32xf32>
    %69 = vector.extract_strided_slice %0 {offsets = [6, 0], sizes = [1, 32], strides = [1, 1]} : vector<23x32xf32> to vector<1x32xf32>
    %cst_25 = arith.constant dense<0.000000e+00> : vector<512xf32>
    %70 = vector.multi_reduction <add>, %67, %cst_25 [1] : vector<512x32xf32> to vector<512xf32>
    %71 = vector.shape_cast %70 : vector<512xf32> to vector<512x1xf32>
    %cst_26 = arith.constant 3.200000e+01 : f32
    %72 = vector.broadcast %cst_26 : f32 to vector<512x1xf32>
    %73 = arith.divf %71, %72 : vector<512x1xf32>
    %74 = vector.broadcast %73 : vector<512x1xf32> to vector<512x32xf32>
    %75 = arith.subf %67, %74 : vector<512x32xf32>
    %76 = arith.mulf %75, %75 : vector<512x32xf32>
    %cst_27 = arith.constant dense<0.000000e+00> : vector<512xf32>
    %77 = vector.multi_reduction <add>, %76, %cst_27 [1] : vector<512x32xf32> to vector<512xf32>
    %78 = vector.shape_cast %77 : vector<512xf32> to vector<512x1xf32>
    %cst_28 = arith.constant 3.200000e+01 : f32
    %79 = vector.broadcast %cst_28 : f32 to vector<512x1xf32>
    %80 = arith.divf %78, %79 : vector<512x1xf32>
    %81 = vector.broadcast %73 : vector<512x1xf32> to vector<512x32xf32>
    %82 = arith.subf %67, %81 : vector<512x32xf32>
    %cst_29 = arith.constant 9.99999974E-6 : f32
    %83 = vector.broadcast %cst_29 : f32 to vector<512x1xf32>
    %84 = arith.addf %80, %83 : vector<512x1xf32>
    %85 = math.rsqrt %84 : vector<512x1xf32>
    %86 = vector.broadcast %85 : vector<512x1xf32> to vector<512x32xf32>
    %87 = arith.mulf %82, %86 : vector<512x32xf32>
    %88 = vector.broadcast %68 : vector<1x32xf32> to vector<512x32xf32>
    %89 = arith.mulf %87, %88 : vector<512x32xf32>
    %90 = vector.broadcast %69 : vector<1x32xf32> to vector<512x32xf32>
    %91 = arith.addf %89, %90 : vector<512x32xf32>
    %cst_30 = arith.constant 0.000000e+00 : f32
    %92 = vector.broadcast %cst_30 : f32 to vector<512x32xf32>
    %93 = arith.maximumf %91, %92 : vector<512x32xf32>
    %94 = arith.truncf %93 : vector<512x32xf32> to vector<512x32xbf16>
    %c1 = arith.constant 1 : index
    %c0_31 = arith.constant 0 : index
    %c0_32 = arith.constant 0 : index
    %95 = vector.load %arg4[%c1, %c0_31, %c0_32] : memref<10x32x32xbf16, #tpu.memory_space<vmem>>, vector<1x32x32xbf16>
    %96 = vector.shape_cast %95 : vector<1x32x32xbf16> to vector<32x32xbf16>
    %cst_33 = arith.constant dense<0.000000e+00> : vector<512x32xf32>
    %97 = tpu.matmul %94, %96, %cst_33 {dimension_numbers = #tpu.dot_dimension_numbers<[1], [0], [0], [1], [0, 0, 1, 1], [], []>} : vector<512x32xbf16>, vector<32x32xbf16>, vector<512x32xf32> -> vector<512x32xf32>
    %98 = vector.extract_strided_slice %0 {offsets = [7, 0], sizes = [1, 32], strides = [1, 1]} : vector<23x32xf32> to vector<1x32xf32>
    %99 = vector.broadcast %98 : vector<1x32xf32> to vector<512x32xf32>
    %100 = arith.addf %97, %99 : vector<512x32xf32>
    %101 = arith.truncf %100 : vector<512x32xf32> to vector<512x32xbf16>
    %cst_34 = arith.constant dense<0.000000e+00> : vector<256x32xf32>
    %102 = tpu.matmul %13, %101, %cst_34 {dimension_numbers = #tpu.dot_dimension_numbers<[0], [0], [1], [1], [0, 1, 1, 1], [], []>} : vector<512x256xbf16>, vector<512x32xbf16>, vector<256x32xf32> -> vector<256x32xf32>
    %c2 = arith.constant 2 : index
    %c0_35 = arith.constant 0 : index
    %c0_36 = arith.constant 0 : index
    %103 = vector.load %arg4[%c2, %c0_35, %c0_36] : memref<10x32x32xbf16, #tpu.memory_space<vmem>>, vector<1x32x32xbf16>
    %104 = vector.shape_cast %103 : vector<1x32x32xbf16> to vector<32x32xbf16>
    %cst_37 = arith.constant dense<0.000000e+00> : vector<256x32xf32>
    %105 = tpu.matmul %54, %104, %cst_37 {dimension_numbers = #tpu.dot_dimension_numbers<[1], [0], [0], [1], [0, 0, 1, 1], [], []>} : vector<256x32xbf16>, vector<32x32xbf16>, vector<256x32xf32> -> vector<256x32xf32>
    %106 = arith.truncf %102 : vector<256x32xf32> to vector<256x32xbf16>
    %c3 = arith.constant 3 : index
    %c0_38 = arith.constant 0 : index
    %c0_39 = arith.constant 0 : index
    %107 = vector.load %arg4[%c3, %c0_38, %c0_39] : memref<10x32x32xbf16, #tpu.memory_space<vmem>>, vector<1x32x32xbf16>
    %108 = vector.shape_cast %107 : vector<1x32x32xbf16> to vector<32x32xbf16>
    %cst_40 = arith.constant dense<0.000000e+00> : vector<256x32xf32>
    %109 = tpu.matmul %106, %108, %cst_40 {dimension_numbers = #tpu.dot_dimension_numbers<[1], [0], [0], [1], [0, 0, 1, 1], [], []>} : vector<256x32xbf16>, vector<32x32xbf16>, vector<256x32xf32> -> vector<256x32xf32>
    %110 = arith.addf %105, %109 : vector<256x32xf32>
    %111 = vector.extract_strided_slice %0 {offsets = [8, 0], sizes = [1, 32], strides = [1, 1]} : vector<23x32xf32> to vector<1x32xf32>
    %112 = vector.broadcast %111 : vector<1x32xf32> to vector<256x32xf32>
    %113 = arith.addf %110, %112 : vector<256x32xf32>
    %114 = vector.extract_strided_slice %0 {offsets = [9, 0], sizes = [1, 32], strides = [1, 1]} : vector<23x32xf32> to vector<1x32xf32>
    %115 = vector.extract_strided_slice %0 {offsets = [10, 0], sizes = [1, 32], strides = [1, 1]} : vector<23x32xf32> to vector<1x32xf32>
    %cst_41 = arith.constant dense<0.000000e+00> : vector<256xf32>
    %116 = vector.multi_reduction <add>, %113, %cst_41 [1] : vector<256x32xf32> to vector<256xf32>
    %117 = vector.shape_cast %116 : vector<256xf32> to vector<256x1xf32>
    %cst_42 = arith.constant 3.200000e+01 : f32
    %118 = vector.broadcast %cst_42 : f32 to vector<256x1xf32>
    %119 = arith.divf %117, %118 : vector<256x1xf32>
    %120 = vector.broadcast %119 : vector<256x1xf32> to vector<256x32xf32>
    %121 = arith.subf %113, %120 : vector<256x32xf32>
    %122 = arith.mulf %121, %121 : vector<256x32xf32>
    %cst_43 = arith.constant dense<0.000000e+00> : vector<256xf32>
    %123 = vector.multi_reduction <add>, %122, %cst_43 [1] : vector<256x32xf32> to vector<256xf32>
    %124 = vector.shape_cast %123 : vector<256xf32> to vector<256x1xf32>
    %cst_44 = arith.constant 3.200000e+01 : f32
    %125 = vector.broadcast %cst_44 : f32 to vector<256x1xf32>
    %126 = arith.divf %124, %125 : vector<256x1xf32>
    %127 = vector.broadcast %119 : vector<256x1xf32> to vector<256x32xf32>
    %128 = arith.subf %113, %127 : vector<256x32xf32>
    %cst_45 = arith.constant 9.99999974E-6 : f32
    %129 = vector.broadcast %cst_45 : f32 to vector<256x1xf32>
    %130 = arith.addf %126, %129 : vector<256x1xf32>
    %131 = math.rsqrt %130 : vector<256x1xf32>
    %132 = vector.broadcast %131 : vector<256x1xf32> to vector<256x32xf32>
    %133 = arith.mulf %128, %132 : vector<256x32xf32>
    %134 = vector.broadcast %114 : vector<1x32xf32> to vector<256x32xf32>
    %135 = arith.mulf %133, %134 : vector<256x32xf32>
    %136 = vector.broadcast %115 : vector<1x32xf32> to vector<256x32xf32>
    %137 = arith.addf %135, %136 : vector<256x32xf32>
    %cst_46 = arith.constant 0.000000e+00 : f32
    %138 = vector.broadcast %cst_46 : f32 to vector<256x32xf32>
    %139 = arith.maximumf %137, %138 : vector<256x32xf32>
    %140 = arith.truncf %139 : vector<256x32xf32> to vector<256x32xbf16>
    %c4 = arith.constant 4 : index
    %c0_47 = arith.constant 0 : index
    %c0_48 = arith.constant 0 : index
    %141 = vector.load %arg4[%c4, %c0_47, %c0_48] : memref<10x32x32xbf16, #tpu.memory_space<vmem>>, vector<1x32x32xbf16>
    %142 = vector.shape_cast %141 : vector<1x32x32xbf16> to vector<32x32xbf16>
    %cst_49 = arith.constant dense<0.000000e+00> : vector<256x32xf32>
    %143 = tpu.matmul %140, %142, %cst_49 {dimension_numbers = #tpu.dot_dimension_numbers<[1], [0], [0], [1], [0, 0, 1, 1], [], []>} : vector<256x32xbf16>, vector<32x32xbf16>, vector<256x32xf32> -> vector<256x32xf32>
    %144 = vector.extract_strided_slice %0 {offsets = [11, 0], sizes = [1, 32], strides = [1, 1]} : vector<23x32xf32> to vector<1x32xf32>
    %145 = vector.broadcast %144 : vector<1x32xf32> to vector<256x32xf32>
    %146 = arith.addf %143, %145 : vector<256x32xf32>
    %147 = arith.addf %146, %53 : vector<256x32xf32>
    %148 = arith.truncf %147 : vector<256x32xf32> to vector<256x32xbf16>
    %c1_50 = arith.constant 1 : index
    %c0_51 = arith.constant 0 : index
    %c0_52 = arith.constant 0 : index
    %149 = vector.load %arg5[%c1_50, %c0_51, %c0_52] : memref<2x32x64xbf16, #tpu.memory_space<vmem>>, vector<1x32x64xbf16>
    %150 = vector.shape_cast %149 : vector<1x32x64xbf16> to vector<32x64xbf16>
    %cst_53 = arith.constant dense<0.000000e+00> : vector<256x64xf32>
    %151 = tpu.matmul %148, %150, %cst_53 {dimension_numbers = #tpu.dot_dimension_numbers<[1], [0], [0], [1], [0, 0, 1, 1], [], []>} : vector<256x32xbf16>, vector<32x64xbf16>, vector<256x64xf32> -> vector<256x64xf32>
    %152 = vector.extract_strided_slice %151 {offsets = [0, 0], sizes = [256, 32], strides = [1, 1]} : vector<256x64xf32> to vector<256x32xf32>
    %153 = arith.truncf %152 : vector<256x32xf32> to vector<256x32xbf16>
    %154 = vector.extract_strided_slice %151 {offsets = [0, 32], sizes = [256, 32], strides = [1, 1]} : vector<256x64xf32> to vector<256x32xf32>
    %155 = arith.truncf %154 : vector<256x32xf32> to vector<256x32xbf16>
    %cst_54 = arith.constant dense<0.000000e+00> : vector<512x32xf32>
    %156 = tpu.matmul %7, %153, %cst_54 {dimension_numbers = #tpu.dot_dimension_numbers<[1], [0], [0], [1], [0, 0, 1, 1], [], []>} : vector<512x256xbf16>, vector<256x32xbf16>, vector<512x32xf32> -> vector<512x32xf32>
    %cst_55 = arith.constant dense<0.000000e+00> : vector<512x32xf32>
    %157 = tpu.matmul %13, %155, %cst_55 {dimension_numbers = #tpu.dot_dimension_numbers<[1], [0], [0], [1], [0, 0, 1, 1], [], []>} : vector<512x256xbf16>, vector<256x32xbf16>, vector<512x32xf32> -> vector<512x32xf32>
    %158 = arith.addf %156, %157 : vector<512x32xf32>
    %159 = vector.extract_strided_slice %0 {offsets = [12, 0], sizes = [1, 32], strides = [1, 1]} : vector<23x32xf32> to vector<1x32xf32>
    %160 = vector.broadcast %159 : vector<1x32xf32> to vector<512x32xf32>
    %161 = arith.addf %158, %160 : vector<512x32xf32>
    %162 = vector.extract_strided_slice %0 {offsets = [13, 0], sizes = [1, 32], strides = [1, 1]} : vector<23x32xf32> to vector<1x32xf32>
    %163 = vector.extract_strided_slice %0 {offsets = [14, 0], sizes = [1, 32], strides = [1, 1]} : vector<23x32xf32> to vector<1x32xf32>
    %cst_56 = arith.constant dense<0.000000e+00> : vector<512xf32>
    %164 = vector.multi_reduction <add>, %161, %cst_56 [1] : vector<512x32xf32> to vector<512xf32>
    %165 = vector.shape_cast %164 : vector<512xf32> to vector<512x1xf32>
    %cst_57 = arith.constant 3.200000e+01 : f32
    %166 = vector.broadcast %cst_57 : f32 to vector<512x1xf32>
    %167 = arith.divf %165, %166 : vector<512x1xf32>
    %168 = vector.broadcast %167 : vector<512x1xf32> to vector<512x32xf32>
    %169 = arith.subf %161, %168 : vector<512x32xf32>
    %170 = arith.mulf %169, %169 : vector<512x32xf32>
    %cst_58 = arith.constant dense<0.000000e+00> : vector<512xf32>
    %171 = vector.multi_reduction <add>, %170, %cst_58 [1] : vector<512x32xf32> to vector<512xf32>
    %172 = vector.shape_cast %171 : vector<512xf32> to vector<512x1xf32>
    %cst_59 = arith.constant 3.200000e+01 : f32
    %173 = vector.broadcast %cst_59 : f32 to vector<512x1xf32>
    %174 = arith.divf %172, %173 : vector<512x1xf32>
    %175 = vector.broadcast %167 : vector<512x1xf32> to vector<512x32xf32>
    %176 = arith.subf %161, %175 : vector<512x32xf32>
    %cst_60 = arith.constant 9.99999974E-6 : f32
    %177 = vector.broadcast %cst_60 : f32 to vector<512x1xf32>
    %178 = arith.addf %174, %177 : vector<512x1xf32>
    %179 = math.rsqrt %178 : vector<512x1xf32>
    %180 = vector.broadcast %179 : vector<512x1xf32> to vector<512x32xf32>
    %181 = arith.mulf %176, %180 : vector<512x32xf32>
    %182 = vector.broadcast %162 : vector<1x32xf32> to vector<512x32xf32>
    %183 = arith.mulf %181, %182 : vector<512x32xf32>
    %184 = vector.broadcast %163 : vector<1x32xf32> to vector<512x32xf32>
    %185 = arith.addf %183, %184 : vector<512x32xf32>
    %cst_61 = arith.constant 0.000000e+00 : f32
    %186 = vector.broadcast %cst_61 : f32 to vector<512x32xf32>
    %187 = arith.maximumf %185, %186 : vector<512x32xf32>
    %188 = arith.truncf %187 : vector<512x32xf32> to vector<512x32xbf16>
    %c5 = arith.constant 5 : index
    %c0_62 = arith.constant 0 : index
    %c0_63 = arith.constant 0 : index
    %189 = vector.load %arg4[%c5, %c0_62, %c0_63] : memref<10x32x32xbf16, #tpu.memory_space<vmem>>, vector<1x32x32xbf16>
    %190 = vector.shape_cast %189 : vector<1x32x32xbf16> to vector<32x32xbf16>
    %cst_64 = arith.constant dense<0.000000e+00> : vector<512x32xf32>
    %191 = tpu.matmul %188, %190, %cst_64 {dimension_numbers = #tpu.dot_dimension_numbers<[1], [0], [0], [1], [0, 0, 1, 1], [], []>} : vector<512x32xbf16>, vector<32x32xbf16>, vector<512x32xf32> -> vector<512x32xf32>
    %192 = vector.extract_strided_slice %0 {offsets = [15, 0], sizes = [1, 32], strides = [1, 1]} : vector<23x32xf32> to vector<1x32xf32>
    %193 = vector.broadcast %192 : vector<1x32xf32> to vector<512x32xf32>
    %194 = arith.addf %191, %193 : vector<512x32xf32>
    %195 = arith.addf %194, %100 : vector<512x32xf32>
    %196 = arith.truncf %195 : vector<512x32xf32> to vector<512x32xbf16>
    %cst_65 = arith.constant dense<0.000000e+00> : vector<256x32xf32>
    %197 = tpu.matmul %13, %196, %cst_65 {dimension_numbers = #tpu.dot_dimension_numbers<[0], [0], [1], [1], [0, 1, 1, 1], [], []>} : vector<512x256xbf16>, vector<512x32xbf16>, vector<256x32xf32> -> vector<256x32xf32>
    %c2_66 = arith.constant 2 : index
    %c0_67 = arith.constant 0 : index
    %c0_68 = arith.constant 0 : index
    %198 = vector.load %arg4[%c2_66, %c0_67, %c0_68] : memref<10x32x32xbf16, #tpu.memory_space<vmem>>, vector<1x32x32xbf16>
    %199 = vector.shape_cast %198 : vector<1x32x32xbf16> to vector<32x32xbf16>
    %cst_69 = arith.constant dense<0.000000e+00> : vector<256x32xf32>
    %200 = tpu.matmul %148, %199, %cst_69 {dimension_numbers = #tpu.dot_dimension_numbers<[1], [0], [0], [1], [0, 0, 1, 1], [], []>} : vector<256x32xbf16>, vector<32x32xbf16>, vector<256x32xf32> -> vector<256x32xf32>
    %201 = arith.truncf %197 : vector<256x32xf32> to vector<256x32xbf16>
    %c3_70 = arith.constant 3 : index
    %c0_71 = arith.constant 0 : index
    %c0_72 = arith.constant 0 : index
    %202 = vector.load %arg4[%c3_70, %c0_71, %c0_72] : memref<10x32x32xbf16, #tpu.memory_space<vmem>>, vector<1x32x32xbf16>
    %203 = vector.shape_cast %202 : vector<1x32x32xbf16> to vector<32x32xbf16>
    %cst_73 = arith.constant dense<0.000000e+00> : vector<256x32xf32>
    %204 = tpu.matmul %201, %203, %cst_73 {dimension_numbers = #tpu.dot_dimension_numbers<[1], [0], [0], [1], [0, 0, 1, 1], [], []>} : vector<256x32xbf16>, vector<32x32xbf16>, vector<256x32xf32> -> vector<256x32xf32>
    %205 = arith.addf %200, %204 : vector<256x32xf32>
    %206 = vector.extract_strided_slice %0 {offsets = [8, 0], sizes = [1, 32], strides = [1, 1]} : vector<23x32xf32> to vector<1x32xf32>
    %207 = vector.broadcast %206 : vector<1x32xf32> to vector<256x32xf32>
    %208 = arith.addf %205, %207 : vector<256x32xf32>
    %209 = vector.extract_strided_slice %0 {offsets = [9, 0], sizes = [1, 32], strides = [1, 1]} : vector<23x32xf32> to vector<1x32xf32>
    %210 = vector.extract_strided_slice %0 {offsets = [10, 0], sizes = [1, 32], strides = [1, 1]} : vector<23x32xf32> to vector<1x32xf32>
    %cst_74 = arith.constant dense<0.000000e+00> : vector<256xf32>
    %211 = vector.multi_reduction <add>, %208, %cst_74 [1] : vector<256x32xf32> to vector<256xf32>
    %212 = vector.shape_cast %211 : vector<256xf32> to vector<256x1xf32>
    %cst_75 = arith.constant 3.200000e+01 : f32
    %213 = vector.broadcast %cst_75 : f32 to vector<256x1xf32>
    %214 = arith.divf %212, %213 : vector<256x1xf32>
    %215 = vector.broadcast %214 : vector<256x1xf32> to vector<256x32xf32>
    %216 = arith.subf %208, %215 : vector<256x32xf32>
    %217 = arith.mulf %216, %216 : vector<256x32xf32>
    %cst_76 = arith.constant dense<0.000000e+00> : vector<256xf32>
    %218 = vector.multi_reduction <add>, %217, %cst_76 [1] : vector<256x32xf32> to vector<256xf32>
    %219 = vector.shape_cast %218 : vector<256xf32> to vector<256x1xf32>
    %cst_77 = arith.constant 3.200000e+01 : f32
    %220 = vector.broadcast %cst_77 : f32 to vector<256x1xf32>
    %221 = arith.divf %219, %220 : vector<256x1xf32>
    %222 = vector.broadcast %214 : vector<256x1xf32> to vector<256x32xf32>
    %223 = arith.subf %208, %222 : vector<256x32xf32>
    %cst_78 = arith.constant 9.99999974E-6 : f32
    %224 = vector.broadcast %cst_78 : f32 to vector<256x1xf32>
    %225 = arith.addf %221, %224 : vector<256x1xf32>
    %226 = math.rsqrt %225 : vector<256x1xf32>
    %227 = vector.broadcast %226 : vector<256x1xf32> to vector<256x32xf32>
    %228 = arith.mulf %223, %227 : vector<256x32xf32>
    %229 = vector.broadcast %209 : vector<1x32xf32> to vector<256x32xf32>
    %230 = arith.mulf %228, %229 : vector<256x32xf32>
    %231 = vector.broadcast %210 : vector<1x32xf32> to vector<256x32xf32>
    %232 = arith.addf %230, %231 : vector<256x32xf32>
    %cst_79 = arith.constant 0.000000e+00 : f32
    %233 = vector.broadcast %cst_79 : f32 to vector<256x32xf32>
    %234 = arith.maximumf %232, %233 : vector<256x32xf32>
    %235 = arith.truncf %234 : vector<256x32xf32> to vector<256x32xbf16>
    %c4_80 = arith.constant 4 : index
    %c0_81 = arith.constant 0 : index
    %c0_82 = arith.constant 0 : index
    %236 = vector.load %arg4[%c4_80, %c0_81, %c0_82] : memref<10x32x32xbf16, #tpu.memory_space<vmem>>, vector<1x32x32xbf16>
    %237 = vector.shape_cast %236 : vector<1x32x32xbf16> to vector<32x32xbf16>
    %cst_83 = arith.constant dense<0.000000e+00> : vector<256x32xf32>
    %238 = tpu.matmul %235, %237, %cst_83 {dimension_numbers = #tpu.dot_dimension_numbers<[1], [0], [0], [1], [0, 0, 1, 1], [], []>} : vector<256x32xbf16>, vector<32x32xbf16>, vector<256x32xf32> -> vector<256x32xf32>
    %239 = vector.extract_strided_slice %0 {offsets = [11, 0], sizes = [1, 32], strides = [1, 1]} : vector<23x32xf32> to vector<1x32xf32>
    %240 = vector.broadcast %239 : vector<1x32xf32> to vector<256x32xf32>
    %241 = arith.addf %238, %240 : vector<256x32xf32>
    %242 = arith.addf %241, %147 : vector<256x32xf32>
    %243 = arith.truncf %242 : vector<256x32xf32> to vector<256x32xbf16>
    %244 = tpu.iota {dimensions = array<i32: 0>} : vector<4x256xi32>
    %c0_84 = arith.constant 0 : index
    %c0_85 = arith.constant 0 : index
    %245 = vector.load %arg3[%c0_84, %c0_85] : memref<1x256xi32, #tpu.memory_space<vmem>>, vector<1x256xi32>
    %246 = vector.broadcast %245 : vector<1x256xi32> to vector<4x256xi32>
    %247 = arith.cmpi eq, %244, %246 : vector<4x256xi32>
    %248 = arith.extui %247 : vector<4x256xi1> to vector<4x256xi32>
    %249 = arith.sitofp %248 : vector<4x256xi32> to vector<4x256xf32>
    %250 = arith.truncf %249 : vector<4x256xf32> to vector<4x256xbf16>
    %cst_86 = arith.constant dense<0.000000e+00> : vector<4x32xf32>
    %251 = tpu.matmul %250, %243, %cst_86 {dimension_numbers = #tpu.dot_dimension_numbers<[1], [0], [0], [1], [0, 0, 1, 1], [], []>} : vector<4x256xbf16>, vector<256x32xbf16>, vector<4x32xf32> -> vector<4x32xf32>
    %252 = arith.extf %250 : vector<4x256xbf16> to vector<4x256xf32>
    %cst_87 = arith.constant dense<0.000000e+00> : vector<4xf32>
    %253 = vector.multi_reduction <add>, %252, %cst_87 [1] : vector<4x256xf32> to vector<4xf32>
    %254 = vector.shape_cast %253 : vector<4xf32> to vector<4x1xf32>
    %cst_88 = arith.constant 1.000000e+00 : f32
    %255 = vector.broadcast %cst_88 : f32 to vector<4x1xf32>
    %256 = arith.maximumf %254, %255 : vector<4x1xf32>
    %257 = vector.broadcast %256 : vector<4x1xf32> to vector<4x32xf32>
    %258 = arith.divf %251, %257 : vector<4x32xf32>
    %259 = arith.truncf %251 : vector<4x32xf32> to vector<4x32xbf16>
    %c6 = arith.constant 6 : index
    %c0_89 = arith.constant 0 : index
    %c0_90 = arith.constant 0 : index
    %260 = vector.load %arg4[%c6, %c0_89, %c0_90] : memref<10x32x32xbf16, #tpu.memory_space<vmem>>, vector<1x32x32xbf16>
    %261 = vector.shape_cast %260 : vector<1x32x32xbf16> to vector<32x32xbf16>
    %cst_91 = arith.constant dense<0.000000e+00> : vector<4x32xf32>
    %262 = tpu.matmul %259, %261, %cst_91 {dimension_numbers = #tpu.dot_dimension_numbers<[1], [0], [0], [1], [0, 0, 1, 1], [], []>} : vector<4x32xbf16>, vector<32x32xbf16>, vector<4x32xf32> -> vector<4x32xf32>
    %263 = arith.truncf %258 : vector<4x32xf32> to vector<4x32xbf16>
    %c7 = arith.constant 7 : index
    %c0_92 = arith.constant 0 : index
    %c0_93 = arith.constant 0 : index
    %264 = vector.load %arg4[%c7, %c0_92, %c0_93] : memref<10x32x32xbf16, #tpu.memory_space<vmem>>, vector<1x32x32xbf16>
    %265 = vector.shape_cast %264 : vector<1x32x32xbf16> to vector<32x32xbf16>
    %cst_94 = arith.constant dense<0.000000e+00> : vector<4x32xf32>
    %266 = tpu.matmul %263, %265, %cst_94 {dimension_numbers = #tpu.dot_dimension_numbers<[1], [0], [0], [1], [0, 0, 1, 1], [], []>} : vector<4x32xbf16>, vector<32x32xbf16>, vector<4x32xf32> -> vector<4x32xf32>
    %267 = arith.addf %262, %266 : vector<4x32xf32>
    %268 = vector.extract_strided_slice %0 {offsets = [16, 0], sizes = [1, 32], strides = [1, 1]} : vector<23x32xf32> to vector<1x32xf32>
    %269 = vector.broadcast %268 : vector<1x32xf32> to vector<4x32xf32>
    %270 = arith.addf %267, %269 : vector<4x32xf32>
    %271 = vector.extract_strided_slice %0 {offsets = [17, 0], sizes = [1, 32], strides = [1, 1]} : vector<23x32xf32> to vector<1x32xf32>
    %272 = vector.extract_strided_slice %0 {offsets = [18, 0], sizes = [1, 32], strides = [1, 1]} : vector<23x32xf32> to vector<1x32xf32>
    %cst_95 = arith.constant dense<0.000000e+00> : vector<4xf32>
    %273 = vector.multi_reduction <add>, %270, %cst_95 [1] : vector<4x32xf32> to vector<4xf32>
    %274 = vector.shape_cast %273 : vector<4xf32> to vector<4x1xf32>
    %cst_96 = arith.constant 3.200000e+01 : f32
    %275 = vector.broadcast %cst_96 : f32 to vector<4x1xf32>
    %276 = arith.divf %274, %275 : vector<4x1xf32>
    %277 = vector.broadcast %276 : vector<4x1xf32> to vector<4x32xf32>
    %278 = arith.subf %270, %277 : vector<4x32xf32>
    %279 = arith.mulf %278, %278 : vector<4x32xf32>
    %cst_97 = arith.constant dense<0.000000e+00> : vector<4xf32>
    %280 = vector.multi_reduction <add>, %279, %cst_97 [1] : vector<4x32xf32> to vector<4xf32>
    %281 = vector.shape_cast %280 : vector<4xf32> to vector<4x1xf32>
    %cst_98 = arith.constant 3.200000e+01 : f32
    %282 = vector.broadcast %cst_98 : f32 to vector<4x1xf32>
    %283 = arith.divf %281, %282 : vector<4x1xf32>
    %284 = vector.broadcast %276 : vector<4x1xf32> to vector<4x32xf32>
    %285 = arith.subf %270, %284 : vector<4x32xf32>
    %cst_99 = arith.constant 9.99999974E-6 : f32
    %286 = vector.broadcast %cst_99 : f32 to vector<4x1xf32>
    %287 = arith.addf %283, %286 : vector<4x1xf32>
    %288 = math.rsqrt %287 : vector<4x1xf32>
    %289 = vector.broadcast %288 : vector<4x1xf32> to vector<4x32xf32>
    %290 = arith.mulf %285, %289 : vector<4x32xf32>
    %291 = vector.broadcast %271 : vector<1x32xf32> to vector<4x32xf32>
    %292 = arith.mulf %290, %291 : vector<4x32xf32>
    %293 = vector.broadcast %272 : vector<1x32xf32> to vector<4x32xf32>
    %294 = arith.addf %292, %293 : vector<4x32xf32>
    %cst_100 = arith.constant 0.000000e+00 : f32
    %295 = vector.broadcast %cst_100 : f32 to vector<4x32xf32>
    %296 = arith.maximumf %294, %295 : vector<4x32xf32>
    %297 = arith.truncf %296 : vector<4x32xf32> to vector<4x32xbf16>
    %c8 = arith.constant 8 : index
    %c0_101 = arith.constant 0 : index
    %c0_102 = arith.constant 0 : index
    %298 = vector.load %arg4[%c8, %c0_101, %c0_102] : memref<10x32x32xbf16, #tpu.memory_space<vmem>>, vector<1x32x32xbf16>
    %299 = vector.shape_cast %298 : vector<1x32x32xbf16> to vector<32x32xbf16>
    %cst_103 = arith.constant dense<0.000000e+00> : vector<4x32xf32>
    %300 = tpu.matmul %297, %299, %cst_103 {dimension_numbers = #tpu.dot_dimension_numbers<[1], [0], [0], [1], [0, 0, 1, 1], [], []>} : vector<4x32xbf16>, vector<32x32xbf16>, vector<4x32xf32> -> vector<4x32xf32>
    %301 = vector.extract_strided_slice %0 {offsets = [19, 0], sizes = [1, 32], strides = [1, 1]} : vector<23x32xf32> to vector<1x32xf32>
    %302 = vector.broadcast %301 : vector<1x32xf32> to vector<4x32xf32>
    %303 = arith.addf %300, %302 : vector<4x32xf32>
    %304 = vector.extract_strided_slice %0 {offsets = [20, 0], sizes = [1, 32], strides = [1, 1]} : vector<23x32xf32> to vector<1x32xf32>
    %305 = vector.extract_strided_slice %0 {offsets = [21, 0], sizes = [1, 32], strides = [1, 1]} : vector<23x32xf32> to vector<1x32xf32>
    %cst_104 = arith.constant dense<0.000000e+00> : vector<4xf32>
    %306 = vector.multi_reduction <add>, %303, %cst_104 [1] : vector<4x32xf32> to vector<4xf32>
    %307 = vector.shape_cast %306 : vector<4xf32> to vector<4x1xf32>
    %cst_105 = arith.constant 3.200000e+01 : f32
    %308 = vector.broadcast %cst_105 : f32 to vector<4x1xf32>
    %309 = arith.divf %307, %308 : vector<4x1xf32>
    %310 = vector.broadcast %309 : vector<4x1xf32> to vector<4x32xf32>
    %311 = arith.subf %303, %310 : vector<4x32xf32>
    %312 = arith.mulf %311, %311 : vector<4x32xf32>
    %cst_106 = arith.constant dense<0.000000e+00> : vector<4xf32>
    %313 = vector.multi_reduction <add>, %312, %cst_106 [1] : vector<4x32xf32> to vector<4xf32>
    %314 = vector.shape_cast %313 : vector<4xf32> to vector<4x1xf32>
    %cst_107 = arith.constant 3.200000e+01 : f32
    %315 = vector.broadcast %cst_107 : f32 to vector<4x1xf32>
    %316 = arith.divf %314, %315 : vector<4x1xf32>
    %317 = vector.broadcast %309 : vector<4x1xf32> to vector<4x32xf32>
    %318 = arith.subf %303, %317 : vector<4x32xf32>
    %cst_108 = arith.constant 9.99999974E-6 : f32
    %319 = vector.broadcast %cst_108 : f32 to vector<4x1xf32>
    %320 = arith.addf %316, %319 : vector<4x1xf32>
    %321 = math.rsqrt %320 : vector<4x1xf32>
    %322 = vector.broadcast %321 : vector<4x1xf32> to vector<4x32xf32>
    %323 = arith.mulf %318, %322 : vector<4x32xf32>
    %324 = vector.broadcast %304 : vector<1x32xf32> to vector<4x32xf32>
    %325 = arith.mulf %323, %324 : vector<4x32xf32>
    %326 = vector.broadcast %305 : vector<1x32xf32> to vector<4x32xf32>
    %327 = arith.addf %325, %326 : vector<4x32xf32>
    %cst_109 = arith.constant 0.000000e+00 : f32
    %328 = vector.broadcast %cst_109 : f32 to vector<4x32xf32>
    %329 = arith.maximumf %327, %328 : vector<4x32xf32>
    %330 = arith.truncf %329 : vector<4x32xf32> to vector<4x32xbf16>
    %c9 = arith.constant 9 : index
    %c0_110 = arith.constant 0 : index
    %c0_111 = arith.constant 0 : index
    %331 = vector.load %arg4[%c9, %c0_110, %c0_111] : memref<10x32x32xbf16, #tpu.memory_space<vmem>>, vector<1x32x32xbf16>
    %332 = vector.shape_cast %331 : vector<1x32x32xbf16> to vector<32x32xbf16>
    %cst_112 = arith.constant dense<0.000000e+00> : vector<4x32xf32>
    %333 = tpu.matmul %330, %332, %cst_112 {dimension_numbers = #tpu.dot_dimension_numbers<[1], [0], [0], [1], [0, 0, 1, 1], [], []>} : vector<4x32xbf16>, vector<32x32xbf16>, vector<4x32xf32> -> vector<4x32xf32>
    %334 = vector.extract_strided_slice %0 {offsets = [22, 0], sizes = [1, 32], strides = [1, 1]} : vector<23x32xf32> to vector<1x32xf32>
    %335 = vector.broadcast %334 : vector<1x32xf32> to vector<4x32xf32>
    %336 = arith.addf %333, %335 : vector<4x32xf32>
    %337 = vector.extract_strided_slice %336 {offsets = [0, 0], sizes = [4, 1], strides = [1, 1]} : vector<4x32xf32> to vector<4x1xf32>
    %338 = arith.negf %337 : vector<4x1xf32>
    %339 = math.exp %338 : vector<4x1xf32>
    %cst_113 = arith.constant 1.000000e+00 : f32
    %340 = vector.broadcast %cst_113 : f32 to vector<4x1xf32>
    %341 = arith.addf %340, %339 : vector<4x1xf32>
    %342 = arith.divf %340, %341 : vector<4x1xf32>
    %c0_114 = arith.constant 0 : index
    %c0_115 = arith.constant 0 : index
    %343 = vector.load %arg8[%c0_114, %c0_115] : memref<4x1xf32, #tpu.memory_space<vmem>>, vector<4x1xf32>
    tpu.vector_store %arg8[%c0_114, %c0_115], %342 {strides = array<i32>} : memref<4x1xf32, #tpu.memory_space<vmem>>, vector<4x1xf32>,
    return
  }
}

</mosaic_0001>

<llo_original>
// kernel: discriminator_forward.1
$region0: #{discriminator_forward.1}
  #allocation0 [shape = 'u32[]', space=smem, size = 0x4, offset = 0x4, fixed_abs, tag = 'smem constant byte address 0x4 - core index']
  #allocation1 [shape = 'u32[144,128]{1,0:T(1,128)}', space=vmem, size = 0x12000, scoped, tag = 'internal scratch']
  %s0 = inlined_call_operand.vmem [shape: f32[256,4], index: 0, kind: input, shape index: {}]
  %s1 = inlined_call_operand.vmem [shape: s32[512,1], index: 1, kind: input, shape index: {}]
  %s2 = inlined_call_operand.vmem [shape: s32[512,1], index: 2, kind: input, shape index: {}]
  %s3 = inlined_call_operand.vmem [shape: s32[1,256], index: 3, kind: input, shape index: {}]
  %s4 = inlined_call_operand.vmem [shape: bf16[10,32,32], index: 4, kind: input, shape index: {}]
  %s5 = inlined_call_operand.vmem [shape: bf16[2,32,64], index: 5, kind: input, shape index: {}]
  %s6 = inlined_call_operand.vmem [shape: bf16[4,32], index: 6, kind: input, shape index: {}]
  %s7 = inlined_call_operand.vmem [shape: f32[23,32], index: 7, kind: input, shape index: {}]
  %s8 = inlined_call_operand.vmem [shape: f32[4,1], index: 8, kind: output, shape index: {}]
  %s9 = sld [smem:[#allocation0]]
  $region42: #{discriminator_forward.1} parent=0
    _
  %s11 = ssub.s32 1, %s9
  %s12 = scalar_select 0, %s11, %s9
  // Predicated region
  $region2: #{discriminator_forward.1} parent=0 // pred_check
    _
  $region3: #{discriminator_forward.1} parent=0 // pred_check_branch
    %14 = sbr.rel (0) target = $region5
  $region4: #{discriminator_forward.1} parent=0 // pred_region
    _
  $region5: #{discriminator_forward.1} parent=0 // pred_fallthru
    _
  // Predicated region
  $region6: #{discriminator_forward.1} parent=0 // pred_check
    _
  $region7: #{discriminator_forward.1} parent=0 // pred_check_branch
    %16 = sbr.rel (0) target = $region9
  $region8: #{discriminator_forward.1} parent=0 // pred_region
    _
  $region9: #{discriminator_forward.1} parent=0 // pred_fallthru
    _
  // Predicated region
  $region10: #{discriminator_forward.1} parent=0 // pred_check
    _
  $region11: #{discriminator_forward.1} parent=0 // pred_check_branch
    %18 = sbr.rel (0) target = $region13
  $region12: #{discriminator_forward.1} parent=0 // pred_region
    _
  $region13: #{discriminator_forward.1} parent=0 // pred_fallthru
    _
  // Predicated region
  $region14: #{discriminator_forward.1} parent=0 // pred_check
    _
  $region15: #{discriminator_forward.1} parent=0 // pred_check_branch
    %20 = sbr.rel (0) target = $region17
  $region16: #{discriminator_forward.1} parent=0 // pred_region
    _
  $region17: #{discriminator_forward.1} parent=0 // pred_fallthru
    _
  // Predicated region
  $region18: #{discriminator_forward.1} parent=0 // pred_check
    _
  $region19: #{discriminator_forward.1} parent=0 // pred_check_branch
    %22 = sbr.rel (0) target = $region21
  $region20: #{discriminator_forward.1} parent=0 // pred_region
    _
  $region21: #{discriminator_forward.1} parent=0 // pred_fallthru
    _
  // Predicated region
  $region22: #{discriminator_forward.1} parent=0 // pred_check
    _
  $region23: #{discriminator_forward.1} parent=0 // pred_check_branch
    %24 = sbr.rel (0) target = $region25
  $region24: #{discriminator_forward.1} parent=0 // pred_region
    _
  $region25: #{discriminator_forward.1} parent=0 // pred_fallthru
    _
  // Predicated region
  $region26: #{discriminator_forward.1} parent=0 // pred_check
    _
  $region27: #{discriminator_forward.1} parent=0 // pred_check_branch
    %26 = sbr.rel (0) target = $region29
  $region28: #{discriminator_forward.1} parent=0 // pred_region
    _
  $region29: #{discriminator_forward.1} parent=0 // pred_fallthru
    _
  // Predicated region
  $region30: #{discriminator_forward.1} parent=0 // pred_check
    _
  $region31: #{discriminator_forward.1} parent=0 // pred_check_branch
    %28 = sbr.rel (0) target = $region33
  $region32: #{discriminator_forward.1} parent=0 // pred_region
    _
  $region33: #{discriminator_forward.1} parent=0 // pred_fallthru
    _
  %v30 = vld [vmem:[%s7] sm:$0xff]
  %v31 = vld [vmem:[%s7 + $0x8] sm:$0xff]
  %v32 = vld [vmem:[%s7 + $0x10] sm:$0x7f]
  %v33 = vlaneseq
  %v34 = vand.u32 %v33, 127
  %v35 = vadd.s32 %v34, 128
  %v36 = vld [vmem:[%s1] sm:$0xff]
  %v37 = vld [vmem:[%s1 + $0x8] sm:$0xff]
  %v38 = vld [vmem:[%s1 + $0x10] sm:$0xff]
  %v39 = vld [vmem:[%s1 + $0x18] sm:$0xff]
  %v40 = vld [vmem:[%s1 + $0x20] sm:$0xff]
  %v41 = vld [vmem:[%s1 + $0x28] sm:$0xff]
  %v42 = vld [vmem:[%s1 + $0x30] sm:$0xff]
  %v43 = vld [vmem:[%s1 + $0x38] sm:$0xff]
  %v44 = vld [vmem:[%s1 + $0x40] sm:$0xff]
  %v45 = vld [vmem:[%s1 + $0x48] sm:$0xff]
  %v46 = vld [vmem:[%s1 + $0x50] sm:$0xff]
  %v47 = vld [vmem:[%s1 + $0x58] sm:$0xff]
  %v48 = vld [vmem:[%s1 + $0x60] sm:$0xff]
  %v49 = vld [vmem:[%s1 + $0x68] sm:$0xff]
  %v50 = vld [vmem:[%s1 + $0x70] sm:$0xff]
  %v51 = vld [vmem:[%s1 + $0x78] sm:$0xff]
  %v52 = vld [vmem:[%s1 + $0x80] sm:$0xff]
  %v53 = vld [vmem:[%s1 + $0x88] sm:$0xff]
  %v54 = vld [vmem:[%s1 + $0x90] sm:$0xff]
  %v55 = vld [vmem:[%s1 + $0x98] sm:$0xff]
  %v56 = vld [vmem:[%s1 + $0xa0] sm:$0xff]
  %v57 = vld [vmem:[%s1 + $0xa8] sm:$0xff]
  %v58 = vld [vmem:[%s1 + $0xb0] sm:$0xff]
  %v59 = vld [vmem:[%s1 + $0xb8] sm:$0xff]
  %v60 = vld [vmem:[%s1 + $0xc0] sm:$0xff]
  %v61 = vld [vmem:[%s1 + $0xc8] sm:$0xff]
  %v62 = vld [vmem:[%s1 + $0xd0] sm:$0xff]
  %v63 = vld [vmem:[%s1 + $0xd8] sm:$0xff]
  %v64 = vld [vmem:[%s1 + $0xe0] sm:$0xff]
  %v65 = vld [vmem:[%s1 + $0xe8] sm:$0xff]
  %v66 = vld [vmem:[%s1 + $0xf0] sm:$0xff]
  %v67 = vld [vmem:[%s1 + $0xf8] sm:$0xff]
  %v68 = vld [vmem:[%s1 + $0x100] sm:$0xff]
  %v69 = vld [vmem:[%s1 + $0x108] sm:$0xff]
  %v70 = vld [vmem:[%s1 + $0x110] sm:$0xff]
  %v71 = vld [vmem:[%s1 + $0x118] sm:$0xff]
  %v72 = vld [vmem:[%s1 + $0x120] sm:$0xff]
  %v73 = vld [vmem:[%s1 + $0x128] sm:$0xff]
  %v74 = vld [vmem:[%s1 + $0x130] sm:$0xff]
  %v75 = vld [vmem:[%s1 + $0x138] sm:$0xff]
  %v76 = vld [vmem:[%s1 + $0x140] sm:$0xff]
  %v77 = vld [vmem:[%s1 + $0x148] sm:$0xff]
  %v78 = vld [vmem:[%s1 + $0x150] sm:$0xff]
  %v79 = vld [vmem:[%s1 + $0x158] sm:$0xff]
  %v80 = vld [vmem:[%s1 + $0x160] sm:$0xff]
  %v81 = vld [vmem:[%s1 + $0x168] sm:$0xff]
  %v82 = vld [vmem:[%s1 + $0x170] sm:$0xff]
  %v83 = vld [vmem:[%s1 + $0x178] sm:$0xff]
  %v84 = vld [vmem:[%s1 + $0x180] sm:$0xff]
  %v85 = vld [vmem:[%s1 + $0x188] sm:$0xff]
  %v86 = vld [vmem:[%s1 + $0x190] sm:$0xff]
  %v87 = vld [vmem:[%s1 + $0x198] sm:$0xff]
  %v88 = vld [vmem:[%s1 + $0x1a0] sm:$0xff]
  %v89 = vld [vmem:[%s1 + $0x1a8] sm:$0xff]
  %v90 = vld [vmem:[%s1 + $0x1b0] sm:$0xff]
  %v91 = vld [vmem:[%s1 + $0x1b8] sm:$0xff]
  %v92 = vld [vmem:[%s1 + $0x1c0] sm:$0xff]
  %v93 = vld [vmem:[%s1 + $0x1c8] sm:$0xff]
  %v94 = vld [vmem:[%s1 + $0x1d0] sm:$0xff]
  %v95 = vld [vmem:[%s1 + $0x1d8] sm:$0xff]
  %v96 = vld [vmem:[%s1 + $0x1e0] sm:$0xff]
  %v97 = vld [vmem:[%s1 + $0x1e8] sm:$0xff]
  %v98 = vld [vmem:[%s1 + $0x1f0] sm:$0xff]
  %v99 = vld [vmem:[%s1 + $0x1f8] sm:$0xff]
  %100 = vset.pattern.permute.xlu0 0
  %101 = vperm.xlu0 %100, %v36
  %v102 = vpop.permute.xlu0 %101
  %103 = vset.pattern.permute.xlu0 0
  %104 = vperm.xlu0 %103, %v37
  %v105 = vpop.permute.xlu0 %104
  %106 = vset.pattern.permute.xlu0 0
  %107 = vperm.xlu0 %106, %v38
  %v108 = vpop.permute.xlu0 %107
  %109 = vset.pattern.permute.xlu0 0
  %110 = vperm.xlu0 %109, %v39
  %v111 = vpop.permute.xlu0 %110
  %112 = vset.pattern.permute.xlu0 0
  %113 = vperm.xlu0 %112, %v40
  %v114 = vpop.permute.xlu0 %113
  %115 = vset.pattern.permute.xlu0 0
  %116 = vperm.xlu0 %115, %v41
  %v117 = vpop.permute.xlu0 %116
  %118 = vset.pattern.permute.xlu0 0
  %119 = vperm.xlu0 %118, %v42
  %v120 = vpop.permute.xlu0 %119
  %121 = vset.pattern.permute.xlu0 0
  %122 = vperm.xlu0 %121, %v43
  %v123 = vpop.permute.xlu0 %122
  %124 = vset.pattern.permute.xlu0 0
  %125 = vperm.xlu0 %124, %v44
  %v126 = vpop.permute.xlu0 %125
  %127 = vset.pattern.permute.xlu0 0
  %128 = vperm.xlu0 %127, %v45
  %v129 = vpop.permute.xlu0 %128
  %130 = vset.pattern.permute.xlu0 0
  %131 = vperm.xlu0 %130, %v46
  %v132 = vpop.permute.xlu0 %131
  %133 = vset.pattern.permute.xlu0 0
  %134 = vperm.xlu0 %133, %v47
  %v135 = vpop.permute.xlu0 %134
  %136 = vset.pattern.permute.xlu0 0
  %137 = vperm.xlu0 %136, %v48
  %v138 = vpop.permute.xlu0 %137
  %139 = vset.pattern.permute.xlu0 0
  %140 = vperm.xlu0 %139, %v49
  %v141 = vpop.permute.xlu0 %140
  %142 = vset.pattern.permute.xlu0 0
  %143 = vperm.xlu0 %142, %v50
  %v144 = vpop.permute.xlu0 %143
  %145 = vset.pattern.permute.xlu0 0
  %146 = vperm.xlu0 %145, %v51
  %v147 = vpop.permute.xlu0 %146
  %148 = vset.pattern.permute.xlu0 0
  %149 = vperm.xlu0 %148, %v52
  %v150 = vpop.permute.xlu0 %149
  %151 = vset.pattern.permute.xlu0 0
  %152 = vperm.xlu0 %151, %v53
  %v153 = vpop.permute.xlu0 %152
  %154 = vset.pattern.permute.xlu0 0
  %155 = vperm.xlu0 %154, %v54
  %v156 = vpop.permute.xlu0 %155
  %157 = vset.pattern.permute.xlu0 0
  %158 = vperm.xlu0 %157, %v55
  %v159 = vpop.permute.xlu0 %158
  %160 = vset.pattern.permute.xlu0 0
  %161 = vperm.xlu0 %160, %v56
  %v162 = vpop.permute.xlu0 %161
  %163 = vset.pattern.permute.xlu0 0
  %164 = vperm.xlu0 %163, %v57
  %v165 = vpop.permute.xlu0 %164
  %166 = vset.pattern.permute.xlu0 0
  %167 = vperm.xlu0 %166, %v58
  %v168 = vpop.permute.xlu0 %167
  %169 = vset.pattern.permute.xlu0 0
  %170 = vperm.xlu0 %169, %v59
  %v171 = vpop.permute.xlu0 %170
  %172 = vset.pattern.permute.xlu0 0
  %173 = vperm.xlu0 %172, %v60
  %v174 = vpop.permute.xlu0 %173
  %175 = vset.pattern.permute.xlu0 0
  %176 = vperm.xlu0 %175, %v61
  %v177 = vpop.permute.xlu0 %176
  %178 = vset.pattern.permute.xlu0 0
  %179 = vperm.xlu0 %178, %v62
  %v180 = vpop.permute.xlu0 %179
  %181 = vset.pattern.permute.xlu0 0
  %182 = vperm.xlu0 %181, %v63
  %v183 = vpop.permute.xlu0 %182
  %184 = vset.pattern.permute.xlu0 0
  %185 = vperm.xlu0 %184, %v64
  %v186 = vpop.permute.xlu0 %185
  %187 = vset.pattern.permute.xlu0 0
  %188 = vperm.xlu0 %187, %v65
  %v189 = vpop.permute.xlu0 %188
  %190 = vset.pattern.permute.xlu0 0
  %191 = vperm.xlu0 %190, %v66
  %v192 = vpop.permute.xlu0 %191
  %193 = vset.pattern.permute.xlu0 0
  %194 = vperm.xlu0 %193, %v67
  %v195 = vpop.permute.xlu0 %194
  %196 = vset.pattern.permute.xlu0 0
  %197 = vperm.xlu0 %196, %v68
  %v198 = vpop.permute.xlu0 %197
  %199 = vset.pattern.permute.xlu0 0
  %200 = vperm.xlu0 %199, %v69
  %v201 = vpop.permute.xlu0 %200
  %202 = vset.pattern.permute.xlu0 0
  %203 = vperm.xlu0 %202, %v70
  %v204 = vpop.permute.xlu0 %203
  %205 = vset.pattern.permute.xlu0 0
  %206 = vperm.xlu0 %205, %v71
  %v207 = vpop.permute.xlu0 %206
  %208 = vset.pattern.permute.xlu0 0
  %209 = vperm.xlu0 %208, %v72
  %v210 = vpop.permute.xlu0 %209
  %211 = vset.pattern.permute.xlu0 0
  %212 = vperm.xlu0 %211, %v73
  %v213 = vpop.permute.xlu0 %212
  %214 = vset.pattern.permute.xlu0 0
  %215 = vperm.xlu0 %214, %v74
  %v216 = vpop.permute.xlu0 %215
  %217 = vset.pattern.permute.xlu0 0
  %218 = vperm.xlu0 %217, %v75
  %v219 = vpop.permute.xlu0 %218
  %220 = vset.pattern.permute.xlu0 0
  %221 = vperm.xlu0 %220, %v76
  %v222 = vpop.permute.xlu0 %221
  %223 = vset.pattern.permute.xlu0 0
  %224 = vperm.xlu0 %223, %v77
  %v225 = vpop.permute.xlu0 %224
  %226 = vset.pattern.permute.xlu0 0
  %227 = vperm.xlu0 %226, %v78
  %v228 = vpop.permute.xlu0 %227
  %229 = vset.pattern.permute.xlu0 0
  %230 = vperm.xlu0 %229, %v79
  %v231 = vpop.permute.xlu0 %230
  %232 = vset.pattern.permute.xlu0 0
  %233 = vperm.xlu0 %232, %v80
  %v234 = vpop.permute.xlu0 %233
  %235 = vset.pattern.permute.xlu0 0
  %236 = vperm.xlu0 %235, %v81
  %v237 = vpop.permute.xlu0 %236
  %238 = vset.pattern.permute.xlu0 0
  %239 = vperm.xlu0 %238, %v82
  %v240 = vpop.permute.xlu0 %239
  %241 = vset.pattern.permute.xlu0 0
  %242 = vperm.xlu0 %241, %v83
  %v243 = vpop.permute.xlu0 %242
  %244 = vset.pattern.permute.xlu0 0
  %245 = vperm.xlu0 %244, %v84
  %v246 = vpop.permute.xlu0 %245
  %247 = vset.pattern.permute.xlu0 0
  %248 = vperm.xlu0 %247, %v85
  %v249 = vpop.permute.xlu0 %248
  %250 = vset.pattern.permute.xlu0 0
  %251 = vperm.xlu0 %250, %v86
  %v252 = vpop.permute.xlu0 %251
  %253 = vset.pattern.permute.xlu0 0
  %254 = vperm.xlu0 %253, %v87
  %v255 = vpop.permute.xlu0 %254
  %256 = vset.pattern.permute.xlu0 0
  %257 = vperm.xlu0 %256, %v88
  %v258 = vpop.permute.xlu0 %257
  %259 = vset.pattern.permute.xlu0 0
  %260 = vperm.xlu0 %259, %v89
  %v261 = vpop.permute.xlu0 %260
  %262 = vset.pattern.permute.xlu0 0
  %263 = vperm.xlu0 %262, %v90
  %v264 = vpop.permute.xlu0 %263
  %265 = vset.pattern.permute.xlu0 0
  %266 = vperm.xlu0 %265, %v91
  %v267 = vpop.permute.xlu0 %266
  %268 = vset.pattern.permute.xlu0 0
  %269 = vperm.xlu0 %268, %v92
  %v270 = vpop.permute.xlu0 %269
  %271 = vset.pattern.permute.xlu0 0
  %272 = vperm.xlu0 %271, %v93
  %v273 = vpop.permute.xlu0 %272
  %274 = vset.pattern.permute.xlu0 0
  %275 = vperm.xlu0 %274, %v94
  %v276 = vpop.permute.xlu0 %275
  %277 = vset.pattern.permute.xlu0 0
  %278 = vperm.xlu0 %277, %v95
  %v279 = vpop.permute.xlu0 %278
  %280 = vset.pattern.permute.xlu0 0
  %281 = vperm.xlu0 %280, %v96
  %v282 = vpop.permute.xlu0 %281
  %283 = vset.pattern.permute.xlu0 0
  %284 = vperm.xlu0 %283, %v97
  %v285 = vpop.permute.xlu0 %284
  %286 = vset.pattern.permute.xlu0 0
  %287 = vperm.xlu0 %286, %v98
  %v288 = vpop.permute.xlu0 %287
  %289 = vset.pattern.permute.xlu0 0
  %290 = vperm.xlu0 %289, %v99
  %v291 = vpop.permute.xlu0 %290
  %vm292 = vcmp.eq.s32.totalorder %v34, %v102
  %vm293 = vcmp.eq.s32.totalorder %v35, %v102
  %vm294 = vcmp.eq.s32.totalorder %v34, %v105
  %vm295 = vcmp.eq.s32.totalorder %v35, %v105
  %vm296 = vcmp.eq.s32.totalorder %v34, %v108
  %vm297 = vcmp.eq.s32.totalorder %v35, %v108
  %vm298 = vcmp.eq.s32.totalorder %v34, %v111
  %vm299 = vcmp.eq.s32.totalorder %v35, %v111
  %vm300 = vcmp.eq.s32.totalorder %v34, %v114
  %vm301 = vcmp.eq.s32.totalorder %v35, %v114
  %vm302 = vcmp.eq.s32.totalorder %v34, %v117
  %vm303 = vcmp.eq.s32.totalorder %v35, %v117
  %vm304 = vcmp.eq.s32.totalorder %v34, %v120
  %vm305 = vcmp.eq.s32.totalorder %v35, %v120
  %vm306 = vcmp.eq.s32.totalorder %v34, %v123
  %vm307 = vcmp.eq.s32.totalorder %v35, %v123
  %vm308 = vcmp.eq.s32.totalorder %v34, %v126
  %vm309 = vcmp.eq.s32.totalorder %v35, %v126
  %vm310 = vcmp.eq.s32.totalorder %v34, %v129
  %vm311 = vcmp.eq.s32.totalorder %v35, %v129
  %vm312 = vcmp.eq.s32.totalorder %v34, %v132
  %vm313 = vcmp.eq.s32.totalorder %v35, %v132
  %vm314 = vcmp.eq.s32.totalorder %v34, %v135
  %vm315 = vcmp.eq.s32.totalorder %v35, %v135
  %vm316 = vcmp.eq.s32.totalorder %v34, %v138
  %vm317 = vcmp.eq.s32.totalorder %v35, %v138
  %vm318 = vcmp.eq.s32.totalorder %v34, %v141
  %vm319 = vcmp.eq.s32.totalorder %v35, %v141
  %vm320 = vcmp.eq.s32.totalorder %v34, %v144
  %vm321 = vcmp.eq.s32.totalorder %v35, %v144
  %vm322 = vcmp.eq.s32.totalorder %v34, %v147
  %vm323 = vcmp.eq.s32.totalorder %v35, %v147
  %vm324 = vcmp.eq.s32.totalorder %v34, %v150
  %vm325 = vcmp.eq.s32.totalorder %v35, %v150
  %vm326 = vcmp.eq.s32.totalorder %v34, %v153
  %vm327 = vcmp.eq.s32.totalorder %v35, %v153
  %vm328 = vcmp.eq.s32.totalorder %v34, %v156
  %vm329 = vcmp.eq.s32.totalorder %v35, %v156
  %vm330 = vcmp.eq.s32.totalorder %v34, %v159
  %vm331 = vcmp.eq.s32.totalorder %v35, %v159
  %vm332 = vcmp.eq.s32.totalorder %v34, %v162
  %vm333 = vcmp.eq.s32.totalorder %v35, %v162
  %vm334 = vcmp.eq.s32.totalorder %v34, %v165
  %vm335 = vcmp.eq.s32.totalorder %v35, %v165
  %vm336 = vcmp.eq.s32.totalorder %v34, %v168
  %vm337 = vcmp.eq.s32.totalorder %v35, %v168
  %vm338 = vcmp.eq.s32.totalorder %v34, %v171
  %vm339 = vcmp.eq.s32.totalorder %v35, %v171
  %vm340 = vcmp.eq.s32.totalorder %v34, %v174
  %vm341 = vcmp.eq.s32.totalorder %v35, %v174
  %vm342 = vcmp.eq.s32.totalorder %v34, %v177
  %vm343 = vcmp.eq.s32.totalorder %v35, %v177
  %vm344 = vcmp.eq.s32.totalorder %v34, %v180
  %vm345 = vcmp.eq.s32.totalorder %v35, %v180
  %vm346 = vcmp.eq.s32.totalorder %v34, %v183
  %vm347 = vcmp.eq.s32.totalorder %v35, %v183
  %vm348 = vcmp.eq.s32.totalorder %v34, %v186
  %vm349 = vcmp.eq.s32.totalorder %v35, %v186
  %vm350 = vcmp.eq.s32.totalorder %v34, %v189
  %vm351 = vcmp.eq.s32.totalorder %v35, %v189
  %vm352 = vcmp.eq.s32.totalorder %v34, %v192
  %vm353 = vcmp.eq.s32.totalorder %v35, %v192
  %vm354 = vcmp.eq.s32.totalorder %v34, %v195
  %vm355 = vcmp.eq.s32.totalorder %v35, %v195
  %vm356 = vcmp.eq.s32.totalorder %v34, %v198
  %vm357 = vcmp.eq.s32.totalorder %v35, %v198
  %vm358 = vcmp.eq.s32.totalorder %v34, %v201
  %vm359 = vcmp.eq.s32.totalorder %v35, %v201
  %vm360 = vcmp.eq.s32.totalorder %v34, %v204
  %vm361 = vcmp.eq.s32.totalorder %v35, %v204
  %vm362 = vcmp.eq.s32.totalorder %v34, %v207
  %vm363 = vcmp.eq.s32.totalorder %v35, %v207
  %vm364 = vcmp.eq.s32.totalorder %v34, %v210
  %vm365 = vcmp.eq.s32.totalorder %v35, %v210
  %vm366 = vcmp.eq.s32.totalorder %v34, %v213
  %vm367 = vcmp.eq.s32.totalorder %v35, %v213
  %vm368 = vcmp.eq.s32.totalorder %v34, %v216
  %vm369 = vcmp.eq.s32.totalorder %v35, %v216
  %vm370 = vcmp.eq.s32.totalorder %v34, %v219
  %vm371 = vcmp.eq.s32.totalorder %v35, %v219
  %vm372 = vcmp.eq.s32.totalorder %v34, %v222
  %vm373 = vcmp.eq.s32.totalorder %v35, %v222
  %vm374 = vcmp.eq.s32.totalorder %v34, %v225
  %vm375 = vcmp.eq.s32.totalorder %v35, %v225
  %vm376 = vcmp.eq.s32.totalorder %v34, %v228
  %vm377 = vcmp.eq.s32.totalorder %v35, %v228
  %vm378 = vcmp.eq.s32.totalorder %v34, %v231
  %vm379 = vcmp.eq.s32.totalorder %v35, %v231
  %vm380 = vcmp.eq.s32.totalorder %v34, %v234
  %vm381 = vcmp.eq.s32.totalorder %v35, %v234
  %vm382 = vcmp.eq.s32.totalorder %v34, %v237
  %vm383 = vcmp.eq.s32.totalorder %v35, %v237
  %vm384 = vcmp.eq.s32.totalorder %v34, %v240
  %vm385 = vcmp.eq.s32.totalorder %v35, %v240
  %vm386 = vcmp.eq.s32.totalorder %v34, %v243
  %vm387 = vcmp.eq.s32.totalorder %v35, %v243
  %vm388 = vcmp.eq.s32.totalorder %v34, %v246
  %vm389 = vcmp.eq.s32.totalorder %v35, %v246
  %vm390 = vcmp.eq.s32.totalorder %v34, %v249
  %vm391 = vcmp.eq.s32.totalorder %v35, %v249
  %vm392 = vcmp.eq.s32.totalorder %v34, %v252
  %vm393 = vcmp.eq.s32.totalorder %v35, %v252
  %vm394 = vcmp.eq.s32.totalorder %v34, %v255
  %vm395 = vcmp.eq.s32.totalorder %v35, %v255
  %vm396 = vcmp.eq.s32.totalorder %v34, %v258
  %vm397 = vcmp.eq.s32.totalorder %v35, %v258
  %vm398 = vcmp.eq.s32.totalorder %v34, %v261
  %vm399 = vcmp.eq.s32.totalorder %v35, %v261
  %vm400 = vcmp.eq.s32.totalorder %v34, %v264
  %vm401 = vcmp.eq.s32.totalorder %v35, %v264
  %vm402 = vcmp.eq.s32.totalorder %v34, %v267
  %vm403 = vcmp.eq.s32.totalorder %v35, %v267
  %vm404 = vcmp.eq.s32.totalorder %v34, %v270
  %vm405 = vcmp.eq.s32.totalorder %v35, %v270
  %vm406 = vcmp.eq.s32.totalorder %v34, %v273
  %vm407 = vcmp.eq.s32.totalorder %v35, %v273
  %vm408 = vcmp.eq.s32.totalorder %v34, %v276
  %vm409 = vcmp.eq.s32.totalorder %v35, %v276
  %vm410 = vcmp.eq.s32.totalorder %v34, %v279
  %vm411 = vcmp.eq.s32.totalorder %v35, %v279
  %vm412 = vcmp.eq.s32.totalorder %v34, %v282
  %vm413 = vcmp.eq.s32.totalorder %v35, %v282
  %vm414 = vcmp.eq.s32.totalorder %v34, %v285
  %vm415 = vcmp.eq.s32.totalorder %v35, %v285
  %vm416 = vcmp.eq.s32.totalorder %v34, %v288
  %vm417 = vcmp.eq.s32.totalorder %v35, %v288
  %vm418 = vcmp.eq.s32.totalorder %v34, %v291
  %vm419 = vcmp.eq.s32.totalorder %v35, %v291
  %v420 = vsel %vm292, 1, 0
  %v421 = vsel %vm293, 1, 0
  %v422 = vsel %vm294, 1, 0
  %v423 = vsel %vm295, 1, 0
  %v424 = vsel %vm296, 1, 0
  %v425 = vsel %vm297, 1, 0
  %v426 = vsel %vm298, 1, 0
  %v427 = vsel %vm299, 1, 0
  %v428 = vsel %vm300, 1, 0
  %v429 = vsel %vm301, 1, 0
  %v430 = vsel %vm302, 1, 0
  %v431 = vsel %vm303, 1, 0
  %v432 = vsel %vm304, 1, 0
  %v433 = vsel %vm305, 1, 0
  %v434 = vsel %vm306, 1, 0
  %v435 = vsel %vm307, 1, 0
  %v436 = vsel %vm308, 1, 0
  %v437 = vsel %vm309, 1, 0
  %v438 = vsel %vm310, 1, 0
  %v439 = vsel %vm311, 1, 0
  %v440 = vsel %vm312, 1, 0
  %v441 = vsel %vm313, 1, 0
  %v442 = vsel %vm314, 1, 0
  %v443 = vsel %vm315, 1, 0
  %v444 = vsel %vm316, 1, 0
  %v445 = vsel %vm317, 1, 0
  %v446 = vsel %vm318, 1, 0
  %v447 = vsel %vm319, 1, 0
  %v448 = vsel %vm320, 1, 0
  %v449 = vsel %vm321, 1, 0
  %v450 = vsel %vm322, 1, 0
  %v451 = vsel %vm323, 1, 0
  %v452 = vsel %vm324, 1, 0
  %v453 = vsel %vm325, 1, 0
  %v454 = vsel %vm326, 1, 0
  %v455 = vsel %vm327, 1, 0
  %v456 = vsel %vm328, 1, 0
  %v457 = vsel %vm329, 1, 0
  %v458 = vsel %vm330, 1, 0
  %v459 = vsel %vm331, 1, 0
  %v460 = vsel %vm332, 1, 0
  %v461 = vsel %vm333, 1, 0
  %v462 = vsel %vm334, 1, 0
  %v463 = vsel %vm335, 1, 0
  %v464 = vsel %vm336, 1, 0
  %v465 = vsel %vm337, 1, 0
  %v466 = vsel %vm338, 1, 0
  %v467 = vsel %vm339, 1, 0
  %v468 = vsel %vm340, 1, 0
  %v469 = vsel %vm341, 1, 0
  %v470 = vsel %vm342, 1, 0
  %v471 = vsel %vm343, 1, 0
  %v472 = vsel %vm344, 1, 0
  %v473 = vsel %vm345, 1, 0
  %v474 = vsel %vm346, 1, 0
  %v475 = vsel %vm347, 1, 0
  %v476 = vsel %vm348, 1, 0
  %v477 = vsel %vm349, 1, 0
  %v478 = vsel %vm350, 1, 0
  %v479 = vsel %vm351, 1, 0
  %v480 = vsel %vm352, 1, 0
  %v481 = vsel %vm353, 1, 0
  %v482 = vsel %vm354, 1, 0
  %v483 = vsel %vm355, 1, 0
  %v484 = vsel %vm356, 1, 0
  %v485 = vsel %vm357, 1, 0
  %v486 = vsel %vm358, 1, 0
  %v487 = vsel %vm359, 1, 0
  %v488 = vsel %vm360, 1, 0
  %v489 = vsel %vm361, 1, 0
  %v490 = vsel %vm362, 1, 0
  %v491 = vsel %vm363, 1, 0
  %v492 = vsel %vm364, 1, 0
  %v493 = vsel %vm365, 1, 0
  %v494 = vsel %vm366, 1, 0
  %v495 = vsel %vm367, 1, 0
  %v496 = vsel %vm368, 1, 0
  %v497 = vsel %vm369, 1, 0
  %v498 = vsel %vm370, 1, 0
  %v499 = vsel %vm371, 1, 0
  %v500 = vsel %vm372, 1, 0
  %v501 = vsel %vm373, 1, 0
  %v502 = vsel %vm374, 1, 0
  %v503 = vsel %vm375, 1, 0
  %v504 = vsel %vm376, 1, 0
  %v505 = vsel %vm377, 1, 0
  %v506 = vsel %vm378, 1, 0
  %v507 = vsel %vm379, 1, 0
  %v508 = vsel %vm380, 1, 0
  %v509 = vsel %vm381, 1, 0
  %v510 = vsel %vm382, 1, 0
  %v511 = vsel %vm383, 1, 0
  %v512 = vsel %vm384, 1, 0
  %v513 = vsel %vm385, 1, 0
  %v514 = vsel %vm386, 1, 0
  %v515 = vsel %vm387, 1, 0
  %v516 = vsel %vm388, 1, 0
  %v517 = vsel %vm389, 1, 0
  %v518 = vsel %vm390, 1, 0
  %v519 = vsel %vm391, 1, 0
  %v520 = vsel %vm392, 1, 0
  %v521 = vsel %vm393, 1, 0
  %v522 = vsel %vm394, 1, 0
  %v523 = vsel %vm395, 1, 0
  %v524 = vsel %vm396, 1, 0
  %v525 = vsel %vm397, 1, 0
  %v526 = vsel %vm398, 1, 0
  %v527 = vsel %vm399, 1, 0
  %v528 = vsel %vm400, 1, 0
  %v529 = vsel %vm401, 1, 0
  %v530 = vsel %vm402, 1, 0
  %v531 = vsel %vm403, 1, 0
  %v532 = vsel %vm404, 1, 0
  %v533 = vsel %vm405, 1, 0
  %v534 = vsel %vm406, 1, 0
  %v535 = vsel %vm407, 1, 0
  %v536 = vsel %vm408, 1, 0
  %v537 = vsel %vm409, 1, 0
  %v538 = vsel %vm410, 1, 0
  %v539 = vsel %vm411, 1, 0
  %v540 = vsel %vm412, 1, 0
  %v541 = vsel %vm413, 1, 0
  %v542 = vsel %vm414, 1, 0
  %v543 = vsel %vm415, 1, 0
  %v544 = vsel %vm416, 1, 0
  %v545 = vsel %vm417, 1, 0
  %v546 = vsel %vm418, 1, 0
  %v547 = vsel %vm419, 1, 0
  %v548 = vcvt.s32.f32 %v420
  %v549 = vcvt.s32.f32 %v421
  %v550 = vcvt.s32.f32 %v422
  %v551 = vcvt.s32.f32 %v423
  %v552 = vcvt.s32.f32 %v424
  %v553 = vcvt.s32.f32 %v425
  %v554 = vcvt.s32.f32 %v426
  %v555 = vcvt.s32.f32 %v427
  %v556 = vcvt.s32.f32 %v428
  %v557 = vcvt.s32.f32 %v429
  %v558 = vcvt.s32.f32 %v430
  %v559 = vcvt.s32.f32 %v431
  %v560 = vcvt.s32.f32 %v432
  %v561 = vcvt.s32.f32 %v433
  %v562 = vcvt.s32.f32 %v434
  %v563 = vcvt.s32.f32 %v435
  %v564 = vcvt.s32.f32 %v436
  %v565 = vcvt.s32.f32 %v437
  %v566 = vcvt.s32.f32 %v438
  %v567 = vcvt.s32.f32 %v439
  %v568 = vcvt.s32.f32 %v440
  %v569 = vcvt.s32.f32 %v441
  %v570 = vcvt.s32.f32 %v442
  %v571 = vcvt.s32.f32 %v443
  %v572 = vcvt.s32.f32 %v444
  %v573 = vcvt.s32.f32 %v445
  %v574 = vcvt.s32.f32 %v446
  %v575 = vcvt.s32.f32 %v447
  %v576 = vcvt.s32.f32 %v448
  %v577 = vcvt.s32.f32 %v449
  %v578 = vcvt.s32.f32 %v450
  %v579 = vcvt.s32.f32 %v451
  %v580 = vcvt.s32.f32 %v452
  %v581 = vcvt.s32.f32 %v453
  %v582 = vcvt.s32.f32 %v454
  %v583 = vcvt.s32.f32 %v455
  %v584 = vcvt.s32.f32 %v456
  %v585 = vcvt.s32.f32 %v457
  %v586 = vcvt.s32.f32 %v458
  %v587 = vcvt.s32.f32 %v459
  %v588 = vcvt.s32.f32 %v460
  %v589 = vcvt.s32.f32 %v461
  %v590 = vcvt.s32.f32 %v462
  %v591 = vcvt.s32.f32 %v463
  %v592 = vcvt.s32.f32 %v464
  %v593 = vcvt.s32.f32 %v465
  %v594 = vcvt.s32.f32 %v466
  %v595 = vcvt.s32.f32 %v467
  %v596 = vcvt.s32.f32 %v468
  %v597 = vcvt.s32.f32 %v469
  %v598 = vcvt.s32.f32 %v470
  %v599 = vcvt.s32.f32 %v471
  %v600 = vcvt.s32.f32 %v472
  %v601 = vcvt.s32.f32 %v473
  %v602 = vcvt.s32.f32 %v474
  %v603 = vcvt.s32.f32 %v475
  %v604 = vcvt.s32.f32 %v476
  %v605 = vcvt.s32.f32 %v477
  %v606 = vcvt.s32.f32 %v478
  %v607 = vcvt.s32.f32 %v479
  %v608 = vcvt.s32.f32 %v480
  %v609 = vcvt.s32.f32 %v481
  %v610 = vcvt.s32.f32 %v482
  %v611 = vcvt.s32.f32 %v483
  %v612 = vcvt.s32.f32 %v484
  %v613 = vcvt.s32.f32 %v485
  %v614 = vcvt.s32.f32 %v486
  %v615 = vcvt.s32.f32 %v487
  %v616 = vcvt.s32.f32 %v488
  %v617 = vcvt.s32.f32 %v489
  %v618 = vcvt.s32.f32 %v490
  %v619 = vcvt.s32.f32 %v491
  %v620 = vcvt.s32.f32 %v492
  %v621 = vcvt.s32.f32 %v493
  %v622 = vcvt.s32.f32 %v494
  %v623 = vcvt.s32.f32 %v495
  %v624 = vcvt.s32.f32 %v496
  %v625 = vcvt.s32.f32 %v497
  %v626 = vcvt.s32.f32 %v498
  %v627 = vcvt.s32.f32 %v499
  %v628 = vcvt.s32.f32 %v500
  %v629 = vcvt.s32.f32 %v501
  %v630 = vcvt.s32.f32 %v502
  %v631 = vcvt.s32.f32 %v503
  %v632 = vcvt.s32.f32 %v504
  %v633 = vcvt.s32.f32 %v505
  %v634 = vcvt.s32.f32 %v506
  %v635 = vcvt.s32.f32 %v507
  %v636 = vcvt.s32.f32 %v508
  %v637 = vcvt.s32.f32 %v509
  %v638 = vcvt.s32.f32 %v510
  %v639 = vcvt.s32.f32 %v511
  %v640 = vcvt.s32.f32 %v512
  %v641 = vcvt.s32.f32 %v513
  %v642 = vcvt.s32.f32 %v514
  %v643 = vcvt.s32.f32 %v515
  %v644 = vcvt.s32.f32 %v516
  %v645 = vcvt.s32.f32 %v517
  %v646 = vcvt.s32.f32 %v518
  %v647 = vcvt.s32.f32 %v519
  %v648 = vcvt.s32.f32 %v520
  %v649 = vcvt.s32.f32 %v521
  %v650 = vcvt.s32.f32 %v522
  %v651 = vcvt.s32.f32 %v523
  %v652 = vcvt.s32.f32 %v524
  %v653 = vcvt.s32.f32 %v525
  %v654 = vcvt.s32.f32 %v526
  %v655 = vcvt.s32.f32 %v527
  %v656 = vcvt.s32.f32 %v528
  %v657 = vcvt.s32.f32 %v529
  %v658 = vcvt.s32.f32 %v530
  %v659 = vcvt.s32.f32 %v531
  %v660 = vcvt.s32.f32 %v532
  %v661 = vcvt.s32.f32 %v533
  %v662 = vcvt.s32.f32 %v534
  %v663 = vcvt.s32.f32 %v535
  %v664 = vcvt.s32.f32 %v536
  %v665 = vcvt.s32.f32 %v537
  %v666 = vcvt.s32.f32 %v538
  %v667 = vcvt.s32.f32 %v539
  %v668 = vcvt.s32.f32 %v540
  %v669 = vcvt.s32.f32 %v541
  %v670 = vcvt.s32.f32 %v542
  %v671 = vcvt.s32.f32 %v543
  %v672 = vcvt.s32.f32 %v544
  %v673 = vcvt.s32.f32 %v545
  %v674 = vcvt.s32.f32 %v546
  %v675 = vcvt.s32.f32 %v547
  %v676 = vpack.c.bf16 %v550, %v548
  %v677 = vpack.c.bf16 %v551, %v549
  %v678 = vpack.c.bf16 %v554, %v552
  %v679 = vpack.c.bf16 %v555, %v553
  %v680 = vpack.c.bf16 %v558, %v556
  %v681 = vpack.c.bf16 %v559, %v557
  %v682 = vpack.c.bf16 %v562, %v560
  %v683 = vpack.c.bf16 %v563, %v561
  %v684 = vpack.c.bf16 %v566, %v564
  %v685 = vpack.c.bf16 %v567, %v565
  %v686 = vpack.c.bf16 %v570, %v568
  %v687 = vpack.c.bf16 %v571, %v569
  %v688 = vpack.c.bf16 %v574, %v572
  %v689 = vpack.c.bf16 %v575, %v573
  %v690 = vpack.c.bf16 %v578, %v576
  %v691 = vpack.c.bf16 %v579, %v577
  %v692 = vpack.c.bf16 %v582, %v580
  %v693 = vpack.c.bf16 %v583, %v581
  %v694 = vpack.c.bf16 %v586, %v584
  %v695 = vpack.c.bf16 %v587, %v585
  %v696 = vpack.c.bf16 %v590, %v588
  %v697 = vpack.c.bf16 %v591, %v589
  %v698 = vpack.c.bf16 %v594, %v592
  %v699 = vpack.c.bf16 %v595, %v593
  %v700 = vpack.c.bf16 %v598, %v596
  %v701 = vpack.c.bf16 %v599, %v597
  %v702 = vpack.c.bf16 %v602, %v600
  %v703 = vpack.c.bf16 %v603, %v601
  %v704 = vpack.c.bf16 %v606, %v604
  %v705 = vpack.c.bf16 %v607, %v605
  %v706 = vpack.c.bf16 %v610, %v608
  %v707 = vpack.c.bf16 %v611, %v609
  %v708 = vpack.c.bf16 %v614, %v612
  %v709 = vpack.c.bf16 %v615, %v613
  %v710 = vpack.c.bf16 %v618, %v616
  %v711 = vpack.c.bf16 %v619, %v617
  %v712 = vpack.c.bf16 %v622, %v620
  %v713 = vpack.c.bf16 %v623, %v621
  %v714 = vpack.c.bf16 %v626, %v624
  %v715 = vpack.c.bf16 %v627, %v625
  %v716 = vpack.c.bf16 %v630, %v628
  %v717 = vpack.c.bf16 %v631, %v629
  %v718 = vpack.c.bf16 %v634, %v632
  %v719 = vpack.c.bf16 %v635, %v633
  %v720 = vpack.c.bf16 %v638, %v636
  %v721 = vpack.c.bf16 %v639, %v637
  %v722 = vpack.c.bf16 %v642, %v640
  %v723 = vpack.c.bf16 %v643, %v641
  %v724 = vpack.c.bf16 %v646, %v644
  %v725 = vpack.c.bf16 %v647, %v645
  %v726 = vpack.c.bf16 %v650, %v648
  %v727 = vpack.c.bf16 %v651, %v649
  %v728 = vpack.c.bf16 %v654, %v652
  %v729 = vpack.c.bf16 %v655, %v653
  %v730 = vpack.c.bf16 %v658, %v656
  %v731 = vpack.c.bf16 %v659, %v657
  %v732 = vpack.c.bf16 %v662, %v660
  %v733 = vpack.c.bf16 %v663, %v661
  %v734 = vpack.c.bf16 %v666, %v664
  %v735 = vpack.c.bf16 %v667, %v665
  %v736 = vpack.c.bf16 %v670, %v668
  %v737 = vpack.c.bf16 %v671, %v669
  %v738 = vpack.c.bf16 %v674, %v672
  %v739 = vpack.c.bf16 %v675, %v673
  %v740 = vld [vmem:[%s2] sm:$0xff]
  %v741 = vld [vmem:[%s2 + $0x8] sm:$0xff]
  %v742 = vld [vmem:[%s2 + $0x10] sm:$0xff]
  %v743 = vld [vmem:[%s2 + $0x18] sm:$0xff]
  %v744 = vld [vmem:[%s2 + $0x20] sm:$0xff]
  %v745 = vld [vmem:[%s2 + $0x28] sm:$0xff]
  %v746 = vld [vmem:[%s2 + $0x30] sm:$0xff]
  %v747 = vld [vmem:[%s2 + $0x38] sm:$0xff]
  %v748 = vld [vmem:[%s2 + $0x40] sm:$0xff]
  %v749 = vld [vmem:[%s2 + $0x48] sm:$0xff]
  %v750 = vld [vmem:[%s2 + $0x50] sm:$0xff]
  %v751 = vld [vmem:[%s2 + $0x58] sm:$0xff]
  %v752 = vld [vmem:[%s2 + $0x60] sm:$0xff]
  %v753 = vld [vmem:[%s2 + $0x68] sm:$0xff]
  %v754 = vld [vmem:[%s2 + $0x70] sm:$0xff]
  %v755 = vld [vmem:[%s2 + $0x78] sm:$0xff]
  %v756 = vld [vmem:[%s2 + $0x80] sm:$0xff]
  %v757 = vld [vmem:[%s2 + $0x88] sm:$0xff]
  %v758 = vld [vmem:[%s2 + $0x90] sm:$0xff]
  %v759 = vld [vmem:[%s2 + $0x98] sm:$0xff]
  %v760 = vld [vmem:[%s2 + $0xa0] sm:$0xff]
  %v761 = vld [vmem:[%s2 + $0xa8] sm:$0xff]
  %v762 = vld [vmem:[%s2 + $0xb0] sm:$0xff]
  %v763 = vld [vmem:[%s2 + $0xb8] sm:$0xff]
  %v764 = vld [vmem:[%s2 + $0xc0] sm:$0xff]
  %v765 = vld [vmem:[%s2 + $0xc8] sm:$0xff]
  %v766 = vld [vmem:[%s2 + $0xd0] sm:$0xff]
  %v767 = vld [vmem:[%s2 + $0xd8] sm:$0xff]
  %v768 = vld [vmem:[%s2 + $0xe0] sm:$0xff]
  %v769 = vld [vmem:[%s2 + $0xe8] sm:$0xff]
  %v770 = vld [vmem:[%s2 + $0xf0] sm:$0xff]
  %v771 = vld [vmem:[%s2 + $0xf8] sm:$0xff]
  %v772 = vld [vmem:[%s2 + $0x100] sm:$0xff]
  %v773 = vld [vmem:[%s2 + $0x108] sm:$0xff]
  %v774 = vld [vmem:[%s2 + $0x110] sm:$0xff]
  %v775 = vld [vmem:[%s2 + $0x118] sm:$0xff]
  %v776 = vld [vmem:[%s2 + $0x120] sm:$0xff]
  %v777 = vld [vmem:[%s2 + $0x128] sm:$0xff]
  %v778 = vld [vmem:[%s2 + $0x130] sm:$0xff]
  %v779 = vld [vmem:[%s2 + $0x138] sm:$0xff]
  %v780 = vld [vmem:[%s2 + $0x140] sm:$0xff]
  %v781 = vld [vmem:[%s2 + $0x148] sm:$0xff]
  %v782 = vld [vmem:[%s2 + $0x150] sm:$0xff]
  %v783 = vld [vmem:[%s2 + $0x158] sm:$0xff]
  %v784 = vld [vmem:[%s2 + $0x160] sm:$0xff]
  %v785 = vld [vmem:[%s2 + $0x168] sm:$0xff]
  %v786 = vld [vmem:[%s2 + $0x170] sm:$0xff]
  %v787 = vld [vmem:[%s2 + $0x178] sm:$0xff]
  %v788 = vld [vmem:[%s2 + $0x180] sm:$0xff]
  %v789 = vld [vmem:[%s2 + $0x188] sm:$0xff]
  %v790 = vld [vmem:[%s2 + $0x190] sm:$0xff]
  %v791 = vld [vmem:[%s2 + $0x198] sm:$0xff]
  %v792 = vld [vmem:[%s2 + $0x1a0] sm:$0xff]
  %v793 = vld [vmem:[%s2 + $0x1a8] sm:$0xff]
  %v794 = vld [vmem:[%s2 + $0x1b0] sm:$0xff]
  %v795 = vld [vmem:[%s2 + $0x1b8] sm:$0xff]
  %v796 = vld [vmem:[%s2 + $0x1c0] sm:$0xff]
  %v797 = vld [vmem:[%s2 + $0x1c8] sm:$0xff]
  %v798 = vld [vmem:[%s2 + $0x1d0] sm:$0xff]
  %v799 = vld [vmem:[%s2 + $0x1d8] sm:$0xff]
  %v800 = vld [vmem:[%s2 + $0x1e0] sm:$0xff]
  %v801 = vld [vmem:[%s2 + $0x1e8] sm:$0xff]
  %v802 = vld [vmem:[%s2 + $0x1f0] sm:$0xff]
  %v803 = vld [vmem:[%s2 + $0x1f8] sm:$0xff]
  %804 = vset.pattern.permute.xlu0 0
  %805 = vperm.xlu0 %804, %v740
  %v806 = vpop.permute.xlu0 %805
  %807 = vset.pattern.permute.xlu0 0
  %808 = vperm.xlu0 %807, %v741
  %v809 = vpop.permute.xlu0 %808
  %810 = vset.pattern.permute.xlu0 0
  %811 = vperm.xlu0 %810, %v742
  %v812 = vpop.permute.xlu0 %811
  %813 = vset.pattern.permute.xlu0 0
  %814 = vperm.xlu0 %813, %v743
  %v815 = vpop.permute.xlu0 %814
  %816 = vset.pattern.permute.xlu0 0
  %817 = vperm.xlu0 %816, %v744
  %v818 = vpop.permute.xlu0 %817
  %819 = vset.pattern.permute.xlu0 0
  %820 = vperm.xlu0 %819, %v745
  %v821 = vpop.permute.xlu0 %820
  %822 = vset.pattern.permute.xlu0 0
  %823 = vperm.xlu0 %822, %v746
  %v824 = vpop.permute.xlu0 %823
  %825 = vset.pattern.permute.xlu0 0
  %826 = vperm.xlu0 %825, %v747
  %v827 = vpop.permute.xlu0 %826
  %828 = vset.pattern.permute.xlu0 0
  %829 = vperm.xlu0 %828, %v748
  %v830 = vpop.permute.xlu0 %829
  %831 = vset.pattern.permute.xlu0 0
  %832 = vperm.xlu0 %831, %v749
  %v833 = vpop.permute.xlu0 %832
  %834 = vset.pattern.permute.xlu0 0
  %835 = vperm.xlu0 %834, %v750
  %v836 = vpop.permute.xlu0 %835
  %837 = vset.pattern.permute.xlu0 0
  %838 = vperm.xlu0 %837, %v751
  %v839 = vpop.permute.xlu0 %838
  %840 = vset.pattern.permute.xlu0 0
  %841 = vperm.xlu0 %840, %v752
  %v842 = vpop.permute.xlu0 %841
  %843 = vset.pattern.permute.xlu0 0
  %844 = vperm.xlu0 %843, %v753
  %v845 = vpop.permute.xlu0 %844
  %846 = vset.pattern.permute.xlu0 0
  %847 = vperm.xlu0 %846, %v754
  %v848 = vpop.permute.xlu0 %847
  %849 = vset.pattern.permute.xlu0 0
  %850 = vperm.xlu0 %849, %v755
  %v851 = vpop.permute.xlu0 %850
  %852 = vset.pattern.permute.xlu0 0
  %853 = vperm.xlu0 %852, %v756
  %v854 = vpop.permute.xlu0 %853
  %855 = vset.pattern.permute.xlu0 0
  %856 = vperm.xlu0 %855, %v757
  %v857 = vpop.permute.xlu0 %856
  %858 = vset.pattern.permute.xlu0 0
  %859 = vperm.xlu0 %858, %v758
  %v860 = vpop.permute.xlu0 %859
  %861 = vset.pattern.permute.xlu0 0
  %862 = vperm.xlu0 %861, %v759
  %v863 = vpop.permute.xlu0 %862
  %864 = vset.pattern.permute.xlu0 0
  %865 = vperm.xlu0 %864, %v760
  %v866 = vpop.permute.xlu0 %865
  %867 = vset.pattern.permute.xlu0 0
  %868 = vperm.xlu0 %867, %v761
  %v869 = vpop.permute.xlu0 %868
  %870 = vset.pattern.permute.xlu0 0
  %871 = vperm.xlu0 %870, %v762
  %v872 = vpop.permute.xlu0 %871
  %873 = vset.pattern.permute.xlu0 0
  %874 = vperm.xlu0 %873, %v763
  %v875 = vpop.permute.xlu0 %874
  %876 = vset.pattern.permute.xlu0 0
  %877 = vperm.xlu0 %876, %v764
  %v878 = vpop.permute.xlu0 %877
  %879 = vset.pattern.permute.xlu0 0
  %880 = vperm.xlu0 %879, %v765
  %v881 = vpop.permute.xlu0 %880
  %882 = vset.pattern.permute.xlu0 0
  %883 = vperm.xlu0 %882, %v766
  %v884 = vpop.permute.xlu0 %883
  %885 = vset.pattern.permute.xlu0 0
  %886 = vperm.xlu0 %885, %v767
  %v887 = vpop.permute.xlu0 %886
  %888 = vset.pattern.permute.xlu0 0
  %889 = vperm.xlu0 %888, %v768
  %v890 = vpop.permute.xlu0 %889
  %891 = vset.pattern.permute.xlu0 0
  %892 = vperm.xlu0 %891, %v769
  %v893 = vpop.permute.xlu0 %892
  %894 = vset.pattern.permute.xlu0 0
  %895 = vperm.xlu0 %894, %v770
  %v896 = vpop.permute.xlu0 %895
  %897 = vset.pattern.permute.xlu0 0
  %898 = vperm.xlu0 %897, %v771
  %v899 = vpop.permute.xlu0 %898
  %900 = vset.pattern.permute.xlu0 0
  %901 = vperm.xlu0 %900, %v772
  %v902 = vpop.permute.xlu0 %901
  %903 = vset.pattern.permute.xlu0 0
  %904 = vperm.xlu0 %903, %v773
  %v905 = vpop.permute.xlu0 %904
  %906 = vset.pattern.permute.xlu0 0
  %907 = vperm.xlu0 %906, %v774
  %v908 = vpop.permute.xlu0 %907
  %909 = vset.pattern.permute.xlu0 0
  %910 = vperm.xlu0 %909, %v775
  %v911 = vpop.permute.xlu0 %910
  %912 = vset.pattern.permute.xlu0 0
  %913 = vperm.xlu0 %912, %v776
  %v914 = vpop.permute.xlu0 %913
  %915 = vset.pattern.permute.xlu0 0
  %916 = vperm.xlu0 %915, %v777
  %v917 = vpop.permute.xlu0 %916
  %918 = vset.pattern.permute.xlu0 0
  %919 = vperm.xlu0 %918, %v778
  %v920 = vpop.permute.xlu0 %919
  %921 = vset.pattern.permute.xlu0 0
  %922 = vperm.xlu0 %921, %v779
  %v923 = vpop.permute.xlu0 %922
  %924 = vset.pattern.permute.xlu0 0
  %925 = vperm.xlu0 %924, %v780
  %v926 = vpop.permute.xlu0 %925
  %927 = vset.pattern.permute.xlu0 0
  %928 = vperm.xlu0 %927, %v781
  %v929 = vpop.permute.xlu0 %928
  %930 = vset.pattern.permute.xlu0 0
  %931 = vperm.xlu0 %930, %v782
  %v932 = vpop.permute.xlu0 %931
  %933 = vset.pattern.permute.xlu0 0
  %934 = vperm.xlu0 %933, %v783
  %v935 = vpop.permute.xlu0 %934
  %936 = vset.pattern.permute.xlu0 0
  %937 = vperm.xlu0 %936, %v784
  %v938 = vpop.permute.xlu0 %937
  %939 = vset.pattern.permute.xlu0 0
  %940 = vperm.xlu0 %939, %v785
  %v941 = vpop.permute.xlu0 %940
  %942 = vset.pattern.permute.xlu0 0
  %943 = vperm.xlu0 %942, %v786
  %v944 = vpop.permute.xlu0 %943
  %945 = vset.pattern.permute.xlu0 0
  %946 = vperm.xlu0 %945, %v787
  %v947 = vpop.permute.xlu0 %946
  %948 = vset.pattern.permute.xlu0 0
  %949 = vperm.xlu0 %948, %v788
  %v950 = vpop.permute.xlu0 %949
  %951 = vset.pattern.permute.xlu0 0
  %952 = vperm.xlu0 %951, %v789
  %v953 = vpop.permute.xlu0 %952
  %954 = vset.pattern.permute.xlu0 0
  %955 = vperm.xlu0 %954, %v790
  %v956 = vpop.permute.xlu0 %955
  %957 = vset.pattern.permute.xlu0 0
  %958 = vperm.xlu0 %957, %v791
  %v959 = vpop.permute.xlu0 %958
  %960 = vset.pattern.permute.xlu0 0
  %961 = vperm.xlu0 %960, %v792
  %v962 = vpop.permute.xlu0 %961
  %963 = vset.pattern.permute.xlu0 0
  %964 = vperm.xlu0 %963, %v793
  %v965 = vpop.permute.xlu0 %964
  %966 = vset.pattern.permute.xlu0 0
  %967 = vperm.xlu0 %966, %v794
  %v968 = vpop.permute.xlu0 %967
  %969 = vset.pattern.permute.xlu0 0
  %970 = vperm.xlu0 %969, %v795
  %v971 = vpop.permute.xlu0 %970
  %972 = vset.pattern.permute.xlu0 0
  %973 = vperm.xlu0 %972, %v796
  %v974 = vpop.permute.xlu0 %973
  %975 = vset.pattern.permute.xlu0 0
  %976 = vperm.xlu0 %975, %v797
  %v977 = vpop.permute.xlu0 %976
  %978 = vset.pattern.permute.xlu0 0
  %979 = vperm.xlu0 %978, %v798
  %v980 = vpop.permute.xlu0 %979
  %981 = vset.pattern.permute.xlu0 0
  %982 = vperm.xlu0 %981, %v799
  %v983 = vpop.permute.xlu0 %982
  %984 = vset.pattern.permute.xlu0 0
  %985 = vperm.xlu0 %984, %v800
  %v986 = vpop.permute.xlu0 %985
  %987 = vset.pattern.permute.xlu0 0
  %988 = vperm.xlu0 %987, %v801
  %v989 = vpop.permute.xlu0 %988
  %990 = vset.pattern.permute.xlu0 0
  %991 = vperm.xlu0 %990, %v802
  %v992 = vpop.permute.xlu0 %991
  %993 = vset.pattern.permute.xlu0 0
  %994 = vperm.xlu0 %993, %v803
  %v995 = vpop.permute.xlu0 %994
  %vm996 = vcmp.eq.s32.totalorder %v34, %v806
  %vm997 = vcmp.eq.s32.totalorder %v35, %v806
  %vm998 = vcmp.eq.s32.totalorder %v34, %v809
  %vm999 = vcmp.eq.s32.totalorder %v35, %v809
  %vm1000 = vcmp.eq.s32.totalorder %v34, %v812
  %vm1001 = vcmp.eq.s32.totalorder %v35, %v812
  %vm1002 = vcmp.eq.s32.totalorder %v34, %v815
  %vm1003 = vcmp.eq.s32.totalorder %v35, %v815
  %vm1004 = vcmp.eq.s32.totalorder %v34, %v818
  %vm1005 = vcmp.eq.s32.totalorder %v35, %v818
  %vm1006 = vcmp.eq.s32.totalorder %v34, %v821
  %vm1007 = vcmp.eq.s32.totalorder %v35, %v821
  %vm1008 = vcmp.eq.s32.totalorder %v34, %v824
  %vm1009 = vcmp.eq.s32.totalorder %v35, %v824
  %vm1010 = vcmp.eq.s32.totalorder %v34, %v827
  %vm1011 = vcmp.eq.s32.totalorder %v35, %v827
  %vm1012 = vcmp.eq.s32.totalorder %v34, %v830
  %vm1013 = vcmp.eq.s32.totalorder %v35, %v830
  %vm1014 = vcmp.eq.s32.totalorder %v34, %v833
  %vm1015 = vcmp.eq.s32.totalorder %v35, %v833
  %vm1016 = vcmp.eq.s32.totalorder %v34, %v836
  %vm1017 = vcmp.eq.s32.totalorder %v35, %v836
  %vm1018 = vcmp.eq.s32.totalorder %v34, %v839
  %vm1019 = vcmp.eq.s32.totalorder %v35, %v839
  %vm1020 = vcmp.eq.s32.totalorder %v34, %v842
  %vm1021 = vcmp.eq.s32.totalorder %v35, %v842
  %vm1022 = vcmp.eq.s32.totalorder %v34, %v845
  %vm1023 = vcmp.eq.s32.totalorder %v35, %v845
  %vm1024 = vcmp.eq.s32.totalorder %v34, %v848
  %vm1025 = vcmp.eq.s32.totalorder %v35, %v848
  %vm1026 = vcmp.eq.s32.totalorder %v34, %v851
  %vm1027 = vcmp.eq.s32.totalorder %v35, %v851
  %vm1028 = vcmp.eq.s32.totalorder %v34, %v854
  %vm1029 = vcmp.eq.s32.totalorder %v35, %v854
  %vm1030 = vcmp.eq.s32.totalorder %v34, %v857
  %vm1031 = vcmp.eq.s32.totalorder %v35, %v857
  %vm1032 = vcmp.eq.s32.totalorder %v34, %v860
  %vm1033 = vcmp.eq.s32.totalorder %v35, %v860
  %vm1034 = vcmp.eq.s32.totalorder %v34, %v863
  %vm1035 = vcmp.eq.s32.totalorder %v35, %v863
  %vm1036 = vcmp.eq.s32.totalorder %v34, %v866
  %vm1037 = vcmp.eq.s32.totalorder %v35, %v866
  %vm1038 = vcmp.eq.s32.totalorder %v34, %v869
  %vm1039 = vcmp.eq.s32.totalorder %v35, %v869
  %vm1040 = vcmp.eq.s32.totalorder %v34, %v872
  %vm1041 = vcmp.eq.s32.totalorder %v35, %v872
  %vm1042 = vcmp.eq.s32.totalorder %v34, %v875
  %vm1043 = vcmp.eq.s32.totalorder %v35, %v875
  %vm1044 = vcmp.eq.s32.totalorder %v34, %v878
  %vm1045 = vcmp.eq.s32.totalorder %v35, %v878
  %vm1046 = vcmp.eq.s32.totalorder %v34, %v881
  %vm1047 = vcmp.eq.s32.totalorder %v35, %v881
  %vm1048 = vcmp.eq.s32.totalorder %v34, %v884
  %vm1049 = vcmp.eq.s32.totalorder %v35, %v884
  %vm1050 = vcmp.eq.s32.totalorder %v34, %v887
  %vm1051 = vcmp.eq.s32.totalorder %v35, %v887
  %vm1052 = vcmp.eq.s32.totalorder %v34, %v890
  %vm1053 = vcmp.eq.s32.totalorder %v35, %v890
  %vm1054 = vcmp.eq.s32.totalorder %v34, %v893
  %vm1055 = vcmp.eq.s32.totalorder %v35, %v893
  %vm1056 = vcmp.eq.s32.totalorder %v34, %v896
  %vm1057 = vcmp.eq.s32.totalorder %v35, %v896
  %vm1058 = vcmp.eq.s32.totalorder %v34, %v899
  %vm1059 = vcmp.eq.s32.totalorder %v35, %v899
  %vm1060 = vcmp.eq.s32.totalorder %v34, %v902
  %vm1061 = vcmp.eq.s32.totalorder %v35, %v902
  %vm1062 = vcmp.eq.s32.totalorder %v34, %v905
  %vm1063 = vcmp.eq.s32.totalorder %v35, %v905
  %vm1064 = vcmp.eq.s32.totalorder %v34, %v908
  %vm1065 = vcmp.eq.s32.totalorder %v35, %v908
  %vm1066 = vcmp.eq.s32.totalorder %v34, %v911
  %vm1067 = vcmp.eq.s32.totalorder %v35, %v911
  %vm1068 = vcmp.eq.s32.totalorder %v34, %v914
  %vm1069 = vcmp.eq.s32.totalorder %v35, %v914
  %vm1070 = vcmp.eq.s32.totalorder %v34, %v917
  %vm1071 = vcmp.eq.s32.totalorder %v35, %v917
  %vm1072 = vcmp.eq.s32.totalorder %v34, %v920
  %vm1073 = vcmp.eq.s32.totalorder %v35, %v920
  %vm1074 = vcmp.eq.s32.totalorder %v34, %v923
  %vm1075 = vcmp.eq.s32.totalorder %v35, %v923
  %vm1076 = vcmp.eq.s32.totalorder %v34, %v926
  %vm1077 = vcmp.eq.s32.totalorder %v35, %v926
  %vm1078 = vcmp.eq.s32.totalorder %v34, %v929
  %vm1079 = vcmp.eq.s32.totalorder %v35, %v929
  %vm1080 = vcmp.eq.s32.totalorder %v34, %v932
  %vm1081 = vcmp.eq.s32.totalorder %v35, %v932
  %vm1082 = vcmp.eq.s32.totalorder %v34, %v935
  %vm1083 = vcmp.eq.s32.totalorder %v35, %v935
  %vm1084 = vcmp.eq.s32.totalorder %v34, %v938
  %vm1085 = vcmp.eq.s32.totalorder %v35, %v938
  %vm1086 = vcmp.eq.s32.totalorder %v34, %v941
  %vm1087 = vcmp.eq.s32.totalorder %v35, %v941
  %vm1088 = vcmp.eq.s32.totalorder %v34, %v944
  %vm1089 = vcmp.eq.s32.totalorder %v35, %v944
  %vm1090 = vcmp.eq.s32.totalorder %v34, %v947
  %vm1091 = vcmp.eq.s32.totalorder %v35, %v947
  %vm1092 = vcmp.eq.s32.totalorder %v34, %v950
  %vm1093 = vcmp.eq.s32.totalorder %v35, %v950
  %vm1094 = vcmp.eq.s32.totalorder %v34, %v953
  %vm1095 = vcmp.eq.s32.totalorder %v35, %v953
  %vm1096 = vcmp.eq.s32.totalorder %v34, %v956
  %vm1097 = vcmp.eq.s32.totalorder %v35, %v956
  %vm1098 = vcmp.eq.s32.totalorder %v34, %v959
  %vm1099 = vcmp.eq.s32.totalorder %v35, %v959
  %vm1100 = vcmp.eq.s32.totalorder %v34, %v962
  %vm1101 = vcmp.eq.s32.totalorder %v35, %v962
  %vm1102 = vcmp.eq.s32.totalorder %v34, %v965
  %vm1103 = vcmp.eq.s32.totalorder %v35, %v965
  %vm1104 = vcmp.eq.s32.totalorder %v34, %v968
  %vm1105 = vcmp.eq.s32.totalorder %v35, %v968
  %vm1106 = vcmp.eq.s32.totalorder %v34, %v971
  %vm1107 = vcmp.eq.s32.totalorder %v35, %v971
  %vm1108 = vcmp.eq.s32.totalorder %v34, %v974
  %vm1109 = vcmp.eq.s32.totalorder %v35, %v974
  %vm1110 = vcmp.eq.s32.totalorder %v34, %v977
  %vm1111 = vcmp.eq.s32.totalorder %v35, %v977
  %vm1112 = vcmp.eq.s32.totalorder %v34, %v980
  %vm1113 = vcmp.eq.s32.totalorder %v35, %v980
  %vm1114 = vcmp.eq.s32.totalorder %v34, %v983
  %vm1115 = vcmp.eq.s32.totalorder %v35, %v983
  %vm1116 = vcmp.eq.s32.totalorder %v34, %v986
  %vm1117 = vcmp.eq.s32.totalorder %v35, %v986
  %vm1118 = vcmp.eq.s32.totalorder %v34, %v989
  %vm1119 = vcmp.eq.s32.totalorder %v35, %v989
  %vm1120 = vcmp.eq.s32.totalorder %v34, %v992
  %vm1121 = vcmp.eq.s32.totalorder %v35, %v992
  %vm1122 = vcmp.eq.s32.totalorder %v34, %v995
  %vm1123 = vcmp.eq.s32.totalorder %v35, %v995
  %v1124 = vsel %vm996, 1, 0
  %v1125 = vsel %vm997, 1, 0
  %v1126 = vsel %vm998, 1, 0
  %v1127 = vsel %vm999, 1, 0
  %v1128 = vsel %vm1000, 1, 0
  %v1129 = vsel %vm1001, 1, 0
  %v1130 = vsel %vm1002, 1, 0
  %v1131 = vsel %vm1003, 1, 0
  %v1132 = vsel %vm1004, 1, 0
  %v1133 = vsel %vm1005, 1, 0
  %v1134 = vsel %vm1006, 1, 0
  %v1135 = vsel %vm1007, 1, 0
  %v1136 = vsel %vm1008, 1, 0
  %v1137 = vsel %vm1009, 1, 0
  %v1138 = vsel %vm1010, 1, 0
  %v1139 = vsel %vm1011, 1, 0
  %v1140 = vsel %vm1012, 1, 0
  %v1141 = vsel %vm1013, 1, 0
  %v1142 = vsel %vm1014, 1, 0
  %v1143 = vsel %vm1015, 1, 0
  %v1144 = vsel %vm1016, 1, 0
  %v1145 = vsel %vm1017, 1, 0
  %v1146 = vsel %vm1018, 1, 0
  %v1147 = vsel %vm1019, 1, 0
  %v1148 = vsel %vm1020, 1, 0
  %v1149 = vsel %vm1021, 1, 0
  %v1150 = vsel %vm1022, 1, 0
  %v1151 = vsel %vm1023, 1, 0
  %v1152 = vsel %vm1024, 1, 0
  %v1153 = vsel %vm1025, 1, 0
  %v1154 = vsel %vm1026, 1, 0
  %v1155 = vsel %vm1027, 1, 0
  %v1156 = vsel %vm1028, 1, 0
  %v1157 = vsel %vm1029, 1, 0
  %v1158 = vsel %vm1030, 1, 0
  %v1159 = vsel %vm1031, 1, 0
  %v1160 = vsel %vm1032, 1, 0
  %v1161 = vsel %vm1033, 1, 0
  %v1162 = vsel %vm1034, 1, 0
  %v1163 = vsel %vm1035, 1, 0
  %v1164 = vsel %vm1036, 1, 0
  %v1165 = vsel %vm1037, 1, 0
  %v1166 = vsel %vm1038, 1, 0
  %v1167 = vsel %vm1039, 1, 0
  %v1168 = vsel %vm1040, 1, 0
  %v1169 = vsel %vm1041, 1, 0
  %v1170 = vsel %vm1042, 1, 0
  %v1171 = vsel %vm1043, 1, 0
  %v1172 = vsel %vm1044, 1, 0
  %v1173 = vsel %vm1045, 1, 0
  %v1174 = vsel %vm1046, 1, 0
  %v1175 = vsel %vm1047, 1, 0
  %v1176 = vsel %vm1048, 1, 0
  %v1177 = vsel %vm1049, 1, 0
  %v1178 = vsel %vm1050, 1, 0
  %v1179 = vsel %vm1051, 1, 0
  %v1180 = vsel %vm1052, 1, 0
  %v1181 = vsel %vm1053, 1, 0
  %v1182 = vsel %vm1054, 1, 0
  %v1183 = vsel %vm1055, 1, 0
  %v1184 = vsel %vm1056, 1, 0
  %v1185 = vsel %vm1057, 1, 0
  %v1186 = vsel %vm1058, 1, 0
  %v1187 = vsel %vm1059, 1, 0
  %v1188 = vsel %vm1060, 1, 0
  %v1189 = vsel %vm1061, 1, 0
  %v1190 = vsel %vm1062, 1, 0
  %v1191 = vsel %vm1063, 1, 0
  %v1192 = vsel %vm1064, 1, 0
  %v1193 = vsel %vm1065, 1, 0
  %v1194 = vsel %vm1066, 1, 0
  %v1195 = vsel %vm1067, 1, 0
  %v1196 = vsel %vm1068, 1, 0
  %v1197 = vsel %vm1069, 1, 0
  %v1198 = vsel %vm1070, 1, 0
  %v1199 = vsel %vm1071, 1, 0
  %v1200 = vsel %vm1072, 1, 0
  %v1201 = vsel %vm1073, 1, 0
  %v1202 = vsel %vm1074, 1, 0
  %v1203 = vsel %vm1075, 1, 0
  %v1204 = vsel %vm1076, 1, 0
  %v1205 = vsel %vm1077, 1, 0
  %v1206 = vsel %vm1078, 1, 0
  %v1207 = vsel %vm1079, 1, 0
  %v1208 = vsel %vm1080, 1, 0
  %v1209 = vsel %vm1081, 1, 0
  %v1210 = vsel %vm1082, 1, 0
  %v1211 = vsel %vm1083, 1, 0
  %v1212 = vsel %vm1084, 1, 0
  %v1213 = vsel %vm1085, 1, 0
  %v1214 = vsel %vm1086, 1, 0
  %v1215 = vsel %vm1087, 1, 0
  %v1216 = vsel %vm1088, 1, 0
  %v1217 = vsel %vm1089, 1, 0
  %v1218 = vsel %vm1090, 1, 0
  %v1219 = vsel %vm1091, 1, 0
  %v1220 = vsel %vm1092, 1, 0
  %v1221 = vsel %vm1093, 1, 0
  %v1222 = vsel %vm1094, 1, 0
  %v1223 = vsel %vm1095, 1, 0
  %v1224 = vsel %vm1096, 1, 0
  %v1225 = vsel %vm1097, 1, 0
  %v1226 = vsel %vm1098, 1, 0
  %v1227 = vsel %vm1099, 1, 0
  %v1228 = vsel %vm1100, 1, 0
  %v1229 = vsel %vm1101, 1, 0
  %v1230 = vsel %vm1102, 1, 0
  %v1231 = vsel %vm1103, 1, 0
  %v1232 = vsel %vm1104, 1, 0
  %v1233 = vsel %vm1105, 1, 0
  %v1234 = vsel %vm1106, 1, 0
  %v1235 = vsel %vm1107, 1, 0
  %v1236 = vsel %vm1108, 1, 0
  %v1237 = vsel %vm1109, 1, 0
  %v1238 = vsel %vm1110, 1, 0
  %v1239 = vsel %vm1111, 1, 0
  %v1240 = vsel %vm1112, 1, 0
  %v1241 = vsel %vm1113, 1, 0
  %v1242 = vsel %vm1114, 1, 0
  %v1243 = vsel %vm1115, 1, 0
  %v1244 = vsel %vm1116, 1, 0
  %v1245 = vsel %vm1117, 1, 0
  %v1246 = vsel %vm1118, 1, 0
  %v1247 = vsel %vm1119, 1, 0
  %v1248 = vsel %vm1120, 1, 0
  %v1249 = vsel %vm1121, 1, 0
  %v1250 = vsel %vm1122, 1, 0
  %v1251 = vsel %vm1123, 1, 0
  %v1252 = vcvt.s32.f32 %v1124
  %v1253 = vcvt.s32.f32 %v1125
  %v1254 = vcvt.s32.f32 %v1126
  %v1255 = vcvt.s32.f32 %v1127
  %v1256 = vcvt.s32.f32 %v1128
  %v1257 = vcvt.s32.f32 %v1129
  %v1258 = vcvt.s32.f32 %v1130
  %v1259 = vcvt.s32.f32 %v1131
  %v1260 = vcvt.s32.f32 %v1132
  %v1261 = vcvt.s32.f32 %v1133
  %v1262 = vcvt.s32.f32 %v1134
  %v1263 = vcvt.s32.f32 %v1135
  %v1264 = vcvt.s32.f32 %v1136
  %v1265 = vcvt.s32.f32 %v1137
  %v1266 = vcvt.s32.f32 %v1138
  %v1267 = vcvt.s32.f32 %v1139
  %v1268 = vcvt.s32.f32 %v1140
  %v1269 = vcvt.s32.f32 %v1141
  %v1270 = vcvt.s32.f32 %v1142
  %v1271 = vcvt.s32.f32 %v1143
  %v1272 = vcvt.s32.f32 %v1144
  %v1273 = vcvt.s32.f32 %v1145
  %v1274 = vcvt.s32.f32 %v1146
  %v1275 = vcvt.s32.f32 %v1147
  %v1276 = vcvt.s32.f32 %v1148
  %v1277 = vcvt.s32.f32 %v1149
  %v1278 = vcvt.s32.f32 %v1150
  %v1279 = vcvt.s32.f32 %v1151
  %v1280 = vcvt.s32.f32 %v1152
  %v1281 = vcvt.s32.f32 %v1153
  %v1282 = vcvt.s32.f32 %v1154
  %v1283 = vcvt.s32.f32 %v1155
  %v1284 = vcvt.s32.f32 %v1156
  %v1285 = vcvt.s32.f32 %v1157
  %v1286 = vcvt.s32.f32 %v1158
  %v1287 = vcvt.s32.f32 %v1159
  %v1288 = vcvt.s32.f32 %v1160
  %v1289 = vcvt.s32.f32 %v1161
  %v1290 = vcvt.s32.f32 %v1162
  %v1291 = vcvt.s32.f32 %v1163
  %v1292 = vcvt.s32.f32 %v1164
  %v1293 = vcvt.s32.f32 %v1165
  %v1294 = vcvt.s32.f32 %v1166
  %v1295 = vcvt.s32.f32 %v1167
  %v1296 = vcvt.s32.f32 %v1168
  %v1297 = vcvt.s32.f32 %v1169
  %v1298 = vcvt.s32.f32 %v1170
  %v1299 = vcvt.s32.f32 %v1171
  %v1300 = vcvt.s32.f32 %v1172
  %v1301 = vcvt.s32.f32 %v1173
  %v1302 = vcvt.s32.f32 %v1174
  %v1303 = vcvt.s32.f32 %v1175
  %v1304 = vcvt.s32.f32 %v1176
  %v1305 = vcvt.s32.f32 %v1177
  %v1306 = vcvt.s32.f32 %v1178
  %v1307 = vcvt.s32.f32 %v1179
  %v1308 = vcvt.s32.f32 %v1180
  %v1309 = vcvt.s32.f32 %v1181
  %v1310 = vcvt.s32.f32 %v1182
  %v1311 = vcvt.s32.f32 %v1183
  %v1312 = vcvt.s32.f32 %v1184
  %v1313 = vcvt.s32.f32 %v1185
  %v1314 = vcvt.s32.f32 %v1186
  %v1315 = vcvt.s32.f32 %v1187
  %v1316 = vcvt.s32.f32 %v1188
  %v1317 = vcvt.s32.f32 %v1189
  %v1318 = vcvt.s32.f32 %v1190
  %v1319 = vcvt.s32.f32 %v1191
  %v1320 = vcvt.s32.f32 %v1192
  %v1321 = vcvt.s32.f32 %v1193
  %v1322 = vcvt.s32.f32 %v1194
  %v1323 = vcvt.s32.f32 %v1195
  %v1324 = vcvt.s32.f32 %v1196
  %v1325 = vcvt.s32.f32 %v1197
  %v1326 = vcvt.s32.f32 %v1198
  %v1327 = vcvt.s32.f32 %v1199
  %v1328 = vcvt.s32.f32 %v1200
  %v1329 = vcvt.s32.f32 %v1201
  %v1330 = vcvt.s32.f32 %v1202
  %v1331 = vcvt.s32.f32 %v1203
  %v1332 = vcvt.s32.f32 %v1204
  %v1333 = vcvt.s32.f32 %v1205
  %v1334 = vcvt.s32.f32 %v1206
  %v1335 = vcvt.s32.f32 %v1207
  %v1336 = vcvt.s32.f32 %v1208
  %v1337 = vcvt.s32.f32 %v1209
  %v1338 = vcvt.s32.f32 %v1210
  %v1339 = vcvt.s32.f32 %v1211
  %v1340 = vcvt.s32.f32 %v1212
  %v1341 = vcvt.s32.f32 %v1213
  %v1342 = vcvt.s32.f32 %v1214
  %v1343 = vcvt.s32.f32 %v1215
  %v1344 = vcvt.s32.f32 %v1216
  %v1345 = vcvt.s32.f32 %v1217
  %v1346 = vcvt.s32.f32 %v1218
  %v1347 = vcvt.s32.f32 %v1219
  %v1348 = vcvt.s32.f32 %v1220
  %v1349 = vcvt.s32.f32 %v1221
  %v1350 = vcvt.s32.f32 %v1222
  %v1351 = vcvt.s32.f32 %v1223
  %v1352 = vcvt.s32.f32 %v1224
  %v1353 = vcvt.s32.f32 %v1225
  %v1354 = vcvt.s32.f32 %v1226
  %v1355 = vcvt.s32.f32 %v1227
  %v1356 = vcvt.s32.f32 %v1228
  %v1357 = vcvt.s32.f32 %v1229
  %v1358 = vcvt.s32.f32 %v1230
  %v1359 = vcvt.s32.f32 %v1231
  %v1360 = vcvt.s32.f32 %v1232
  %v1361 = vcvt.s32.f32 %v1233
  %v1362 = vcvt.s32.f32 %v1234
  %v1363 = vcvt.s32.f32 %v1235
  %v1364 = vcvt.s32.f32 %v1236
  %v1365 = vcvt.s32.f32 %v1237
  %v1366 = vcvt.s32.f32 %v1238
  %v1367 = vcvt.s32.f32 %v1239
  %v1368 = vcvt.s32.f32 %v1240
  %v1369 = vcvt.s32.f32 %v1241
  %v1370 = vcvt.s32.f32 %v1242
  %v1371 = vcvt.s32.f32 %v1243
  %v1372 = vcvt.s32.f32 %v1244
  %v1373 = vcvt.s32.f32 %v1245
  %v1374 = vcvt.s32.f32 %v1246
  %v1375 = vcvt.s32.f32 %v1247
  %v1376 = vcvt.s32.f32 %v1248
  %v1377 = vcvt.s32.f32 %v1249
  %v1378 = vcvt.s32.f32 %v1250
  %v1379 = vcvt.s32.f32 %v1251
  %v1380 = vpack.c.bf16 %v1254, %v1252
  %v1381 = vpack.c.bf16 %v1255, %v1253
  %v1382 = vpack.c.bf16 %v1258, %v1256
  %v1383 = vpack.c.bf16 %v1259, %v1257
  %v1384 = vpack.c.bf16 %v1262, %v1260
  %v1385 = vpack.c.bf16 %v1263, %v1261
  %v1386 = vpack.c.bf16 %v1266, %v1264
  %v1387 = vpack.c.bf16 %v1267, %v1265
  %v1388 = vpack.c.bf16 %v1270, %v1268
  %v1389 = vpack.c.bf16 %v1271, %v1269
  %v1390 = vpack.c.bf16 %v1274, %v1272
  %v1391 = vpack.c.bf16 %v1275, %v1273
  %v1392 = vpack.c.bf16 %v1278, %v1276
  %v1393 = vpack.c.bf16 %v1279, %v1277
  %v1394 = vpack.c.bf16 %v1282, %v1280
  %v1395 = vpack.c.bf16 %v1283, %v1281
  %v1396 = vpack.c.bf16 %v1286, %v1284
  %v1397 = vpack.c.bf16 %v1287, %v1285
  %v1398 = vpack.c.bf16 %v1290, %v1288
  %v1399 = vpack.c.bf16 %v1291, %v1289
  %v1400 = vpack.c.bf16 %v1294, %v1292
  %v1401 = vpack.c.bf16 %v1295, %v1293
  %v1402 = vpack.c.bf16 %v1298, %v1296
  %v1403 = vpack.c.bf16 %v1299, %v1297
  %v1404 = vpack.c.bf16 %v1302, %v1300
  %v1405 = vpack.c.bf16 %v1303, %v1301
  %v1406 = vpack.c.bf16 %v1306, %v1304
  %v1407 = vpack.c.bf16 %v1307, %v1305
  %v1408 = vpack.c.bf16 %v1310, %v1308
  %v1409 = vpack.c.bf16 %v1311, %v1309
  %v1410 = vpack.c.bf16 %v1314, %v1312
  %v1411 = vpack.c.bf16 %v1315, %v1313
  %v1412 = vpack.c.bf16 %v1318, %v1316
  %v1413 = vpack.c.bf16 %v1319, %v1317
  %v1414 = vpack.c.bf16 %v1322, %v1320
  %v1415 = vpack.c.bf16 %v1323, %v1321
  %v1416 = vpack.c.bf16 %v1326, %v1324
  %v1417 = vpack.c.bf16 %v1327, %v1325
  %v1418 = vpack.c.bf16 %v1330, %v1328
  %v1419 = vpack.c.bf16 %v1331, %v1329
  %v1420 = vpack.c.bf16 %v1334, %v1332
  %v1421 = vpack.c.bf16 %v1335, %v1333
  %v1422 = vpack.c.bf16 %v1338, %v1336
  %v1423 = vpack.c.bf16 %v1339, %v1337
  %v1424 = vpack.c.bf16 %v1342, %v1340
  %v1425 = vpack.c.bf16 %v1343, %v1341
  %v1426 = vpack.c.bf16 %v1346, %v1344
  %v1427 = vpack.c.bf16 %v1347, %v1345
  %v1428 = vpack.c.bf16 %v1350, %v1348
  %v1429 = vpack.c.bf16 %v1351, %v1349
  %v1430 = vpack.c.bf16 %v1354, %v1352
  %v1431 = vpack.c.bf16 %v1355, %v1353
  %v1432 = vpack.c.bf16 %v1358, %v1356
  %v1433 = vpack.c.bf16 %v1359, %v1357
  %v1434 = vpack.c.bf16 %v1362, %v1360
  %v1435 = vpack.c.bf16 %v1363, %v1361
  %v1436 = vpack.c.bf16 %v1366, %v1364
  %v1437 = vpack.c.bf16 %v1367, %v1365
  %v1438 = vpack.c.bf16 %v1370, %v1368
  %v1439 = vpack.c.bf16 %v1371, %v1369
  %v1440 = vpack.c.bf16 %v1374, %v1372
  %v1441 = vpack.c.bf16 %v1375, %v1373
  %v1442 = vpack.c.bf16 %v1378, %v1376
  %v1443 = vpack.c.bf16 %v1379, %v1377
  %v1444 = vld [vmem:[%s0] sm:$0xff]
  %v1445 = vld [vmem:[%s0 + $0x8] sm:$0xff]
  %v1446 = vld [vmem:[%s0 + $0x10] sm:$0xff]
  %v1447 = vld [vmem:[%s0 + $0x18] sm:$0xff]
  %v1448 = vld [vmem:[%s0 + $0x20] sm:$0xff]
  %v1449 = vld [vmem:[%s0 + $0x28] sm:$0xff]
  %v1450 = vld [vmem:[%s0 + $0x30] sm:$0xff]
  %v1451 = vld [vmem:[%s0 + $0x38] sm:$0xff]
  %v1452 = vld [vmem:[%s0 + $0x40] sm:$0xff]
  %v1453 = vld [vmem:[%s0 + $0x48] sm:$0xff]
  %v1454 = vld [vmem:[%s0 + $0x50] sm:$0xff]
  %v1455 = vld [vmem:[%s0 + $0x58] sm:$0xff]
  %v1456 = vld [vmem:[%s0 + $0x60] sm:$0xff]
  %v1457 = vld [vmem:[%s0 + $0x68] sm:$0xff]
  %v1458 = vld [vmem:[%s0 + $0x70] sm:$0xff]
  %v1459 = vld [vmem:[%s0 + $0x78] sm:$0xff]
  %v1460 = vld [vmem:[%s0 + $0x80] sm:$0xff]
  %v1461 = vld [vmem:[%s0 + $0x88] sm:$0xff]
  %v1462 = vld [vmem:[%s0 + $0x90] sm:$0xff]
  %v1463 = vld [vmem:[%s0 + $0x98] sm:$0xff]
  %v1464 = vld [vmem:[%s0 + $0xa0] sm:$0xff]
  %v1465 = vld [vmem:[%s0 + $0xa8] sm:$0xff]
  %v1466 = vld [vmem:[%s0 + $0xb0] sm:$0xff]
  %v1467 = vld [vmem:[%s0 + $0xb8] sm:$0xff]
  %v1468 = vld [vmem:[%s0 + $0xc0] sm:$0xff]
  %v1469 = vld [vmem:[%s0 + $0xc8] sm:$0xff]
  %v1470 = vld [vmem:[%s0 + $0xd0] sm:$0xff]
  %v1471 = vld [vmem:[%s0 + $0xd8] sm:$0xff]
  %v1472 = vld [vmem:[%s0 + $0xe0] sm:$0xff]
  %v1473 = vld [vmem:[%s0 + $0xe8] sm:$0xff]
  %v1474 = vld [vmem:[%s0 + $0xf0] sm:$0xff]
  %v1475 = vld [vmem:[%s0 + $0xf8] sm:$0xff]
  %v1476 = vpack.c.bf16 %v1445, %v1444
  %v1477 = vpack.c.bf16 %v1447, %v1446
  %v1478 = vpack.c.bf16 %v1449, %v1448
  %v1479 = vpack.c.bf16 %v1451, %v1450
  %v1480 = vpack.c.bf16 %v1453, %v1452
  %v1481 = vpack.c.bf16 %v1455, %v1454
  %v1482 = vpack.c.bf16 %v1457, %v1456
  %v1483 = vpack.c.bf16 %v1459, %v1458
  %v1484 = vpack.c.bf16 %v1461, %v1460
  %v1485 = vpack.c.bf16 %v1463, %v1462
  %v1486 = vpack.c.bf16 %v1465, %v1464
  %v1487 = vpack.c.bf16 %v1467, %v1466
  %v1488 = vpack.c.bf16 %v1469, %v1468
  %v1489 = vpack.c.bf16 %v1471, %v1470
  %v1490 = vpack.c.bf16 %v1473, %v1472
  %v1491 = vpack.c.bf16 %v1475, %v1474
  %v1492 = vld [vmem:[%s6] sm:$0x3]
  %v1493 = vlaneseq
  %v1494 = vshrl.u32 %v1493, 7
  %v1495 = vsub.s32 0, %v1494
  %v1496 = vrot.slane %v30, %v1495
  %vm1497 = vcmask 31744
  %v1499 = vsel %vm1497, %v1476, 0
  %v1502 = vsel %vm1497, %v1477, 0
  %v1505 = vsel %vm1497, %v1478, 0
  %v1508 = vsel %vm1497, %v1479, 0
  %v1511 = vsel %vm1497, %v1480, 0
  %v1514 = vsel %vm1497, %v1481, 0
  %v1517 = vsel %vm1497, %v1482, 0
  %v1520 = vsel %vm1497, %v1483, 0
  %v1523 = vsel %vm1497, %v1484, 0
  %v1526 = vsel %vm1497, %v1485, 0
  %v1529 = vsel %vm1497, %v1486, 0
  %v1532 = vsel %vm1497, %v1487, 0
  %v1535 = vsel %vm1497, %v1488, 0
  %v1538 = vsel %vm1497, %v1489, 0
  %v1541 = vsel %vm1497, %v1490, 0
  %v1544 = vsel %vm1497, %v1491, 0
  %vm1546 = vcmask 1041408
  %v1548 = vsel %vm1546, %v1492, 0
  %1550 = vmatprep.subr.bf16.mxu0 0
  %1551 = vmatpush1.bf16.msra.mxu0 %v1548
  %1552 = vmatprep.subr.bf16.mxu0 0
  %1553 = vmatpush1.bf16.msra.mxu0 0
  %1554 = vmatprep.subr.bf16.mxu0 0
  %1555 = vmatpush1.bf16.msra.mxu0 0
  %1556 = vmatprep.subr.bf16.mxu0 0
  %1557 = vmatpush1.bf16.msra.mxu0 0
  %1558 = vmatprep.subr.bf16.mxu0 0
  %1559 = vmatpush1.bf16.msra.mxu0 0
  %1560 = vmatprep.subr.bf16.mxu0 0
  %1561 = vmatpush1.bf16.msra.mxu0 0
  %1562 = vmatprep.subr.bf16.mxu0 0
  %1563 = vmatpush1.bf16.msra.mxu0 0
  %1564 = vmatprep.subr.bf16.mxu0 0
  %1565 = vmatpush1.bf16.msra.mxu0 0
  %1566 = vmatprep.subr.bf16.mxu0 0
  %1567 = vmatpush1.bf16.msra.mxu0 0
  %1568 = vmatprep.subr.bf16.mxu0 0
  %1569 = vmatpush1.bf16.msra.mxu0 0
  %1570 = vmatprep.subr.bf16.mxu0 0
  %1571 = vmatpush1.bf16.msra.mxu0 0
  %1572 = vmatprep.subr.bf16.mxu0 0
  %1573 = vmatpush1.bf16.msra.mxu0 0
  %1574 = vmatprep.subr.bf16.mxu0 0
  %1575 = vmatpush1.bf16.msra.mxu0 0
  %1576 = vmatprep.subr.bf16.mxu0 0
  %1577 = vmatpush1.bf16.msra.mxu0 0
  %1578 = vmatprep.subr.bf16.mxu0 0
  %1579 = vmatpush1.bf16.msra.mxu0 0
  %1580 = vmatprep.subr.bf16.mxu0 0
  %1581 = vmatpush1.bf16.msra.mxu0 0
  %1582 = vmatprep.mubr.bf16.mxu0 0
  %1583 = vmatmul.mubr.bf16.gmra.mrb[0].mxu0 %v1499
  %v1584 = vpop.f32.mrb[0].mxu0
  %v1585 = vadd.f32 %v1496, %v1584
  %v1586 = vpop.f32.mrb[0].mxu0
  %v1587 = vpop.f32.mrb[0].mxu0
  %v1588 = vadd.f32 %v1496, %v1587
  %v1589 = vpop.f32.mrb[0].mxu0
  %1590 = vmatprep.mubr.bf16.mxu0 0
  %1591 = vmatmul.mubr.bf16.gmra.mrb[0].mxu0 %v1502
  %v1592 = vpop.f32.mrb[0].mxu0
  %v1593 = vadd.f32 %v1496, %v1592
  %v1594 = vpop.f32.mrb[0].mxu0
  %v1595 = vpop.f32.mrb[0].mxu0
  %v1596 = vadd.f32 %v1496, %v1595
  %v1597 = vpop.f32.mrb[0].mxu0
  %1598 = vmatprep.mubr.bf16.mxu0 0
  %1599 = vmatmul.mubr.bf16.gmra.mrb[0].mxu0 %v1505
  %v1600 = vpop.f32.mrb[0].mxu0
  %v1601 = vadd.f32 %v1496, %v1600
  %v1602 = vpop.f32.mrb[0].mxu0
  %v1603 = vpop.f32.mrb[0].mxu0
  %v1604 = vadd.f32 %v1496, %v1603
  %v1605 = vpop.f32.mrb[0].mxu0
  %1606 = vmatprep.mubr.bf16.mxu0 0
  %1607 = vmatmul.mubr.bf16.gmra.mrb[0].mxu0 %v1508
  %v1608 = vpop.f32.mrb[0].mxu0
  %v1609 = vadd.f32 %v1496, %v1608
  %v1610 = vpop.f32.mrb[0].mxu0
  %v1611 = vpop.f32.mrb[0].mxu0
  %v1612 = vadd.f32 %v1496, %v1611
  %v1613 = vpop.f32.mrb[0].mxu0
  %1614 = vmatprep.mubr.bf16.mxu0 0
  %1615 = vmatmul.mubr.bf16.gmra.mrb[0].mxu0 %v1511
  %v1616 = vpop.f32.mrb[0].mxu0
  %v1617 = vadd.f32 %v1496, %v1616
  %v1618 = vpop.f32.mrb[0].mxu0
  %v1619 = vpop.f32.mrb[0].mxu0
  %v1620 = vadd.f32 %v1496, %v1619
  %v1621 = vpop.f32.mrb[0].mxu0
  %1622 = vmatprep.mubr.bf16.mxu0 0
  %1623 = vmatmul.mubr.bf16.gmra.mrb[0].mxu0 %v1514
  %v1624 = vpop.f32.mrb[0].mxu0
  %v1625 = vadd.f32 %v1496, %v1624
  %v1626 = vpop.f32.mrb[0].mxu0
  %v1627 = vpop.f32.mrb[0].mxu0
  %v1628 = vadd.f32 %v1496, %v1627
  %v1629 = vpop.f32.mrb[0].mxu0
  %1630 = vmatprep.mubr.bf16.mxu0 0
  %1631 = vmatmul.mubr.bf16.gmra.mrb[0].mxu0 %v1517
  %v1632 = vpop.f32.mrb[0].mxu0
  %v1633 = vadd.f32 %v1496, %v1632
  %v1634 = vpop.f32.mrb[0].mxu0
  %v1635 = vpop.f32.mrb[0].mxu0
  %v1636 = vadd.f32 %v1496, %v1635
  %v1637 = vpop.f32.mrb[0].mxu0
  %1638 = vmatprep.mubr.bf16.mxu0 0
  %1639 = vmatmul.mubr.bf16.gmra.mrb[0].mxu0 %v1520
  %v1640 = vpop.f32.mrb[0].mxu0
  %v1641 = vadd.f32 %v1496, %v1640
  %v1642 = vpop.f32.mrb[0].mxu0
  %v1643 = vpop.f32.mrb[0].mxu0
  %v1644 = vadd.f32 %v1496, %v1643
  %v1645 = vpop.f32.mrb[0].mxu0
  %1646 = vmatprep.mubr.bf16.mxu0 0
  %1647 = vmatmul.mubr.bf16.gmra.mrb[0].mxu0 %v1523
  %v1648 = vpop.f32.mrb[0].mxu0
  %v1649 = vadd.f32 %v1496, %v1648
  %v1650 = vpop.f32.mrb[0].mxu0
  %v1651 = vpop.f32.mrb[0].mxu0
  %v1652 = vadd.f32 %v1496, %v1651
  %v1653 = vpop.f32.mrb[0].mxu0
  %1654 = vmatprep.mubr.bf16.mxu0 0
  %1655 = vmatmul.mubr.bf16.gmra.mrb[0].mxu0 %v1526
  %v1656 = vpop.f32.mrb[0].mxu0
  %v1657 = vadd.f32 %v1496, %v1656
  %v1658 = vpop.f32.mrb[0].mxu0
  %v1659 = vpop.f32.mrb[0].mxu0
  %v1660 = vadd.f32 %v1496, %v1659
  %v1661 = vpop.f32.mrb[0].mxu0
  %1662 = vmatprep.mubr.bf16.mxu0 0
  %1663 = vmatmul.mubr.bf16.gmra.mrb[0].mxu0 %v1529
  %v1664 = vpop.f32.mrb[0].mxu0
  %v1665 = vadd.f32 %v1496, %v1664
  %v1666 = vpop.f32.mrb[0].mxu0
  %v1667 = vpop.f32.mrb[0].mxu0
  %v1668 = vadd.f32 %v1496, %v1667
  %v1669 = vpop.f32.mrb[0].mxu0
  %1670 = vmatprep.mubr.bf16.mxu0 0
  %1671 = vmatmul.mubr.bf16.gmra.mrb[0].mxu0 %v1532
  %v1672 = vpop.f32.mrb[0].mxu0
  %v1673 = vadd.f32 %v1496, %v1672
  %v1674 = vpop.f32.mrb[0].mxu0
  %v1675 = vpop.f32.mrb[0].mxu0
  %v1676 = vadd.f32 %v1496, %v1675
  %v1677 = vpop.f32.mrb[0].mxu0
  %1678 = vmatprep.mubr.bf16.mxu0 0
  %1679 = vmatmul.mubr.bf16.gmra.mrb[0].mxu0 %v1535
  %v1680 = vpop.f32.mrb[0].mxu0
  %v1681 = vadd.f32 %v1496, %v1680
  %v1682 = vpop.f32.mrb[0].mxu0
  %v1683 = vpop.f32.mrb[0].mxu0
  %v1684 = vadd.f32 %v1496, %v1683
  %v1685 = vpop.f32.mrb[0].mxu0
  %1686 = vmatprep.mubr.bf16.mxu0 0
  %1687 = vmatmul.mubr.bf16.gmra.mrb[0].mxu0 %v1538
  %v1688 = vpop.f32.mrb[0].mxu0
  %v1689 = vadd.f32 %v1496, %v1688
  %v1690 = vpop.f32.mrb[0].mxu0
  %v1691 = vpop.f32.mrb[0].mxu0
  %v1692 = vadd.f32 %v1496, %v1691
  %v1693 = vpop.f32.mrb[0].mxu0
  %1694 = vmatprep.mubr.bf16.mxu0 0
  %1695 = vmatmul.mubr.bf16.gmra.mrb[0].mxu0 %v1541
  %v1696 = vpop.f32.mrb[0].mxu0
  %v1697 = vadd.f32 %v1496, %v1696
  %v1698 = vpop.f32.mrb[0].mxu0
  %v1699 = vpop.f32.mrb[0].mxu0
  %v1700 = vadd.f32 %v1496, %v1699
  %v1701 = vpop.f32.mrb[0].mxu0
  %1702 = vmatprep.mubr.bf16.mxu0 0
  %1703 = vmatmul.mubr.bf16.gmra.mrb[0].mxu0 %v1544
  %v1704 = vpop.f32.mrb[0].mxu0
  %v1705 = vadd.f32 %v1496, %v1704
  %v1706 = vpop.f32.mrb[0].mxu0
  %v1707 = vpop.f32.mrb[0].mxu0
  %v1708 = vadd.f32 %v1496, %v1707
  %v1709 = vpop.f32.mrb[0].mxu0
  %1710 = vdwg.mxu0
  %vm1711 = vcmask 261120
  %v1712 = vsel %vm1711, %v1585, 0.0
  %1713 = vadd.xlane.f32.xlu0 %v1712
  %v1714 = vpop.xlane.xlu0 %1713
  %v1715 = vsel %vm1711, %v1588, 0.0
  %1716 = vadd.xlane.f32.xlu0 %v1715
  %v1717 = vpop.xlane.xlu0 %1716
  %v1718 = vsel %vm1711, %v1593, 0.0
  %1719 = vadd.xlane.f32.xlu0 %v1718
  %v1720 = vpop.xlane.xlu0 %1719
  %v1721 = vsel %vm1711, %v1596, 0.0
  %1722 = vadd.xlane.f32.xlu0 %v1721
  %v1723 = vpop.xlane.xlu0 %1722
  %v1724 = vsel %vm1711, %v1601, 0.0
  %1725 = vadd.xlane.f32.xlu0 %v1724
  %v1726 = vpop.xlane.xlu0 %1725
  %v1727 = vsel %vm1711, %v1604, 0.0
  %1728 = vadd.xlane.f32.xlu0 %v1727
  %v1729 = vpop.xlane.xlu0 %1728
  %v1730 = vsel %vm1711, %v1609, 0.0
  %1731 = vadd.xlane.f32.xlu0 %v1730
  %v1732 = vpop.xlane.xlu0 %1731
  %v1733 = vsel %vm1711, %v1612, 0.0
  %1734 = vadd.xlane.f32.xlu0 %v1733
  %v1735 = vpop.xlane.xlu0 %1734
  %v1736 = vsel %vm1711, %v1617, 0.0
  %1737 = vadd.xlane.f32.xlu0 %v1736
  %v1738 = vpop.xlane.xlu0 %1737
  %v1739 = vsel %vm1711, %v1620, 0.0
  %1740 = vadd.xlane.f32.xlu0 %v1739
  %v1741 = vpop.xlane.xlu0 %1740
  %v1742 = vsel %vm1711, %v1625, 0.0
  %1743 = vadd.xlane.f32.xlu0 %v1742
  %v1744 = vpop.xlane.xlu0 %1743
  %v1745 = vsel %vm1711, %v1628, 0.0
  %1746 = vadd.xlane.f32.xlu0 %v1745
  %v1747 = vpop.xlane.xlu0 %1746
  %v1748 = vsel %vm1711, %v1633, 0.0
  %1749 = vadd.xlane.f32.xlu0 %v1748
  %v1750 = vpop.xlane.xlu0 %1749
  %v1751 = vsel %vm1711, %v1636, 0.0
  %1752 = vadd.xlane.f32.xlu0 %v1751
  %v1753 = vpop.xlane.xlu0 %1752
  %v1754 = vsel %vm1711, %v1641, 0.0
  %1755 = vadd.xlane.f32.xlu0 %v1754
  %v1756 = vpop.xlane.xlu0 %1755
  %v1757 = vsel %vm1711, %v1644, 0.0
  %1758 = vadd.xlane.f32.xlu0 %v1757
  %v1759 = vpop.xlane.xlu0 %1758
  %v1760 = vsel %vm1711, %v1649, 0.0
  %1761 = vadd.xlane.f32.xlu0 %v1760
  %v1762 = vpop.xlane.xlu0 %1761
  %v1763 = vsel %vm1711, %v1652, 0.0
  %1764 = vadd.xlane.f32.xlu0 %v1763
  %v1765 = vpop.xlane.xlu0 %1764
  %v1766 = vsel %vm1711, %v1657, 0.0
  %1767 = vadd.xlane.f32.xlu0 %v1766
  %v1768 = vpop.xlane.xlu0 %1767
  %v1769 = vsel %vm1711, %v1660, 0.0
  %1770 = vadd.xlane.f32.xlu0 %v1769
  %v1771 = vpop.xlane.xlu0 %1770
  %v1772 = vsel %vm1711, %v1665, 0.0
  %1773 = vadd.xlane.f32.xlu0 %v1772
  %v1774 = vpop.xlane.xlu0 %1773
  %v1775 = vsel %vm1711, %v1668, 0.0
  %1776 = vadd.xlane.f32.xlu0 %v1775
  %v1777 = vpop.xlane.xlu0 %1776
  %v1778 = vsel %vm1711, %v1673, 0.0
  %1779 = vadd.xlane.f32.xlu0 %v1778
  %v1780 = vpop.xlane.xlu0 %1779
  %v1781 = vsel %vm1711, %v1676, 0.0
  %1782 = vadd.xlane.f32.xlu0 %v1781
  %v1783 = vpop.xlane.xlu0 %1782
  %v1784 = vsel %vm1711, %v1681, 0.0
  %1785 = vadd.xlane.f32.xlu0 %v1784
  %v1786 = vpop.xlane.xlu0 %1785
  %v1787 = vsel %vm1711, %v1684, 0.0
  %1788 = vadd.xlane.f32.xlu0 %v1787
  %v1789 = vpop.xlane.xlu0 %1788
  %v1790 = vsel %vm1711, %v1689, 0.0
  %1791 = vadd.xlane.f32.xlu0 %v1790
  %v1792 = vpop.xlane.xlu0 %1791
  %v1793 = vsel %vm1711, %v1692, 0.0
  %1794 = vadd.xlane.f32.xlu0 %v1793
  %v1795 = vpop.xlane.xlu0 %1794
  %v1796 = vsel %vm1711, %v1697, 0.0
  %1797 = vadd.xlane.f32.xlu0 %v1796
  %v1798 = vpop.xlane.xlu0 %1797
  %v1799 = vsel %vm1711, %v1700, 0.0
  %1800 = vadd.xlane.f32.xlu0 %v1799
  %v1801 = vpop.xlane.xlu0 %1800
  %v1802 = vsel %vm1711, %v1705, 0.0
  %1803 = vadd.xlane.f32.xlu0 %v1802
  %v1804 = vpop.xlane.xlu0 %1803
  %v1805 = vsel %vm1711, %v1708, 0.0
  %1806 = vadd.xlane.f32.xlu0 %v1805
  %v1807 = vpop.xlane.xlu0 %1806
  %v1808 = vrcp.pop 32.0
  %v1809 = vmul.f32 %v1714, %v1808
  %v1810 = vmul.f32 %v1717, %v1808
  %v1811 = vmul.f32 %v1720, %v1808
  %v1812 = vmul.f32 %v1723, %v1808
  %v1813 = vmul.f32 %v1726, %v1808
  %v1814 = vmul.f32 %v1729, %v1808
  %v1815 = vmul.f32 %v1732, %v1808
  %v1816 = vmul.f32 %v1735, %v1808
  %v1817 = vmul.f32 %v1738, %v1808
  %v1818 = vmul.f32 %v1741, %v1808
  %v1819 = vmul.f32 %v1744, %v1808
  %v1820 = vmul.f32 %v1747, %v1808
  %v1821 = vmul.f32 %v1750, %v1808
  %v1822 = vmul.f32 %v1753, %v1808
  %v1823 = vmul.f32 %v1756, %v1808
  %v1824 = vmul.f32 %v1759, %v1808
  %v1825 = vmul.f32 %v1762, %v1808
  %v1826 = vmul.f32 %v1765, %v1808
  %v1827 = vmul.f32 %v1768, %v1808
  %v1828 = vmul.f32 %v1771, %v1808
  %v1829 = vmul.f32 %v1774, %v1808
  %v1830 = vmul.f32 %v1777, %v1808
  %v1831 = vmul.f32 %v1780, %v1808
  %v1832 = vmul.f32 %v1783, %v1808
  %v1833 = vmul.f32 %v1786, %v1808
  %v1834 = vmul.f32 %v1789, %v1808
  %v1835 = vmul.f32 %v1792, %v1808
  %v1836 = vmul.f32 %v1795, %v1808
  %v1837 = vmul.f32 %v1798, %v1808
  %v1838 = vmul.f32 %v1801, %v1808
  %v1839 = vmul.f32 %v1804, %v1808
  %v1840 = vmul.f32 %v1807, %v1808
  %v1841 = vsub.f32 %v1585, %v1809
  %v1842 = vsub.f32 %v1588, %v1810
  %v1843 = vsub.f32 %v1593, %v1811
  %v1844 = vsub.f32 %v1596, %v1812
  %v1845 = vsub.f32 %v1601, %v1813
  %v1846 = vsub.f32 %v1604, %v1814
  %v1847 = vsub.f32 %v1609, %v1815
  %v1848 = vsub.f32 %v1612, %v1816
  %v1849 = vsub.f32 %v1617, %v1817
  %v1850 = vsub.f32 %v1620, %v1818
  %v1851 = vsub.f32 %v1625, %v1819
  %v1852 = vsub.f32 %v1628, %v1820
  %v1853 = vsub.f32 %v1633, %v1821
  %v1854 = vsub.f32 %v1636, %v1822
  %v1855 = vsub.f32 %v1641, %v1823
  %v1856 = vsub.f32 %v1644, %v1824
  %v1857 = vsub.f32 %v1649, %v1825
  %v1858 = vsub.f32 %v1652, %v1826
  %v1859 = vsub.f32 %v1657, %v1827
  %v1860 = vsub.f32 %v1660, %v1828
  %v1861 = vsub.f32 %v1665, %v1829
  %v1862 = vsub.f32 %v1668, %v1830
  %v1863 = vsub.f32 %v1673, %v1831
  %v1864 = vsub.f32 %v1676, %v1832
  %v1865 = vsub.f32 %v1681, %v1833
  %v1866 = vsub.f32 %v1684, %v1834
  %v1867 = vsub.f32 %v1689, %v1835
  %v1868 = vsub.f32 %v1692, %v1836
  %v1869 = vsub.f32 %v1697, %v1837
  %v1870 = vsub.f32 %v1700, %v1838
  %v1871 = vsub.f32 %v1705, %v1839
  %v1872 = vsub.f32 %v1708, %v1840
  %v1873 = vmul.f32 %v1841, %v1841
  %v1874 = vmul.f32 %v1842, %v1842
  %v1875 = vmul.f32 %v1843, %v1843
  %v1876 = vmul.f32 %v1844, %v1844
  %v1877 = vmul.f32 %v1845, %v1845
  %v1878 = vmul.f32 %v1846, %v1846
  %v1879 = vmul.f32 %v1847, %v1847
  %v1880 = vmul.f32 %v1848, %v1848
  %v1881 = vmul.f32 %v1849, %v1849
  %v1882 = vmul.f32 %v1850, %v1850
  %v1883 = vmul.f32 %v1851, %v1851
  %v1884 = vmul.f32 %v1852, %v1852
  %v1885 = vmul.f32 %v1853, %v1853
  %v1886 = vmul.f32 %v1854, %v1854
  %v1887 = vmul.f32 %v1855, %v1855
  %v1888 = vmul.f32 %v1856, %v1856
  %v1889 = vmul.f32 %v1857, %v1857
  %v1890 = vmul.f32 %v1858, %v1858
  %v1891 = vmul.f32 %v1859, %v1859
  %v1892 = vmul.f32 %v1860, %v1860
  %v1893 = vmul.f32 %v1861, %v1861
  %v1894 = vmul.f32 %v1862, %v1862
  %v1895 = vmul.f32 %v1863, %v1863
  %v1896 = vmul.f32 %v1864, %v1864
  %v1897 = vmul.f32 %v1865, %v1865
  %v1898 = vmul.f32 %v1866, %v1866
  %v1899 = vmul.f32 %v1867, %v1867
  %v1900 = vmul.f32 %v1868, %v1868
  %v1901 = vmul.f32 %v1869, %v1869
  %v1902 = vmul.f32 %v1870, %v1870
  %v1903 = vmul.f32 %v1871, %v1871
  %v1904 = vmul.f32 %v1872, %v1872
  %v1905 = vsel %vm1711, %v1873, 0.0
  %1906 = vadd.xlane.f32.xlu0 %v1905
  %v1907 = vpop.xlane.xlu0 %1906
  %v1908 = vsel %vm1711, %v1874, 0.0
  %1909 = vadd.xlane.f32.xlu0 %v1908
  %v1910 = vpop.xlane.xlu0 %1909
  %v1911 = vsel %vm1711, %v1875, 0.0
  %1912 = vadd.xlane.f32.xlu0 %v1911
  %v1913 = vpop.xlane.xlu0 %1912
  %v1914 = vsel %vm1711, %v1876, 0.0
  %1915 = vadd.xlane.f32.xlu0 %v1914
  %v1916 = vpop.xlane.xlu0 %1915
  %v1917 = vsel %vm1711, %v1877, 0.0
  %1918 = vadd.xlane.f32.xlu0 %v1917
  %v1919 = vpop.xlane.xlu0 %1918
  %v1920 = vsel %vm1711, %v1878, 0.0
  %1921 = vadd.xlane.f32.xlu0 %v1920
  %v1922 = vpop.xlane.xlu0 %1921
  %v1923 = vsel %vm1711, %v1879, 0.0
  %1924 = vadd.xlane.f32.xlu0 %v1923
  %v1925 = vpop.xlane.xlu0 %1924
  %v1926 = vsel %vm1711, %v1880, 0.0
  %1927 = vadd.xlane.f32.xlu0 %v1926
  %v1928 = vpop.xlane.xlu0 %1927
  %v1929 = vsel %vm1711, %v1881, 0.0
  %1930 = vadd.xlane.f32.xlu0 %v1929
  %v1931 = vpop.xlane.xlu0 %1930
  %v1932 = vsel %vm1711, %v1882, 0.0
  %1933 = vadd.xlane.f32.xlu0 %v1932
  %v1934 = vpop.xlane.xlu0 %1933
  %v1935 = vsel %vm1711, %v1883, 0.0
  %1936 = vadd.xlane.f32.xlu0 %v1935
  %v1937 = vpop.xlane.xlu0 %1936
  %v1938 = vsel %vm1711, %v1884, 0.0
  %1939 = vadd.xlane.f32.xlu0 %v1938
  %v1940 = vpop.xlane.xlu0 %1939
  %v1941 = vsel %vm1711, %v1885, 0.0
  %1942 = vadd.xlane.f32.xlu0 %v1941
  %v1943 = vpop.xlane.xlu0 %1942
  %v1944 = vsel %vm1711, %v1886, 0.0
  %1945 = vadd.xlane.f32.xlu0 %v1944
  %v1946 = vpop.xlane.xlu0 %1945
  %v1947 = vsel %vm1711, %v1887, 0.0
  %1948 = vadd.xlane.f32.xlu0 %v1947
  %v1949 = vpop.xlane.xlu0 %1948
  %v1950 = vsel %vm1711, %v1888, 0.0
  %1951 = vadd.xlane.f32.xlu0 %v1950
  %v1952 = vpop.xlane.xlu0 %1951
  %v1953 = vsel %vm1711, %v1889, 0.0
  %1954 = vadd.xlane.f32.xlu0 %v1953
  %v1955 = vpop.xlane.xlu0 %1954
  %v1956 = vsel %vm1711, %v1890, 0.0
  %1957 = vadd.xlane.f32.xlu0 %v1956
  %v1958 = vpop.xlane.xlu0 %1957
  %v1959 = vsel %vm1711, %v1891, 0.0
  %1960 = vadd.xlane.f32.xlu0 %v1959
  %v1961 = vpop.xlane.xlu0 %1960
  %v1962 = vsel %vm1711, %v1892, 0.0
  %1963 = vadd.xlane.f32.xlu0 %v1962
  %v1964 = vpop.xlane.xlu0 %1963
  %v1965 = vsel %vm1711, %v1893, 0.0
  %1966 = vadd.xlane.f32.xlu0 %v1965
  %v1967 = vpop.xlane.xlu0 %1966
  %v1968 = vsel %vm1711, %v1894, 0.0
  %1969 = vadd.xlane.f32.xlu0 %v1968
  %v1970 = vpop.xlane.xlu0 %1969
  %v1971 = vsel %vm1711, %v1895, 0.0
  %1972 = vadd.xlane.f32.xlu0 %v1971
  %v1973 = vpop.xlane.xlu0 %1972
  %v1974 = vsel %vm1711, %v1896, 0.0
  %1975 = vadd.xlane.f32.xlu0 %v1974
  %v1976 = vpop.xlane.xlu0 %1975
  %v1977 = vsel %vm1711, %v1897, 0.0
  %1978 = vadd.xlane.f32.xlu0 %v1977
  %v1979 = vpop.xlane.xlu0 %1978
  %v1980 = vsel %vm1711, %v1898, 0.0
  %1981 = vadd.xlane.f32.xlu0 %v1980
  %v1982 = vpop.xlane.xlu0 %1981
  %v1983 = vsel %vm1711, %v1899, 0.0
  %1984 = vadd.xlane.f32.xlu0 %v1983
  %v1985 = vpop.xlane.xlu0 %1984
  %v1986 = vsel %vm1711, %v1900, 0.0
  %1987 = vadd.xlane.f32.xlu0 %v1986
  %v1988 = vpop.xlane.xlu0 %1987
  %v1989 = vsel %vm1711, %v1901, 0.0
  %1990 = vadd.xlane.f32.xlu0 %v1989
  %v1991 = vpop.xlane.xlu0 %1990
  %v1992 = vsel %vm1711, %v1902, 0.0
  %1993 = vadd.xlane.f32.xlu0 %v1992
  %v1994 = vpop.xlane.xlu0 %1993
  %v1995 = vsel %vm1711, %v1903, 0.0
  %1996 = vadd.xlane.f32.xlu0 %v1995
  %v1997 = vpop.xlane.xlu0 %1996
  %v1998 = vsel %vm1711, %v1904, 0.0
  %1999 = vadd.xlane.f32.xlu0 %v1998
  %v2000 = vpop.xlane.xlu0 %1999
  %v2001 = vmul.f32 %v1907, %v1808
  %v2002 = vmul.f32 %v1910, %v1808
  %v2003 = vmul.f32 %v1913, %v1808
  %v2004 = vmul.f32 %v1916, %v1808
  %v2005 = vmul.f32 %v1919, %v1808
  %v2006 = vmul.f32 %v1922, %v1808
  %v2007 = vmul.f32 %v1925, %v1808
  %v2008 = vmul.f32 %v1928, %v1808
  %v2009 = vmul.f32 %v1931, %v1808
  %v2010 = vmul.f32 %v1934, %v1808
  %v2011 = vmul.f32 %v1937, %v1808
  %v2012 = vmul.f32 %v1940, %v1808
  %v2013 = vmul.f32 %v1943, %v1808
  %v2014 = vmul.f32 %v1946, %v1808
  %v2015 = vmul.f32 %v1949, %v1808
  %v2016 = vmul.f32 %v1952, %v1808
  %v2017 = vmul.f32 %v1955, %v1808
  %v2018 = vmul.f32 %v1958, %v1808
  %v2019 = vmul.f32 %v1961, %v1808
  %v2020 = vmul.f32 %v1964, %v1808
  %v2021 = vmul.f32 %v1967, %v1808
  %v2022 = vmul.f32 %v1970, %v1808
  %v2023 = vmul.f32 %v1973, %v1808
  %v2024 = vmul.f32 %v1976, %v1808
  %v2025 = vmul.f32 %v1979, %v1808
  %v2026 = vmul.f32 %v1982, %v1808
  %v2027 = vmul.f32 %v1985, %v1808
  %v2028 = vmul.f32 %v1988, %v1808
  %v2029 = vmul.f32 %v1991, %v1808
  %v2030 = vmul.f32 %v1994, %v1808
  %v2031 = vmul.f32 %v1997, %v1808
  %v2032 = vmul.f32 %v2000, %v1808
  %v2033 = vadd.f32 %v2001, 1e-05
  %v2034 = vadd.f32 %v2002, 1e-05
  %v2035 = vadd.f32 %v2003, 1e-05
  %v2036 = vadd.f32 %v2004, 1e-05
  %v2037 = vadd.f32 %v2005, 1e-05
  %v2038 = vadd.f32 %v2006, 1e-05
  %v2039 = vadd.f32 %v2007, 1e-05
  %v2040 = vadd.f32 %v2008, 1e-05
  %v2041 = vadd.f32 %v2009, 1e-05
  %v2042 = vadd.f32 %v2010, 1e-05
  %v2043 = vadd.f32 %v2011, 1e-05
  %v2044 = vadd.f32 %v2012, 1e-05
  %v2045 = vadd.f32 %v2013, 1e-05
  %v2046 = vadd.f32 %v2014, 1e-05
  %v2047 = vadd.f32 %v2015, 1e-05
  %v2048 = vadd.f32 %v2016, 1e-05
  %v2049 = vadd.f32 %v2017, 1e-05
  %v2050 = vadd.f32 %v2018, 1e-05
  %v2051 = vadd.f32 %v2019, 1e-05
  %v2052 = vadd.f32 %v2020, 1e-05
  %v2053 = vadd.f32 %v2021, 1e-05
  %v2054 = vadd.f32 %v2022, 1e-05
  %v2055 = vadd.f32 %v2023, 1e-05
  %v2056 = vadd.f32 %v2024, 1e-05
  %v2057 = vadd.f32 %v2025, 1e-05
  %v2058 = vadd.f32 %v2026, 1e-05
  %v2059 = vadd.f32 %v2027, 1e-05
  %v2060 = vadd.f32 %v2028, 1e-05
  %v2061 = vadd.f32 %v2029, 1e-05
  %v2062 = vadd.f32 %v2030, 1e-05
  %v2063 = vadd.f32 %v2031, 1e-05
  %v2064 = vadd.f32 %v2032, 1e-05
  %v2065 = vrsqrt.pop %v2033
  %v2066 = vrsqrt.pop %v2034
  %v2067 = vrsqrt.pop %v2035
  %v2068 = vrsqrt.pop %v2036
  %v2069 = vrsqrt.pop %v2037
  %v2070 = vrsqrt.pop %v2038
  %v2071 = vrsqrt.pop %v2039
  %v2072 = vrsqrt.pop %v2040
  %v2073 = vrsqrt.pop %v2041
  %v2074 = vrsqrt.pop %v2042
  %v2075 = vrsqrt.pop %v2043
  %v2076 = vrsqrt.pop %v2044
  %v2077 = vrsqrt.pop %v2045
  %v2078 = vrsqrt.pop %v2046
  %v2079 = vrsqrt.pop %v2047
  %v2080 = vrsqrt.pop %v2048
  %v2081 = vrsqrt.pop %v2049
  %v2082 = vrsqrt.pop %v2050
  %v2083 = vrsqrt.pop %v2051
  %v2084 = vrsqrt.pop %v2052
  %v2085 = vrsqrt.pop %v2053
  %v2086 = vrsqrt.pop %v2054
  %v2087 = vrsqrt.pop %v2055
  %v2088 = vrsqrt.pop %v2056
  %v2089 = vrsqrt.pop %v2057
  %v2090 = vrsqrt.pop %v2058
  %v2091 = vrsqrt.pop %v2059
  %v2092 = vrsqrt.pop %v2060
  %v2093 = vrsqrt.pop %v2061
  %v2094 = vrsqrt.pop %v2062
  %v2095 = vrsqrt.pop %v2063
  %v2096 = vrsqrt.pop %v2064
  %v2097 = vmul.f32 %v1841, %v2065
  %v2098 = vmul.f32 %v1842, %v2066
  %v2099 = vmul.f32 %v1843, %v2067
  %v2100 = vmul.f32 %v1844, %v2068
  %v2101 = vmul.f32 %v1845, %v2069
  %v2102 = vmul.f32 %v1846, %v2070
  %v2103 = vmul.f32 %v1847, %v2071
  %v2104 = vmul.f32 %v1848, %v2072
  %v2105 = vmul.f32 %v1849, %v2073
  %v2106 = vmul.f32 %v1850, %v2074
  %v2107 = vmul.f32 %v1851, %v2075
  %v2108 = vmul.f32 %v1852, %v2076
  %v2109 = vmul.f32 %v1853, %v2077
  %v2110 = vmul.f32 %v1854, %v2078
  %v2111 = vmul.f32 %v1855, %v2079
  %v2112 = vmul.f32 %v1856, %v2080
  %v2113 = vmul.f32 %v1857, %v2081
  %v2114 = vmul.f32 %v1858, %v2082
  %v2115 = vmul.f32 %v1859, %v2083
  %v2116 = vmul.f32 %v1860, %v2084
  %v2117 = vmul.f32 %v1861, %v2085
  %v2118 = vmul.f32 %v1862, %v2086
  %v2119 = vmul.f32 %v1863, %v2087
  %v2120 = vmul.f32 %v1864, %v2088
  %v2121 = vmul.f32 %v1865, %v2089
  %v2122 = vmul.f32 %v1866, %v2090
  %v2123 = vmul.f32 %v1867, %v2091
  %v2124 = vmul.f32 %v1868, %v2092
  %v2125 = vmul.f32 %v1869, %v2093
  %v2126 = vmul.f32 %v1870, %v2094
  %v2127 = vmul.f32 %v1871, %v2095
  %v2128 = vmul.f32 %v1872, %v2096
  %v2129 = vlaneseq
  %v2130 = vshrl.u32 %v2129, 7
  %v2131 = vsub.s32 1, %v2130
  %v2132 = vrot.slane %v30, %v2131
  %v2133 = vmul.f32 %v2097, %v2132
  %v2134 = vmul.f32 %v2098, %v2132
  %v2135 = vmul.f32 %v2099, %v2132
  %v2136 = vmul.f32 %v2100, %v2132
  %v2137 = vmul.f32 %v2101, %v2132
  %v2138 = vmul.f32 %v2102, %v2132
  %v2139 = vmul.f32 %v2103, %v2132
  %v2140 = vmul.f32 %v2104, %v2132
  %v2141 = vmul.f32 %v2105, %v2132
  %v2142 = vmul.f32 %v2106, %v2132
  %v2143 = vmul.f32 %v2107, %v2132
  %v2144 = vmul.f32 %v2108, %v2132
  %v2145 = vmul.f32 %v2109, %v2132
  %v2146 = vmul.f32 %v2110, %v2132
  %v2147 = vmul.f32 %v2111, %v2132
  %v2148 = vmul.f32 %v2112, %v2132
  %v2149 = vmul.f32 %v2113, %v2132
  %v2150 = vmul.f32 %v2114, %v2132
  %v2151 = vmul.f32 %v2115, %v2132
  %v2152 = vmul.f32 %v2116, %v2132
  %v2153 = vmul.f32 %v2117, %v2132
  %v2154 = vmul.f32 %v2118, %v2132
  %v2155 = vmul.f32 %v2119, %v2132
  %v2156 = vmul.f32 %v2120, %v2132
  %v2157 = vmul.f32 %v2121, %v2132
  %v2158 = vmul.f32 %v2122, %v2132
  %v2159 = vmul.f32 %v2123, %v2132
  %v2160 = vmul.f32 %v2124, %v2132
  %v2161 = vmul.f32 %v2125, %v2132
  %v2162 = vmul.f32 %v2126, %v2132
  %v2163 = vmul.f32 %v2127, %v2132
  %v2164 = vmul.f32 %v2128, %v2132
  %v2165 = vlaneseq
  %v2166 = vshrl.u32 %v2165, 7
  %v2167 = vsub.s32 2, %v2166
  %v2168 = vrot.slane %v30, %v2167
  %v2169 = vadd.f32 %v2133, %v2168
  %v2170 = vadd.f32 %v2134, %v2168
  %v2171 = vadd.f32 %v2135, %v2168
  %v2172 = vadd.f32 %v2136, %v2168
  %v2173 = vadd.f32 %v2137, %v2168
  %v2174 = vadd.f32 %v2138, %v2168
  %v2175 = vadd.f32 %v2139, %v2168
  %v2176 = vadd.f32 %v2140, %v2168
  %v2177 = vadd.f32 %v2141, %v2168
  %v2178 = vadd.f32 %v2142, %v2168
  %v2179 = vadd.f32 %v2143, %v2168
  %v2180 = vadd.f32 %v2144, %v2168
  %v2181 = vadd.f32 %v2145, %v2168
  %v2182 = vadd.f32 %v2146, %v2168
  %v2183 = vadd.f32 %v2147, %v2168
  %v2184 = vadd.f32 %v2148, %v2168
  %v2185 = vadd.f32 %v2149, %v2168
  %v2186 = vadd.f32 %v2150, %v2168
  %v2187 = vadd.f32 %v2151, %v2168
  %v2188 = vadd.f32 %v2152, %v2168
  %v2189 = vadd.f32 %v2153, %v2168
  %v2190 = vadd.f32 %v2154, %v2168
  %v2191 = vadd.f32 %v2155, %v2168
  %v2192 = vadd.f32 %v2156, %v2168
  %v2193 = vadd.f32 %v2157, %v2168
  %v2194 = vadd.f32 %v2158, %v2168
  %v2195 = vadd.f32 %v2159, %v2168
  %v2196 = vadd.f32 %v2160, %v2168
  %v2197 = vadd.f32 %v2161, %v2168
  %v2198 = vadd.f32 %v2162, %v2168
  %v2199 = vadd.f32 %v2163, %v2168
  %v2200 = vadd.f32 %v2164, %v2168
  %v2201 = vmax.f32 %v2169, 0.0
  %v2202 = vmax.f32 %v2170, 0.0
  %v2203 = vmax.f32 %v2171, 0.0
  %v2204 = vmax.f32 %v2172, 0.0
  %v2205 = vmax.f32 %v2173, 0.0
  %v2206 = vmax.f32 %v2174, 0.0
  %v2207 = vmax.f32 %v2175, 0.0
  %v2208 = vmax.f32 %v2176, 0.0
  %v2209 = vmax.f32 %v2177, 0.0
  %v2210 = vmax.f32 %v2178, 0.0
  %v2211 = vmax.f32 %v2179, 0.0
  %v2212 = vmax.f32 %v2180, 0.0
  %v2213 = vmax.f32 %v2181, 0.0
  %v2214 = vmax.f32 %v2182, 0.0
  %v2215 = vmax.f32 %v2183, 0.0
  %v2216 = vmax.f32 %v2184, 0.0
  %v2217 = vmax.f32 %v2185, 0.0
  %v2218 = vmax.f32 %v2186, 0.0
  %v2219 = vmax.f32 %v2187, 0.0
  %v2220 = vmax.f32 %v2188, 0.0
  %v2221 = vmax.f32 %v2189, 0.0
  %v2222 = vmax.f32 %v2190, 0.0
  %v2223 = vmax.f32 %v2191, 0.0
  %v2224 = vmax.f32 %v2192, 0.0
  %v2225 = vmax.f32 %v2193, 0.0
  %v2226 = vmax.f32 %v2194, 0.0
  %v2227 = vmax.f32 %v2195, 0.0
  %v2228 = vmax.f32 %v2196, 0.0
  %v2229 = vmax.f32 %v2197, 0.0
  %v2230 = vmax.f32 %v2198, 0.0
  %v2231 = vmax.f32 %v2199, 0.0
  %v2232 = vmax.f32 %v2200, 0.0
  %v2233 = vpack.c.bf16 %v2202, %v2201
  %v2234 = vpack.c.bf16 %v2204, %v2203
  %v2235 = vpack.c.bf16 %v2206, %v2205
  %v2236 = vpack.c.bf16 %v2208, %v2207
  %v2237 = vpack.c.bf16 %v2210, %v2209
  %v2238 = vpack.c.bf16 %v2212, %v2211
  %v2239 = vpack.c.bf16 %v2214, %v2213
  %v2240 = vpack.c.bf16 %v2216, %v2215
  %v2241 = vpack.c.bf16 %v2218, %v2217
  %v2242 = vpack.c.bf16 %v2220, %v2219
  %v2243 = vpack.c.bf16 %v2222, %v2221
  %v2244 = vpack.c.bf16 %v2224, %v2223
  %v2245 = vpack.c.bf16 %v2226, %v2225
  %v2246 = vpack.c.bf16 %v2228, %v2227
  %v2247 = vpack.c.bf16 %v2230, %v2229
  %v2248 = vpack.c.bf16 %v2232, %v2231
  %v2249 = vld [vmem:[%s4] sm:$0xf]
  %v2250 = vld [vmem:[%s4 + $0x4] sm:$0xf]
  %v2251 = vld [vmem:[%s4 + $0x8] sm:$0xf]
  %v2252 = vld [vmem:[%s4 + $0xc] sm:$0xf]
  %v2253 = vlaneseq
  %v2254 = vshrl.u32 %v2253, 7
  %v2255 = vsub.s32 3, %v2254
  %v2256 = vrot.slane %v30, %v2255
  %v2261 = vunpack.c.l.b16 %v2249
  %v2262 = vunpack.c.l.b16 %v2250
  %v2263 = vunpack.c.l.b16 %v2251
  %v2264 = vunpack.c.l.b16 %v2252
  %v2265 = vpack.c.b16 %v2262, %v2261
  %v2266 = vpack.c.b16 %v2264, %v2263
  %v2270 = vsel %vm1711, %v2233, 0
  %v2273 = vsel %vm1711, %v2234, 0
  %v2276 = vsel %vm1711, %v2235, 0
  %v2279 = vsel %vm1711, %v2236, 0
  %v2282 = vsel %vm1711, %v2237, 0
  %v2285 = vsel %vm1711, %v2238, 0
  %v2288 = vsel %vm1711, %v2239, 0
  %v2291 = vsel %vm1711, %v2240, 0
  %v2294 = vsel %vm1711, %v2241, 0
  %v2297 = vsel %vm1711, %v2242, 0
  %v2300 = vsel %vm1711, %v2243, 0
  %v2303 = vsel %vm1711, %v2244, 0
  %v2306 = vsel %vm1711, %v2245, 0
  %v2309 = vsel %vm1711, %v2246, 0
  %v2312 = vsel %vm1711, %v2247, 0
  %v2315 = vsel %vm1711, %v2248, 0
  %2317 = vmatprep.subr.bf16.mxu0 0
  %2318 = vmatpush1.bf16.msra.mxu0 %v2265
  %2319 = vmatprep.subr.bf16.mxu0 0
  %2320 = vmatpush1.bf16.msra.mxu0 %v2266
  %2321 = vmatprep.subr.bf16.mxu0 0
  %2322 = vmatpush1.bf16.msra.mxu0 0
  %2323 = vmatprep.subr.bf16.mxu0 0
  %2324 = vmatpush1.bf16.msra.mxu0 0
  %2325 = vmatprep.subr.bf16.mxu0 0
  %2326 = vmatpush1.bf16.msra.mxu0 0
  %2327 = vmatprep.subr.bf16.mxu0 0
  %2328 = vmatpush1.bf16.msra.mxu0 0
  %2329 = vmatprep.subr.bf16.mxu0 0
  %2330 = vmatpush1.bf16.msra.mxu0 0
  %2331 = vmatprep.subr.bf16.mxu0 0
  %2332 = vmatpush1.bf16.msra.mxu0 0
  %2333 = vmatprep.subr.bf16.mxu0 0
  %2334 = vmatpush1.bf16.msra.mxu0 0
  %2335 = vmatprep.subr.bf16.mxu0 0
  %2336 = vmatpush1.bf16.msra.mxu0 0
  %2337 = vmatprep.subr.bf16.mxu0 0
  %2338 = vmatpush1.bf16.msra.mxu0 0
  %2339 = vmatprep.subr.bf16.mxu0 0
  %2340 = vmatpush1.bf16.msra.mxu0 0
  %2341 = vmatprep.subr.bf16.mxu0 0
  %2342 = vmatpush1.bf16.msra.mxu0 0
  %2343 = vmatprep.subr.bf16.mxu0 0
  %2344 = vmatpush1.bf16.msra.mxu0 0
  %2345 = vmatprep.subr.bf16.mxu0 0
  %2346 = vmatpush1.bf16.msra.mxu0 0
  %2347 = vmatprep.subr.bf16.mxu0 0
  %2348 = vmatpush1.bf16.msra.mxu0 0
  %2349 = vmatprep.mubr.bf16.mxu0 0
  %2350 = vmatmul.mubr.bf16.gmra.mrb[0].mxu0 %v2270
  %v2351 = vpop.f32.mrb[0].mxu0
  %v2352 = vadd.f32 %v2256, %v2351
  %v2353 = vpop.f32.mrb[0].mxu0
  %v2354 = vpop.f32.mrb[0].mxu0
  %v2355 = vadd.f32 %v2256, %v2354
  %v2356 = vpop.f32.mrb[0].mxu0
  %2357 = vmatprep.mubr.bf16.mxu0 0
  %2358 = vmatmul.mubr.bf16.gmra.mrb[0].mxu0 %v2273
  %v2359 = vpop.f32.mrb[0].mxu0
  %v2360 = vadd.f32 %v2256, %v2359
  %v2361 = vpop.f32.mrb[0].mxu0
  %v2362 = vpop.f32.mrb[0].mxu0
  %v2363 = vadd.f32 %v2256, %v2362
  %v2364 = vpop.f32.mrb[0].mxu0
  %2365 = vmatprep.mubr.bf16.mxu0 0
  %2366 = vmatmul.mubr.bf16.gmra.mrb[0].mxu0 %v2276
  %v2367 = vpop.f32.mrb[0].mxu0
  %v2368 = vadd.f32 %v2256, %v2367
  %v2369 = vpop.f32.mrb[0].mxu0
  %v2370 = vpop.f32.mrb[0].mxu0
  %v2371 = vadd.f32 %v2256, %v2370
  %v2372 = vpop.f32.mrb[0].mxu0
  %2373 = vmatprep.mubr.bf16.mxu0 0
  %2374 = vmatmul.mubr.bf16.gmra.mrb[0].mxu0 %v2279
  %v2375 = vpop.f32.mrb[0].mxu0
  %v2376 = vadd.f32 %v2256, %v2375
  %v2377 = vpop.f32.mrb[0].mxu0
  %v2378 = vpop.f32.mrb[0].mxu0
  %v2379 = vadd.f32 %v2256, %v2378
  %v2380 = vpop.f32.mrb[0].mxu0
  %2381 = vmatprep.mubr.bf16.mxu0 0
  %2382 = vmatmul.mubr.bf16.gmra.mrb[0].mxu0 %v2282
  %v2383 = vpop.f32.mrb[0].mxu0
  %v2384 = vadd.f32 %v2256, %v2383
  %v2385 = vpop.f32.mrb[0].mxu0
  %v2386 = vpop.f32.mrb[0].mxu0
  %v2387 = vadd.f32 %v2256, %v2386
  %v2388 = vpop.f32.mrb[0].mxu0
  %2389 = vmatprep.mubr.bf16.mxu0 0
  %2390 = vmatmul.mubr.bf16.gmra.mrb[0].mxu0 %v2285
  %v2391 = vpop.f32.mrb[0].mxu0
  %v2392 = vadd.f32 %v2256, %v2391
  %v2393 = vpop.f32.mrb[0].mxu0
  %v2394 = vpop.f32.mrb[0].mxu0
  %v2395 = vadd.f32 %v2256, %v2394
  %v2396 = vpop.f32.mrb[0].mxu0
  %2397 = vmatprep.mubr.bf16.mxu0 0
  %2398 = vmatmul.mubr.bf16.gmra.mrb[0].mxu0 %v2288
  %v2399 = vpop.f32.mrb[0].mxu0
  %v2400 = vadd.f32 %v2256, %v2399
  %v2401 = vpop.f32.mrb[0].mxu0
  %v2402 = vpop.f32.mrb[0].mxu0
  %v2403 = vadd.f32 %v2256, %v2402
  %v2404 = vpop.f32.mrb[0].mxu0
  %2405 = vmatprep.mubr.bf16.mxu0 0
  %2406 = vmatmul.mubr.bf16.gmra.mrb[0].mxu0 %v2291
  %v2407 = vpop.f32.mrb[0].mxu0
  %v2408 = vadd.f32 %v2256, %v2407
  %v2409 = vpop.f32.mrb[0].mxu0
  %v2410 = vpop.f32.mrb[0].mxu0
  %v2411 = vadd.f32 %v2256, %v2410
  %v2412 = vpop.f32.mrb[0].mxu0
  %2413 = vmatprep.mubr.bf16.mxu0 0
  %2414 = vmatmul.mubr.bf16.gmra.mrb[0].mxu0 %v2294
  %v2415 = vpop.f32.mrb[0].mxu0
  %v2416 = vadd.f32 %v2256, %v2415
  %v2417 = vpop.f32.mrb[0].mxu0
  %v2418 = vpop.f32.mrb[0].mxu0
  %v2419 = vadd.f32 %v2256, %v2418
  %v2420 = vpop.f32.mrb[0].mxu0
  %2421 = vmatprep.mubr.bf16.mxu0 0
  %2422 = vmatmul.mubr.bf16.gmra.mrb[0].mxu0 %v2297
  %v2423 = vpop.f32.mrb[0].mxu0
  %v2424 = vadd.f32 %v2256, %v2423
  %v2425 = vpop.f32.mrb[0].mxu0
  %v2426 = vpop.f32.mrb[0].mxu0
  %v2427 = vadd.f32 %v2256, %v2426
  %v2428 = vpop.f32.mrb[0].mxu0
  %2429 = vmatprep.mubr.bf16.mxu0 0
  %2430 = vmatmul.mubr.bf16.gmra.mrb[0].mxu0 %v2300
  %v2431 = vpop.f32.mrb[0].mxu0
  %v2432 = vadd.f32 %v2256, %v2431
  %v2433 = vpop.f32.mrb[0].mxu0
  %v2434 = vpop.f32.mrb[0].mxu0
  %v2435 = vadd.f32 %v2256, %v2434
  %v2436 = vpop.f32.mrb[0].mxu0
  %2437 = vmatprep.mubr.bf16.mxu0 0
  %2438 = vmatmul.mubr.bf16.gmra.mrb[0].mxu0 %v2303
  %v2439 = vpop.f32.mrb[0].mxu0
  %v2440 = vadd.f32 %v2256, %v2439
  %v2441 = vpop.f32.mrb[0].mxu0
  %v2442 = vpop.f32.mrb[0].mxu0
  %v2443 = vadd.f32 %v2256, %v2442
  %v2444 = vpop.f32.mrb[0].mxu0
  %2445 = vmatprep.mubr.bf16.mxu0 0
  %2446 = vmatmul.mubr.bf16.gmra.mrb[0].mxu0 %v2306
  %v2447 = vpop.f32.mrb[0].mxu0
  %v2448 = vadd.f32 %v2256, %v2447
  %v2449 = vpop.f32.mrb[0].mxu0
  %v2450 = vpop.f32.mrb[0].mxu0
  %v2451 = vadd.f32 %v2256, %v2450
  %v2452 = vpop.f32.mrb[0].mxu0
  %2453 = vmatprep.mubr.bf16.mxu0 0
  %2454 = vmatmul.mubr.bf16.gmra.mrb[0].mxu0 %v2309
  %v2455 = vpop.f32.mrb[0].mxu0
  %v2456 = vadd.f32 %v2256, %v2455
  %v2457 = vpop.f32.mrb[0].mxu0
  %v2458 = vpop.f32.mrb[0].mxu0
  %v2459 = vadd.f32 %v2256, %v2458
  %v2460 = vpop.f32.mrb[0].mxu0
  %2461 = vmatprep.mubr.bf16.mxu0 0
  %2462 = vmatmul.mubr.bf16.gmra.mrb[0].mxu0 %v2312
  %v2463 = vpop.f32.mrb[0].mxu0
  %v2464 = vadd.f32 %v2256, %v2463
  %v2465 = vpop.f32.mrb[0].mxu0
  %v2466 = vpop.f32.mrb[0].mxu0
  %v2467 = vadd.f32 %v2256, %v2466
  %v2468 = vpop.f32.mrb[0].mxu0
  %2469 = vmatprep.mubr.bf16.mxu0 0
  %2470 = vmatmul.mubr.bf16.gmra.mrb[0].mxu0 %v2315
  %v2471 = vpop.f32.mrb[0].mxu0
  %v2472 = vadd.f32 %v2256, %v2471
  %v2473 = vpop.f32.mrb[0].mxu0
  %v2474 = vpop.f32.mrb[0].mxu0
  %v2475 = vadd.f32 %v2256, %v2474
  %v2476 = vpop.f32.mrb[0].mxu0
  %2477 = vdwg.mxu0
  %v2478 = vpack.c.bf16 %v2355, %v2352
  %v2479 = vpack.c.bf16 %v2363, %v2360
  %v2480 = vpack.c.bf16 %v2371, %v2368
  %v2481 = vpack.c.bf16 %v2379, %v2376
  %v2482 = vpack.c.bf16 %v2387, %v2384
  %v2483 = vpack.c.bf16 %v2395, %v2392
  %v2484 = vpack.c.bf16 %v2403, %v2400
  %v2485 = vpack.c.bf16 %v2411, %v2408
  %v2486 = vpack.c.bf16 %v2419, %v2416
  %v2487 = vpack.c.bf16 %v2427, %v2424
  %v2488 = vpack.c.bf16 %v2435, %v2432
  %v2489 = vpack.c.bf16 %v2443, %v2440
  %v2490 = vpack.c.bf16 %v2451, %v2448
  %v2491 = vpack.c.bf16 %v2459, %v2456
  %v2492 = vpack.c.bf16 %v2467, %v2464
  %v2493 = vpack.c.bf16 %v2475, %v2472
  %v2494 = vld [vmem:[%s5] sm:$0xf]
  %v2495 = vld [vmem:[%s5 + $0x4] sm:$0xf]
  %v2496 = vld [vmem:[%s5 + $0x8] sm:$0xf]
  %v2497 = vld [vmem:[%s5 + $0xc] sm:$0xf]
  %v2502 = vunpack.c.l.b16 %v2494
  %v2503 = vunpack.c.l.b16 %v2495
  %v2504 = vunpack.c.l.b16 %v2496
  %v2505 = vunpack.c.l.b16 %v2497
  %v2506 = vpack.c.b16 %v2503, %v2502
  %v2507 = vpack.c.b16 %v2505, %v2504
  %v2511 = vsel %vm1711, %v2478, 0
  %v2514 = vsel %vm1711, %v2479, 0
  %v2517 = vsel %vm1711, %v2480, 0
  %v2520 = vsel %vm1711, %v2481, 0
  %v2523 = vsel %vm1711, %v2482, 0
  %v2526 = vsel %vm1711, %v2483, 0
  %v2529 = vsel %vm1711, %v2484, 0
  %v2532 = vsel %vm1711, %v2485, 0
  %v2535 = vsel %vm1711, %v2486, 0
  %v2538 = vsel %vm1711, %v2487, 0
  %v2541 = vsel %vm1711, %v2488, 0
  %v2544 = vsel %vm1711, %v2489, 0
  %v2547 = vsel %vm1711, %v2490, 0
  %v2550 = vsel %vm1711, %v2491, 0
  %v2553 = vsel %vm1711, %v2492, 0
  %v2556 = vsel %vm1711, %v2493, 0
  %2558 = vmatprep.subr.bf16.mxu0 0
  %2559 = vmatpush1.bf16.msra.mxu0 %v2506
  %2560 = vmatprep.subr.bf16.mxu0 0
  %2561 = vmatpush1.bf16.msra.mxu0 %v2507
  %2562 = vmatprep.subr.bf16.mxu0 0
  %2563 = vmatpush1.bf16.msra.mxu0 0
  %2564 = vmatprep.subr.bf16.mxu0 0
  %2565 = vmatpush1.bf16.msra.mxu0 0
  %2566 = vmatprep.subr.bf16.mxu0 0
  %2567 = vmatpush1.bf16.msra.mxu0 0
  %2568 = vmatprep.subr.bf16.mxu0 0
  %2569 = vmatpush1.bf16.msra.mxu0 0
  %2570 = vmatprep.subr.bf16.mxu0 0
  %2571 = vmatpush1.bf16.msra.mxu0 0
  %2572 = vmatprep.subr.bf16.mxu0 0
  %2573 = vmatpush1.bf16.msra.mxu0 0
  %2574 = vmatprep.subr.bf16.mxu0 0
  %2575 = vmatpush1.bf16.msra.mxu0 0
  %2576 = vmatprep.subr.bf16.mxu0 0
  %2577 = vmatpush1.bf16.msra.mxu0 0
  %2578 = vmatprep.subr.bf16.mxu0 0
  %2579 = vmatpush1.bf16.msra.mxu0 0
  %2580 = vmatprep.subr.bf16.mxu0 0
  %2581 = vmatpush1.bf16.msra.mxu0 0
  %2582 = vmatprep.subr.bf16.mxu0 0
  %2583 = vmatpush1.bf16.msra.mxu0 0
  %2584 = vmatprep.subr.bf16.mxu0 0
  %2585 = vmatpush1.bf16.msra.mxu0 0
  %2586 = vmatprep.subr.bf16.mxu0 0
  %2587 = vmatpush1.bf16.msra.mxu0 0
  %2588 = vmatprep.subr.bf16.mxu0 0
  %2589 = vmatpush1.bf16.msra.mxu0 0
  %2590 = vmatprep.mubr.bf16.mxu0 0
  %2591 = vmatmul.mubr.bf16.gmra.mrb[0].mxu0 %v2511
  %v2592 = vpop.f32.mrb[0].mxu0
  %v2593 = vadd.f32 0.0, %v2592
  %v2594 = vpop.f32.mrb[0].mxu0
  %v2595 = vpop.f32.mrb[0].mxu0
  %v2596 = vadd.f32 0.0, %v2595
  %v2597 = vpop.f32.mrb[0].mxu0
  %2598 = vmatprep.mubr.bf16.mxu0 0
  %2599 = vmatmul.mubr.bf16.gmra.mrb[0].mxu0 %v2514
  %v2600 = vpop.f32.mrb[0].mxu0
  %v2601 = vadd.f32 0.0, %v2600
  %v2602 = vpop.f32.mrb[0].mxu0
  %v2603 = vpop.f32.mrb[0].mxu0
  %v2604 = vadd.f32 0.0, %v2603
  %v2605 = vpop.f32.mrb[0].mxu0
  %2606 = vmatprep.mubr.bf16.mxu0 0
  %2607 = vmatmul.mubr.bf16.gmra.mrb[0].mxu0 %v2517
  %v2608 = vpop.f32.mrb[0].mxu0
  %v2609 = vadd.f32 0.0, %v2608
  %v2610 = vpop.f32.mrb[0].mxu0
  %v2611 = vpop.f32.mrb[0].mxu0
  %v2612 = vadd.f32 0.0, %v2611
  %v2613 = vpop.f32.mrb[0].mxu0
  %2614 = vmatprep.mubr.bf16.mxu0 0
  %2615 = vmatmul.mubr.bf16.gmra.mrb[0].mxu0 %v2520
  %v2616 = vpop.f32.mrb[0].mxu0
  %v2617 = vadd.f32 0.0, %v2616
  %v2618 = vpop.f32.mrb[0].mxu0
  %v2619 = vpop.f32.mrb[0].mxu0
  %v2620 = vadd.f32 0.0, %v2619
  %v2621 = vpop.f32.mrb[0].mxu0
  %2622 = vmatprep.mubr.bf16.mxu0 0
  %2623 = vmatmul.mubr.bf16.gmra.mrb[0].mxu0 %v2523
  %v2624 = vpop.f32.mrb[0].mxu0
  %v2625 = vadd.f32 0.0, %v2624
  %v2626 = vpop.f32.mrb[0].mxu0
  %v2627 = vpop.f32.mrb[0].mxu0
  %v2628 = vadd.f32 0.0, %v2627
  %v2629 = vpop.f32.mrb[0].mxu0
  %2630 = vmatprep.mubr.bf16.mxu0 0
  %2631 = vmatmul.mubr.bf16.gmra.mrb[0].mxu0 %v2526
  %v2632 = vpop.f32.mrb[0].mxu0
  %v2633 = vadd.f32 0.0, %v2632
  %v2634 = vpop.f32.mrb[0].mxu0
  %v2635 = vpop.f32.mrb[0].mxu0
  %v2636 = vadd.f32 0.0, %v2635
  %v2637 = vpop.f32.mrb[0].mxu0
  %2638 = vmatprep.mubr.bf16.mxu0 0
  %2639 = vmatmul.mubr.bf16.gmra.mrb[0].mxu0 %v2529
  %v2640 = vpop.f32.mrb[0].mxu0
  %v2641 = vadd.f32 0.0, %v2640
  %v2642 = vpop.f32.mrb[0].mxu0
  %v2643 = vpop.f32.mrb[0].mxu0
  %v2644 = vadd.f32 0.0, %v2643
  %v2645 = vpop.f32.mrb[0].mxu0
  %2646 = vmatprep.mubr.bf16.mxu0 0
  %2647 = vmatmul.mubr.bf16.gmra.mrb[0].mxu0 %v2532
  %v2648 = vpop.f32.mrb[0].mxu0
  %v2649 = vadd.f32 0.0, %v2648
  %v2650 = vpop.f32.mrb[0].mxu0
  %v2651 = vpop.f32.mrb[0].mxu0
  %v2652 = vadd.f32 0.0, %v2651
  %v2653 = vpop.f32.mrb[0].mxu0
  %2654 = vmatprep.mubr.bf16.mxu0 0
  %2655 = vmatmul.mubr.bf16.gmra.mrb[0].mxu0 %v2535
  %v2656 = vpop.f32.mrb[0].mxu0
  %v2657 = vadd.f32 0.0, %v2656
  %v2658 = vpop.f32.mrb[0].mxu0
  %v2659 = vpop.f32.mrb[0].mxu0
  %v2660 = vadd.f32 0.0, %v2659
  %v2661 = vpop.f32.mrb[0].mxu0
  %2662 = vmatprep.mubr.bf16.mxu0 0
  %2663 = vmatmul.mubr.bf16.gmra.mrb[0].mxu0 %v2538
  %v2664 = vpop.f32.mrb[0].mxu0
  %v2665 = vadd.f32 0.0, %v2664
  %v2666 = vpop.f32.mrb[0].mxu0
  %v2667 = vpop.f32.mrb[0].mxu0
  %v2668 = vadd.f32 0.0, %v2667
  %v2669 = vpop.f32.mrb[0].mxu0
  %2670 = vmatprep.mubr.bf16.mxu0 0
  %2671 = vmatmul.mubr.bf16.gmra.mrb[0].mxu0 %v2541
  %v2672 = vpop.f32.mrb[0].mxu0
  %v2673 = vadd.f32 0.0, %v2672
  %v2674 = vpop.f32.mrb[0].mxu0
  %v2675 = vpop.f32.mrb[0].mxu0
  %v2676 = vadd.f32 0.0, %v2675
  %v2677 = vpop.f32.mrb[0].mxu0
  %2678 = vmatprep.mubr.bf16.mxu0 0
  %2679 = vmatmul.mubr.bf16.gmra.mrb[0].mxu0 %v2544
  %v2680 = vpop.f32.mrb[0].mxu0
  %v2681 = vadd.f32 0.0, %v2680
  %v2682 = vpop.f32.mrb[0].mxu0
  %v2683 = vpop.f32.mrb[0].mxu0
  %v2684 = vadd.f32 0.0, %v2683
  %v2685 = vpop.f32.mrb[0].mxu0
  %2686 = vmatprep.mubr.bf16.mxu0 0
  %2687 = vmatmul.mubr.bf16.gmra.mrb[0].mxu0 %v2547
  %v2688 = vpop.f32.mrb[0].mxu0
  %v2689 = vadd.f32 0.0, %v2688
  %v2690 = vpop.f32.mrb[0].mxu0
  %v2691 = vpop.f32.mrb[0].mxu0
  %v2692 = vadd.f32 0.0, %v2691
  %v2693 = vpop.f32.mrb[0].mxu0
  %2694 = vmatprep.mubr.bf16.mxu0 0
  %2695 = vmatmul.mubr.bf16.gmra.mrb[0].mxu0 %v2550
  %v2696 = vpop.f32.mrb[0].mxu0
  %v2697 = vadd.f32 0.0, %v2696
  %v2698 = vpop.f32.mrb[0].mxu0
  %v2699 = vpop.f32.mrb[0].mxu0
  %v2700 = vadd.f32 0.0, %v2699
  %v2701 = vpop.f32.mrb[0].mxu0
  %2702 = vmatprep.mubr.bf16.mxu0 0
  %2703 = vmatmul.mubr.bf16.gmra.mrb[0].mxu0 %v2553
  %v2704 = vpop.f32.mrb[0].mxu0
  %v2705 = vadd.f32 0.0, %v2704
  %v2706 = vpop.f32.mrb[0].mxu0
  %v2707 = vpop.f32.mrb[0].mxu0
  %v2708 = vadd.f32 0.0, %v2707
  %v2709 = vpop.f32.mrb[0].mxu0
  %2710 = vmatprep.mubr.bf16.mxu0 0
  %2711 = vmatmul.mubr.bf16.gmra.mrb[0].mxu0 %v2556
  %v2712 = vpop.f32.mrb[0].mxu0
  %v2713 = vadd.f32 0.0, %v2712
  %v2714 = vpop.f32.mrb[0].mxu0
  %v2715 = vpop.f32.mrb[0].mxu0
  %v2716 = vadd.f32 0.0, %v2715
  %v2717 = vpop.f32.mrb[0].mxu0
  %2718 = vdwg.mxu0
  %v2719 = vpack.c.bf16 %v2596, %v2593
  %v2720 = vpack.c.bf16 %v2604, %v2601
  %v2721 = vpack.c.bf16 %v2612, %v2609
  %v2722 = vpack.c.bf16 %v2620, %v2617
  %v2723 = vpack.c.bf16 %v2628, %v2625
  %v2724 = vpack.c.bf16 %v2636, %v2633
  %v2725 = vpack.c.bf16 %v2644, %v2641
  %v2726 = vpack.c.bf16 %v2652, %v2649
  %v2727 = vpack.c.bf16 %v2660, %v2657
  %v2728 = vpack.c.bf16 %v2668, %v2665
  %v2729 = vpack.c.bf16 %v2676, %v2673
  %v2730 = vpack.c.bf16 %v2684, %v2681
  %v2731 = vpack.c.bf16 %v2692, %v2689
  %v2732 = vpack.c.bf16 %v2700, %v2697
  %v2733 = vpack.c.bf16 %v2708, %v2705
  %v2734 = vpack.c.bf16 %v2716, %v2713
  %2751 = vrot.lane.b32.xlu0 %v2719, 96
  %v2752 = vpop.permute.xlu0 %2751
  %2753 = vrot.lane.b32.xlu0 %v2720, 96
  %v2754 = vpop.permute.xlu0 %2753
  %2755 = vrot.lane.b32.xlu0 %v2721, 96
  %v2756 = vpop.permute.xlu0 %2755
  %2757 = vrot.lane.b32.xlu0 %v2722, 96
  %v2758 = vpop.permute.xlu0 %2757
  %2759 = vrot.lane.b32.xlu0 %v2723, 96
  %v2760 = vpop.permute.xlu0 %2759
  %2761 = vrot.lane.b32.xlu0 %v2724, 96
  %v2762 = vpop.permute.xlu0 %2761
  %2763 = vrot.lane.b32.xlu0 %v2725, 96
  %v2764 = vpop.permute.xlu0 %2763
  %2765 = vrot.lane.b32.xlu0 %v2726, 96
  %v2766 = vpop.permute.xlu0 %2765
  %2767 = vrot.lane.b32.xlu0 %v2727, 96
  %v2768 = vpop.permute.xlu0 %2767
  %2769 = vrot.lane.b32.xlu0 %v2728, 96
  %v2770 = vpop.permute.xlu0 %2769
  %2771 = vrot.lane.b32.xlu0 %v2729, 96
  %v2772 = vpop.permute.xlu0 %2771
  %2773 = vrot.lane.b32.xlu0 %v2730, 96
  %v2774 = vpop.permute.xlu0 %2773
  %2775 = vrot.lane.b32.xlu0 %v2731, 96
  %v2776 = vpop.permute.xlu0 %2775
  %2777 = vrot.lane.b32.xlu0 %v2732, 96
  %v2778 = vpop.permute.xlu0 %2777
  %2779 = vrot.lane.b32.xlu0 %v2733, 96
  %v2780 = vpop.permute.xlu0 %2779
  %2781 = vrot.lane.b32.xlu0 %v2734, 96
  %v2782 = vpop.permute.xlu0 %2781
  %2799 = vmatprep.subr.bf16.mxu0 0
  %2800 = vmatpush1.bf16.msra.mxu0 %v2752
  %2801 = vmatprep.subr.bf16.mxu0 0
  %2802 = vmatpush1.bf16.msra.mxu0 %v2754
  %2803 = vmatprep.subr.bf16.mxu0 0
  %2804 = vmatpush1.bf16.msra.mxu0 %v2756
  %2805 = vmatprep.subr.bf16.mxu0 0
  %2806 = vmatpush1.bf16.msra.mxu0 %v2758
  %2807 = vmatprep.subr.bf16.mxu0 0
  %2808 = vmatpush1.bf16.msra.mxu0 %v2760
  %2809 = vmatprep.subr.bf16.mxu0 0
  %2810 = vmatpush1.bf16.msra.mxu0 %v2762
  %2811 = vmatprep.subr.bf16.mxu0 0
  %2812 = vmatpush1.bf16.msra.mxu0 %v2764
  %2813 = vmatprep.subr.bf16.mxu0 0
  %2814 = vmatpush1.bf16.msra.mxu0 %v2766
  %2815 = vmatprep.subr.bf16.mxu0 0
  %2816 = vmatpush1.bf16.msra.mxu0 %v2768
  %2817 = vmatprep.subr.bf16.mxu0 0
  %2818 = vmatpush1.bf16.msra.mxu0 %v2770
  %2819 = vmatprep.subr.bf16.mxu0 0
  %2820 = vmatpush1.bf16.msra.mxu0 %v2772
  %2821 = vmatprep.subr.bf16.mxu0 0
  %2822 = vmatpush1.bf16.msra.mxu0 %v2774
  %2823 = vmatprep.subr.bf16.mxu0 0
  %2824 = vmatpush1.bf16.msra.mxu0 %v2776
  %2825 = vmatprep.subr.bf16.mxu0 0
  %2826 = vmatpush1.bf16.msra.mxu0 %v2778
  %2827 = vmatprep.subr.bf16.mxu0 0
  %2828 = vmatpush1.bf16.msra.mxu0 %v2780
  %2829 = vmatprep.subr.bf16.mxu0 0
  %2830 = vmatpush1.bf16.msra.mxu0 %v2782
  %2831 = vmatprep.mubr.bf16.mxu0 %v1381
  %2832 = vmatmul.mubr.bf16.gmra.mrb[0].mxu0 %v1380
  %v2833 = vpop.f32.mrb[0].mxu0
  %v2834 = vadd.f32 0.0, %v2833
  %v2835 = vpop.f32.mrb[0].mxu0
  %v2836 = vpop.f32.mrb[0].mxu0
  %v2837 = vadd.f32 0.0, %v2836
  %v2838 = vpop.f32.mrb[0].mxu0
  %2839 = vmatprep.mubr.bf16.mxu0 %v1383
  %2840 = vmatmul.mubr.bf16.gmra.mrb[0].mxu0 %v1382
  %v2841 = vpop.f32.mrb[0].mxu0
  %v2842 = vadd.f32 0.0, %v2841
  %v2843 = vpop.f32.mrb[0].mxu0
  %v2844 = vpop.f32.mrb[0].mxu0
  %v2845 = vadd.f32 0.0, %v2844
  %v2846 = vpop.f32.mrb[0].mxu0
  %2847 = vmatprep.mubr.bf16.mxu0 %v1385
  %2848 = vmatmul.mubr.bf16.gmra.mrb[0].mxu0 %v1384
  %v2849 = vpop.f32.mrb[0].mxu0
  %v2850 = vadd.f32 0.0, %v2849
  %v2851 = vpop.f32.mrb[0].mxu0
  %v2852 = vpop.f32.mrb[0].mxu0
  %v2853 = vadd.f32 0.0, %v2852
  %v2854 = vpop.f32.mrb[0].mxu0
  %2855 = vmatprep.mubr.bf16.mxu0 %v1387
  %2856 = vmatmul.mubr.bf16.gmra.mrb[0].mxu0 %v1386
  %v2857 = vpop.f32.mrb[0].mxu0
  %v2858 = vadd.f32 0.0, %v2857
  %v2859 = vpop.f32.mrb[0].mxu0
  %v2860 = vpop.f32.mrb[0].mxu0
  %v2861 = vadd.f32 0.0, %v2860
  %v2862 = vpop.f32.mrb[0].mxu0
  %2863 = vmatprep.mubr.bf16.mxu0 %v1389
  %2864 = vmatmul.mubr.bf16.gmra.mrb[0].mxu0 %v1388
  %v2865 = vpop.f32.mrb[0].mxu0
  %v2866 = vadd.f32 0.0, %v2865
  %v2867 = vpop.f32.mrb[0].mxu0
  %v2868 = vpop.f32.mrb[0].mxu0
  %v2869 = vadd.f32 0.0, %v2868
  %v2870 = vpop.f32.mrb[0].mxu0
  %2871 = vmatprep.mubr.bf16.mxu0 %v1391
  %2872 = vmatmul.mubr.bf16.gmra.mrb[0].mxu0 %v1390
  %v2873 = vpop.f32.mrb[0].mxu0
  %v2874 = vadd.f32 0.0, %v2873
  %v2875 = vpop.f32.mrb[0].mxu0
  %v2876 = vpop.f32.mrb[0].mxu0
  %v2877 = vadd.f32 0.0, %v2876
  %v2878 = vpop.f32.mrb[0].mxu0
  %2879 = vmatprep.mubr.bf16.mxu0 %v1393
  %2880 = vmatmul.mubr.bf16.gmra.mrb[0].mxu0 %v1392
  %v2881 = vpop.f32.mrb[0].mxu0
  %v2882 = vadd.f32 0.0, %v2881
  %v2883 = vpop.f32.mrb[0].mxu0
  %v2884 = vpop.f32.mrb[0].mxu0
  %v2885 = vadd.f32 0.0, %v2884
  %v2886 = vpop.f32.mrb[0].mxu0
  %2887 = vmatprep.mubr.bf16.mxu0 %v1395
  %2888 = vmatmul.mubr.bf16.gmra.mrb[0].mxu0 %v1394
  %v2889 = vpop.f32.mrb[0].mxu0
  %v2890 = vadd.f32 0.0, %v2889
  %v2891 = vpop.f32.mrb[0].mxu0
  %v2892 = vpop.f32.mrb[0].mxu0
  %v2893 = vadd.f32 0.0, %v2892
  %v2894 = vpop.f32.mrb[0].mxu0
  %2895 = vmatprep.mubr.bf16.mxu0 %v1397
  %2896 = vmatmul.mubr.bf16.gmra.mrb[0].mxu0 %v1396
  %v2897 = vpop.f32.mrb[0].mxu0
  %v2898 = vadd.f32 0.0, %v2897
  %v2899 = vpop.f32.mrb[0].mxu0
  %v2900 = vpop.f32.mrb[0].mxu0
  %v2901 = vadd.f32 0.0, %v2900
  %v2902 = vpop.f32.mrb[0].mxu0
  %2903 = vmatprep.mubr.bf16.mxu0 %v1399
  %2904 = vmatmul.mubr.bf16.gmra.mrb[0].mxu0 %v1398
  %v2905 = vpop.f32.mrb[0].mxu0
  %v2906 = vadd.f32 0.0, %v2905
  %v2907 = vpop.f32.mrb[0].mxu0
  %v2908 = vpop.f32.mrb[0].mxu0
  %v2909 = vadd.f32 0.0, %v2908
  %v2910 = vpop.f32.mrb[0].mxu0
  %2911 = vmatprep.mubr.bf16.mxu0 %v1401
  %2912 = vmatmul.mubr.bf16.gmra.mrb[0].mxu0 %v1400
  %v2913 = vpop.f32.mrb[0].mxu0
  %v2914 = vadd.f32 0.0, %v2913
  %v2915 = vpop.f32.mrb[0].mxu0
  %v2916 = vpop.f32.mrb[0].mxu0
  %v2917 = vadd.f32 0.0, %v2916
  %v2918 = vpop.f32.mrb[0].mxu0
  %2919 = vmatprep.mubr.bf16.mxu0 %v1403
  %2920 = vmatmul.mubr.bf16.gmra.mrb[0].mxu0 %v1402
  %v2921 = vpop.f32.mrb[0].mxu0
  %v2922 = vadd.f32 0.0, %v2921
  %v2923 = vpop.f32.mrb[0].mxu0
  %v2924 = vpop.f32.mrb[0].mxu0
  %v2925 = vadd.f32 0.0, %v2924
  %v2926 = vpop.f32.mrb[0].mxu0
  %2927 = vmatprep.mubr.bf16.mxu0 %v1405
  %2928 = vmatmul.mubr.bf16.gmra.mrb[0].mxu0 %v1404
  %v2929 = vpop.f32.mrb[0].mxu0
  %v2930 = vadd.f32 0.0, %v2929
  %v2931 = vpop.f32.mrb[0].mxu0
  %v2932 = vpop.f32.mrb[0].mxu0
  %v2933 = vadd.f32 0.0, %v2932
  %v2934 = vpop.f32.mrb[0].mxu0
  %2935 = vmatprep.mubr.bf16.mxu0 %v1407
  %2936 = vmatmul.mubr.bf16.gmra.mrb[0].mxu0 %v1406
  %v2937 = vpop.f32.mrb[0].mxu0
  %v2938 = vadd.f32 0.0, %v2937
  %v2939 = vpop.f32.mrb[0].mxu0
  %v2940 = vpop.f32.mrb[0].mxu0
  %v2941 = vadd.f32 0.0, %v2940
  %v2942 = vpop.f32.mrb[0].mxu0
  %2943 = vmatprep.mubr.bf16.mxu0 %v1409
  %2944 = vmatmul.mubr.bf16.gmra.mrb[0].mxu0 %v1408
  %v2945 = vpop.f32.mrb[0].mxu0
  %v2946 = vadd.f32 0.0, %v2945
  %v2947 = vpop.f32.mrb[0].mxu0
  %v2948 = vpop.f32.mrb[0].mxu0
  %v2949 = vadd.f32 0.0, %v2948
  %v2950 = vpop.f32.mrb[0].mxu0
  %2951 = vmatprep.mubr.bf16.mxu0 %v1411
  %2952 = vmatmul.mubr.bf16.gmra.mrb[0].mxu0 %v1410
  %v2953 = vpop.f32.mrb[0].mxu0
  %v2954 = vadd.f32 0.0, %v2953
  %v2955 = vpop.f32.mrb[0].mxu0
  %v2956 = vpop.f32.mrb[0].mxu0
  %v2957 = vadd.f32 0.0, %v2956
  %v2958 = vpop.f32.mrb[0].mxu0
  %2959 = vmatprep.mubr.bf16.mxu0 %v1413
  %2960 = vmatmul.mubr.bf16.gmra.mrb[0].mxu0 %v1412
  %v2961 = vpop.f32.mrb[0].mxu0
  %v2962 = vadd.f32 0.0, %v2961
  %v2963 = vpop.f32.mrb[0].mxu0
  %v2964 = vpop.f32.mrb[0].mxu0
  %v2965 = vadd.f32 0.0, %v2964
  %v2966 = vpop.f32.mrb[0].mxu0
  %2967 = vmatprep.mubr.bf16.mxu0 %v1415
  %2968 = vmatmul.mubr.bf16.gmra.mrb[0].mxu0 %v1414
  %v2969 = vpop.f32.mrb[0].mxu0
  %v2970 = vadd.f32 0.0, %v2969
  %v2971 = vpop.f32.mrb[0].mxu0
  %v2972 = vpop.f32.mrb[0].mxu0
  %v2973 = vadd.f32 0.0, %v2972
  %v2974 = vpop.f32.mrb[0].mxu0
  %2975 = vmatprep.mubr.bf16.mxu0 %v1417
  %2976 = vmatmul.mubr.bf16.gmra.mrb[0].mxu0 %v1416
  %v2977 = vpop.f32.mrb[0].mxu0
  %v2978 = vadd.f32 0.0, %v2977
  %v2979 = vpop.f32.mrb[0].mxu0
  %v2980 = vpop.f32.mrb[0].mxu0
  %v2981 = vadd.f32 0.0, %v2980
  %v2982 = vpop.f32.mrb[0].mxu0
  %2983 = vmatprep.mubr.bf16.mxu0 %v1419
  %2984 = vmatmul.mubr.bf16.gmra.mrb[0].mxu0 %v1418
  %v2985 = vpop.f32.mrb[0].mxu0
  %v2986 = vadd.f32 0.0, %v2985
  %v2987 = vpop.f32.mrb[0].mxu0
  %v2988 = vpop.f32.mrb[0].mxu0
  %v2989 = vadd.f32 0.0, %v2988
  %v2990 = vpop.f32.mrb[0].mxu0
  %2991 = vmatprep.mubr.bf16.mxu0 %v1421
  %2992 = vmatmul.mubr.bf16.gmra.mrb[0].mxu0 %v1420
  %v2993 = vpop.f32.mrb[0].mxu0
  %v2994 = vadd.f32 0.0, %v2993
  %v2995 = vpop.f32.mrb[0].mxu0
  %v2996 = vpop.f32.mrb[0].mxu0
  %v2997 = vadd.f32 0.0, %v2996
  %v2998 = vpop.f32.mrb[0].mxu0
  %2999 = vmatprep.mubr.bf16.mxu0 %v1423
  %3000 = vmatmul.mubr.bf16.gmra.mrb[0].mxu0 %v1422
  %v3001 = vpop.f32.mrb[0].mxu0
  %v3002 = vadd.f32 0.0, %v3001
  %v3003 = vpop.f32.mrb[0].mxu0
  %v3004 = vpop.f32.mrb[0].mxu0
  %v3005 = vadd.f32 0.0, %v3004
  %v3006 = vpop.f32.mrb[0].mxu0
  %3007 = vmatprep.mubr.bf16.mxu0 %v1425
  %3008 = vmatmul.mubr.bf16.gmra.mrb[0].mxu0 %v1424
  %v3009 = vpop.f32.mrb[0].mxu0
  %v3010 = vadd.f32 0.0, %v3009
  %v3011 = vpop.f32.mrb[0].mxu0
  %v3012 = vpop.f32.mrb[0].mxu0
  %v3013 = vadd.f32 0.0, %v3012
  %v3014 = vpop.f32.mrb[0].mxu0
  %3015 = vmatprep.mubr.bf16.mxu0 %v1427
  %3016 = vmatmul.mubr.bf16.gmra.mrb[0].mxu0 %v1426
  %v3017 = vpop.f32.mrb[0].mxu0
  %v3018 = vadd.f32 0.0, %v3017
  %v3019 = vpop.f32.mrb[0].mxu0
  %v3020 = vpop.f32.mrb[0].mxu0
  %v3021 = vadd.f32 0.0, %v3020
  %v3022 = vpop.f32.mrb[0].mxu0
  %3023 = vmatprep.mubr.bf16.mxu0 %v1429
  %3024 = vmatmul.mubr.bf16.gmra.mrb[0].mxu0 %v1428
  %v3025 = vpop.f32.mrb[0].mxu0
  %v3026 = vadd.f32 0.0, %v3025
  %v3027 = vpop.f32.mrb[0].mxu0
  %v3028 = vpop.f32.mrb[0].mxu0
  %v3029 = vadd.f32 0.0, %v3028
  %v3030 = vpop.f32.mrb[0].mxu0
  %3031 = vmatprep.mubr.bf16.mxu0 %v1431
  %3032 = vmatmul.mubr.bf16.gmra.mrb[0].mxu0 %v1430
  %v3033 = vpop.f32.mrb[0].mxu0
  %v3034 = vadd.f32 0.0, %v3033
  %v3035 = vpop.f32.mrb[0].mxu0
  %v3036 = vpop.f32.mrb[0].mxu0
  %v3037 = vadd.f32 0.0, %v3036
  %v3038 = vpop.f32.mrb[0].mxu0
  %3039 = vmatprep.mubr.bf16.mxu0 %v1433
  %3040 = vmatmul.mubr.bf16.gmra.mrb[0].mxu0 %v1432
  %v3041 = vpop.f32.mrb[0].mxu0
  %v3042 = vadd.f32 0.0, %v3041
  %v3043 = vpop.f32.mrb[0].mxu0
  %v3044 = vpop.f32.mrb[0].mxu0
  %v3045 = vadd.f32 0.0, %v3044
  %v3046 = vpop.f32.mrb[0].mxu0
  %3047 = vmatprep.mubr.bf16.mxu0 %v1435
  %3048 = vmatmul.mubr.bf16.gmra.mrb[0].mxu0 %v1434
  %v3049 = vpop.f32.mrb[0].mxu0
  %v3050 = vadd.f32 0.0, %v3049
  %v3051 = vpop.f32.mrb[0].mxu0
  %v3052 = vpop.f32.mrb[0].mxu0
  %v3053 = vadd.f32 0.0, %v3052
  %v3054 = vpop.f32.mrb[0].mxu0
  %3055 = vmatprep.mubr.bf16.mxu0 %v1437
  %3056 = vmatmul.mubr.bf16.gmra.mrb[0].mxu0 %v1436
  %v3057 = vpop.f32.mrb[0].mxu0
  %v3058 = vadd.f32 0.0, %v3057
  %v3059 = vpop.f32.mrb[0].mxu0
  %v3060 = vpop.f32.mrb[0].mxu0
  %v3061 = vadd.f32 0.0, %v3060
  %v3062 = vpop.f32.mrb[0].mxu0
  %3063 = vmatprep.mubr.bf16.mxu0 %v1439
  %3064 = vmatmul.mubr.bf16.gmra.mrb[0].mxu0 %v1438
  %v3065 = vpop.f32.mrb[0].mxu0
  %v3066 = vadd.f32 0.0, %v3065
  %v3067 = vpop.f32.mrb[0].mxu0
  %v3068 = vpop.f32.mrb[0].mxu0
  %v3069 = vadd.f32 0.0, %v3068
  %v3070 = vpop.f32.mrb[0].mxu0
  %3071 = vmatprep.mubr.bf16.mxu0 %v1441
  %3072 = vmatmul.mubr.bf16.gmra.mrb[0].mxu0 %v1440
  %v3073 = vpop.f32.mrb[0].mxu0
  %v3074 = vadd.f32 0.0, %v3073
  %v3075 = vpop.f32.mrb[0].mxu0
  %v3076 = vpop.f32.mrb[0].mxu0
  %v3077 = vadd.f32 0.0, %v3076
  %v3078 = vpop.f32.mrb[0].mxu0
  %3079 = vmatprep.mubr.bf16.mxu0 %v1443
  %3080 = vmatmul.mubr.bf16.gmra.mrb[0].mxu0 %v1442
  %v3081 = vpop.f32.mrb[0].mxu0
  %v3082 = vadd.f32 0.0, %v3081
  %v3083 = vpop.f32.mrb[0].mxu0
  %v3084 = vpop.f32.mrb[0].mxu0
  %v3085 = vadd.f32 0.0, %v3084
  %v3086 = vpop.f32.mrb[0].mxu0
  %3087 = vdwg.mxu0
  %3088 = vmatprep.subr.bf16.mxu0 0
  %3089 = vmatpush1.bf16.msra.mxu0 %v2719
  %3090 = vmatprep.subr.bf16.mxu0 0
  %3091 = vmatpush1.bf16.msra.mxu0 %v2720
  %3092 = vmatprep.subr.bf16.mxu0 0
  %3093 = vmatpush1.bf16.msra.mxu0 %v2721
  %3094 = vmatprep.subr.bf16.mxu0 0
  %3095 = vmatpush1.bf16.msra.mxu0 %v2722
  %3096 = vmatprep.subr.bf16.mxu0 0
  %3097 = vmatpush1.bf16.msra.mxu0 %v2723
  %3098 = vmatprep.subr.bf16.mxu0 0
  %3099 = vmatpush1.bf16.msra.mxu0 %v2724
  %3100 = vmatprep.subr.bf16.mxu0 0
  %3101 = vmatpush1.bf16.msra.mxu0 %v2725
  %3102 = vmatprep.subr.bf16.mxu0 0
  %3103 = vmatpush1.bf16.msra.mxu0 %v2726
  %3104 = vmatprep.subr.bf16.mxu0 0
  %3105 = vmatpush1.bf16.msra.mxu0 %v2727
  %3106 = vmatprep.subr.bf16.mxu0 0
  %3107 = vmatpush1.bf16.msra.mxu0 %v2728
  %3108 = vmatprep.subr.bf16.mxu0 0
  %3109 = vmatpush1.bf16.msra.mxu0 %v2729
  %3110 = vmatprep.subr.bf16.mxu0 0
  %3111 = vmatpush1.bf16.msra.mxu0 %v2730
  %3112 = vmatprep.subr.bf16.mxu0 0
  %3113 = vmatpush1.bf16.msra.mxu0 %v2731
  %3114 = vmatprep.subr.bf16.mxu0 0
  %3115 = vmatpush1.bf16.msra.mxu0 %v2732
  %3116 = vmatprep.subr.bf16.mxu0 0
  %3117 = vmatpush1.bf16.msra.mxu0 %v2733
  %3118 = vmatprep.subr.bf16.mxu0 0
  %3119 = vmatpush1.bf16.msra.mxu0 %v2734
  %3120 = vmatprep.mubr.bf16.mxu0 %v677
  %3121 = vmatmul.mubr.bf16.gmra.mrb[0].mxu0 %v676
  %v3122 = vpop.f32.mrb[0].mxu0
  %v3123 = vadd.f32 %v2834, %v3122
  %v3124 = vpop.f32.mrb[0].mxu0
  %v3125 = vpop.f32.mrb[0].mxu0
  %v3126 = vadd.f32 %v2837, %v3125
  %v3127 = vpop.f32.mrb[0].mxu0
  %3128 = vmatprep.mubr.bf16.mxu0 %v679
  %3129 = vmatmul.mubr.bf16.gmra.mrb[0].mxu0 %v678
  %v3130 = vpop.f32.mrb[0].mxu0
  %v3131 = vadd.f32 %v2842, %v3130
  %v3132 = vpop.f32.mrb[0].mxu0
  %v3133 = vpop.f32.mrb[0].mxu0
  %v3134 = vadd.f32 %v2845, %v3133
  %v3135 = vpop.f32.mrb[0].mxu0
  %3136 = vmatprep.mubr.bf16.mxu0 %v681
  %3137 = vmatmul.mubr.bf16.gmra.mrb[0].mxu0 %v680
  %v3138 = vpop.f32.mrb[0].mxu0
  %v3139 = vadd.f32 %v2850, %v3138
  %v3140 = vpop.f32.mrb[0].mxu0
  %v3141 = vpop.f32.mrb[0].mxu0
  %v3142 = vadd.f32 %v2853, %v3141
  %v3143 = vpop.f32.mrb[0].mxu0
  %3144 = vmatprep.mubr.bf16.mxu0 %v683
  %3145 = vmatmul.mubr.bf16.gmra.mrb[0].mxu0 %v682
  %v3146 = vpop.f32.mrb[0].mxu0
  %v3147 = vadd.f32 %v2858, %v3146
  %v3148 = vpop.f32.mrb[0].mxu0
  %v3149 = vpop.f32.mrb[0].mxu0
  %v3150 = vadd.f32 %v2861, %v3149
  %v3151 = vpop.f32.mrb[0].mxu0
  %3152 = vmatprep.mubr.bf16.mxu0 %v685
  %3153 = vmatmul.mubr.bf16.gmra.mrb[0].mxu0 %v684
  %v3154 = vpop.f32.mrb[0].mxu0
  %v3155 = vadd.f32 %v2866, %v3154
  %v3156 = vpop.f32.mrb[0].mxu0
  %v3157 = vpop.f32.mrb[0].mxu0
  %v3158 = vadd.f32 %v2869, %v3157
  %v3159 = vpop.f32.mrb[0].mxu0
  %3160 = vmatprep.mubr.bf16.mxu0 %v687
  %3161 = vmatmul.mubr.bf16.gmra.mrb[0].mxu0 %v686
  %v3162 = vpop.f32.mrb[0].mxu0
  %v3163 = vadd.f32 %v2874, %v3162
  %v3164 = vpop.f32.mrb[0].mxu0
  %v3165 = vpop.f32.mrb[0].mxu0
  %v3166 = vadd.f32 %v2877, %v3165
  %v3167 = vpop.f32.mrb[0].mxu0
  %3168 = vmatprep.mubr.bf16.mxu0 %v689
  %3169 = vmatmul.mubr.bf16.gmra.mrb[0].mxu0 %v688
  %v3170 = vpop.f32.mrb[0].mxu0
  %v3171 = vadd.f32 %v2882, %v3170
  %v3172 = vpop.f32.mrb[0].mxu0
  %v3173 = vpop.f32.mrb[0].mxu0
  %v3174 = vadd.f32 %v2885, %v3173
  %v3175 = vpop.f32.mrb[0].mxu0
  %3176 = vmatprep.mubr.bf16.mxu0 %v691
  %3177 = vmatmul.mubr.bf16.gmra.mrb[0].mxu0 %v690
  %v3178 = vpop.f32.mrb[0].mxu0
  %v3179 = vadd.f32 %v2890, %v3178
  %v3180 = vpop.f32.mrb[0].mxu0
  %v3181 = vpop.f32.mrb[0].mxu0
  %v3182 = vadd.f32 %v2893, %v3181
  %v3183 = vpop.f32.mrb[0].mxu0
  %3184 = vmatprep.mubr.bf16.mxu0 %v693
  %3185 = vmatmul.mubr.bf16.gmra.mrb[0].mxu0 %v692
  %v3186 = vpop.f32.mrb[0].mxu0
  %v3187 = vadd.f32 %v2898, %v3186
  %v3188 = vpop.f32.mrb[0].mxu0
  %v3189 = vpop.f32.mrb[0].mxu0
  %v3190 = vadd.f32 %v2901, %v3189
  %v3191 = vpop.f32.mrb[0].mxu0
  %3192 = vmatprep.mubr.bf16.mxu0 %v695
  %3193 = vmatmul.mubr.bf16.gmra.mrb[0].mxu0 %v694
  %v3194 = vpop.f32.mrb[0].mxu0
  %v3195 = vadd.f32 %v2906, %v3194
  %v3196 = vpop.f32.mrb[0].mxu0
  %v3197 = vpop.f32.mrb[0].mxu0
  %v3198 = vadd.f32 %v2909, %v3197
  %v3199 = vpop.f32.mrb[0].mxu0
  %3200 = vmatprep.mubr.bf16.mxu0 %v697
  %3201 = vmatmul.mubr.bf16.gmra.mrb[0].mxu0 %v696
  %v3202 = vpop.f32.mrb[0].mxu0
  %v3203 = vadd.f32 %v2914, %v3202
  %v3204 = vpop.f32.mrb[0].mxu0
  %v3205 = vpop.f32.mrb[0].mxu0
  %v3206 = vadd.f32 %v2917, %v3205
  %v3207 = vpop.f32.mrb[0].mxu0
  %3208 = vmatprep.mubr.bf16.mxu0 %v699
  %3209 = vmatmul.mubr.bf16.gmra.mrb[0].mxu0 %v698
  %v3210 = vpop.f32.mrb[0].mxu0
  %v3211 = vadd.f32 %v2922, %v3210
  %v3212 = vpop.f32.mrb[0].mxu0
  %v3213 = vpop.f32.mrb[0].mxu0
  %v3214 = vadd.f32 %v2925, %v3213
  %v3215 = vpop.f32.mrb[0].mxu0
  %3216 = vmatprep.mubr.bf16.mxu0 %v701
  %3217 = vmatmul.mubr.bf16.gmra.mrb[0].mxu0 %v700
  %v3218 = vpop.f32.mrb[0].mxu0
  %v3219 = vadd.f32 %v2930, %v3218
  %v3220 = vpop.f32.mrb[0].mxu0
  %v3221 = vpop.f32.mrb[0].mxu0
  %v3222 = vadd.f32 %v2933, %v3221
  %v3223 = vpop.f32.mrb[0].mxu0
  %3224 = vmatprep.mubr.bf16.mxu0 %v703
  %3225 = vmatmul.mubr.bf16.gmra.mrb[0].mxu0 %v702
  %v3226 = vpop.f32.mrb[0].mxu0
  %v3227 = vadd.f32 %v2938, %v3226
  %v3228 = vpop.f32.mrb[0].mxu0
  %v3229 = vpop.f32.mrb[0].mxu0
  %v3230 = vadd.f32 %v2941, %v3229
  %v3231 = vpop.f32.mrb[0].mxu0
  %3232 = vmatprep.mubr.bf16.mxu0 %v705
  %3233 = vmatmul.mubr.bf16.gmra.mrb[0].mxu0 %v704
  %v3234 = vpop.f32.mrb[0].mxu0
  %v3235 = vadd.f32 %v2946, %v3234
  %v3236 = vpop.f32.mrb[0].mxu0
  %v3237 = vpop.f32.mrb[0].mxu0
  %v3238 = vadd.f32 %v2949, %v3237
  %v3239 = vpop.f32.mrb[0].mxu0
  %3240 = vmatprep.mubr.bf16.mxu0 %v707
  %3241 = vmatmul.mubr.bf16.gmra.mrb[0].mxu0 %v706
  %v3242 = vpop.f32.mrb[0].mxu0
  %v3243 = vadd.f32 %v2954, %v3242
  %v3244 = vpop.f32.mrb[0].mxu0
  %v3245 = vpop.f32.mrb[0].mxu0
  %v3246 = vadd.f32 %v2957, %v3245
  %v3247 = vpop.f32.mrb[0].mxu0
  %3248 = vmatprep.mubr.bf16.mxu0 %v709
  %3249 = vmatmul.mubr.bf16.gmra.mrb[0].mxu0 %v708
  %v3250 = vpop.f32.mrb[0].mxu0
  %v3251 = vadd.f32 %v2962, %v3250
  %v3252 = vpop.f32.mrb[0].mxu0
  %v3253 = vpop.f32.mrb[0].mxu0
  %v3254 = vadd.f32 %v2965, %v3253
  %v3255 = vpop.f32.mrb[0].mxu0
  %3256 = vmatprep.mubr.bf16.mxu0 %v711
  %3257 = vmatmul.mubr.bf16.gmra.mrb[0].mxu0 %v710
  %v3258 = vpop.f32.mrb[0].mxu0
  %v3259 = vadd.f32 %v2970, %v3258
  %v3260 = vpop.f32.mrb[0].mxu0
  %v3261 = vpop.f32.mrb[0].mxu0
  %v3262 = vadd.f32 %v2973, %v3261
  %v3263 = vpop.f32.mrb[0].mxu0
  %3264 = vmatprep.mubr.bf16.mxu0 %v713
  %3265 = vmatmul.mubr.bf16.gmra.mrb[0].mxu0 %v712
  %v3266 = vpop.f32.mrb[0].mxu0
  %v3267 = vadd.f32 %v2978, %v3266
  %v3268 = vpop.f32.mrb[0].mxu0
  %v3269 = vpop.f32.mrb[0].mxu0
  %v3270 = vadd.f32 %v2981, %v3269
  %v3271 = vpop.f32.mrb[0].mxu0
  %3272 = vmatprep.mubr.bf16.mxu0 %v715
  %3273 = vmatmul.mubr.bf16.gmra.mrb[0].mxu0 %v714
  %v3274 = vpop.f32.mrb[0].mxu0
  %v3275 = vadd.f32 %v2986, %v3274
  %v3276 = vpop.f32.mrb[0].mxu0
  %v3277 = vpop.f32.mrb[0].mxu0
  %v3278 = vadd.f32 %v2989, %v3277
  %v3279 = vpop.f32.mrb[0].mxu0
  %3280 = vmatprep.mubr.bf16.mxu0 %v717
  %3281 = vmatmul.mubr.bf16.gmra.mrb[0].mxu0 %v716
  %v3282 = vpop.f32.mrb[0].mxu0
  %v3283 = vadd.f32 %v2994, %v3282
  %v3284 = vpop.f32.mrb[0].mxu0
  %v3285 = vpop.f32.mrb[0].mxu0
  %v3286 = vadd.f32 %v2997, %v3285
  %v3287 = vpop.f32.mrb[0].mxu0
  %3288 = vmatprep.mubr.bf16.mxu0 %v719
  %3289 = vmatmul.mubr.bf16.gmra.mrb[0].mxu0 %v718
  %v3290 = vpop.f32.mrb[0].mxu0
  %v3291 = vadd.f32 %v3002, %v3290
  %v3292 = vpop.f32.mrb[0].mxu0
  %v3293 = vpop.f32.mrb[0].mxu0
  %v3294 = vadd.f32 %v3005, %v3293
  %v3295 = vpop.f32.mrb[0].mxu0
  %3296 = vmatprep.mubr.bf16.mxu0 %v721
  %3297 = vmatmul.mubr.bf16.gmra.mrb[0].mxu0 %v720
  %v3298 = vpop.f32.mrb[0].mxu0
  %v3299 = vadd.f32 %v3010, %v3298
  %v3300 = vpop.f32.mrb[0].mxu0
  %v3301 = vpop.f32.mrb[0].mxu0
  %v3302 = vadd.f32 %v3013, %v3301
  %v3303 = vpop.f32.mrb[0].mxu0
  %3304 = vmatprep.mubr.bf16.mxu0 %v723
  %3305 = vmatmul.mubr.bf16.gmra.mrb[0].mxu0 %v722
  %v3306 = vpop.f32.mrb[0].mxu0
  %v3307 = vadd.f32 %v3018, %v3306
  %v3308 = vpop.f32.mrb[0].mxu0
  %v3309 = vpop.f32.mrb[0].mxu0
  %v3310 = vadd.f32 %v3021, %v3309
  %v3311 = vpop.f32.mrb[0].mxu0
  %3312 = vmatprep.mubr.bf16.mxu0 %v725
  %3313 = vmatmul.mubr.bf16.gmra.mrb[0].mxu0 %v724
  %v3314 = vpop.f32.mrb[0].mxu0
  %v3315 = vadd.f32 %v3026, %v3314
  %v3316 = vpop.f32.mrb[0].mxu0
  %v3317 = vpop.f32.mrb[0].mxu0
  %v3318 = vadd.f32 %v3029, %v3317
  %v3319 = vpop.f32.mrb[0].mxu0
  %3320 = vmatprep.mubr.bf16.mxu0 %v727
  %3321 = vmatmul.mubr.bf16.gmra.mrb[0].mxu0 %v726
  %v3322 = vpop.f32.mrb[0].mxu0
  %v3323 = vadd.f32 %v3034, %v3322
  %v3324 = vpop.f32.mrb[0].mxu0
  %v3325 = vpop.f32.mrb[0].mxu0
  %v3326 = vadd.f32 %v3037, %v3325
  %v3327 = vpop.f32.mrb[0].mxu0
  %3328 = vmatprep.mubr.bf16.mxu0 %v729
  %3329 = vmatmul.mubr.bf16.gmra.mrb[0].mxu0 %v728
  %v3330 = vpop.f32.mrb[0].mxu0
  %v3331 = vadd.f32 %v3042, %v3330
  %v3332 = vpop.f32.mrb[0].mxu0
  %v3333 = vpop.f32.mrb[0].mxu0
  %v3334 = vadd.f32 %v3045, %v3333
  %v3335 = vpop.f32.mrb[0].mxu0
  %3336 = vmatprep.mubr.bf16.mxu0 %v731
  %3337 = vmatmul.mubr.bf16.gmra.mrb[0].mxu0 %v730
  %v3338 = vpop.f32.mrb[0].mxu0
  %v3339 = vadd.f32 %v3050, %v3338
  %v3340 = vpop.f32.mrb[0].mxu0
  %v3341 = vpop.f32.mrb[0].mxu0
  %v3342 = vadd.f32 %v3053, %v3341
  %v3343 = vpop.f32.mrb[0].mxu0
  %3344 = vmatprep.mubr.bf16.mxu0 %v733
  %3345 = vmatmul.mubr.bf16.gmra.mrb[0].mxu0 %v732
  %v3346 = vpop.f32.mrb[0].mxu0
  %v3347 = vadd.f32 %v3058, %v3346
  %v3348 = vpop.f32.mrb[0].mxu0
  %v3349 = vpop.f32.mrb[0].mxu0
  %v3350 = vadd.f32 %v3061, %v3349
  %v3351 = vpop.f32.mrb[0].mxu0
  %3352 = vmatprep.mubr.bf16.mxu0 %v735
  %3353 = vmatmul.mubr.bf16.gmra.mrb[0].mxu0 %v734
  %v3354 = vpop.f32.mrb[0].mxu0
  %v3355 = vadd.f32 %v3066, %v3354
  %v3356 = vpop.f32.mrb[0].mxu0
  %v3357 = vpop.f32.mrb[0].mxu0
  %v3358 = vadd.f32 %v3069, %v3357
  %v3359 = vpop.f32.mrb[0].mxu0
  %3360 = vmatprep.mubr.bf16.mxu0 %v737
  %3361 = vmatmul.mubr.bf16.gmra.mrb[0].mxu0 %v736
  %v3362 = vpop.f32.mrb[0].mxu0
  %v3363 = vadd.f32 %v3074, %v3362
  %v3364 = vpop.f32.mrb[0].mxu0
  %v3365 = vpop.f32.mrb[0].mxu0
  %v3366 = vadd.f32 %v3077, %v3365
  %v3367 = vpop.f32.mrb[0].mxu0
  %3368 = vmatprep.mubr.bf16.mxu0 %v739
  %3369 = vmatmul.mubr.bf16.gmra.mrb[0].mxu0 %v738
  %v3370 = vpop.f32.mrb[0].mxu0
  %v3371 = vadd.f32 %v3082, %v3370
  %v3372 = vpop.f32.mrb[0].mxu0
  %v3373 = vpop.f32.mrb[0].mxu0
  %v3374 = vadd.f32 %v3085, %v3373
  %v3375 = vpop.f32.mrb[0].mxu0
  %3376 = vdwg.mxu0
  %v3377 = vlaneseq
  %v3378 = vshrl.u32 %v3377, 7
  %v3379 = vsub.s32 4, %v3378
  %v3380 = vrot.slane %v30, %v3379
  %v3381 = vadd.f32 %v3123, %v3380
  %v3382 = vadd.f32 %v3126, %v3380
  %v3383 = vadd.f32 %v3131, %v3380
  %v3384 = vadd.f32 %v3134, %v3380
  %v3385 = vadd.f32 %v3139, %v3380
  %v3386 = vadd.f32 %v3142, %v3380
  %v3387 = vadd.f32 %v3147, %v3380
  %v3388 = vadd.f32 %v3150, %v3380
  %v3389 = vadd.f32 %v3155, %v3380
  %v3390 = vadd.f32 %v3158, %v3380
  %v3391 = vadd.f32 %v3163, %v3380
  %v3392 = vadd.f32 %v3166, %v3380
  %v3393 = vadd.f32 %v3171, %v3380
  %v3394 = vadd.f32 %v3174, %v3380
  %v3395 = vadd.f32 %v3179, %v3380
  %v3396 = vadd.f32 %v3182, %v3380
  %v3397 = vadd.f32 %v3187, %v3380
  %v3398 = vadd.f32 %v3190, %v3380
  %v3399 = vadd.f32 %v3195, %v3380
  %v3400 = vadd.f32 %v3198, %v3380
  %v3401 = vadd.f32 %v3203, %v3380
  %v3402 = vadd.f32 %v3206, %v3380
  %v3403 = vadd.f32 %v3211, %v3380
  %v3404 = vadd.f32 %v3214, %v3380
  %v3405 = vadd.f32 %v3219, %v3380
  %v3406 = vadd.f32 %v3222, %v3380
  %v3407 = vadd.f32 %v3227, %v3380
  %v3408 = vadd.f32 %v3230, %v3380
  %v3409 = vadd.f32 %v3235, %v3380
  %v3410 = vadd.f32 %v3238, %v3380
  %v3411 = vadd.f32 %v3243, %v3380
  %v3412 = vadd.f32 %v3246, %v3380
  %v3413 = vadd.f32 %v3251, %v3380
  %v3414 = vadd.f32 %v3254, %v3380
  %v3415 = vadd.f32 %v3259, %v3380
  %v3416 = vadd.f32 %v3262, %v3380
  %v3417 = vadd.f32 %v3267, %v3380
  %v3418 = vadd.f32 %v3270, %v3380
  %v3419 = vadd.f32 %v3275, %v3380
  %v3420 = vadd.f32 %v3278, %v3380
  %v3421 = vadd.f32 %v3283, %v3380
  %v3422 = vadd.f32 %v3286, %v3380
  %v3423 = vadd.f32 %v3291, %v3380
  %v3424 = vadd.f32 %v3294, %v3380
  %v3425 = vadd.f32 %v3299, %v3380
  %v3426 = vadd.f32 %v3302, %v3380
  %v3427 = vadd.f32 %v3307, %v3380
  %v3428 = vadd.f32 %v3310, %v3380
  %v3429 = vadd.f32 %v3315, %v3380
  %v3430 = vadd.f32 %v3318, %v3380
  %v3431 = vadd.f32 %v3323, %v3380
  %v3432 = vadd.f32 %v3326, %v3380
  %v3433 = vadd.f32 %v3331, %v3380
  %v3434 = vadd.f32 %v3334, %v3380
  %v3435 = vadd.f32 %v3339, %v3380
  %v3436 = vadd.f32 %v3342, %v3380
  %v3437 = vadd.f32 %v3347, %v3380
  %v3438 = vadd.f32 %v3350, %v3380
  %v3439 = vadd.f32 %v3355, %v3380
  %v3440 = vadd.f32 %v3358, %v3380
  %v3441 = vadd.f32 %v3363, %v3380
  %v3442 = vadd.f32 %v3366, %v3380
  %v3443 = vadd.f32 %v3371, %v3380
  %v3444 = vadd.f32 %v3374, %v3380
  %v3445 = vsel %vm1711, %v3381, 0.0
  %3446 = vadd.xlane.f32.xlu0 %v3445
  %v3447 = vpop.xlane.xlu0 %3446
  %v3448 = vsel %vm1711, %v3382, 0.0
  %3449 = vadd.xlane.f32.xlu0 %v3448
  %v3450 = vpop.xlane.xlu0 %3449
  %v3451 = vsel %vm1711, %v3383, 0.0
  %3452 = vadd.xlane.f32.xlu0 %v3451
  %v3453 = vpop.xlane.xlu0 %3452
  %v3454 = vsel %vm1711, %v3384, 0.0
  %3455 = vadd.xlane.f32.xlu0 %v3454
  %v3456 = vpop.xlane.xlu0 %3455
  %v3457 = vsel %vm1711, %v3385, 0.0
  %3458 = vadd.xlane.f32.xlu0 %v3457
  %v3459 = vpop.xlane.xlu0 %3458
  %v3460 = vsel %vm1711, %v3386, 0.0
  %3461 = vadd.xlane.f32.xlu0 %v3460
  %v3462 = vpop.xlane.xlu0 %3461
  %v3463 = vsel %vm1711, %v3387, 0.0
  %3464 = vadd.xlane.f32.xlu0 %v3463
  %v3465 = vpop.xlane.xlu0 %3464
  %v3466 = vsel %vm1711, %v3388, 0.0
  %3467 = vadd.xlane.f32.xlu0 %v3466
  %v3468 = vpop.xlane.xlu0 %3467
  %v3469 = vsel %vm1711, %v3389, 0.0
  %3470 = vadd.xlane.f32.xlu0 %v3469
  %v3471 = vpop.xlane.xlu0 %3470
  %v3472 = vsel %vm1711, %v3390, 0.0
  %3473 = vadd.xlane.f32.xlu0 %v3472
  %v3474 = vpop.xlane.xlu0 %3473
  %v3475 = vsel %vm1711, %v3391, 0.0
  %3476 = vadd.xlane.f32.xlu0 %v3475
  %v3477 = vpop.xlane.xlu0 %3476
  %v3478 = vsel %vm1711, %v3392, 0.0
  %3479 = vadd.xlane.f32.xlu0 %v3478
  %v3480 = vpop.xlane.xlu0 %3479
  %v3481 = vsel %vm1711, %v3393, 0.0
  %3482 = vadd.xlane.f32.xlu0 %v3481
  %v3483 = vpop.xlane.xlu0 %3482
  %v3484 = vsel %vm1711, %v3394, 0.0
  %3485 = vadd.xlane.f32.xlu0 %v3484
  %v3486 = vpop.xlane.xlu0 %3485
  %v3487 = vsel %vm1711, %v3395, 0.0
  %3488 = vadd.xlane.f32.xlu0 %v3487
  %v3489 = vpop.xlane.xlu0 %3488
  %v3490 = vsel %vm1711, %v3396, 0.0
  %3491 = vadd.xlane.f32.xlu0 %v3490
  %v3492 = vpop.xlane.xlu0 %3491
  %v3493 = vsel %vm1711, %v3397, 0.0
  %3494 = vadd.xlane.f32.xlu0 %v3493
  %v3495 = vpop.xlane.xlu0 %3494
  %v3496 = vsel %vm1711, %v3398, 0.0
  %3497 = vadd.xlane.f32.xlu0 %v3496
  %v3498 = vpop.xlane.xlu0 %3497
  %v3499 = vsel %vm1711, %v3399, 0.0
  %3500 = vadd.xlane.f32.xlu0 %v3499
  %v3501 = vpop.xlane.xlu0 %3500
  %v3502 = vsel %vm1711, %v3400, 0.0
  %3503 = vadd.xlane.f32.xlu0 %v3502
  %v3504 = vpop.xlane.xlu0 %3503
  %v3505 = vsel %vm1711, %v3401, 0.0
  %3506 = vadd.xlane.f32.xlu0 %v3505
  %v3507 = vpop.xlane.xlu0 %3506
  %v3508 = vsel %vm1711, %v3402, 0.0
  %3509 = vadd.xlane.f32.xlu0 %v3508
  %v3510 = vpop.xlane.xlu0 %3509
  %v3511 = vsel %vm1711, %v3403, 0.0
  %3512 = vadd.xlane.f32.xlu0 %v3511
  %v3513 = vpop.xlane.xlu0 %3512
  %v3514 = vsel %vm1711, %v3404, 0.0
  %3515 = vadd.xlane.f32.xlu0 %v3514
  %v3516 = vpop.xlane.xlu0 %3515
  %v3517 = vsel %vm1711, %v3405, 0.0
  %3518 = vadd.xlane.f32.xlu0 %v3517
  %v3519 = vpop.xlane.xlu0 %3518
  %v3520 = vsel %vm1711, %v3406, 0.0
  %3521 = vadd.xlane.f32.xlu0 %v3520
  %v3522 = vpop.xlane.xlu0 %3521
  %v3523 = vsel %vm1711, %v3407, 0.0
  %3524 = vadd.xlane.f32.xlu0 %v3523
  %v3525 = vpop.xlane.xlu0 %3524
  %v3526 = vsel %vm1711, %v3408, 0.0
  %3527 = vadd.xlane.f32.xlu0 %v3526
  %v3528 = vpop.xlane.xlu0 %3527
  %v3529 = vsel %vm1711, %v3409, 0.0
  %3530 = vadd.xlane.f32.xlu0 %v3529
  %v3531 = vpop.xlane.xlu0 %3530
  %v3532 = vsel %vm1711, %v3410, 0.0
  %3533 = vadd.xlane.f32.xlu0 %v3532
  %v3534 = vpop.xlane.xlu0 %3533
  %v3535 = vsel %vm1711, %v3411, 0.0
  %3536 = vadd.xlane.f32.xlu0 %v3535
  %v3537 = vpop.xlane.xlu0 %3536
  %v3538 = vsel %vm1711, %v3412, 0.0
  %3539 = vadd.xlane.f32.xlu0 %v3538
  %v3540 = vpop.xlane.xlu0 %3539
  %v3541 = vsel %vm1711, %v3413, 0.0
  %3542 = vadd.xlane.f32.xlu0 %v3541
  %v3543 = vpop.xlane.xlu0 %3542
  %v3544 = vsel %vm1711, %v3414, 0.0
  %3545 = vadd.xlane.f32.xlu0 %v3544
  %v3546 = vpop.xlane.xlu0 %3545
  %v3547 = vsel %vm1711, %v3415, 0.0
  %3548 = vadd.xlane.f32.xlu0 %v3547
  %v3549 = vpop.xlane.xlu0 %3548
  %v3550 = vsel %vm1711, %v3416, 0.0
  %3551 = vadd.xlane.f32.xlu0 %v3550
  %v3552 = vpop.xlane.xlu0 %3551
  %v3553 = vsel %vm1711, %v3417, 0.0
  %3554 = vadd.xlane.f32.xlu0 %v3553
  %v3555 = vpop.xlane.xlu0 %3554
  %v3556 = vsel %vm1711, %v3418, 0.0
  %3557 = vadd.xlane.f32.xlu0 %v3556
  %v3558 = vpop.xlane.xlu0 %3557
  %v3559 = vsel %vm1711, %v3419, 0.0
  %3560 = vadd.xlane.f32.xlu0 %v3559
  %v3561 = vpop.xlane.xlu0 %3560
  %v3562 = vsel %vm1711, %v3420, 0.0
  %3563 = vadd.xlane.f32.xlu0 %v3562
  %v3564 = vpop.xlane.xlu0 %3563
  %v3565 = vsel %vm1711, %v3421, 0.0
  %3566 = vadd.xlane.f32.xlu0 %v3565
  %v3567 = vpop.xlane.xlu0 %3566
  %v3568 = vsel %vm1711, %v3422, 0.0
  %3569 = vadd.xlane.f32.xlu0 %v3568
  %v3570 = vpop.xlane.xlu0 %3569
  %v3571 = vsel %vm1711, %v3423, 0.0
  %3572 = vadd.xlane.f32.xlu0 %v3571
  %v3573 = vpop.xlane.xlu0 %3572
  %v3574 = vsel %vm1711, %v3424, 0.0
  %3575 = vadd.xlane.f32.xlu0 %v3574
  %v3576 = vpop.xlane.xlu0 %3575
  %v3577 = vsel %vm1711, %v3425, 0.0
  %3578 = vadd.xlane.f32.xlu0 %v3577
  %v3579 = vpop.xlane.xlu0 %3578
  %v3580 = vsel %vm1711, %v3426, 0.0
  %3581 = vadd.xlane.f32.xlu0 %v3580
  %v3582 = vpop.xlane.xlu0 %3581
  %v3583 = vsel %vm1711, %v3427, 0.0
  %3584 = vadd.xlane.f32.xlu0 %v3583
  %v3585 = vpop.xlane.xlu0 %3584
  %v3586 = vsel %vm1711, %v3428, 0.0
  %3587 = vadd.xlane.f32.xlu0 %v3586
  %v3588 = vpop.xlane.xlu0 %3587
  %v3589 = vsel %vm1711, %v3429, 0.0
  %3590 = vadd.xlane.f32.xlu0 %v3589
  %v3591 = vpop.xlane.xlu0 %3590
  %v3592 = vsel %vm1711, %v3430, 0.0
  %3593 = vadd.xlane.f32.xlu0 %v3592
  %v3594 = vpop.xlane.xlu0 %3593
  %v3595 = vsel %vm1711, %v3431, 0.0
  %3596 = vadd.xlane.f32.xlu0 %v3595
  %v3597 = vpop.xlane.xlu0 %3596
  %v3598 = vsel %vm1711, %v3432, 0.0
  %3599 = vadd.xlane.f32.xlu0 %v3598
  %v3600 = vpop.xlane.xlu0 %3599
  %v3601 = vsel %vm1711, %v3433, 0.0
  %3602 = vadd.xlane.f32.xlu0 %v3601
  %v3603 = vpop.xlane.xlu0 %3602
  %v3604 = vsel %vm1711, %v3434, 0.0
  %3605 = vadd.xlane.f32.xlu0 %v3604
  %v3606 = vpop.xlane.xlu0 %3605
  %v3607 = vsel %vm1711, %v3435, 0.0
  %3608 = vadd.xlane.f32.xlu0 %v3607
  %v3609 = vpop.xlane.xlu0 %3608
  %v3610 = vsel %vm1711, %v3436, 0.0
  %3611 = vadd.xlane.f32.xlu0 %v3610
  %v3612 = vpop.xlane.xlu0 %3611
  %v3613 = vsel %vm1711, %v3437, 0.0
  %3614 = vadd.xlane.f32.xlu0 %v3613
  %v3615 = vpop.xlane.xlu0 %3614
  %v3616 = vsel %vm1711, %v3438, 0.0
  %3617 = vadd.xlane.f32.xlu0 %v3616
  %v3618 = vpop.xlane.xlu0 %3617
  %v3619 = vsel %vm1711, %v3439, 0.0
  %3620 = vadd.xlane.f32.xlu0 %v3619
  %v3621 = vpop.xlane.xlu0 %3620
  %v3622 = vsel %vm1711, %v3440, 0.0
  %3623 = vadd.xlane.f32.xlu0 %v3622
  %v3624 = vpop.xlane.xlu0 %3623
  %v3625 = vsel %vm1711, %v3441, 0.0
  %3626 = vadd.xlane.f32.xlu0 %v3625
  %v3627 = vpop.xlane.xlu0 %3626
  %v3628 = vsel %vm1711, %v3442, 0.0
  %3629 = vadd.xlane.f32.xlu0 %v3628
  %v3630 = vpop.xlane.xlu0 %3629
  %v3631 = vsel %vm1711, %v3443, 0.0
  %3632 = vadd.xlane.f32.xlu0 %v3631
  %v3633 = vpop.xlane.xlu0 %3632
  %v3634 = vsel %vm1711, %v3444, 0.0
  %3635 = vadd.xlane.f32.xlu0 %v3634
  %v3636 = vpop.xlane.xlu0 %3635
  %v3637 = vmul.f32 %v3447, %v1808
  %v3638 = vmul.f32 %v3450, %v1808
  %v3639 = vmul.f32 %v3453, %v1808
  %v3640 = vmul.f32 %v3456, %v1808
  %v3641 = vmul.f32 %v3459, %v1808
  %v3642 = vmul.f32 %v3462, %v1808
  %v3643 = vmul.f32 %v3465, %v1808
  %v3644 = vmul.f32 %v3468, %v1808
  %v3645 = vmul.f32 %v3471, %v1808
  %v3646 = vmul.f32 %v3474, %v1808
  %v3647 = vmul.f32 %v3477, %v1808
  %v3648 = vmul.f32 %v3480, %v1808
  %v3649 = vmul.f32 %v3483, %v1808
  %v3650 = vmul.f32 %v3486, %v1808
  %v3651 = vmul.f32 %v3489, %v1808
  %v3652 = vmul.f32 %v3492, %v1808
  %v3653 = vmul.f32 %v3495, %v1808
  %v3654 = vmul.f32 %v3498, %v1808
  %v3655 = vmul.f32 %v3501, %v1808
  %v3656 = vmul.f32 %v3504, %v1808
  %v3657 = vmul.f32 %v3507, %v1808
  %v3658 = vmul.f32 %v3510, %v1808
  %v3659 = vmul.f32 %v3513, %v1808
  %v3660 = vmul.f32 %v3516, %v1808
  %v3661 = vmul.f32 %v3519, %v1808
  %v3662 = vmul.f32 %v3522, %v1808
  %v3663 = vmul.f32 %v3525, %v1808
  %v3664 = vmul.f32 %v3528, %v1808
  %v3665 = vmul.f32 %v3531, %v1808
  %v3666 = vmul.f32 %v3534, %v1808
  %v3667 = vmul.f32 %v3537, %v1808
  %v3668 = vmul.f32 %v3540, %v1808
  %v3669 = vmul.f32 %v3543, %v1808
  %v3670 = vmul.f32 %v3546, %v1808
  %v3671 = vmul.f32 %v3549, %v1808
  %v3672 = vmul.f32 %v3552, %v1808
  %v3673 = vmul.f32 %v3555, %v1808
  %v3674 = vmul.f32 %v3558, %v1808
  %v3675 = vmul.f32 %v3561, %v1808
  %v3676 = vmul.f32 %v3564, %v1808
  %v3677 = vmul.f32 %v3567, %v1808
  %v3678 = vmul.f32 %v3570, %v1808
  %v3679 = vmul.f32 %v3573, %v1808
  %v3680 = vmul.f32 %v3576, %v1808
  %v3681 = vmul.f32 %v3579, %v1808
  %v3682 = vmul.f32 %v3582, %v1808
  %v3683 = vmul.f32 %v3585, %v1808
  %v3684 = vmul.f32 %v3588, %v1808
  %v3685 = vmul.f32 %v3591, %v1808
  %v3686 = vmul.f32 %v3594, %v1808
  %v3687 = vmul.f32 %v3597, %v1808
  %v3688 = vmul.f32 %v3600, %v1808
  %v3689 = vmul.f32 %v3603, %v1808
  %v3690 = vmul.f32 %v3606, %v1808
  %v3691 = vmul.f32 %v3609, %v1808
  %v3692 = vmul.f32 %v3612, %v1808
  %v3693 = vmul.f32 %v3615, %v1808
  %v3694 = vmul.f32 %v3618, %v1808
  %v3695 = vmul.f32 %v3621, %v1808
  %v3696 = vmul.f32 %v3624, %v1808
  %v3697 = vmul.f32 %v3627, %v1808
  %v3698 = vmul.f32 %v3630, %v1808
  %v3699 = vmul.f32 %v3633, %v1808
  %v3700 = vmul.f32 %v3636, %v1808
  %v3701 = vsub.f32 %v3381, %v3637
  %v3702 = vsub.f32 %v3382, %v3638
  %v3703 = vsub.f32 %v3383, %v3639
  %v3704 = vsub.f32 %v3384, %v3640
  %v3705 = vsub.f32 %v3385, %v3641
  %v3706 = vsub.f32 %v3386, %v3642
  %v3707 = vsub.f32 %v3387, %v3643
  %v3708 = vsub.f32 %v3388, %v3644
  %v3709 = vsub.f32 %v3389, %v3645
  %v3710 = vsub.f32 %v3390, %v3646
  %v3711 = vsub.f32 %v3391, %v3647
  %v3712 = vsub.f32 %v3392, %v3648
  %v3713 = vsub.f32 %v3393, %v3649
  %v3714 = vsub.f32 %v3394, %v3650
  %v3715 = vsub.f32 %v3395, %v3651
  %v3716 = vsub.f32 %v3396, %v3652
  %v3717 = vsub.f32 %v3397, %v3653
  %v3718 = vsub.f32 %v3398, %v3654
  %v3719 = vsub.f32 %v3399, %v3655
  %v3720 = vsub.f32 %v3400, %v3656
  %v3721 = vsub.f32 %v3401, %v3657
  %v3722 = vsub.f32 %v3402, %v3658
  %v3723 = vsub.f32 %v3403, %v3659
  %v3724 = vsub.f32 %v3404, %v3660
  %v3725 = vsub.f32 %v3405, %v3661
  %v3726 = vsub.f32 %v3406, %v3662
  %v3727 = vsub.f32 %v3407, %v3663
  %v3728 = vsub.f32 %v3408, %v3664
  %v3729 = vsub.f32 %v3409, %v3665
  %v3730 = vsub.f32 %v3410, %v3666
  %v3731 = vsub.f32 %v3411, %v3667
  %v3732 = vsub.f32 %v3412, %v3668
  %v3733 = vsub.f32 %v3413, %v3669
  %v3734 = vsub.f32 %v3414, %v3670
  %v3735 = vsub.f32 %v3415, %v3671
  %v3736 = vsub.f32 %v3416, %v3672
  %v3737 = vsub.f32 %v3417, %v3673
  %v3738 = vsub.f32 %v3418, %v3674
  %v3739 = vsub.f32 %v3419, %v3675
  %v3740 = vsub.f32 %v3420, %v3676
  %v3741 = vsub.f32 %v3421, %v3677
  %v3742 = vsub.f32 %v3422, %v3678
  %v3743 = vsub.f32 %v3423, %v3679
  %v3744 = vsub.f32 %v3424, %v3680
  %v3745 = vsub.f32 %v3425, %v3681
  %v3746 = vsub.f32 %v3426, %v3682
  %v3747 = vsub.f32 %v3427, %v3683
  %v3748 = vsub.f32 %v3428, %v3684
  %v3749 = vsub.f32 %v3429, %v3685
  %v3750 = vsub.f32 %v3430, %v3686
  %v3751 = vsub.f32 %v3431, %v3687
  %v3752 = vsub.f32 %v3432, %v3688
  %v3753 = vsub.f32 %v3433, %v3689
  %v3754 = vsub.f32 %v3434, %v3690
  %v3755 = vsub.f32 %v3435, %v3691
  %v3756 = vsub.f32 %v3436, %v3692
  %v3757 = vsub.f32 %v3437, %v3693
  %v3758 = vsub.f32 %v3438, %v3694
  %v3759 = vsub.f32 %v3439, %v3695
  %v3760 = vsub.f32 %v3440, %v3696
  %v3761 = vsub.f32 %v3441, %v3697
  %v3762 = vsub.f32 %v3442, %v3698
  %v3763 = vsub.f32 %v3443, %v3699
  %v3764 = vsub.f32 %v3444, %v3700
  %v3765 = vmul.f32 %v3701, %v3701
  %v3766 = vmul.f32 %v3702, %v3702
  %v3767 = vmul.f32 %v3703, %v3703
  %v3768 = vmul.f32 %v3704, %v3704
  %v3769 = vmul.f32 %v3705, %v3705
  %v3770 = vmul.f32 %v3706, %v3706
  %v3771 = vmul.f32 %v3707, %v3707
  %v3772 = vmul.f32 %v3708, %v3708
  %v3773 = vmul.f32 %v3709, %v3709
  %v3774 = vmul.f32 %v3710, %v3710
  %v3775 = vmul.f32 %v3711, %v3711
  %v3776 = vmul.f32 %v3712, %v3712
  %v3777 = vmul.f32 %v3713, %v3713
  %v3778 = vmul.f32 %v3714, %v3714
  %v3779 = vmul.f32 %v3715, %v3715
  %v3780 = vmul.f32 %v3716, %v3716
  %v3781 = vmul.f32 %v3717, %v3717
  %v3782 = vmul.f32 %v3718, %v3718
  %v3783 = vmul.f32 %v3719, %v3719
  %v3784 = vmul.f32 %v3720, %v3720
  %v3785 = vmul.f32 %v3721, %v3721
  %v3786 = vmul.f32 %v3722, %v3722
  %v3787 = vmul.f32 %v3723, %v3723
  %v3788 = vmul.f32 %v3724, %v3724
  %v3789 = vmul.f32 %v3725, %v3725
  %v3790 = vmul.f32 %v3726, %v3726
  %v3791 = vmul.f32 %v3727, %v3727
  %v3792 = vmul.f32 %v3728, %v3728
  %v3793 = vmul.f32 %v3729, %v3729
  %v3794 = vmul.f32 %v3730, %v3730
  %v3795 = vmul.f32 %v3731, %v3731
  %v3796 = vmul.f32 %v3732, %v3732
  %v3797 = vmul.f32 %v3733, %v3733
  %v3798 = vmul.f32 %v3734, %v3734
  %v3799 = vmul.f32 %v3735, %v3735
  %v3800 = vmul.f32 %v3736, %v3736
  %v3801 = vmul.f32 %v3737, %v3737
  %v3802 = vmul.f32 %v3738, %v3738
  %v3803 = vmul.f32 %v3739, %v3739
  %v3804 = vmul.f32 %v3740, %v3740
  %v3805 = vmul.f32 %v3741, %v3741
  %v3806 = vmul.f32 %v3742, %v3742
  %v3807 = vmul.f32 %v3743, %v3743
  %v3808 = vmul.f32 %v3744, %v3744
  %v3809 = vmul.f32 %v3745, %v3745
  %v3810 = vmul.f32 %v3746, %v3746
  %v3811 = vmul.f32 %v3747, %v3747
  %v3812 = vmul.f32 %v3748, %v3748
  %v3813 = vmul.f32 %v3749, %v3749
  %v3814 = vmul.f32 %v3750, %v3750
  %v3815 = vmul.f32 %v3751, %v3751
  %v3816 = vmul.f32 %v3752, %v3752
  %v3817 = vmul.f32 %v3753, %v3753
  %v3818 = vmul.f32 %v3754, %v3754
  %v3819 = vmul.f32 %v3755, %v3755
  %v3820 = vmul.f32 %v3756, %v3756
  %v3821 = vmul.f32 %v3757, %v3757
  %v3822 = vmul.f32 %v3758, %v3758
  %v3823 = vmul.f32 %v3759, %v3759
  %v3824 = vmul.f32 %v3760, %v3760
  %v3825 = vmul.f32 %v3761, %v3761
  %v3826 = vmul.f32 %v3762, %v3762
  %v3827 = vmul.f32 %v3763, %v3763
  %v3828 = vmul.f32 %v3764, %v3764
  %v3829 = vsel %vm1711, %v3765, 0.0
  %3830 = vadd.xlane.f32.xlu0 %v3829
  %v3831 = vpop.xlane.xlu0 %3830
  %v3832 = vsel %vm1711, %v3766, 0.0
  %3833 = vadd.xlane.f32.xlu0 %v3832
  %v3834 = vpop.xlane.xlu0 %3833
  %v3835 = vsel %vm1711, %v3767, 0.0
  %3836 = vadd.xlane.f32.xlu0 %v3835
  %v3837 = vpop.xlane.xlu0 %3836
  %v3838 = vsel %vm1711, %v3768, 0.0
  %3839 = vadd.xlane.f32.xlu0 %v3838
  %v3840 = vpop.xlane.xlu0 %3839
  %v3841 = vsel %vm1711, %v3769, 0.0
  %3842 = vadd.xlane.f32.xlu0 %v3841
  %v3843 = vpop.xlane.xlu0 %3842
  %v3844 = vsel %vm1711, %v3770, 0.0
  %3845 = vadd.xlane.f32.xlu0 %v3844
  %v3846 = vpop.xlane.xlu0 %3845
  %v3847 = vsel %vm1711, %v3771, 0.0
  %3848 = vadd.xlane.f32.xlu0 %v3847
  %v3849 = vpop.xlane.xlu0 %3848
  %v3850 = vsel %vm1711, %v3772, 0.0
  %3851 = vadd.xlane.f32.xlu0 %v3850
  %v3852 = vpop.xlane.xlu0 %3851
  %v3853 = vsel %vm1711, %v3773, 0.0
  %3854 = vadd.xlane.f32.xlu0 %v3853
  %v3855 = vpop.xlane.xlu0 %3854
  %v3856 = vsel %vm1711, %v3774, 0.0
  %3857 = vadd.xlane.f32.xlu0 %v3856
  %v3858 = vpop.xlane.xlu0 %3857
  %v3859 = vsel %vm1711, %v3775, 0.0
  %3860 = vadd.xlane.f32.xlu0 %v3859
  %v3861 = vpop.xlane.xlu0 %3860
  %v3862 = vsel %vm1711, %v3776, 0.0
  %3863 = vadd.xlane.f32.xlu0 %v3862
  %v3864 = vpop.xlane.xlu0 %3863
  %v3865 = vsel %vm1711, %v3777, 0.0
  %3866 = vadd.xlane.f32.xlu0 %v3865
  %v3867 = vpop.xlane.xlu0 %3866
  %v3868 = vsel %vm1711, %v3778, 0.0
  %3869 = vadd.xlane.f32.xlu0 %v3868
  %v3870 = vpop.xlane.xlu0 %3869
  %v3871 = vsel %vm1711, %v3779, 0.0
  %3872 = vadd.xlane.f32.xlu0 %v3871
  %v3873 = vpop.xlane.xlu0 %3872
  %v3874 = vsel %vm1711, %v3780, 0.0
  %3875 = vadd.xlane.f32.xlu0 %v3874
  %v3876 = vpop.xlane.xlu0 %3875
  %v3877 = vsel %vm1711, %v3781, 0.0
  %3878 = vadd.xlane.f32.xlu0 %v3877
  %v3879 = vpop.xlane.xlu0 %3878
  %v3880 = vsel %vm1711, %v3782, 0.0
  %3881 = vadd.xlane.f32.xlu0 %v3880
  %v3882 = vpop.xlane.xlu0 %3881
  %v3883 = vsel %vm1711, %v3783, 0.0
  %3884 = vadd.xlane.f32.xlu0 %v3883
  %v3885 = vpop.xlane.xlu0 %3884
  %v3886 = vsel %vm1711, %v3784, 0.0
  %3887 = vadd.xlane.f32.xlu0 %v3886
  %v3888 = vpop.xlane.xlu0 %3887
  %v3889 = vsel %vm1711, %v3785, 0.0
  %3890 = vadd.xlane.f32.xlu0 %v3889
  %v3891 = vpop.xlane.xlu0 %3890
  %v3892 = vsel %vm1711, %v3786, 0.0
  %3893 = vadd.xlane.f32.xlu0 %v3892
  %v3894 = vpop.xlane.xlu0 %3893
  %v3895 = vsel %vm1711, %v3787, 0.0
  %3896 = vadd.xlane.f32.xlu0 %v3895
  %v3897 = vpop.xlane.xlu0 %3896
  %v3898 = vsel %vm1711, %v3788, 0.0
  %3899 = vadd.xlane.f32.xlu0 %v3898
  %v3900 = vpop.xlane.xlu0 %3899
  %v3901 = vsel %vm1711, %v3789, 0.0
  %3902 = vadd.xlane.f32.xlu0 %v3901
  %v3903 = vpop.xlane.xlu0 %3902
  %v3904 = vsel %vm1711, %v3790, 0.0
  %3905 = vadd.xlane.f32.xlu0 %v3904
  %v3906 = vpop.xlane.xlu0 %3905
  %v3907 = vsel %vm1711, %v3791, 0.0
  %3908 = vadd.xlane.f32.xlu0 %v3907
  %v3909 = vpop.xlane.xlu0 %3908
  %v3910 = vsel %vm1711, %v3792, 0.0
  %3911 = vadd.xlane.f32.xlu0 %v3910
  %v3912 = vpop.xlane.xlu0 %3911
  %v3913 = vsel %vm1711, %v3793, 0.0
  %3914 = vadd.xlane.f32.xlu0 %v3913
  %v3915 = vpop.xlane.xlu0 %3914
  %v3916 = vsel %vm1711, %v3794, 0.0
  %3917 = vadd.xlane.f32.xlu0 %v3916
  %v3918 = vpop.xlane.xlu0 %3917
  %v3919 = vsel %vm1711, %v3795, 0.0
  %3920 = vadd.xlane.f32.xlu0 %v3919
  %v3921 = vpop.xlane.xlu0 %3920
  %v3922 = vsel %vm1711, %v3796, 0.0
  %3923 = vadd.xlane.f32.xlu0 %v3922
  %v3924 = vpop.xlane.xlu0 %3923
  %v3925 = vsel %vm1711, %v3797, 0.0
  %3926 = vadd.xlane.f32.xlu0 %v3925
  %v3927 = vpop.xlane.xlu0 %3926
  %v3928 = vsel %vm1711, %v3798, 0.0
  %3929 = vadd.xlane.f32.xlu0 %v3928
  %v3930 = vpop.xlane.xlu0 %3929
  %v3931 = vsel %vm1711, %v3799, 0.0
  %3932 = vadd.xlane.f32.xlu0 %v3931
  %v3933 = vpop.xlane.xlu0 %3932
  %v3934 = vsel %vm1711, %v3800, 0.0
  %3935 = vadd.xlane.f32.xlu0 %v3934
  %v3936 = vpop.xlane.xlu0 %3935
  %v3937 = vsel %vm1711, %v3801, 0.0
  %3938 = vadd.xlane.f32.xlu0 %v3937
  %v3939 = vpop.xlane.xlu0 %3938
  %v3940 = vsel %vm1711, %v3802, 0.0
  %3941 = vadd.xlane.f32.xlu0 %v3940
  %v3942 = vpop.xlane.xlu0 %3941
  %v3943 = vsel %vm1711, %v3803, 0.0
  %3944 = vadd.xlane.f32.xlu0 %v3943
  %v3945 = vpop.xlane.xlu0 %3944
  %v3946 = vsel %vm1711, %v3804, 0.0
  %3947 = vadd.xlane.f32.xlu0 %v3946
  %v3948 = vpop.xlane.xlu0 %3947
  %v3949 = vsel %vm1711, %v3805, 0.0
  %3950 = vadd.xlane.f32.xlu0 %v3949
  %v3951 = vpop.xlane.xlu0 %3950
  %v3952 = vsel %vm1711, %v3806, 0.0
  %3953 = vadd.xlane.f32.xlu0 %v3952
  %v3954 = vpop.xlane.xlu0 %3953
  %v3955 = vsel %vm1711, %v3807, 0.0
  %3956 = vadd.xlane.f32.xlu0 %v3955
  %v3957 = vpop.xlane.xlu0 %3956
  %v3958 = vsel %vm1711, %v3808, 0.0
  %3959 = vadd.xlane.f32.xlu0 %v3958
  %v3960 = vpop.xlane.xlu0 %3959
  %v3961 = vsel %vm1711, %v3809, 0.0
  %3962 = vadd.xlane.f32.xlu0 %v3961
  %v3963 = vpop.xlane.xlu0 %3962
  %v3964 = vsel %vm1711, %v3810, 0.0
  %3965 = vadd.xlane.f32.xlu0 %v3964
  %v3966 = vpop.xlane.xlu0 %3965
  %v3967 = vsel %vm1711, %v3811, 0.0
  %3968 = vadd.xlane.f32.xlu0 %v3967
  %v3969 = vpop.xlane.xlu0 %3968
  %v3970 = vsel %vm1711, %v3812, 0.0
  %3971 = vadd.xlane.f32.xlu0 %v3970
  %v3972 = vpop.xlane.xlu0 %3971
  %v3973 = vsel %vm1711, %v3813, 0.0
  %3974 = vadd.xlane.f32.xlu0 %v3973
  %v3975 = vpop.xlane.xlu0 %3974
  %v3976 = vsel %vm1711, %v3814, 0.0
  %3977 = vadd.xlane.f32.xlu0 %v3976
  %v3978 = vpop.xlane.xlu0 %3977
  %v3979 = vsel %vm1711, %v3815, 0.0
  %3980 = vadd.xlane.f32.xlu0 %v3979
  %v3981 = vpop.xlane.xlu0 %3980
  %v3982 = vsel %vm1711, %v3816, 0.0
  %3983 = vadd.xlane.f32.xlu0 %v3982
  %v3984 = vpop.xlane.xlu0 %3983
  %v3985 = vsel %vm1711, %v3817, 0.0
  %3986 = vadd.xlane.f32.xlu0 %v3985
  %v3987 = vpop.xlane.xlu0 %3986
  %v3988 = vsel %vm1711, %v3818, 0.0
  %3989 = vadd.xlane.f32.xlu0 %v3988
  %v3990 = vpop.xlane.xlu0 %3989
  %v3991 = vsel %vm1711, %v3819, 0.0
  %3992 = vadd.xlane.f32.xlu0 %v3991
  %v3993 = vpop.xlane.xlu0 %3992
  %v3994 = vsel %vm1711, %v3820, 0.0
  %3995 = vadd.xlane.f32.xlu0 %v3994
  %v3996 = vpop.xlane.xlu0 %3995
  %v3997 = vsel %vm1711, %v3821, 0.0
  %3998 = vadd.xlane.f32.xlu0 %v3997
  %v3999 = vpop.xlane.xlu0 %3998
  %v4000 = vsel %vm1711, %v3822, 0.0
  %4001 = vadd.xlane.f32.xlu0 %v4000
  %v4002 = vpop.xlane.xlu0 %4001
  %v4003 = vsel %vm1711, %v3823, 0.0
  %4004 = vadd.xlane.f32.xlu0 %v4003
  %v4005 = vpop.xlane.xlu0 %4004
  %v4006 = vsel %vm1711, %v3824, 0.0
  %4007 = vadd.xlane.f32.xlu0 %v4006
  %v4008 = vpop.xlane.xlu0 %4007
  %v4009 = vsel %vm1711, %v3825, 0.0
  %4010 = vadd.xlane.f32.xlu0 %v4009
  %v4011 = vpop.xlane.xlu0 %4010
  %v4012 = vsel %vm1711, %v3826, 0.0
  %4013 = vadd.xlane.f32.xlu0 %v4012
  %v4014 = vpop.xlane.xlu0 %4013
  %v4015 = vsel %vm1711, %v3827, 0.0
  %4016 = vadd.xlane.f32.xlu0 %v4015
  %v4017 = vpop.xlane.xlu0 %4016
  %v4018 = vsel %vm1711, %v3828, 0.0
  %4019 = vadd.xlane.f32.xlu0 %v4018
  %v4020 = vpop.xlane.xlu0 %4019
  %v4021 = vmul.f32 %v3831, %v1808
  %v4022 = vmul.f32 %v3834, %v1808
  %v4023 = vmul.f32 %v3837, %v1808
  %v4024 = vmul.f32 %v3840, %v1808
  %v4025 = vmul.f32 %v3843, %v1808
  %v4026 = vmul.f32 %v3846, %v1808
  %v4027 = vmul.f32 %v3849, %v1808
  %v4028 = vmul.f32 %v3852, %v1808
  %v4029 = vmul.f32 %v3855, %v1808
  %v4030 = vmul.f32 %v3858, %v1808
  %v4031 = vmul.f32 %v3861, %v1808
  %v4032 = vmul.f32 %v3864, %v1808
  %v4033 = vmul.f32 %v3867, %v1808
  %v4034 = vmul.f32 %v3870, %v1808
  %v4035 = vmul.f32 %v3873, %v1808
  %v4036 = vmul.f32 %v3876, %v1808
  %v4037 = vmul.f32 %v3879, %v1808
  %v4038 = vmul.f32 %v3882, %v1808
  %v4039 = vmul.f32 %v3885, %v1808
  %v4040 = vmul.f32 %v3888, %v1808
  %v4041 = vmul.f32 %v3891, %v1808
  %v4042 = vmul.f32 %v3894, %v1808
  %v4043 = vmul.f32 %v3897, %v1808
  %v4044 = vmul.f32 %v3900, %v1808
  %v4045 = vmul.f32 %v3903, %v1808
  %v4046 = vmul.f32 %v3906, %v1808
  %v4047 = vmul.f32 %v3909, %v1808
  %v4048 = vmul.f32 %v3912, %v1808
  %v4049 = vmul.f32 %v3915, %v1808
  %v4050 = vmul.f32 %v3918, %v1808
  %v4051 = vmul.f32 %v3921, %v1808
  %v4052 = vmul.f32 %v3924, %v1808
  %v4053 = vmul.f32 %v3927, %v1808
  %v4054 = vmul.f32 %v3930, %v1808
  %v4055 = vmul.f32 %v3933, %v1808
  %v4056 = vmul.f32 %v3936, %v1808
  %v4057 = vmul.f32 %v3939, %v1808
  %v4058 = vmul.f32 %v3942, %v1808
  %v4059 = vmul.f32 %v3945, %v1808
  %v4060 = vmul.f32 %v3948, %v1808
  %v4061 = vmul.f32 %v3951, %v1808
  %v4062 = vmul.f32 %v3954, %v1808
  %v4063 = vmul.f32 %v3957, %v1808
  %v4064 = vmul.f32 %v3960, %v1808
  %v4065 = vmul.f32 %v3963, %v1808
  %v4066 = vmul.f32 %v3966, %v1808
  %v4067 = vmul.f32 %v3969, %v1808
  %v4068 = vmul.f32 %v3972, %v1808
  %v4069 = vmul.f32 %v3975, %v1808
  %v4070 = vmul.f32 %v3978, %v1808
  %v4071 = vmul.f32 %v3981, %v1808
  %v4072 = vmul.f32 %v3984, %v1808
  %v4073 = vmul.f32 %v3987, %v1808
  %v4074 = vmul.f32 %v3990, %v1808
  %v4075 = vmul.f32 %v3993, %v1808
  %v4076 = vmul.f32 %v3996, %v1808
  %v4077 = vmul.f32 %v3999, %v1808
  %v4078 = vmul.f32 %v4002, %v1808
  %v4079 = vmul.f32 %v4005, %v1808
  %v4080 = vmul.f32 %v4008, %v1808
  %v4081 = vmul.f32 %v4011, %v1808
  %v4082 = vmul.f32 %v4014, %v1808
  %v4083 = vmul.f32 %v4017, %v1808
  %v4084 = vmul.f32 %v4020, %v1808
  %v4085 = vadd.f32 %v4021, 1e-05
  %v4086 = vadd.f32 %v4022, 1e-05
  %v4087 = vadd.f32 %v4023, 1e-05
  %v4088 = vadd.f32 %v4024, 1e-05
  %v4089 = vadd.f32 %v4025, 1e-05
  %v4090 = vadd.f32 %v4026, 1e-05
  %v4091 = vadd.f32 %v4027, 1e-05
  %v4092 = vadd.f32 %v4028, 1e-05
  %v4093 = vadd.f32 %v4029, 1e-05
  %v4094 = vadd.f32 %v4030, 1e-05
  %v4095 = vadd.f32 %v4031, 1e-05
  %v4096 = vadd.f32 %v4032, 1e-05
  %v4097 = vadd.f32 %v4033, 1e-05
  %v4098 = vadd.f32 %v4034, 1e-05
  %v4099 = vadd.f32 %v4035, 1e-05
  %v4100 = vadd.f32 %v4036, 1e-05
  %v4101 = vadd.f32 %v4037, 1e-05
  %v4102 = vadd.f32 %v4038, 1e-05
  %v4103 = vadd.f32 %v4039, 1e-05
  %v4104 = vadd.f32 %v4040, 1e-05
  %v4105 = vadd.f32 %v4041, 1e-05
  %v4106 = vadd.f32 %v4042, 1e-05
  %v4107 = vadd.f32 %v4043, 1e-05
  %v4108 = vadd.f32 %v4044, 1e-05
  %v4109 = vadd.f32 %v4045, 1e-05
  %v4110 = vadd.f32 %v4046, 1e-05
  %v4111 = vadd.f32 %v4047, 1e-05
  %v4112 = vadd.f32 %v4048, 1e-05
  %v4113 = vadd.f32 %v4049, 1e-05
  %v4114 = vadd.f32 %v4050, 1e-05
  %v4115 = vadd.f32 %v4051, 1e-05
  %v4116 = vadd.f32 %v4052, 1e-05
  %v4117 = vadd.f32 %v4053, 1e-05
  %v4118 = vadd.f32 %v4054, 1e-05
  %v4119 = vadd.f32 %v4055, 1e-05
  %v4120 = vadd.f32 %v4056, 1e-05
  %v4121 = vadd.f32 %v4057, 1e-05
  %v4122 = vadd.f32 %v4058, 1e-05
  %v4123 = vadd.f32 %v4059, 1e-05
  %v4124 = vadd.f32 %v4060, 1e-05
  %v4125 = vadd.f32 %v4061, 1e-05
  %v4126 = vadd.f32 %v4062, 1e-05
  %v4127 = vadd.f32 %v4063, 1e-05
  %v4128 = vadd.f32 %v4064, 1e-05
  %v4129 = vadd.f32 %v4065, 1e-05
  %v4130 = vadd.f32 %v4066, 1e-05
  %v4131 = vadd.f32 %v4067, 1e-05
  %v4132 = vadd.f32 %v4068, 1e-05
  %v4133 = vadd.f32 %v4069, 1e-05
  %v4134 = vadd.f32 %v4070, 1e-05
  %v4135 = vadd.f32 %v4071, 1e-05
  %v4136 = vadd.f32 %v4072, 1e-05
  %v4137 = vadd.f32 %v4073, 1e-05
  %v4138 = vadd.f32 %v4074, 1e-05
  %v4139 = vadd.f32 %v4075, 1e-05
  %v4140 = vadd.f32 %v4076, 1e-05
  %v4141 = vadd.f32 %v4077, 1e-05
  %v4142 = vadd.f32 %v4078, 1e-05
  %v4143 = vadd.f32 %v4079, 1e-05
  %v4144 = vadd.f32 %v4080, 1e-05
  %v4145 = vadd.f32 %v4081, 1e-05
  %v4146 = vadd.f32 %v4082, 1e-05
  %v4147 = vadd.f32 %v4083, 1e-05
  %v4148 = vadd.f32 %v4084, 1e-05
  %v4149 = vrsqrt.pop %v4085
  %v4150 = vrsqrt.pop %v4086
  %v4151 = vrsqrt.pop %v4087
  %v4152 = vrsqrt.pop %v4088
  %v4153 = vrsqrt.pop %v4089
  %v4154 = vrsqrt.pop %v4090
  %v4155 = vrsqrt.pop %v4091
  %v4156 = vrsqrt.pop %v4092
  %v4157 = vrsqrt.pop %v4093
  %v4158 = vrsqrt.pop %v4094
  %v4159 = vrsqrt.pop %v4095
  %v4160 = vrsqrt.pop %v4096
  %v4161 = vrsqrt.pop %v4097
  %v4162 = vrsqrt.pop %v4098
  %v4163 = vrsqrt.pop %v4099
  %v4164 = vrsqrt.pop %v4100
  %v4165 = vrsqrt.pop %v4101
  %v4166 = vrsqrt.pop %v4102
  %v4167 = vrsqrt.pop %v4103
  %v4168 = vrsqrt.pop %v4104
  %v4169 = vrsqrt.pop %v4105
  %v4170 = vrsqrt.pop %v4106
  %v4171 = vrsqrt.pop %v4107
  %v4172 = vrsqrt.pop %v4108
  %v4173 = vrsqrt.pop %v4109
  %v4174 = vrsqrt.pop %v4110
  %v4175 = vrsqrt.pop %v4111
  %v4176 = vrsqrt.pop %v4112
  %v4177 = vrsqrt.pop %v4113
  %v4178 = vrsqrt.pop %v4114
  %v4179 = vrsqrt.pop %v4115
  %v4180 = vrsqrt.pop %v4116
  %v4181 = vrsqrt.pop %v4117
  %v4182 = vrsqrt.pop %v4118
  %v4183 = vrsqrt.pop %v4119
  %v4184 = vrsqrt.pop %v4120
  %v4185 = vrsqrt.pop %v4121
  %v4186 = vrsqrt.pop %v4122
  %v4187 = vrsqrt.pop %v4123
  %v4188 = vrsqrt.pop %v4124
  %v4189 = vrsqrt.pop %v4125
  %v4190 = vrsqrt.pop %v4126
  %v4191 = vrsqrt.pop %v4127
  %v4192 = vrsqrt.pop %v4128
  %v4193 = vrsqrt.pop %v4129
  %v4194 = vrsqrt.pop %v4130
  %v4195 = vrsqrt.pop %v4131
  %v4196 = vrsqrt.pop %v4132
  %v4197 = vrsqrt.pop %v4133
  %v4198 = vrsqrt.pop %v4134
  %v4199 = vrsqrt.pop %v4135
  %v4200 = vrsqrt.pop %v4136
  %v4201 = vrsqrt.pop %v4137
  %v4202 = vrsqrt.pop %v4138
  %v4203 = vrsqrt.pop %v4139
  %v4204 = vrsqrt.pop %v4140
  %v4205 = vrsqrt.pop %v4141
  %v4206 = vrsqrt.pop %v4142
  %v4207 = vrsqrt.pop %v4143
  %v4208 = vrsqrt.pop %v4144
  %v4209 = vrsqrt.pop %v4145
  %v4210 = vrsqrt.pop %v4146
  %v4211 = vrsqrt.pop %v4147
  %v4212 = vrsqrt.pop %v4148
  %v4213 = vmul.f32 %v3701, %v4149
  %v4214 = vmul.f32 %v3702, %v4150
  %v4215 = vmul.f32 %v3703, %v4151
  %v4216 = vmul.f32 %v3704, %v4152
  %v4217 = vmul.f32 %v3705, %v4153
  %v4218 = vmul.f32 %v3706, %v4154
  %v4219 = vmul.f32 %v3707, %v4155
  %v4220 = vmul.f32 %v3708, %v4156
  %v4221 = vmul.f32 %v3709, %v4157
  %v4222 = vmul.f32 %v3710, %v4158
  %v4223 = vmul.f32 %v3711, %v4159
  %v4224 = vmul.f32 %v3712, %v4160
  %v4225 = vmul.f32 %v3713, %v4161
  %v4226 = vmul.f32 %v3714, %v4162
  %v4227 = vmul.f32 %v3715, %v4163
  %v4228 = vmul.f32 %v3716, %v4164
  %v4229 = vmul.f32 %v3717, %v4165
  %v4230 = vmul.f32 %v3718, %v4166
  %v4231 = vmul.f32 %v3719, %v4167
  %v4232 = vmul.f32 %v3720, %v4168
  %v4233 = vmul.f32 %v3721, %v4169
  %v4234 = vmul.f32 %v3722, %v4170
  %v4235 = vmul.f32 %v3723, %v4171
  %v4236 = vmul.f32 %v3724, %v4172
  %v4237 = vmul.f32 %v3725, %v4173
  %v4238 = vmul.f32 %v3726, %v4174
  %v4239 = vmul.f32 %v3727, %v4175
  %v4240 = vmul.f32 %v3728, %v4176
  %v4241 = vmul.f32 %v3729, %v4177
  %v4242 = vmul.f32 %v3730, %v4178
  %v4243 = vmul.f32 %v3731, %v4179
  %v4244 = vmul.f32 %v3732, %v4180
  %v4245 = vmul.f32 %v3733, %v4181
  %v4246 = vmul.f32 %v3734, %v4182
  %v4247 = vmul.f32 %v3735, %v4183
  %v4248 = vmul.f32 %v3736, %v4184
  %v4249 = vmul.f32 %v3737, %v4185
  %v4250 = vmul.f32 %v3738, %v4186
  %v4251 = vmul.f32 %v3739, %v4187
  %v4252 = vmul.f32 %v3740, %v4188
  %v4253 = vmul.f32 %v3741, %v4189
  %v4254 = vmul.f32 %v3742, %v4190
  %v4255 = vmul.f32 %v3743, %v4191
  %v4256 = vmul.f32 %v3744, %v4192
  %v4257 = vmul.f32 %v3745, %v4193
  %v4258 = vmul.f32 %v3746, %v4194
  %v4259 = vmul.f32 %v3747, %v4195
  %v4260 = vmul.f32 %v3748, %v4196
  %v4261 = vmul.f32 %v3749, %v4197
  %v4262 = vmul.f32 %v3750, %v4198
  %v4263 = vmul.f32 %v3751, %v4199
  %v4264 = vmul.f32 %v3752, %v4200
  %v4265 = vmul.f32 %v3753, %v4201
  %v4266 = vmul.f32 %v3754, %v4202
  %v4267 = vmul.f32 %v3755, %v4203
  %v4268 = vmul.f32 %v3756, %v4204
  %v4269 = vmul.f32 %v3757, %v4205
  %v4270 = vmul.f32 %v3758, %v4206
  %v4271 = vmul.f32 %v3759, %v4207
  %v4272 = vmul.f32 %v3760, %v4208
  %v4273 = vmul.f32 %v3761, %v4209
  %v4274 = vmul.f32 %v3762, %v4210
  %v4275 = vmul.f32 %v3763, %v4211
  %v4276 = vmul.f32 %v3764, %v4212
  %v4277 = vlaneseq
  %v4278 = vshrl.u32 %v4277, 7
  %v4279 = vsub.s32 5, %v4278
  %v4280 = vrot.slane %v30, %v4279
  %v4281 = vmul.f32 %v4213, %v4280
  %v4282 = vmul.f32 %v4214, %v4280
  %v4283 = vmul.f32 %v4215, %v4280
  %v4284 = vmul.f32 %v4216, %v4280
  %v4285 = vmul.f32 %v4217, %v4280
  %v4286 = vmul.f32 %v4218, %v4280
  %v4287 = vmul.f32 %v4219, %v4280
  %v4288 = vmul.f32 %v4220, %v4280
  %v4289 = vmul.f32 %v4221, %v4280
  %v4290 = vmul.f32 %v4222, %v4280
  %v4291 = vmul.f32 %v4223, %v4280
  %v4292 = vmul.f32 %v4224, %v4280
  %v4293 = vmul.f32 %v4225, %v4280
  %v4294 = vmul.f32 %v4226, %v4280
  %v4295 = vmul.f32 %v4227, %v4280
  %v4296 = vmul.f32 %v4228, %v4280
  %v4297 = vmul.f32 %v4229, %v4280
  %v4298 = vmul.f32 %v4230, %v4280
  %v4299 = vmul.f32 %v4231, %v4280
  %v4300 = vmul.f32 %v4232, %v4280
  %v4301 = vmul.f32 %v4233, %v4280
  %v4302 = vmul.f32 %v4234, %v4280
  %v4303 = vmul.f32 %v4235, %v4280
  %v4304 = vmul.f32 %v4236, %v4280
  %v4305 = vmul.f32 %v4237, %v4280
  %v4306 = vmul.f32 %v4238, %v4280
  %v4307 = vmul.f32 %v4239, %v4280
  %v4308 = vmul.f32 %v4240, %v4280
  %v4309 = vmul.f32 %v4241, %v4280
  %v4310 = vmul.f32 %v4242, %v4280
  %v4311 = vmul.f32 %v4243, %v4280
  %v4312 = vmul.f32 %v4244, %v4280
  %v4313 = vmul.f32 %v4245, %v4280
  %v4314 = vmul.f32 %v4246, %v4280
  %v4315 = vmul.f32 %v4247, %v4280
  %v4316 = vmul.f32 %v4248, %v4280
  %v4317 = vmul.f32 %v4249, %v4280
  %v4318 = vmul.f32 %v4250, %v4280
  %v4319 = vmul.f32 %v4251, %v4280
  %v4320 = vmul.f32 %v4252, %v4280
  %v4321 = vmul.f32 %v4253, %v4280
  %v4322 = vmul.f32 %v4254, %v4280
  %v4323 = vmul.f32 %v4255, %v4280
  %v4324 = vmul.f32 %v4256, %v4280
  %v4325 = vmul.f32 %v4257, %v4280
  %v4326 = vmul.f32 %v4258, %v4280
  %v4327 = vmul.f32 %v4259, %v4280
  %v4328 = vmul.f32 %v4260, %v4280
  %v4329 = vmul.f32 %v4261, %v4280
  %v4330 = vmul.f32 %v4262, %v4280
  %v4331 = vmul.f32 %v4263, %v4280
  %v4332 = vmul.f32 %v4264, %v4280
  %v4333 = vmul.f32 %v4265, %v4280
  %v4334 = vmul.f32 %v4266, %v4280
  %v4335 = vmul.f32 %v4267, %v4280
  %v4336 = vmul.f32 %v4268, %v4280
  %v4337 = vmul.f32 %v4269, %v4280
  %v4338 = vmul.f32 %v4270, %v4280
  %v4339 = vmul.f32 %v4271, %v4280
  %v4340 = vmul.f32 %v4272, %v4280
  %v4341 = vmul.f32 %v4273, %v4280
  %v4342 = vmul.f32 %v4274, %v4280
  %v4343 = vmul.f32 %v4275, %v4280
  %v4344 = vmul.f32 %v4276, %v4280
  %v4345 = vlaneseq
  %v4346 = vshrl.u32 %v4345, 7
  %v4347 = vsub.s32 6, %v4346
  %v4348 = vrot.slane %v30, %v4347
  %v4349 = vadd.f32 %v4281, %v4348
  %v4350 = vadd.f32 %v4282, %v4348
  %v4351 = vadd.f32 %v4283, %v4348
  %v4352 = vadd.f32 %v4284, %v4348
  %v4353 = vadd.f32 %v4285, %v4348
  %v4354 = vadd.f32 %v4286, %v4348
  %v4355 = vadd.f32 %v4287, %v4348
  %v4356 = vadd.f32 %v4288, %v4348
  %v4357 = vadd.f32 %v4289, %v4348
  %v4358 = vadd.f32 %v4290, %v4348
  %v4359 = vadd.f32 %v4291, %v4348
  %v4360 = vadd.f32 %v4292, %v4348
  %v4361 = vadd.f32 %v4293, %v4348
  %v4362 = vadd.f32 %v4294, %v4348
  %v4363 = vadd.f32 %v4295, %v4348
  %v4364 = vadd.f32 %v4296, %v4348
  %v4365 = vadd.f32 %v4297, %v4348
  %v4366 = vadd.f32 %v4298, %v4348
  %v4367 = vadd.f32 %v4299, %v4348
  %v4368 = vadd.f32 %v4300, %v4348
  %v4369 = vadd.f32 %v4301, %v4348
  %v4370 = vadd.f32 %v4302, %v4348
  %v4371 = vadd.f32 %v4303, %v4348
  %v4372 = vadd.f32 %v4304, %v4348
  %v4373 = vadd.f32 %v4305, %v4348
  %v4374 = vadd.f32 %v4306, %v4348
  %v4375 = vadd.f32 %v4307, %v4348
  %v4376 = vadd.f32 %v4308, %v4348
  %v4377 = vadd.f32 %v4309, %v4348
  %v4378 = vadd.f32 %v4310, %v4348
  %v4379 = vadd.f32 %v4311, %v4348
  %v4380 = vadd.f32 %v4312, %v4348
  %v4381 = vadd.f32 %v4313, %v4348
  %v4382 = vadd.f32 %v4314, %v4348
  %v4383 = vadd.f32 %v4315, %v4348
  %v4384 = vadd.f32 %v4316, %v4348
  %v4385 = vadd.f32 %v4317, %v4348
  %v4386 = vadd.f32 %v4318, %v4348
  %v4387 = vadd.f32 %v4319, %v4348
  %v4388 = vadd.f32 %v4320, %v4348
  %v4389 = vadd.f32 %v4321, %v4348
  %v4390 = vadd.f32 %v4322, %v4348
  %v4391 = vadd.f32 %v4323, %v4348
  %v4392 = vadd.f32 %v4324, %v4348
  %v4393 = vadd.f32 %v4325, %v4348
  %v4394 = vadd.f32 %v4326, %v4348
  %v4395 = vadd.f32 %v4327, %v4348
  %v4396 = vadd.f32 %v4328, %v4348
  %v4397 = vadd.f32 %v4329, %v4348
  %v4398 = vadd.f32 %v4330, %v4348
  %v4399 = vadd.f32 %v4331, %v4348
  %v4400 = vadd.f32 %v4332, %v4348
  %v4401 = vadd.f32 %v4333, %v4348
  %v4402 = vadd.f32 %v4334, %v4348
  %v4403 = vadd.f32 %v4335, %v4348
  %v4404 = vadd.f32 %v4336, %v4348
  %v4405 = vadd.f32 %v4337, %v4348
  %v4406 = vadd.f32 %v4338, %v4348
  %v4407 = vadd.f32 %v4339, %v4348
  %v4408 = vadd.f32 %v4340, %v4348
  %v4409 = vadd.f32 %v4341, %v4348
  %v4410 = vadd.f32 %v4342, %v4348
  %v4411 = vadd.f32 %v4343, %v4348
  %v4412 = vadd.f32 %v4344, %v4348
  %v4413 = vmax.f32 %v4349, 0.0
  %v4414 = vmax.f32 %v4350, 0.0
  %v4415 = vmax.f32 %v4351, 0.0
  %v4416 = vmax.f32 %v4352, 0.0
  %v4417 = vmax.f32 %v4353, 0.0
  %v4418 = vmax.f32 %v4354, 0.0
  %v4419 = vmax.f32 %v4355, 0.0
  %v4420 = vmax.f32 %v4356, 0.0
  %v4421 = vmax.f32 %v4357, 0.0
  %v4422 = vmax.f32 %v4358, 0.0
  %v4423 = vmax.f32 %v4359, 0.0
  %v4424 = vmax.f32 %v4360, 0.0
  %v4425 = vmax.f32 %v4361, 0.0
  %v4426 = vmax.f32 %v4362, 0.0
  %v4427 = vmax.f32 %v4363, 0.0
  %v4428 = vmax.f32 %v4364, 0.0
  %v4429 = vmax.f32 %v4365, 0.0
  %v4430 = vmax.f32 %v4366, 0.0
  %v4431 = vmax.f32 %v4367, 0.0
  %v4432 = vmax.f32 %v4368, 0.0
  %v4433 = vmax.f32 %v4369, 0.0
  %v4434 = vmax.f32 %v4370, 0.0
  %v4435 = vmax.f32 %v4371, 0.0
  %v4436 = vmax.f32 %v4372, 0.0
  %v4437 = vmax.f32 %v4373, 0.0
  %v4438 = vmax.f32 %v4374, 0.0
  %v4439 = vmax.f32 %v4375, 0.0
  %v4440 = vmax.f32 %v4376, 0.0
  %v4441 = vmax.f32 %v4377, 0.0
  %v4442 = vmax.f32 %v4378, 0.0
  %v4443 = vmax.f32 %v4379, 0.0
  %v4444 = vmax.f32 %v4380, 0.0
  %v4445 = vmax.f32 %v4381, 0.0
  %v4446 = vmax.f32 %v4382, 0.0
  %v4447 = vmax.f32 %v4383, 0.0
  %v4448 = vmax.f32 %v4384, 0.0
  %v4449 = vmax.f32 %v4385, 0.0
  %v4450 = vmax.f32 %v4386, 0.0
  %v4451 = vmax.f32 %v4387, 0.0
  %v4452 = vmax.f32 %v4388, 0.0
  %v4453 = vmax.f32 %v4389, 0.0
  %v4454 = vmax.f32 %v4390, 0.0
  %v4455 = vmax.f32 %v4391, 0.0
  %v4456 = vmax.f32 %v4392, 0.0
  %v4457 = vmax.f32 %v4393, 0.0
  %v4458 = vmax.f32 %v4394, 0.0
  %v4459 = vmax.f32 %v4395, 0.0
  %v4460 = vmax.f32 %v4396, 0.0
  %v4461 = vmax.f32 %v4397, 0.0
  %v4462 = vmax.f32 %v4398, 0.0
  %v4463 = vmax.f32 %v4399, 0.0
  %v4464 = vmax.f32 %v4400, 0.0
  %v4465 = vmax.f32 %v4401, 0.0
  %v4466 = vmax.f32 %v4402, 0.0
  %v4467 = vmax.f32 %v4403, 0.0
  %v4468 = vmax.f32 %v4404, 0.0
  %v4469 = vmax.f32 %v4405, 0.0
  %v4470 = vmax.f32 %v4406, 0.0
  %v4471 = vmax.f32 %v4407, 0.0
  %v4472 = vmax.f32 %v4408, 0.0
  %v4473 = vmax.f32 %v4409, 0.0
  %v4474 = vmax.f32 %v4410, 0.0
  %v4475 = vmax.f32 %v4411, 0.0
  %v4476 = vmax.f32 %v4412, 0.0
  %v4477 = vpack.c.bf16 %v4414, %v4413
  %v4478 = vpack.c.bf16 %v4416, %v4415
  %v4479 = vpack.c.bf16 %v4418, %v4417
  %v4480 = vpack.c.bf16 %v4420, %v4419
  %v4481 = vpack.c.bf16 %v4422, %v4421
  %v4482 = vpack.c.bf16 %v4424, %v4423
  %v4483 = vpack.c.bf16 %v4426, %v4425
  %v4484 = vpack.c.bf16 %v4428, %v4427
  %v4485 = vpack.c.bf16 %v4430, %v4429
  %v4486 = vpack.c.bf16 %v4432, %v4431
  %v4487 = vpack.c.bf16 %v4434, %v4433
  %v4488 = vpack.c.bf16 %v4436, %v4435
  %v4489 = vpack.c.bf16 %v4438, %v4437
  %v4490 = vpack.c.bf16 %v4440, %v4439
  %v4491 = vpack.c.bf16 %v4442, %v4441
  %v4492 = vpack.c.bf16 %v4444, %v4443
  %v4493 = vpack.c.bf16 %v4446, %v4445
  %v4494 = vpack.c.bf16 %v4448, %v4447
  %v4495 = vpack.c.bf16 %v4450, %v4449
  %v4496 = vpack.c.bf16 %v4452, %v4451
  %v4497 = vpack.c.bf16 %v4454, %v4453
  %v4498 = vpack.c.bf16 %v4456, %v4455
  %v4499 = vpack.c.bf16 %v4458, %v4457
  %v4500 = vpack.c.bf16 %v4460, %v4459
  %v4501 = vpack.c.bf16 %v4462, %v4461
  %v4502 = vpack.c.bf16 %v4464, %v4463
  %v4503 = vpack.c.bf16 %v4466, %v4465
  %v4504 = vpack.c.bf16 %v4468, %v4467
  %v4505 = vpack.c.bf16 %v4470, %v4469
  %v4506 = vpack.c.bf16 %v4472, %v4471
  %v4507 = vpack.c.bf16 %v4474, %v4473
  %v4508 = vpack.c.bf16 %v4476, %v4475
  %s4509 = scalar_lea.vmem %s4, 16
  %v4510 = vld [vmem:[%s4509] sm:$0xf]
  %v4511 = vld [vmem:[%s4509 + $0x4] sm:$0xf]
  %v4512 = vld [vmem:[%s4509 + $0x8] sm:$0xf]
  %v4513 = vld [vmem:[%s4509 + $0xc] sm:$0xf]
  %v4514 = vlaneseq
  %v4515 = vshrl.u32 %v4514, 7
  %v4516 = vsub.s32 7, %v4515
  %v4517 = vrot.slane %v30, %v4516
  %v4522 = vunpack.c.l.b16 %v4510
  %v4523 = vunpack.c.l.b16 %v4511
  %v4524 = vunpack.c.l.b16 %v4512
  %v4525 = vunpack.c.l.b16 %v4513
  %v4526 = vpack.c.b16 %v4523, %v4522
  %v4527 = vpack.c.b16 %v4525, %v4524
  %v4531 = vsel %vm1711, %v4477, 0
  %v4534 = vsel %vm1711, %v4478, 0
  %v4537 = vsel %vm1711, %v4479, 0
  %v4540 = vsel %vm1711, %v4480, 0
  %v4543 = vsel %vm1711, %v4481, 0
  %v4546 = vsel %vm1711, %v4482, 0
  %v4549 = vsel %vm1711, %v4483, 0
  %v4552 = vsel %vm1711, %v4484, 0
  %v4555 = vsel %vm1711, %v4485, 0
  %v4558 = vsel %vm1711, %v4486, 0
  %v4561 = vsel %vm1711, %v4487, 0
  %v4564 = vsel %vm1711, %v4488, 0
  %v4567 = vsel %vm1711, %v4489, 0
  %v4570 = vsel %vm1711, %v4490, 0
  %v4573 = vsel %vm1711, %v4491, 0
  %v4576 = vsel %vm1711, %v4492, 0
  %v4579 = vsel %vm1711, %v4493, 0
  %v4582 = vsel %vm1711, %v4494, 0
  %v4585 = vsel %vm1711, %v4495, 0
  %v4588 = vsel %vm1711, %v4496, 0
  %v4591 = vsel %vm1711, %v4497, 0
  %v4594 = vsel %vm1711, %v4498, 0
  %v4597 = vsel %vm1711, %v4499, 0
  %v4600 = vsel %vm1711, %v4500, 0
  %v4603 = vsel %vm1711, %v4501, 0
  %v4606 = vsel %vm1711, %v4502, 0
  %v4609 = vsel %vm1711, %v4503, 0
  %v4612 = vsel %vm1711, %v4504, 0
  %v4615 = vsel %vm1711, %v4505, 0
  %v4618 = vsel %vm1711, %v4506, 0
  %v4621 = vsel %vm1711, %v4507, 0
  %v4624 = vsel %vm1711, %v4508, 0
  %4626 = vmatprep.subr.bf16.mxu0 0
  %4627 = vmatpush1.bf16.msra.mxu0 %v4526
  %4628 = vmatprep.subr.bf16.mxu0 0
  %4629 = vmatpush1.bf16.msra.mxu0 %v4527
  %4630 = vmatprep.subr.bf16.mxu0 0
  %4631 = vmatpush1.bf16.msra.mxu0 0
  %4632 = vmatprep.subr.bf16.mxu0 0
  %4633 = vmatpush1.bf16.msra.mxu0 0
  %4634 = vmatprep.subr.bf16.mxu0 0
  %4635 = vmatpush1.bf16.msra.mxu0 0
  %4636 = vmatprep.subr.bf16.mxu0 0
  %4637 = vmatpush1.bf16.msra.mxu0 0
  %4638 = vmatprep.subr.bf16.mxu0 0
  %4639 = vmatpush1.bf16.msra.mxu0 0
  %4640 = vmatprep.subr.bf16.mxu0 0
  %4641 = vmatpush1.bf16.msra.mxu0 0
  %4642 = vmatprep.subr.bf16.mxu0 0
  %4643 = vmatpush1.bf16.msra.mxu0 0
  %4644 = vmatprep.subr.bf16.mxu0 0
  %4645 = vmatpush1.bf16.msra.mxu0 0
  %4646 = vmatprep.subr.bf16.mxu0 0
  %4647 = vmatpush1.bf16.msra.mxu0 0
  %4648 = vmatprep.subr.bf16.mxu0 0
  %4649 = vmatpush1.bf16.msra.mxu0 0
  %4650 = vmatprep.subr.bf16.mxu0 0
  %4651 = vmatpush1.bf16.msra.mxu0 0
  %4652 = vmatprep.subr.bf16.mxu0 0
  %4653 = vmatpush1.bf16.msra.mxu0 0
  %4654 = vmatprep.subr.bf16.mxu0 0
  %4655 = vmatpush1.bf16.msra.mxu0 0
  %4656 = vmatprep.subr.bf16.mxu0 0
  %4657 = vmatpush1.bf16.msra.mxu0 0
  %4658 = vmatprep.mubr.bf16.mxu0 0
  %4659 = vmatmul.mubr.bf16.gmra.mrb[0].mxu0 %v4531
  %v4660 = vpop.f32.mrb[0].mxu0
  %v4661 = vadd.f32 %v4517, %v4660
  %v4662 = vpop.f32.mrb[0].mxu0
  %v4663 = vpop.f32.mrb[0].mxu0
  %v4664 = vadd.f32 %v4517, %v4663
  %v4665 = vpop.f32.mrb[0].mxu0
  %4666 = vmatprep.mubr.bf16.mxu0 0
  %4667 = vmatmul.mubr.bf16.gmra.mrb[0].mxu0 %v4534
  %v4668 = vpop.f32.mrb[0].mxu0
  %v4669 = vadd.f32 %v4517, %v4668
  %v4670 = vpop.f32.mrb[0].mxu0
  %v4671 = vpop.f32.mrb[0].mxu0
  %v4672 = vadd.f32 %v4517, %v4671
  %v4673 = vpop.f32.mrb[0].mxu0
  %4674 = vmatprep.mubr.bf16.mxu0 0
  %4675 = vmatmul.mubr.bf16.gmra.mrb[0].mxu0 %v4537
  %v4676 = vpop.f32.mrb[0].mxu0
  %v4677 = vadd.f32 %v4517, %v4676
  %v4678 = vpop.f32.mrb[0].mxu0
  %v4679 = vpop.f32.mrb[0].mxu0
  %v4680 = vadd.f32 %v4517, %v4679
  %v4681 = vpop.f32.mrb[0].mxu0
  %4682 = vmatprep.mubr.bf16.mxu0 0
  %4683 = vmatmul.mubr.bf16.gmra.mrb[0].mxu0 %v4540
  %v4684 = vpop.f32.mrb[0].mxu0
  %v4685 = vadd.f32 %v4517, %v4684
  %v4686 = vpop.f32.mrb[0].mxu0
  %v4687 = vpop.f32.mrb[0].mxu0
  %v4688 = vadd.f32 %v4517, %v4687
  %v4689 = vpop.f32.mrb[0].mxu0
  %4690 = vmatprep.mubr.bf16.mxu0 0
  %4691 = vmatmul.mubr.bf16.gmra.mrb[0].mxu0 %v4543
  %v4692 = vpop.f32.mrb[0].mxu0
  %v4693 = vadd.f32 %v4517, %v4692
  %v4694 = vpop.f32.mrb[0].mxu0
  %v4695 = vpop.f32.mrb[0].mxu0
  %v4696 = vadd.f32 %v4517, %v4695
  %v4697 = vpop.f32.mrb[0].mxu0
  %4698 = vmatprep.mubr.bf16.mxu0 0
  %4699 = vmatmul.mubr.bf16.gmra.mrb[0].mxu0 %v4546
  %v4700 = vpop.f32.mrb[0].mxu0
  %v4701 = vadd.f32 %v4517, %v4700
  %v4702 = vpop.f32.mrb[0].mxu0
  %v4703 = vpop.f32.mrb[0].mxu0
  %v4704 = vadd.f32 %v4517, %v4703
  %v4705 = vpop.f32.mrb[0].mxu0
  %4706 = vmatprep.mubr.bf16.mxu0 0
  %4707 = vmatmul.mubr.bf16.gmra.mrb[0].mxu0 %v4549
  %v4708 = vpop.f32.mrb[0].mxu0
  %v4709 = vadd.f32 %v4517, %v4708
  %v4710 = vpop.f32.mrb[0].mxu0
  %v4711 = vpop.f32.mrb[0].mxu0
  %v4712 = vadd.f32 %v4517, %v4711
  %v4713 = vpop.f32.mrb[0].mxu0
  %4714 = vmatprep.mubr.bf16.mxu0 0
  %4715 = vmatmul.mubr.bf16.gmra.mrb[0].mxu0 %v4552
  %v4716 = vpop.f32.mrb[0].mxu0
  %v4717 = vadd.f32 %v4517, %v4716
  %v4718 = vpop.f32.mrb[0].mxu0
  %v4719 = vpop.f32.mrb[0].mxu0
  %v4720 = vadd.f32 %v4517, %v4719
  %v4721 = vpop.f32.mrb[0].mxu0
  %4722 = vmatprep.mubr.bf16.mxu0 0
  %4723 = vmatmul.mubr.bf16.gmra.mrb[0].mxu0 %v4555
  %v4724 = vpop.f32.mrb[0].mxu0
  %v4725 = vadd.f32 %v4517, %v4724
  %v4726 = vpop.f32.mrb[0].mxu0
  %v4727 = vpop.f32.mrb[0].mxu0
  %v4728 = vadd.f32 %v4517, %v4727
  %v4729 = vpop.f32.mrb[0].mxu0
  %4730 = vmatprep.mubr.bf16.mxu0 0
  %4731 = vmatmul.mubr.bf16.gmra.mrb[0].mxu0 %v4558
  %v4732 = vpop.f32.mrb[0].mxu0
  %v4733 = vadd.f32 %v4517, %v4732
  %v4734 = vpop.f32.mrb[0].mxu0
  %v4735 = vpop.f32.mrb[0].mxu0
  %v4736 = vadd.f32 %v4517, %v4735
  %v4737 = vpop.f32.mrb[0].mxu0
  %4738 = vmatprep.mubr.bf16.mxu0 0
  %4739 = vmatmul.mubr.bf16.gmra.mrb[0].mxu0 %v4561
  %v4740 = vpop.f32.mrb[0].mxu0
  %v4741 = vadd.f32 %v4517, %v4740
  %v4742 = vpop.f32.mrb[0].mxu0
  %v4743 = vpop.f32.mrb[0].mxu0
  %v4744 = vadd.f32 %v4517, %v4743
  %v4745 = vpop.f32.mrb[0].mxu0
  %4746 = vmatprep.mubr.bf16.mxu0 0
  %4747 = vmatmul.mubr.bf16.gmra.mrb[0].mxu0 %v4564
  %v4748 = vpop.f32.mrb[0].mxu0
  %v4749 = vadd.f32 %v4517, %v4748
  %v4750 = vpop.f32.mrb[0].mxu0
  %v4751 = vpop.f32.mrb[0].mxu0
  %v4752 = vadd.f32 %v4517, %v4751
  %v4753 = vpop.f32.mrb[0].mxu0
  %4754 = vmatprep.mubr.bf16.mxu0 0
  %4755 = vmatmul.mubr.bf16.gmra.mrb[0].mxu0 %v4567
  %v4756 = vpop.f32.mrb[0].mxu0
  %v4757 = vadd.f32 %v4517, %v4756
  %v4758 = vpop.f32.mrb[0].mxu0
  %v4759 = vpop.f32.mrb[0].mxu0
  %v4760 = vadd.f32 %v4517, %v4759
  %v4761 = vpop.f32.mrb[0].mxu0
  %4762 = vmatprep.mubr.bf16.mxu0 0
  %4763 = vmatmul.mubr.bf16.gmra.mrb[0].mxu0 %v4570
  %v4764 = vpop.f32.mrb[0].mxu0
  %v4765 = vadd.f32 %v4517, %v4764
  %v4766 = vpop.f32.mrb[0].mxu0
  %v4767 = vpop.f32.mrb[0].mxu0
  %v4768 = vadd.f32 %v4517, %v4767
  %v4769 = vpop.f32.mrb[0].mxu0
  %4770 = vmatprep.mubr.bf16.mxu0 0
  %4771 = vmatmul.mubr.bf16.gmra.mrb[0].mxu0 %v4573
  %v4772 = vpop.f32.mrb[0].mxu0
  %v4773 = vadd.f32 %v4517, %v4772
  %v4774 = vpop.f32.mrb[0].mxu0
  %v4775 = vpop.f32.mrb[0].mxu0
  %v4776 = vadd.f32 %v4517, %v4775
  %v4777 = vpop.f32.mrb[0].mxu0
  %4778 = vmatprep.mubr.bf16.mxu0 0
  %4779 = vmatmul.mubr.bf16.gmra.mrb[0].mxu0 %v4576
  %v4780 = vpop.f32.mrb[0].mxu0
  %v4781 = vadd.f32 %v4517, %v4780
  %v4782 = vpop.f32.mrb[0].mxu0
  %v4783 = vpop.f32.mrb[0].mxu0
  %v4784 = vadd.f32 %v4517, %v4783
  %v4785 = vpop.f32.mrb[0].mxu0
  %4786 = vmatprep.mubr.bf16.mxu0 0
  %4787 = vmatmul.mubr.bf16.gmra.mrb[0].mxu0 %v4579
  %v4788 = vpop.f32.mrb[0].mxu0
  %v4789 = vadd.f32 %v4517, %v4788
  %v4790 = vpop.f32.mrb[0].mxu0
  %v4791 = vpop.f32.mrb[0].mxu0
  %v4792 = vadd.f32 %v4517, %v4791
  %v4793 = vpop.f32.mrb[0].mxu0
  %4794 = vmatprep.mubr.bf16.mxu0 0
  %4795 = vmatmul.mubr.bf16.gmra.mrb[0].mxu0 %v4582
  %v4796 = vpop.f32.mrb[0].mxu0
  %v4797 = vadd.f32 %v4517, %v4796
  %v4798 = vpop.f32.mrb[0].mxu0
  %v4799 = vpop.f32.mrb[0].mxu0
  %v4800 = vadd.f32 %v4517, %v4799
  %v4801 = vpop.f32.mrb[0].mxu0
  %4802 = vmatprep.mubr.bf16.mxu0 0
  %4803 = vmatmul.mubr.bf16.gmra.mrb[0].mxu0 %v4585
  %v4804 = vpop.f32.mrb[0].mxu0
  %v4805 = vadd.f32 %v4517, %v4804
  %v4806 = vpop.f32.mrb[0].mxu0
  %v4807 = vpop.f32.mrb[0].mxu0
  %v4808 = vadd.f32 %v4517, %v4807
  %v4809 = vpop.f32.mrb[0].mxu0
  %4810 = vmatprep.mubr.bf16.mxu0 0
  %4811 = vmatmul.mubr.bf16.gmra.mrb[0].mxu0 %v4588
  %v4812 = vpop.f32.mrb[0].mxu0
  %v4813 = vadd.f32 %v4517, %v4812
  %v4814 = vpop.f32.mrb[0].mxu0
  %v4815 = vpop.f32.mrb[0].mxu0
  %v4816 = vadd.f32 %v4517, %v4815
  %v4817 = vpop.f32.mrb[0].mxu0
  %4818 = vmatprep.mubr.bf16.mxu0 0
  %4819 = vmatmul.mubr.bf16.gmra.mrb[0].mxu0 %v4591
  %v4820 = vpop.f32.mrb[0].mxu0
  %v4821 = vadd.f32 %v4517, %v4820
  %v4822 = vpop.f32.mrb[0].mxu0
  %v4823 = vpop.f32.mrb[0].mxu0
  %v4824 = vadd.f32 %v4517, %v4823
  %v4825 = vpop.f32.mrb[0].mxu0
  %4826 = vmatprep.mubr.bf16.mxu0 0
  %4827 = vmatmul.mubr.bf16.gmra.mrb[0].mxu0 %v4594
  %v4828 = vpop.f32.mrb[0].mxu0
  %v4829 = vadd.f32 %v4517, %v4828
  %v4830 = vpop.f32.mrb[0].mxu0
  %v4831 = vpop.f32.mrb[0].mxu0
  %v4832 = vadd.f32 %v4517, %v4831
  %v4833 = vpop.f32.mrb[0].mxu0
  %4834 = vmatprep.mubr.bf16.mxu0 0
  %4835 = vmatmul.mubr.bf16.gmra.mrb[0].mxu0 %v4597
  %v4836 = vpop.f32.mrb[0].mxu0
  %v4837 = vadd.f32 %v4517, %v4836
  %v4838 = vpop.f32.mrb[0].mxu0
  %v4839 = vpop.f32.mrb[0].mxu0
  %v4840 = vadd.f32 %v4517, %v4839
  %v4841 = vpop.f32.mrb[0].mxu0
  %4842 = vmatprep.mubr.bf16.mxu0 0
  %4843 = vmatmul.mubr.bf16.gmra.mrb[0].mxu0 %v4600
  %v4844 = vpop.f32.mrb[0].mxu0
  %v4845 = vadd.f32 %v4517, %v4844
  %v4846 = vpop.f32.mrb[0].mxu0
  %v4847 = vpop.f32.mrb[0].mxu0
  %v4848 = vadd.f32 %v4517, %v4847
  %v4849 = vpop.f32.mrb[0].mxu0
  %4850 = vmatprep.mubr.bf16.mxu0 0
  %4851 = vmatmul.mubr.bf16.gmra.mrb[0].mxu0 %v4603
  %v4852 = vpop.f32.mrb[0].mxu0
  %v4853 = vadd.f32 %v4517, %v4852
  %v4854 = vpop.f32.mrb[0].mxu0
  %v4855 = vpop.f32.mrb[0].mxu0
  %v4856 = vadd.f32 %v4517, %v4855
  %v4857 = vpop.f32.mrb[0].mxu0
  %4858 = vmatprep.mubr.bf16.mxu0 0
  %4859 = vmatmul.mubr.bf16.gmra.mrb[0].mxu0 %v4606
  %v4860 = vpop.f32.mrb[0].mxu0
  %v4861 = vadd.f32 %v4517, %v4860
  %v4862 = vpop.f32.mrb[0].mxu0
  %v4863 = vpop.f32.mrb[0].mxu0
  %v4864 = vadd.f32 %v4517, %v4863
  %v4865 = vpop.f32.mrb[0].mxu0
  %4866 = vmatprep.mubr.bf16.mxu0 0
  %4867 = vmatmul.mubr.bf16.gmra.mrb[0].mxu0 %v4609
  %v4868 = vpop.f32.mrb[0].mxu0
  %v4869 = vadd.f32 %v4517, %v4868
  %v4870 = vpop.f32.mrb[0].mxu0
  %v4871 = vpop.f32.mrb[0].mxu0
  %v4872 = vadd.f32 %v4517, %v4871
  %v4873 = vpop.f32.mrb[0].mxu0
  %4874 = vmatprep.mubr.bf16.mxu0 0
  %4875 = vmatmul.mubr.bf16.gmra.mrb[0].mxu0 %v4612
  %v4876 = vpop.f32.mrb[0].mxu0
  %v4877 = vadd.f32 %v4517, %v4876
  %v4878 = vpop.f32.mrb[0].mxu0
  %v4879 = vpop.f32.mrb[0].mxu0
  %v4880 = vadd.f32 %v4517, %v4879
  %v4881 = vpop.f32.mrb[0].mxu0
  %4882 = vmatprep.mubr.bf16.mxu0 0
  %4883 = vmatmul.mubr.bf16.gmra.mrb[0].mxu0 %v4615
  %v4884 = vpop.f32.mrb[0].mxu0
  %v4885 = vadd.f32 %v4517, %v4884
  %v4886 = vpop.f32.mrb[0].mxu0
  %v4887 = vpop.f32.mrb[0].mxu0
  %v4888 = vadd.f32 %v4517, %v4887
  %v4889 = vpop.f32.mrb[0].mxu0
  %4890 = vmatprep.mubr.bf16.mxu0 0
  %4891 = vmatmul.mubr.bf16.gmra.mrb[0].mxu0 %v4618
  %v4892 = vpop.f32.mrb[0].mxu0
  %v4893 = vadd.f32 %v4517, %v4892
  %v4894 = vpop.f32.mrb[0].mxu0
  %v4895 = vpop.f32.mrb[0].mxu0
  %v4896 = vadd.f32 %v4517, %v4895
  %v4897 = vpop.f32.mrb[0].mxu0
  %4898 = vmatprep.mubr.bf16.mxu0 0
  %4899 = vmatmul.mubr.bf16.gmra.mrb[0].mxu0 %v4621
  %v4900 = vpop.f32.mrb[0].mxu0
  %v4901 = vadd.f32 %v4517, %v4900
  %v4902 = vpop.f32.mrb[0].mxu0
  %v4903 = vpop.f32.mrb[0].mxu0
  %v4904 = vadd.f32 %v4517, %v4903
  %v4905 = vpop.f32.mrb[0].mxu0
  %4906 = vmatprep.mubr.bf16.mxu0 0
  %4907 = vmatmul.mubr.bf16.gmra.mrb[0].mxu0 %v4624
  %v4908 = vpop.f32.mrb[0].mxu0
  %v4909 = vadd.f32 %v4517, %v4908
  %v4910 = vpop.f32.mrb[0].mxu0
  %v4911 = vpop.f32.mrb[0].mxu0
  %v4912 = vadd.f32 %v4517, %v4911
  %v4913 = vpop.f32.mrb[0].mxu0
  %4914 = vdwg.mxu0
  %v4915 = vpack.c.bf16 %v4664, %v4661
  %v4916 = vpack.c.bf16 %v4672, %v4669
  %v4917 = vpack.c.bf16 %v4680, %v4677
  %v4918 = vpack.c.bf16 %v4688, %v4685
  %v4919 = vpack.c.bf16 %v4696, %v4693
  %v4920 = vpack.c.bf16 %v4704, %v4701
  %v4921 = vpack.c.bf16 %v4712, %v4709
  %v4922 = vpack.c.bf16 %v4720, %v4717
  %v4923 = vpack.c.bf16 %v4728, %v4725
  %v4924 = vpack.c.bf16 %v4736, %v4733
  %v4925 = vpack.c.bf16 %v4744, %v4741
  %v4926 = vpack.c.bf16 %v4752, %v4749
  %v4927 = vpack.c.bf16 %v4760, %v4757
  %v4928 = vpack.c.bf16 %v4768, %v4765
  %v4929 = vpack.c.bf16 %v4776, %v4773
  %v4930 = vpack.c.bf16 %v4784, %v4781
  %v4931 = vpack.c.bf16 %v4792, %v4789
  %v4932 = vpack.c.bf16 %v4800, %v4797
  %v4933 = vpack.c.bf16 %v4808, %v4805
  %v4934 = vpack.c.bf16 %v4816, %v4813
  %v4935 = vpack.c.bf16 %v4824, %v4821
  %v4936 = vpack.c.bf16 %v4832, %v4829
  %v4937 = vpack.c.bf16 %v4840, %v4837
  %v4938 = vpack.c.bf16 %v4848, %v4845
  %v4939 = vpack.c.bf16 %v4856, %v4853
  %v4940 = vpack.c.bf16 %v4864, %v4861
  %v4941 = vpack.c.bf16 %v4872, %v4869
  %v4942 = vpack.c.bf16 %v4880, %v4877
  %v4943 = vpack.c.bf16 %v4888, %v4885
  %v4944 = vpack.c.bf16 %v4896, %v4893
  %v4945 = vpack.c.bf16 %v4904, %v4901
  %v4946 = vpack.c.bf16 %v4912, %v4909
  %4947 = vxpose.xlu0.c.b16.start [1/8] %v1380, 128
  %4948 = vxpose.xlu0.c.b16.cont [2/8] %v1382, 128
  %4949 = vxpose.xlu0.c.b16.cont [3/8] %v1384, 128
  %4950 = vxpose.xlu0.c.b16.cont [4/8] %v1386, 128
  %4951 = vxpose.xlu0.c.b16.cont [5/8] %v1388, 128
  %4952 = vxpose.xlu0.c.b16.cont [6/8] %v1390, 128
  %4953 = vxpose.xlu0.c.b16.cont [7/8] %v1392, 128
  %4954 = vxpose.xlu0.c.b16.end [8/8] %v1394, 128
  %v4955 = vpop.trf.xlu0
  %v4956 = vpop.trf.xlu0
  %v4957 = vpop.trf.xlu0
  %v4958 = vpop.trf.xlu0
  %v4959 = vpop.trf.xlu0
  %v4960 = vpop.trf.xlu0
  %v4961 = vpop.trf.xlu0
  %v4962 = vpop.trf.xlu0
  %4963 = vxpose.xlu0.c.b16.start [1/8] %v1381, 128
  %4964 = vxpose.xlu0.c.b16.cont [2/8] %v1383, 128
  %4965 = vxpose.xlu0.c.b16.cont [3/8] %v1385, 128
  %4966 = vxpose.xlu0.c.b16.cont [4/8] %v1387, 128
  %4967 = vxpose.xlu0.c.b16.cont [5/8] %v1389, 128
  %4968 = vxpose.xlu0.c.b16.cont [6/8] %v1391, 128
  %4969 = vxpose.xlu0.c.b16.cont [7/8] %v1393, 128
  %4970 = vxpose.xlu0.c.b16.end [8/8] %v1395, 128
  %v4971 = vpop.trf.xlu0
  %v4972 = vpop.trf.xlu0
  %v4973 = vpop.trf.xlu0
  %v4974 = vpop.trf.xlu0
  %v4975 = vpop.trf.xlu0
  %v4976 = vpop.trf.xlu0
  %v4977 = vpop.trf.xlu0
  %v4978 = vpop.trf.xlu0
  %4979 = vxpose.xlu0.c.b16.start [1/8] %v1396, 128
  %4980 = vxpose.xlu0.c.b16.cont [2/8] %v1398, 128
  %4981 = vxpose.xlu0.c.b16.cont [3/8] %v1400, 128
  %4982 = vxpose.xlu0.c.b16.cont [4/8] %v1402, 128
  %4983 = vxpose.xlu0.c.b16.cont [5/8] %v1404, 128
  %4984 = vxpose.xlu0.c.b16.cont [6/8] %v1406, 128
  %4985 = vxpose.xlu0.c.b16.cont [7/8] %v1408, 128
  %4986 = vxpose.xlu0.c.b16.end [8/8] %v1410, 128
  %v4987 = vpop.trf.xlu0
  %v4988 = vpop.trf.xlu0
  %v4989 = vpop.trf.xlu0
  %v4990 = vpop.trf.xlu0
  %v4991 = vpop.trf.xlu0
  %v4992 = vpop.trf.xlu0
  %v4993 = vpop.trf.xlu0
  %v4994 = vpop.trf.xlu0
  %4995 = vxpose.xlu0.c.b16.start [1/8] %v1397, 128
  %4996 = vxpose.xlu0.c.b16.cont [2/8] %v1399, 128
  %4997 = vxpose.xlu0.c.b16.cont [3/8] %v1401, 128
  %4998 = vxpose.xlu0.c.b16.cont [4/8] %v1403, 128
  %4999 = vxpose.xlu0.c.b16.cont [5/8] %v1405, 128
  %5000 = vxpose.xlu0.c.b16.cont [6/8] %v1407, 128
  %5001 = vxpose.xlu0.c.b16.cont [7/8] %v1409, 128
  %5002 = vxpose.xlu0.c.b16.end [8/8] %v1411, 128
  %v5003 = vpop.trf.xlu0
  %v5004 = vpop.trf.xlu0
  %v5005 = vpop.trf.xlu0
  %v5006 = vpop.trf.xlu0
  %v5007 = vpop.trf.xlu0
  %v5008 = vpop.trf.xlu0
  %v5009 = vpop.trf.xlu0
  %v5010 = vpop.trf.xlu0
  %5011 = vxpose.xlu0.c.b16.start [1/8] %v1412, 128
  %5012 = vxpose.xlu0.c.b16.cont [2/8] %v1414, 128
  %5013 = vxpose.xlu0.c.b16.cont [3/8] %v1416, 128
  %5014 = vxpose.xlu0.c.b16.cont [4/8] %v1418, 128
  %5015 = vxpose.xlu0.c.b16.cont [5/8] %v1420, 128
  %5016 = vxpose.xlu0.c.b16.cont [6/8] %v1422, 128
  %5017 = vxpose.xlu0.c.b16.cont [7/8] %v1424, 128
  %5018 = vxpose.xlu0.c.b16.end [8/8] %v1426, 128
  %v5019 = vpop.trf.xlu0
  %v5020 = vpop.trf.xlu0
  %v5021 = vpop.trf.xlu0
  %v5022 = vpop.trf.xlu0
  %v5023 = vpop.trf.xlu0
  %v5024 = vpop.trf.xlu0
  %v5025 = vpop.trf.xlu0
  %v5026 = vpop.trf.xlu0
  %5027 = vxpose.xlu0.c.b16.start [1/8] %v1413, 128
  %5028 = vxpose.xlu0.c.b16.cont [2/8] %v1415, 128
  %5029 = vxpose.xlu0.c.b16.cont [3/8] %v1417, 128
  %5030 = vxpose.xlu0.c.b16.cont [4/8] %v1419, 128
  %5031 = vxpose.xlu0.c.b16.cont [5/8] %v1421, 128
  %5032 = vxpose.xlu0.c.b16.cont [6/8] %v1423, 128
  %5033 = vxpose.xlu0.c.b16.cont [7/8] %v1425, 128
  %5034 = vxpose.xlu0.c.b16.end [8/8] %v1427, 128
  %v5035 = vpop.trf.xlu0
  %v5036 = vpop.trf.xlu0
  %v5037 = vpop.trf.xlu0
  %v5038 = vpop.trf.xlu0
  %v5039 = vpop.trf.xlu0
  %v5040 = vpop.trf.xlu0
  %v5041 = vpop.trf.xlu0
  %v5042 = vpop.trf.xlu0
  %5043 = vxpose.xlu0.c.b16.start [1/8] %v1428, 128
  %5044 = vxpose.xlu0.c.b16.cont [2/8] %v1430, 128
  %5045 = vxpose.xlu0.c.b16.cont [3/8] %v1432, 128
  %5046 = vxpose.xlu0.c.b16.cont [4/8] %v1434, 128
  %5047 = vxpose.xlu0.c.b16.cont [5/8] %v1436, 128
  %5048 = vxpose.xlu0.c.b16.cont [6/8] %v1438, 128
  %5049 = vxpose.xlu0.c.b16.cont [7/8] %v1440, 128
  %5050 = vxpose.xlu0.c.b16.end [8/8] %v1442, 128
  %v5051 = vpop.trf.xlu0
  %v5052 = vpop.trf.xlu0
  %v5053 = vpop.trf.xlu0
  %v5054 = vpop.trf.xlu0
  %v5055 = vpop.trf.xlu0
  %v5056 = vpop.trf.xlu0
  %v5057 = vpop.trf.xlu0
  %v5058 = vpop.trf.xlu0
  %5059 = vxpose.xlu0.c.b16.start [1/8] %v1429, 128
  %5060 = vxpose.xlu0.c.b16.cont [2/8] %v1431, 128
  %5061 = vxpose.xlu0.c.b16.cont [3/8] %v1433, 128
  %5062 = vxpose.xlu0.c.b16.cont [4/8] %v1435, 128
  %5063 = vxpose.xlu0.c.b16.cont [5/8] %v1437, 128
  %5064 = vxpose.xlu0.c.b16.cont [6/8] %v1439, 128
  %5065 = vxpose.xlu0.c.b16.cont [7/8] %v1441, 128
  %5066 = vxpose.xlu0.c.b16.end [8/8] %v1443, 128
  %v5067 = vpop.trf.xlu0
  %v5068 = vpop.trf.xlu0
  %v5069 = vpop.trf.xlu0
  %v5070 = vpop.trf.xlu0
  %v5071 = vpop.trf.xlu0
  %v5072 = vpop.trf.xlu0
  %v5073 = vpop.trf.xlu0
  %v5074 = vpop.trf.xlu0
  %5075 = vmatprep.subr.bf16.mxu0 0
  %5076 = vmatpush1.bf16.msra.mxu0 %v4915
  %5077 = vmatprep.subr.bf16.mxu0 0
  %5078 = vmatpush1.bf16.msra.mxu0 %v4916
  %5079 = vmatprep.subr.bf16.mxu0 0
  %5080 = vmatpush1.bf16.msra.mxu0 %v4917
  %5081 = vmatprep.subr.bf16.mxu0 0
  %5082 = vmatpush1.bf16.msra.mxu0 %v4918
  %5083 = vmatprep.subr.bf16.mxu0 0
  %5084 = vmatpush1.bf16.msra.mxu0 %v4919
  %5085 = vmatprep.subr.bf16.mxu0 0
  %5086 = vmatpush1.bf16.msra.mxu0 %v4920
  %5087 = vmatprep.subr.bf16.mxu0 0
  %5088 = vmatpush1.bf16.msra.mxu0 %v4921
  %5089 = vmatprep.subr.bf16.mxu0 0
  %5090 = vmatpush1.bf16.msra.mxu0 %v4922
  %5091 = vmatprep.subr.bf16.mxu0 0
  %5092 = vmatpush1.bf16.msra.mxu0 %v4923
  %5093 = vmatprep.subr.bf16.mxu0 0
  %5094 = vmatpush1.bf16.msra.mxu0 %v4924
  %5095 = vmatprep.subr.bf16.mxu0 0
  %5096 = vmatpush1.bf16.msra.mxu0 %v4925
  %5097 = vmatprep.subr.bf16.mxu0 0
  %5098 = vmatpush1.bf16.msra.mxu0 %v4926
  %5099 = vmatprep.subr.bf16.mxu0 0
  %5100 = vmatpush1.bf16.msra.mxu0 %v4927
  %5101 = vmatprep.subr.bf16.mxu0 0
  %5102 = vmatpush1.bf16.msra.mxu0 %v4928
  %5103 = vmatprep.subr.bf16.mxu0 0
  %5104 = vmatpush1.bf16.msra.mxu0 %v4929
  %5105 = vmatprep.subr.bf16.mxu0 0
  %5106 = vmatpush1.bf16.msra.mxu0 %v4930
  %5107 = vmatprep.mubr.bf16.mxu0 %v4987
  %5108 = vmatmul.mubr.bf16.gmra.mrb[0].mxu0 %v4955
  %v5109 = vpop.f32.mrb[0].mxu0
  %v5110 = vadd.f32 0.0, %v5109
  %v5111 = vpop.f32.mrb[0].mxu0
  %v5112 = vpop.f32.mrb[0].mxu0
  %v5113 = vadd.f32 0.0, %v5112
  %v5114 = vpop.f32.mrb[0].mxu0
  %5115 = vmatprep.mubr.bf16.mxu0 %v4988
  %5116 = vmatmul.mubr.bf16.gmra.mrb[0].mxu0 %v4956
  %v5117 = vpop.f32.mrb[0].mxu0
  %v5118 = vadd.f32 0.0, %v5117
  %v5119 = vpop.f32.mrb[0].mxu0
  %v5120 = vpop.f32.mrb[0].mxu0
  %v5121 = vadd.f32 0.0, %v5120
  %v5122 = vpop.f32.mrb[0].mxu0
  %5123 = vmatprep.mubr.bf16.mxu0 %v4989
  %5124 = vmatmul.mubr.bf16.gmra.mrb[0].mxu0 %v4957
  %v5125 = vpop.f32.mrb[0].mxu0
  %v5126 = vadd.f32 0.0, %v5125
  %v5127 = vpop.f32.mrb[0].mxu0
  %v5128 = vpop.f32.mrb[0].mxu0
  %v5129 = vadd.f32 0.0, %v5128
  %v5130 = vpop.f32.mrb[0].mxu0
  %5131 = vmatprep.mubr.bf16.mxu0 %v4990
  %5132 = vmatmul.mubr.bf16.gmra.mrb[0].mxu0 %v4958
  %v5133 = vpop.f32.mrb[0].mxu0
  %v5134 = vadd.f32 0.0, %v5133
  %v5135 = vpop.f32.mrb[0].mxu0
  %v5136 = vpop.f32.mrb[0].mxu0
  %v5137 = vadd.f32 0.0, %v5136
  %v5138 = vpop.f32.mrb[0].mxu0
  %5139 = vmatprep.mubr.bf16.mxu0 %v4991
  %5140 = vmatmul.mubr.bf16.gmra.mrb[0].mxu0 %v4959
  %v5141 = vpop.f32.mrb[0].mxu0
  %v5142 = vadd.f32 0.0, %v5141
  %v5143 = vpop.f32.mrb[0].mxu0
  %v5144 = vpop.f32.mrb[0].mxu0
  %v5145 = vadd.f32 0.0, %v5144
  %v5146 = vpop.f32.mrb[0].mxu0
  %5147 = vmatprep.mubr.bf16.mxu0 %v4992
  %5148 = vmatmul.mubr.bf16.gmra.mrb[0].mxu0 %v4960
  %v5149 = vpop.f32.mrb[0].mxu0
  %v5150 = vadd.f32 0.0, %v5149
  %v5151 = vpop.f32.mrb[0].mxu0
  %v5152 = vpop.f32.mrb[0].mxu0
  %v5153 = vadd.f32 0.0, %v5152
  %v5154 = vpop.f32.mrb[0].mxu0
  %5155 = vmatprep.mubr.bf16.mxu0 %v4993
  %5156 = vmatmul.mubr.bf16.gmra.mrb[0].mxu0 %v4961
  %v5157 = vpop.f32.mrb[0].mxu0
  %v5158 = vadd.f32 0.0, %v5157
  %v5159 = vpop.f32.mrb[0].mxu0
  %v5160 = vpop.f32.mrb[0].mxu0
  %v5161 = vadd.f32 0.0, %v5160
  %v5162 = vpop.f32.mrb[0].mxu0
  %5163 = vmatprep.mubr.bf16.mxu0 %v4994
  %5164 = vmatmul.mubr.bf16.gmra.mrb[0].mxu0 %v4962
  %v5165 = vpop.f32.mrb[0].mxu0
  %v5166 = vadd.f32 0.0, %v5165
  %v5167 = vpop.f32.mrb[0].mxu0
  %v5168 = vpop.f32.mrb[0].mxu0
  %v5169 = vadd.f32 0.0, %v5168
  %v5170 = vpop.f32.mrb[0].mxu0
  %5171 = vmatprep.mubr.bf16.mxu0 %v5003
  %5172 = vmatmul.mubr.bf16.gmra.mrb[0].mxu0 %v4971
  %v5173 = vpop.f32.mrb[0].mxu0
  %v5174 = vadd.f32 0.0, %v5173
  %v5175 = vpop.f32.mrb[0].mxu0
  %v5176 = vpop.f32.mrb[0].mxu0
  %v5177 = vadd.f32 0.0, %v5176
  %v5178 = vpop.f32.mrb[0].mxu0
  %5179 = vmatprep.mubr.bf16.mxu0 %v5004
  %5180 = vmatmul.mubr.bf16.gmra.mrb[0].mxu0 %v4972
  %v5181 = vpop.f32.mrb[0].mxu0
  %v5182 = vadd.f32 0.0, %v5181
  %v5183 = vpop.f32.mrb[0].mxu0
  %v5184 = vpop.f32.mrb[0].mxu0
  %v5185 = vadd.f32 0.0, %v5184
  %v5186 = vpop.f32.mrb[0].mxu0
  %5187 = vmatprep.mubr.bf16.mxu0 %v5005
  %5188 = vmatmul.mubr.bf16.gmra.mrb[0].mxu0 %v4973
  %v5189 = vpop.f32.mrb[0].mxu0
  %v5190 = vadd.f32 0.0, %v5189
  %v5191 = vpop.f32.mrb[0].mxu0
  %v5192 = vpop.f32.mrb[0].mxu0
  %v5193 = vadd.f32 0.0, %v5192
  %v5194 = vpop.f32.mrb[0].mxu0
  %5195 = vmatprep.mubr.bf16.mxu0 %v5006
  %5196 = vmatmul.mubr.bf16.gmra.mrb[0].mxu0 %v4974
  %v5197 = vpop.f32.mrb[0].mxu0
  %v5198 = vadd.f32 0.0, %v5197
  %v5199 = vpop.f32.mrb[0].mxu0
  %v5200 = vpop.f32.mrb[0].mxu0
  %v5201 = vadd.f32 0.0, %v5200
  %v5202 = vpop.f32.mrb[0].mxu0
  %5203 = vmatprep.mubr.bf16.mxu0 %v5007
  %5204 = vmatmul.mubr.bf16.gmra.mrb[0].mxu0 %v4975
  %v5205 = vpop.f32.mrb[0].mxu0
  %v5206 = vadd.f32 0.0, %v5205
  %v5207 = vpop.f32.mrb[0].mxu0
  %v5208 = vpop.f32.mrb[0].mxu0
  %v5209 = vadd.f32 0.0, %v5208
  %v5210 = vpop.f32.mrb[0].mxu0
  %5211 = vmatprep.mubr.bf16.mxu0 %v5008
  %5212 = vmatmul.mubr.bf16.gmra.mrb[0].mxu0 %v4976
  %v5213 = vpop.f32.mrb[0].mxu0
  %v5214 = vadd.f32 0.0, %v5213
  %v5215 = vpop.f32.mrb[0].mxu0
  %v5216 = vpop.f32.mrb[0].mxu0
  %v5217 = vadd.f32 0.0, %v5216
  %v5218 = vpop.f32.mrb[0].mxu0
  %5219 = vmatprep.mubr.bf16.mxu0 %v5009
  %5220 = vmatmul.mubr.bf16.gmra.mrb[0].mxu0 %v4977
  %v5221 = vpop.f32.mrb[0].mxu0
  %v5222 = vadd.f32 0.0, %v5221
  %v5223 = vpop.f32.mrb[0].mxu0
  %v5224 = vpop.f32.mrb[0].mxu0
  %v5225 = vadd.f32 0.0, %v5224
  %v5226 = vpop.f32.mrb[0].mxu0
  %5227 = vmatprep.mubr.bf16.mxu0 %v5010
  %5228 = vmatmul.mubr.bf16.gmra.mrb[0].mxu0 %v4978
  %v5229 = vpop.f32.mrb[0].mxu0
  %v5230 = vadd.f32 0.0, %v5229
  %v5231 = vpop.f32.mrb[0].mxu0
  %v5232 = vpop.f32.mrb[0].mxu0
  %v5233 = vadd.f32 0.0, %v5232
  %v5234 = vpop.f32.mrb[0].mxu0
  %5235 = vdwg.mxu0
  %5236 = vmatprep.subr.bf16.mxu0 0
  %5237 = vmatpush1.bf16.msra.mxu0 %v4931
  %5238 = vmatprep.subr.bf16.mxu0 0
  %5239 = vmatpush1.bf16.msra.mxu0 %v4932
  %5240 = vmatprep.subr.bf16.mxu0 0
  %5241 = vmatpush1.bf16.msra.mxu0 %v4933
  %5242 = vmatprep.subr.bf16.mxu0 0
  %5243 = vmatpush1.bf16.msra.mxu0 %v4934
  %5244 = vmatprep.subr.bf16.mxu0 0
  %5245 = vmatpush1.bf16.msra.mxu0 %v4935
  %5246 = vmatprep.subr.bf16.mxu0 0
  %5247 = vmatpush1.bf16.msra.mxu0 %v4936
  %5248 = vmatprep.subr.bf16.mxu0 0
  %5249 = vmatpush1.bf16.msra.mxu0 %v4937
  %5250 = vmatprep.subr.bf16.mxu0 0
  %5251 = vmatpush1.bf16.msra.mxu0 %v4938
  %5252 = vmatprep.subr.bf16.mxu0 0
  %5253 = vmatpush1.bf16.msra.mxu0 %v4939
  %5254 = vmatprep.subr.bf16.mxu0 0
  %5255 = vmatpush1.bf16.msra.mxu0 %v4940
  %5256 = vmatprep.subr.bf16.mxu0 0
  %5257 = vmatpush1.bf16.msra.mxu0 %v4941
  %5258 = vmatprep.subr.bf16.mxu0 0
  %5259 = vmatpush1.bf16.msra.mxu0 %v4942
  %5260 = vmatprep.subr.bf16.mxu0 0
  %5261 = vmatpush1.bf16.msra.mxu0 %v4943
  %5262 = vmatprep.subr.bf16.mxu0 0
  %5263 = vmatpush1.bf16.msra.mxu0 %v4944
  %5264 = vmatprep.subr.bf16.mxu0 0
  %5265 = vmatpush1.bf16.msra.mxu0 %v4945
  %5266 = vmatprep.subr.bf16.mxu0 0
  %5267 = vmatpush1.bf16.msra.mxu0 %v4946
  %5268 = vmatprep.mubr.bf16.mxu0 %v5051
  %5269 = vmatmul.mubr.bf16.gmra.mrb[0].mxu0 %v5019
  %v5270 = vpop.f32.mrb[0].mxu0
  %v5271 = vadd.f32 %v5110, %v5270
  %v5272 = vpop.f32.mrb[0].mxu0
  %v5273 = vpop.f32.mrb[0].mxu0
  %v5274 = vadd.f32 %v5113, %v5273
  %v5275 = vpop.f32.mrb[0].mxu0
  %5276 = vmatprep.mubr.bf16.mxu0 %v5052
  %5277 = vmatmul.mubr.bf16.gmra.mrb[0].mxu0 %v5020
  %v5278 = vpop.f32.mrb[0].mxu0
  %v5279 = vadd.f32 %v5118, %v5278
  %v5280 = vpop.f32.mrb[0].mxu0
  %v5281 = vpop.f32.mrb[0].mxu0
  %v5282 = vadd.f32 %v5121, %v5281
  %v5283 = vpop.f32.mrb[0].mxu0
  %5284 = vmatprep.mubr.bf16.mxu0 %v5053
  %5285 = vmatmul.mubr.bf16.gmra.mrb[0].mxu0 %v5021
  %v5286 = vpop.f32.mrb[0].mxu0
  %v5287 = vadd.f32 %v5126, %v5286
  %v5288 = vpop.f32.mrb[0].mxu0
  %v5289 = vpop.f32.mrb[0].mxu0
  %v5290 = vadd.f32 %v5129, %v5289
  %v5291 = vpop.f32.mrb[0].mxu0
  %5292 = vmatprep.mubr.bf16.mxu0 %v5054
  %5293 = vmatmul.mubr.bf16.gmra.mrb[0].mxu0 %v5022
  %v5294 = vpop.f32.mrb[0].mxu0
  %v5295 = vadd.f32 %v5134, %v5294
  %v5296 = vpop.f32.mrb[0].mxu0
  %v5297 = vpop.f32.mrb[0].mxu0
  %v5298 = vadd.f32 %v5137, %v5297
  %v5299 = vpop.f32.mrb[0].mxu0
  %5300 = vmatprep.mubr.bf16.mxu0 %v5055
  %5301 = vmatmul.mubr.bf16.gmra.mrb[0].mxu0 %v5023
  %v5302 = vpop.f32.mrb[0].mxu0
  %v5303 = vadd.f32 %v5142, %v5302
  %v5304 = vpop.f32.mrb[0].mxu0
  %v5305 = vpop.f32.mrb[0].mxu0
  %v5306 = vadd.f32 %v5145, %v5305
  %v5307 = vpop.f32.mrb[0].mxu0
  %5308 = vmatprep.mubr.bf16.mxu0 %v5056
  %5309 = vmatmul.mubr.bf16.gmra.mrb[0].mxu0 %v5024
  %v5310 = vpop.f32.mrb[0].mxu0
  %v5311 = vadd.f32 %v5150, %v5310
  %v5312 = vpop.f32.mrb[0].mxu0
  %v5313 = vpop.f32.mrb[0].mxu0
  %v5314 = vadd.f32 %v5153, %v5313
  %v5315 = vpop.f32.mrb[0].mxu0
  %5316 = vmatprep.mubr.bf16.mxu0 %v5057
  %5317 = vmatmul.mubr.bf16.gmra.mrb[0].mxu0 %v5025
  %v5318 = vpop.f32.mrb[0].mxu0
  %v5319 = vadd.f32 %v5158, %v5318
  %v5320 = vpop.f32.mrb[0].mxu0
  %v5321 = vpop.f32.mrb[0].mxu0
  %v5322 = vadd.f32 %v5161, %v5321
  %v5323 = vpop.f32.mrb[0].mxu0
  %5324 = vmatprep.mubr.bf16.mxu0 %v5058
  %5325 = vmatmul.mubr.bf16.gmra.mrb[0].mxu0 %v5026
  %v5326 = vpop.f32.mrb[0].mxu0
  %v5327 = vadd.f32 %v5166, %v5326
  %v5328 = vpop.f32.mrb[0].mxu0
  %v5329 = vpop.f32.mrb[0].mxu0
  %v5330 = vadd.f32 %v5169, %v5329
  %v5331 = vpop.f32.mrb[0].mxu0
  %5332 = vmatprep.mubr.bf16.mxu0 %v5067
  %5333 = vmatmul.mubr.bf16.gmra.mrb[0].mxu0 %v5035
  %v5334 = vpop.f32.mrb[0].mxu0
  %v5335 = vadd.f32 %v5174, %v5334
  %v5336 = vpop.f32.mrb[0].mxu0
  %v5337 = vpop.f32.mrb[0].mxu0
  %v5338 = vadd.f32 %v5177, %v5337
  %v5339 = vpop.f32.mrb[0].mxu0
  %5340 = vmatprep.mubr.bf16.mxu0 %v5068
  %5341 = vmatmul.mubr.bf16.gmra.mrb[0].mxu0 %v5036
  %v5342 = vpop.f32.mrb[0].mxu0
  %v5343 = vadd.f32 %v5182, %v5342
  %v5344 = vpop.f32.mrb[0].mxu0
  %v5345 = vpop.f32.mrb[0].mxu0
  %v5346 = vadd.f32 %v5185, %v5345
  %v5347 = vpop.f32.mrb[0].mxu0
  %5348 = vmatprep.mubr.bf16.mxu0 %v5069
  %5349 = vmatmul.mubr.bf16.gmra.mrb[0].mxu0 %v5037
  %v5350 = vpop.f32.mrb[0].mxu0
  %v5351 = vadd.f32 %v5190, %v5350
  %v5352 = vpop.f32.mrb[0].mxu0
  %v5353 = vpop.f32.mrb[0].mxu0
  %v5354 = vadd.f32 %v5193, %v5353
  %v5355 = vpop.f32.mrb[0].mxu0
  %5356 = vmatprep.mubr.bf16.mxu0 %v5070
  %5357 = vmatmul.mubr.bf16.gmra.mrb[0].mxu0 %v5038
  %v5358 = vpop.f32.mrb[0].mxu0
  %v5359 = vadd.f32 %v5198, %v5358
  %v5360 = vpop.f32.mrb[0].mxu0
  %v5361 = vpop.f32.mrb[0].mxu0
  %v5362 = vadd.f32 %v5201, %v5361
  %v5363 = vpop.f32.mrb[0].mxu0
  %5364 = vmatprep.mubr.bf16.mxu0 %v5071
  %5365 = vmatmul.mubr.bf16.gmra.mrb[0].mxu0 %v5039
  %v5366 = vpop.f32.mrb[0].mxu0
  %v5367 = vadd.f32 %v5206, %v5366
  %v5368 = vpop.f32.mrb[0].mxu0
  %v5369 = vpop.f32.mrb[0].mxu0
  %v5370 = vadd.f32 %v5209, %v5369
  %v5371 = vpop.f32.mrb[0].mxu0
  %5372 = vmatprep.mubr.bf16.mxu0 %v5072
  %5373 = vmatmul.mubr.bf16.gmra.mrb[0].mxu0 %v5040
  %v5374 = vpop.f32.mrb[0].mxu0
  %v5375 = vadd.f32 %v5214, %v5374
  %v5376 = vpop.f32.mrb[0].mxu0
  %v5377 = vpop.f32.mrb[0].mxu0
  %v5378 = vadd.f32 %v5217, %v5377
  %v5379 = vpop.f32.mrb[0].mxu0
  %5380 = vmatprep.mubr.bf16.mxu0 %v5073
  %5381 = vmatmul.mubr.bf16.gmra.mrb[0].mxu0 %v5041
  %v5382 = vpop.f32.mrb[0].mxu0
  %v5383 = vadd.f32 %v5222, %v5382
  %v5384 = vpop.f32.mrb[0].mxu0
  %v5385 = vpop.f32.mrb[0].mxu0
  %v5386 = vadd.f32 %v5225, %v5385
  %v5387 = vpop.f32.mrb[0].mxu0
  %5388 = vmatprep.mubr.bf16.mxu0 %v5074
  %5389 = vmatmul.mubr.bf16.gmra.mrb[0].mxu0 %v5042
  %v5390 = vpop.f32.mrb[0].mxu0
  %v5391 = vadd.f32 %v5230, %v5390
  %v5392 = vpop.f32.mrb[0].mxu0
  %v5393 = vpop.f32.mrb[0].mxu0
  %v5394 = vadd.f32 %v5233, %v5393
  %v5395 = vpop.f32.mrb[0].mxu0
  %5396 = vdwg.mxu0
  %s5397 = scalar_lea.vmem %s4, 32
  %v5398 = vld [vmem:[%s5397] sm:$0xf]
  %v5399 = vld [vmem:[%s5397 + $0x4] sm:$0xf]
  %v5400 = vld [vmem:[%s5397 + $0x8] sm:$0xf]
  %v5401 = vld [vmem:[%s5397 + $0xc] sm:$0xf]
  %v5402 = vpack.c.bf16 %v5274, %v5271
  %v5403 = vpack.c.bf16 %v5282, %v5279
  %v5404 = vpack.c.bf16 %v5290, %v5287
  %v5405 = vpack.c.bf16 %v5298, %v5295
  %v5406 = vpack.c.bf16 %v5306, %v5303
  %v5407 = vpack.c.bf16 %v5314, %v5311
  %v5408 = vpack.c.bf16 %v5322, %v5319
  %v5409 = vpack.c.bf16 %v5330, %v5327
  %v5410 = vpack.c.bf16 %v5338, %v5335
  %v5411 = vpack.c.bf16 %v5346, %v5343
  %v5412 = vpack.c.bf16 %v5354, %v5351
  %v5413 = vpack.c.bf16 %v5362, %v5359
  %v5414 = vpack.c.bf16 %v5370, %v5367
  %v5415 = vpack.c.bf16 %v5378, %v5375
  %v5416 = vpack.c.bf16 %v5386, %v5383
  %v5417 = vpack.c.bf16 %v5394, %v5391
  %s5418 = scalar_lea.vmem %s4, 48
  %v5419 = vld [vmem:[%s5418] sm:$0xf]
  %v5420 = vld [vmem:[%s5418 + $0x4] sm:$0xf]
  %v5421 = vld [vmem:[%s5418 + $0x8] sm:$0xf]
  %v5422 = vld [vmem:[%s5418 + $0xc] sm:$0xf]
  %v5427 = vunpack.c.l.b16 %v5419
  %v5428 = vunpack.c.l.b16 %v5420
  %v5429 = vunpack.c.l.b16 %v5421
  %v5430 = vunpack.c.l.b16 %v5422
  %v5431 = vpack.c.b16 %v5428, %v5427
  %v5432 = vpack.c.b16 %v5430, %v5429
  %v5436 = vsel %vm1711, %v5402, 0
  %v5439 = vsel %vm1711, %v5403, 0
  %v5442 = vsel %vm1711, %v5404, 0
  %v5445 = vsel %vm1711, %v5405, 0
  %v5448 = vsel %vm1711, %v5406, 0
  %v5451 = vsel %vm1711, %v5407, 0
  %v5454 = vsel %vm1711, %v5408, 0
  %v5457 = vsel %vm1711, %v5409, 0
  %v5460 = vsel %vm1711, %v5410, 0
  %v5463 = vsel %vm1711, %v5411, 0
  %v5466 = vsel %vm1711, %v5412, 0
  %v5469 = vsel %vm1711, %v5413, 0
  %v5472 = vsel %vm1711, %v5414, 0
  %v5475 = vsel %vm1711, %v5415, 0
  %v5478 = vsel %vm1711, %v5416, 0
  %v5481 = vsel %vm1711, %v5417, 0
  %5483 = vmatprep.subr.bf16.mxu0 0
  %5484 = vmatpush1.bf16.msra.mxu0 %v5431
  %5485 = vmatprep.subr.bf16.mxu0 0
  %5486 = vmatpush1.bf16.msra.mxu0 %v5432
  %5487 = vmatprep.subr.bf16.mxu0 0
  %5488 = vmatpush1.bf16.msra.mxu0 0
  %5489 = vmatprep.subr.bf16.mxu0 0
  %5490 = vmatpush1.bf16.msra.mxu0 0
  %5491 = vmatprep.subr.bf16.mxu0 0
  %5492 = vmatpush1.bf16.msra.mxu0 0
  %5493 = vmatprep.subr.bf16.mxu0 0
  %5494 = vmatpush1.bf16.msra.mxu0 0
  %5495 = vmatprep.subr.bf16.mxu0 0
  %5496 = vmatpush1.bf16.msra.mxu0 0
  %5497 = vmatprep.subr.bf16.mxu0 0
  %5498 = vmatpush1.bf16.msra.mxu0 0
  %5499 = vmatprep.subr.bf16.mxu0 0
  %5500 = vmatpush1.bf16.msra.mxu0 0
  %5501 = vmatprep.subr.bf16.mxu0 0
  %5502 = vmatpush1.bf16.msra.mxu0 0
  %5503 = vmatprep.subr.bf16.mxu0 0
  %5504 = vmatpush1.bf16.msra.mxu0 0
  %5505 = vmatprep.subr.bf16.mxu0 0
  %5506 = vmatpush1.bf16.msra.mxu0 0
  %5507 = vmatprep.subr.bf16.mxu0 0
  %5508 = vmatpush1.bf16.msra.mxu0 0
  %5509 = vmatprep.subr.bf16.mxu0 0
  %5510 = vmatpush1.bf16.msra.mxu0 0
  %5511 = vmatprep.subr.bf16.mxu0 0
  %5512 = vmatpush1.bf16.msra.mxu0 0
  %5513 = vmatprep.subr.bf16.mxu0 0
  %5514 = vmatpush1.bf16.msra.mxu0 0
  %5515 = vmatprep.mubr.bf16.mxu0 0
  %5516 = vmatmul.mubr.bf16.gmra.mrb[0].mxu0 %v5436
  %v5517 = vpop.f32.mrb[0].mxu0
  %v5518 = vadd.f32 0.0, %v5517
  %v5519 = vpop.f32.mrb[0].mxu0
  %v5520 = vpop.f32.mrb[0].mxu0
  %v5521 = vadd.f32 0.0, %v5520
  %v5522 = vpop.f32.mrb[0].mxu0
  %5523 = vmatprep.mubr.bf16.mxu0 0
  %5524 = vmatmul.mubr.bf16.gmra.mrb[0].mxu0 %v5439
  %v5525 = vpop.f32.mrb[0].mxu0
  %v5526 = vadd.f32 0.0, %v5525
  %v5527 = vpop.f32.mrb[0].mxu0
  %v5528 = vpop.f32.mrb[0].mxu0
  %v5529 = vadd.f32 0.0, %v5528
  %v5530 = vpop.f32.mrb[0].mxu0
  %5531 = vmatprep.mubr.bf16.mxu0 0
  %5532 = vmatmul.mubr.bf16.gmra.mrb[0].mxu0 %v5442
  %v5533 = vpop.f32.mrb[0].mxu0
  %v5534 = vadd.f32 0.0, %v5533
  %v5535 = vpop.f32.mrb[0].mxu0
  %v5536 = vpop.f32.mrb[0].mxu0
  %v5537 = vadd.f32 0.0, %v5536
  %v5538 = vpop.f32.mrb[0].mxu0
  %5539 = vmatprep.mubr.bf16.mxu0 0
  %5540 = vmatmul.mubr.bf16.gmra.mrb[0].mxu0 %v5445
  %v5541 = vpop.f32.mrb[0].mxu0
  %v5542 = vadd.f32 0.0, %v5541
  %v5543 = vpop.f32.mrb[0].mxu0
  %v5544 = vpop.f32.mrb[0].mxu0
  %v5545 = vadd.f32 0.0, %v5544
  %v5546 = vpop.f32.mrb[0].mxu0
  %5547 = vmatprep.mubr.bf16.mxu0 0
  %5548 = vmatmul.mubr.bf16.gmra.mrb[0].mxu0 %v5448
  %v5549 = vpop.f32.mrb[0].mxu0
  %v5550 = vadd.f32 0.0, %v5549
  %v5551 = vpop.f32.mrb[0].mxu0
  %v5552 = vpop.f32.mrb[0].mxu0
  %v5553 = vadd.f32 0.0, %v5552
  %v5554 = vpop.f32.mrb[0].mxu0
  %5555 = vmatprep.mubr.bf16.mxu0 0
  %5556 = vmatmul.mubr.bf16.gmra.mrb[0].mxu0 %v5451
  %v5557 = vpop.f32.mrb[0].mxu0
  %v5558 = vadd.f32 0.0, %v5557
  %v5559 = vpop.f32.mrb[0].mxu0
  %v5560 = vpop.f32.mrb[0].mxu0
  %v5561 = vadd.f32 0.0, %v5560
  %v5562 = vpop.f32.mrb[0].mxu0
  %5563 = vmatprep.mubr.bf16.mxu0 0
  %5564 = vmatmul.mubr.bf16.gmra.mrb[0].mxu0 %v5454
  %v5565 = vpop.f32.mrb[0].mxu0
  %v5566 = vadd.f32 0.0, %v5565
  %v5567 = vpop.f32.mrb[0].mxu0
  %v5568 = vpop.f32.mrb[0].mxu0
  %v5569 = vadd.f32 0.0, %v5568
  %v5570 = vpop.f32.mrb[0].mxu0
  %5571 = vmatprep.mubr.bf16.mxu0 0
  %5572 = vmatmul.mubr.bf16.gmra.mrb[0].mxu0 %v5457
  %v5573 = vpop.f32.mrb[0].mxu0
  %v5574 = vadd.f32 0.0, %v5573
  %v5575 = vpop.f32.mrb[0].mxu0
  %v5576 = vpop.f32.mrb[0].mxu0
  %v5577 = vadd.f32 0.0, %v5576
  %v5578 = vpop.f32.mrb[0].mxu0
  %5579 = vmatprep.mubr.bf16.mxu0 0
  %5580 = vmatmul.mubr.bf16.gmra.mrb[0].mxu0 %v5460
  %v5581 = vpop.f32.mrb[0].mxu0
  %v5582 = vadd.f32 0.0, %v5581
  %v5583 = vpop.f32.mrb[0].mxu0
  %v5584 = vpop.f32.mrb[0].mxu0
  %v5585 = vadd.f32 0.0, %v5584
  %v5586 = vpop.f32.mrb[0].mxu0
  %5587 = vmatprep.mubr.bf16.mxu0 0
  %5588 = vmatmul.mubr.bf16.gmra.mrb[0].mxu0 %v5463
  %v5589 = vpop.f32.mrb[0].mxu0
  %v5590 = vadd.f32 0.0, %v5589
  %v5591 = vpop.f32.mrb[0].mxu0
  %v5592 = vpop.f32.mrb[0].mxu0
  %v5593 = vadd.f32 0.0, %v5592
  %v5594 = vpop.f32.mrb[0].mxu0
  %5595 = vmatprep.mubr.bf16.mxu0 0
  %5596 = vmatmul.mubr.bf16.gmra.mrb[0].mxu0 %v5466
  %v5597 = vpop.f32.mrb[0].mxu0
  %v5598 = vadd.f32 0.0, %v5597
  %v5599 = vpop.f32.mrb[0].mxu0
  %v5600 = vpop.f32.mrb[0].mxu0
  %v5601 = vadd.f32 0.0, %v5600
  %v5602 = vpop.f32.mrb[0].mxu0
  %5603 = vmatprep.mubr.bf16.mxu0 0
  %5604 = vmatmul.mubr.bf16.gmra.mrb[0].mxu0 %v5469
  %v5605 = vpop.f32.mrb[0].mxu0
  %v5606 = vadd.f32 0.0, %v5605
  %v5607 = vpop.f32.mrb[0].mxu0
  %v5608 = vpop.f32.mrb[0].mxu0
  %v5609 = vadd.f32 0.0, %v5608
  %v5610 = vpop.f32.mrb[0].mxu0
  %5611 = vmatprep.mubr.bf16.mxu0 0
  %5612 = vmatmul.mubr.bf16.gmra.mrb[0].mxu0 %v5472
  %v5613 = vpop.f32.mrb[0].mxu0
  %v5614 = vadd.f32 0.0, %v5613
  %v5615 = vpop.f32.mrb[0].mxu0
  %v5616 = vpop.f32.mrb[0].mxu0
  %v5617 = vadd.f32 0.0, %v5616
  %v5618 = vpop.f32.mrb[0].mxu0
  %5619 = vmatprep.mubr.bf16.mxu0 0
  %5620 = vmatmul.mubr.bf16.gmra.mrb[0].mxu0 %v5475
  %v5621 = vpop.f32.mrb[0].mxu0
  %v5622 = vadd.f32 0.0, %v5621
  %v5623 = vpop.f32.mrb[0].mxu0
  %v5624 = vpop.f32.mrb[0].mxu0
  %v5625 = vadd.f32 0.0, %v5624
  %v5626 = vpop.f32.mrb[0].mxu0
  %5627 = vmatprep.mubr.bf16.mxu0 0
  %5628 = vmatmul.mubr.bf16.gmra.mrb[0].mxu0 %v5478
  %v5629 = vpop.f32.mrb[0].mxu0
  %v5630 = vadd.f32 0.0, %v5629
  %v5631 = vpop.f32.mrb[0].mxu0
  %v5632 = vpop.f32.mrb[0].mxu0
  %v5633 = vadd.f32 0.0, %v5632
  %v5634 = vpop.f32.mrb[0].mxu0
  %5635 = vmatprep.mubr.bf16.mxu0 0
  %5636 = vmatmul.mubr.bf16.gmra.mrb[0].mxu0 %v5481
  %v5637 = vpop.f32.mrb[0].mxu0
  %v5638 = vadd.f32 0.0, %v5637
  %v5639 = vpop.f32.mrb[0].mxu0
  %v5640 = vpop.f32.mrb[0].mxu0
  %v5641 = vadd.f32 0.0, %v5640
  %v5642 = vpop.f32.mrb[0].mxu0
  %5643 = vdwg.mxu0
  %v5648 = vunpack.c.l.b16 %v5398
  %v5649 = vunpack.c.l.b16 %v5399
  %v5650 = vunpack.c.l.b16 %v5400
  %v5651 = vunpack.c.l.b16 %v5401
  %v5652 = vpack.c.b16 %v5649, %v5648
  %v5653 = vpack.c.b16 %v5651, %v5650
  %5656 = vmatprep.subr.bf16.mxu0 0
  %5657 = vmatpush1.bf16.msra.mxu0 %v5652
  %5658 = vmatprep.subr.bf16.mxu0 0
  %5659 = vmatpush1.bf16.msra.mxu0 %v5653
  %5660 = vmatprep.subr.bf16.mxu0 0
  %5661 = vmatpush1.bf16.msra.mxu0 0
  %5662 = vmatprep.subr.bf16.mxu0 0
  %5663 = vmatpush1.bf16.msra.mxu0 0
  %5664 = vmatprep.subr.bf16.mxu0 0
  %5665 = vmatpush1.bf16.msra.mxu0 0
  %5666 = vmatprep.subr.bf16.mxu0 0
  %5667 = vmatpush1.bf16.msra.mxu0 0
  %5668 = vmatprep.subr.bf16.mxu0 0
  %5669 = vmatpush1.bf16.msra.mxu0 0
  %5670 = vmatprep.subr.bf16.mxu0 0
  %5671 = vmatpush1.bf16.msra.mxu0 0
  %5672 = vmatprep.subr.bf16.mxu0 0
  %5673 = vmatpush1.bf16.msra.mxu0 0
  %5674 = vmatprep.subr.bf16.mxu0 0
  %5675 = vmatpush1.bf16.msra.mxu0 0
  %5676 = vmatprep.subr.bf16.mxu0 0
  %5677 = vmatpush1.bf16.msra.mxu0 0
  %5678 = vmatprep.subr.bf16.mxu0 0
  %5679 = vmatpush1.bf16.msra.mxu0 0
  %5680 = vmatprep.subr.bf16.mxu0 0
  %5681 = vmatpush1.bf16.msra.mxu0 0
  %5682 = vmatprep.subr.bf16.mxu0 0
  %5683 = vmatpush1.bf16.msra.mxu0 0
  %5684 = vmatprep.subr.bf16.mxu0 0
  %5685 = vmatpush1.bf16.msra.mxu0 0
  %5686 = vmatprep.subr.bf16.mxu0 0
  %5687 = vmatpush1.bf16.msra.mxu0 0
  %5688 = vmatprep.mubr.bf16.mxu0 0
  %5689 = vmatmul.mubr.bf16.gmra.mrb[0].mxu0 %v2511
  %v5690 = vpop.f32.mrb[0].mxu0
  %v5691 = vadd.f32 %v5518, %v5690
  %v5692 = vpop.f32.mrb[0].mxu0
  %v5693 = vpop.f32.mrb[0].mxu0
  %v5694 = vadd.f32 %v5521, %v5693
  %v5695 = vpop.f32.mrb[0].mxu0
  %5696 = vmatprep.mubr.bf16.mxu0 0
  %5697 = vmatmul.mubr.bf16.gmra.mrb[0].mxu0 %v2514
  %v5698 = vpop.f32.mrb[0].mxu0
  %v5699 = vadd.f32 %v5526, %v5698
  %v5700 = vpop.f32.mrb[0].mxu0
  %v5701 = vpop.f32.mrb[0].mxu0
  %v5702 = vadd.f32 %v5529, %v5701
  %v5703 = vpop.f32.mrb[0].mxu0
  %5704 = vmatprep.mubr.bf16.mxu0 0
  %5705 = vmatmul.mubr.bf16.gmra.mrb[0].mxu0 %v2517
  %v5706 = vpop.f32.mrb[0].mxu0
  %v5707 = vadd.f32 %v5534, %v5706
  %v5708 = vpop.f32.mrb[0].mxu0
  %v5709 = vpop.f32.mrb[0].mxu0
  %v5710 = vadd.f32 %v5537, %v5709
  %v5711 = vpop.f32.mrb[0].mxu0
  %5712 = vmatprep.mubr.bf16.mxu0 0
  %5713 = vmatmul.mubr.bf16.gmra.mrb[0].mxu0 %v2520
  %v5714 = vpop.f32.mrb[0].mxu0
  %v5715 = vadd.f32 %v5542, %v5714
  %v5716 = vpop.f32.mrb[0].mxu0
  %v5717 = vpop.f32.mrb[0].mxu0
  %v5718 = vadd.f32 %v5545, %v5717
  %v5719 = vpop.f32.mrb[0].mxu0
  %5720 = vmatprep.mubr.bf16.mxu0 0
  %5721 = vmatmul.mubr.bf16.gmra.mrb[0].mxu0 %v2523
  %v5722 = vpop.f32.mrb[0].mxu0
  %v5723 = vadd.f32 %v5550, %v5722
  %v5724 = vpop.f32.mrb[0].mxu0
  %v5725 = vpop.f32.mrb[0].mxu0
  %v5726 = vadd.f32 %v5553, %v5725
  %v5727 = vpop.f32.mrb[0].mxu0
  %5728 = vmatprep.mubr.bf16.mxu0 0
  %5729 = vmatmul.mubr.bf16.gmra.mrb[0].mxu0 %v2526
  %v5730 = vpop.f32.mrb[0].mxu0
  %v5731 = vadd.f32 %v5558, %v5730
  %v5732 = vpop.f32.mrb[0].mxu0
  %v5733 = vpop.f32.mrb[0].mxu0
  %v5734 = vadd.f32 %v5561, %v5733
  %v5735 = vpop.f32.mrb[0].mxu0
  %5736 = vmatprep.mubr.bf16.mxu0 0
  %5737 = vmatmul.mubr.bf16.gmra.mrb[0].mxu0 %v2529
  %v5738 = vpop.f32.mrb[0].mxu0
  %v5739 = vadd.f32 %v5566, %v5738
  %v5740 = vpop.f32.mrb[0].mxu0
  %v5741 = vpop.f32.mrb[0].mxu0
  %v5742 = vadd.f32 %v5569, %v5741
  %v5743 = vpop.f32.mrb[0].mxu0
  %5744 = vmatprep.mubr.bf16.mxu0 0
  %5745 = vmatmul.mubr.bf16.gmra.mrb[0].mxu0 %v2532
  %v5746 = vpop.f32.mrb[0].mxu0
  %v5747 = vadd.f32 %v5574, %v5746
  %v5748 = vpop.f32.mrb[0].mxu0
  %v5749 = vpop.f32.mrb[0].mxu0
  %v5750 = vadd.f32 %v5577, %v5749
  %v5751 = vpop.f32.mrb[0].mxu0
  %5752 = vmatprep.mubr.bf16.mxu0 0
  %5753 = vmatmul.mubr.bf16.gmra.mrb[0].mxu0 %v2535
  %v5754 = vpop.f32.mrb[0].mxu0
  %v5755 = vadd.f32 %v5582, %v5754
  %v5756 = vpop.f32.mrb[0].mxu0
  %v5757 = vpop.f32.mrb[0].mxu0
  %v5758 = vadd.f32 %v5585, %v5757
  %v5759 = vpop.f32.mrb[0].mxu0
  %5760 = vmatprep.mubr.bf16.mxu0 0
  %5761 = vmatmul.mubr.bf16.gmra.mrb[0].mxu0 %v2538
  %v5762 = vpop.f32.mrb[0].mxu0
  %v5763 = vadd.f32 %v5590, %v5762
  %v5764 = vpop.f32.mrb[0].mxu0
  %v5765 = vpop.f32.mrb[0].mxu0
  %v5766 = vadd.f32 %v5593, %v5765
  %v5767 = vpop.f32.mrb[0].mxu0
  %5768 = vmatprep.mubr.bf16.mxu0 0
  %5769 = vmatmul.mubr.bf16.gmra.mrb[0].mxu0 %v2541
  %v5770 = vpop.f32.mrb[0].mxu0
  %v5771 = vadd.f32 %v5598, %v5770
  %v5772 = vpop.f32.mrb[0].mxu0
  %v5773 = vpop.f32.mrb[0].mxu0
  %v5774 = vadd.f32 %v5601, %v5773
  %v5775 = vpop.f32.mrb[0].mxu0
  %5776 = vmatprep.mubr.bf16.mxu0 0
  %5777 = vmatmul.mubr.bf16.gmra.mrb[0].mxu0 %v2544
  %v5778 = vpop.f32.mrb[0].mxu0
  %v5779 = vadd.f32 %v5606, %v5778
  %v5780 = vpop.f32.mrb[0].mxu0
  %v5781 = vpop.f32.mrb[0].mxu0
  %v5782 = vadd.f32 %v5609, %v5781
  %v5783 = vpop.f32.mrb[0].mxu0
  %5784 = vmatprep.mubr.bf16.mxu0 0
  %5785 = vmatmul.mubr.bf16.gmra.mrb[0].mxu0 %v2547
  %v5786 = vpop.f32.mrb[0].mxu0
  %v5787 = vadd.f32 %v5614, %v5786
  %v5788 = vpop.f32.mrb[0].mxu0
  %v5789 = vpop.f32.mrb[0].mxu0
  %v5790 = vadd.f32 %v5617, %v5789
  %v5791 = vpop.f32.mrb[0].mxu0
  %5792 = vmatprep.mubr.bf16.mxu0 0
  %5793 = vmatmul.mubr.bf16.gmra.mrb[0].mxu0 %v2550
  %v5794 = vpop.f32.mrb[0].mxu0
  %v5795 = vadd.f32 %v5622, %v5794
  %v5796 = vpop.f32.mrb[0].mxu0
  %v5797 = vpop.f32.mrb[0].mxu0
  %v5798 = vadd.f32 %v5625, %v5797
  %v5799 = vpop.f32.mrb[0].mxu0
  %5800 = vmatprep.mubr.bf16.mxu0 0
  %5801 = vmatmul.mubr.bf16.gmra.mrb[0].mxu0 %v2553
  %v5802 = vpop.f32.mrb[0].mxu0
  %v5803 = vadd.f32 %v5630, %v5802
  %v5804 = vpop.f32.mrb[0].mxu0
  %v5805 = vpop.f32.mrb[0].mxu0
  %v5806 = vadd.f32 %v5633, %v5805
  %v5807 = vpop.f32.mrb[0].mxu0
  %5808 = vmatprep.mubr.bf16.mxu0 0
  %5809 = vmatmul.mubr.bf16.gmra.mrb[0].mxu0 %v2556
  %v5810 = vpop.f32.mrb[0].mxu0
  %v5811 = vadd.f32 %v5638, %v5810
  %v5812 = vpop.f32.mrb[0].mxu0
  %v5813 = vpop.f32.mrb[0].mxu0
  %v5814 = vadd.f32 %v5641, %v5813
  %v5815 = vpop.f32.mrb[0].mxu0
  %5816 = vdwg.mxu0
  %v5817 = vlaneseq
  %v5818 = vshrl.u32 %v5817, 7
  %v5819 = vsub.s32 0, %v5818
  %v5820 = vrot.slane %v31, %v5819
  %v5821 = vadd.f32 %v5691, %v5820
  %v5822 = vadd.f32 %v5694, %v5820
  %v5823 = vadd.f32 %v5699, %v5820
  %v5824 = vadd.f32 %v5702, %v5820
  %v5825 = vadd.f32 %v5707, %v5820
  %v5826 = vadd.f32 %v5710, %v5820
  %v5827 = vadd.f32 %v5715, %v5820
  %v5828 = vadd.f32 %v5718, %v5820
  %v5829 = vadd.f32 %v5723, %v5820
  %v5830 = vadd.f32 %v5726, %v5820
  %v5831 = vadd.f32 %v5731, %v5820
  %v5832 = vadd.f32 %v5734, %v5820
  %v5833 = vadd.f32 %v5739, %v5820
  %v5834 = vadd.f32 %v5742, %v5820
  %v5835 = vadd.f32 %v5747, %v5820
  %v5836 = vadd.f32 %v5750, %v5820
  %v5837 = vadd.f32 %v5755, %v5820
  %v5838 = vadd.f32 %v5758, %v5820
  %v5839 = vadd.f32 %v5763, %v5820
  %v5840 = vadd.f32 %v5766, %v5820
  %v5841 = vadd.f32 %v5771, %v5820
  %v5842 = vadd.f32 %v5774, %v5820
  %v5843 = vadd.f32 %v5779, %v5820
  %v5844 = vadd.f32 %v5782, %v5820
  %v5845 = vadd.f32 %v5787, %v5820
  %v5846 = vadd.f32 %v5790, %v5820
  %v5847 = vadd.f32 %v5795, %v5820
  %v5848 = vadd.f32 %v5798, %v5820
  %v5849 = vadd.f32 %v5803, %v5820
  %v5850 = vadd.f32 %v5806, %v5820
  %v5851 = vadd.f32 %v5811, %v5820
  %v5852 = vadd.f32 %v5814, %v5820
  %v5853 = vsel %vm1711, %v5821, 0.0
  %5854 = vadd.xlane.f32.xlu0 %v5853
  %v5855 = vpop.xlane.xlu0 %5854
  %v5856 = vsel %vm1711, %v5822, 0.0
  %5857 = vadd.xlane.f32.xlu0 %v5856
  %v5858 = vpop.xlane.xlu0 %5857
  %v5859 = vsel %vm1711, %v5823, 0.0
  %5860 = vadd.xlane.f32.xlu0 %v5859
  %v5861 = vpop.xlane.xlu0 %5860
  %v5862 = vsel %vm1711, %v5824, 0.0
  %5863 = vadd.xlane.f32.xlu0 %v5862
  %v5864 = vpop.xlane.xlu0 %5863
  %v5865 = vsel %vm1711, %v5825, 0.0
  %5866 = vadd.xlane.f32.xlu0 %v5865
  %v5867 = vpop.xlane.xlu0 %5866
  %v5868 = vsel %vm1711, %v5826, 0.0
  %5869 = vadd.xlane.f32.xlu0 %v5868
  %v5870 = vpop.xlane.xlu0 %5869
  %v5871 = vsel %vm1711, %v5827, 0.0
  %5872 = vadd.xlane.f32.xlu0 %v5871
  %v5873 = vpop.xlane.xlu0 %5872
  %v5874 = vsel %vm1711, %v5828, 0.0
  %5875 = vadd.xlane.f32.xlu0 %v5874
  %v5876 = vpop.xlane.xlu0 %5875
  %v5877 = vsel %vm1711, %v5829, 0.0
  %5878 = vadd.xlane.f32.xlu0 %v5877
  %v5879 = vpop.xlane.xlu0 %5878
  %v5880 = vsel %vm1711, %v5830, 0.0
  %5881 = vadd.xlane.f32.xlu0 %v5880
  %v5882 = vpop.xlane.xlu0 %5881
  %v5883 = vsel %vm1711, %v5831, 0.0
  %5884 = vadd.xlane.f32.xlu0 %v5883
  %v5885 = vpop.xlane.xlu0 %5884
  %v5886 = vsel %vm1711, %v5832, 0.0
  %5887 = vadd.xlane.f32.xlu0 %v5886
  %v5888 = vpop.xlane.xlu0 %5887
  %v5889 = vsel %vm1711, %v5833, 0.0
  %5890 = vadd.xlane.f32.xlu0 %v5889
  %v5891 = vpop.xlane.xlu0 %5890
  %v5892 = vsel %vm1711, %v5834, 0.0
  %5893 = vadd.xlane.f32.xlu0 %v5892
  %v5894 = vpop.xlane.xlu0 %5893
  %v5895 = vsel %vm1711, %v5835, 0.0
  %5896 = vadd.xlane.f32.xlu0 %v5895
  %v5897 = vpop.xlane.xlu0 %5896
  %v5898 = vsel %vm1711, %v5836, 0.0
  %5899 = vadd.xlane.f32.xlu0 %v5898
  %v5900 = vpop.xlane.xlu0 %5899
  %v5901 = vsel %vm1711, %v5837, 0.0
  %5902 = vadd.xlane.f32.xlu0 %v5901
  %v5903 = vpop.xlane.xlu0 %5902
  %v5904 = vsel %vm1711, %v5838, 0.0
  %5905 = vadd.xlane.f32.xlu0 %v5904
  %v5906 = vpop.xlane.xlu0 %5905
  %v5907 = vsel %vm1711, %v5839, 0.0
  %5908 = vadd.xlane.f32.xlu0 %v5907
  %v5909 = vpop.xlane.xlu0 %5908
  %v5910 = vsel %vm1711, %v5840, 0.0
  %5911 = vadd.xlane.f32.xlu0 %v5910
  %v5912 = vpop.xlane.xlu0 %5911
  %v5913 = vsel %vm1711, %v5841, 0.0
  %5914 = vadd.xlane.f32.xlu0 %v5913
  %v5915 = vpop.xlane.xlu0 %5914
  %v5916 = vsel %vm1711, %v5842, 0.0
  %5917 = vadd.xlane.f32.xlu0 %v5916
  %v5918 = vpop.xlane.xlu0 %5917
  %v5919 = vsel %vm1711, %v5843, 0.0
  %5920 = vadd.xlane.f32.xlu0 %v5919
  %v5921 = vpop.xlane.xlu0 %5920
  %v5922 = vsel %vm1711, %v5844, 0.0
  %5923 = vadd.xlane.f32.xlu0 %v5922
  %v5924 = vpop.xlane.xlu0 %5923
  %v5925 = vsel %vm1711, %v5845, 0.0
  %5926 = vadd.xlane.f32.xlu0 %v5925
  %v5927 = vpop.xlane.xlu0 %5926
  %v5928 = vsel %vm1711, %v5846, 0.0
  %5929 = vadd.xlane.f32.xlu0 %v5928
  %v5930 = vpop.xlane.xlu0 %5929
  %v5931 = vsel %vm1711, %v5847, 0.0
  %5932 = vadd.xlane.f32.xlu0 %v5931
  %v5933 = vpop.xlane.xlu0 %5932
  %v5934 = vsel %vm1711, %v5848, 0.0
  %5935 = vadd.xlane.f32.xlu0 %v5934
  %v5936 = vpop.xlane.xlu0 %5935
  %v5937 = vsel %vm1711, %v5849, 0.0
  %5938 = vadd.xlane.f32.xlu0 %v5937
  %v5939 = vpop.xlane.xlu0 %5938
  %v5940 = vsel %vm1711, %v5850, 0.0
  %5941 = vadd.xlane.f32.xlu0 %v5940
  %v5942 = vpop.xlane.xlu0 %5941
  %v5943 = vsel %vm1711, %v5851, 0.0
  %5944 = vadd.xlane.f32.xlu0 %v5943
  %v5945 = vpop.xlane.xlu0 %5944
  %v5946 = vsel %vm1711, %v5852, 0.0
  %5947 = vadd.xlane.f32.xlu0 %v5946
  %v5948 = vpop.xlane.xlu0 %5947
  %v5949 = vmul.f32 %v5855, %v1808
  %v5950 = vmul.f32 %v5858, %v1808
  %v5951 = vmul.f32 %v5861, %v1808
  %v5952 = vmul.f32 %v5864, %v1808
  %v5953 = vmul.f32 %v5867, %v1808
  %v5954 = vmul.f32 %v5870, %v1808
  %v5955 = vmul.f32 %v5873, %v1808
  %v5956 = vmul.f32 %v5876, %v1808
  %v5957 = vmul.f32 %v5879, %v1808
  %v5958 = vmul.f32 %v5882, %v1808
  %v5959 = vmul.f32 %v5885, %v1808
  %v5960 = vmul.f32 %v5888, %v1808
  %v5961 = vmul.f32 %v5891, %v1808
  %v5962 = vmul.f32 %v5894, %v1808
  %v5963 = vmul.f32 %v5897, %v1808
  %v5964 = vmul.f32 %v5900, %v1808
  %v5965 = vmul.f32 %v5903, %v1808
  %v5966 = vmul.f32 %v5906, %v1808
  %v5967 = vmul.f32 %v5909, %v1808
  %v5968 = vmul.f32 %v5912, %v1808
  %v5969 = vmul.f32 %v5915, %v1808
  %v5970 = vmul.f32 %v5918, %v1808
  %v5971 = vmul.f32 %v5921, %v1808
  %v5972 = vmul.f32 %v5924, %v1808
  %v5973 = vmul.f32 %v5927, %v1808
  %v5974 = vmul.f32 %v5930, %v1808
  %v5975 = vmul.f32 %v5933, %v1808
  %v5976 = vmul.f32 %v5936, %v1808
  %v5977 = vmul.f32 %v5939, %v1808
  %v5978 = vmul.f32 %v5942, %v1808
  %v5979 = vmul.f32 %v5945, %v1808
  %v5980 = vmul.f32 %v5948, %v1808
  %v5981 = vsub.f32 %v5821, %v5949
  %v5982 = vsub.f32 %v5822, %v5950
  %v5983 = vsub.f32 %v5823, %v5951
  %v5984 = vsub.f32 %v5824, %v5952
  %v5985 = vsub.f32 %v5825, %v5953
  %v5986 = vsub.f32 %v5826, %v5954
  %v5987 = vsub.f32 %v5827, %v5955
  %v5988 = vsub.f32 %v5828, %v5956
  %v5989 = vsub.f32 %v5829, %v5957
  %v5990 = vsub.f32 %v5830, %v5958
  %v5991 = vsub.f32 %v5831, %v5959
  %v5992 = vsub.f32 %v5832, %v5960
  %v5993 = vsub.f32 %v5833, %v5961
  %v5994 = vsub.f32 %v5834, %v5962
  %v5995 = vsub.f32 %v5835, %v5963
  %v5996 = vsub.f32 %v5836, %v5964
  %v5997 = vsub.f32 %v5837, %v5965
  %v5998 = vsub.f32 %v5838, %v5966
  %v5999 = vsub.f32 %v5839, %v5967
  %v6000 = vsub.f32 %v5840, %v5968
  %v6001 = vsub.f32 %v5841, %v5969
  %v6002 = vsub.f32 %v5842, %v5970
  %v6003 = vsub.f32 %v5843, %v5971
  %v6004 = vsub.f32 %v5844, %v5972
  %v6005 = vsub.f32 %v5845, %v5973
  %v6006 = vsub.f32 %v5846, %v5974
  %v6007 = vsub.f32 %v5847, %v5975
  %v6008 = vsub.f32 %v5848, %v5976
  %v6009 = vsub.f32 %v5849, %v5977
  %v6010 = vsub.f32 %v5850, %v5978
  %v6011 = vsub.f32 %v5851, %v5979
  %v6012 = vsub.f32 %v5852, %v5980
  %v6013 = vmul.f32 %v5981, %v5981
  %v6014 = vmul.f32 %v5982, %v5982
  %v6015 = vmul.f32 %v5983, %v5983
  %v6016 = vmul.f32 %v5984, %v5984
  %v6017 = vmul.f32 %v5985, %v5985
  %v6018 = vmul.f32 %v5986, %v5986
  %v6019 = vmul.f32 %v5987, %v5987
  %v6020 = vmul.f32 %v5988, %v5988
  %v6021 = vmul.f32 %v5989, %v5989
  %v6022 = vmul.f32 %v5990, %v5990
  %v6023 = vmul.f32 %v5991, %v5991
  %v6024 = vmul.f32 %v5992, %v5992
  %v6025 = vmul.f32 %v5993, %v5993
  %v6026 = vmul.f32 %v5994, %v5994
  %v6027 = vmul.f32 %v5995, %v5995
  %v6028 = vmul.f32 %v5996, %v5996
  %v6029 = vmul.f32 %v5997, %v5997
  %v6030 = vmul.f32 %v5998, %v5998
  %v6031 = vmul.f32 %v5999, %v5999
  %v6032 = vmul.f32 %v6000, %v6000
  %v6033 = vmul.f32 %v6001, %v6001
  %v6034 = vmul.f32 %v6002, %v6002
  %v6035 = vmul.f32 %v6003, %v6003
  %v6036 = vmul.f32 %v6004, %v6004
  %v6037 = vmul.f32 %v6005, %v6005
  %v6038 = vmul.f32 %v6006, %v6006
  %v6039 = vmul.f32 %v6007, %v6007
  %v6040 = vmul.f32 %v6008, %v6008
  %v6041 = vmul.f32 %v6009, %v6009
  %v6042 = vmul.f32 %v6010, %v6010
  %v6043 = vmul.f32 %v6011, %v6011
  %v6044 = vmul.f32 %v6012, %v6012
  %v6045 = vsel %vm1711, %v6013, 0.0
  %6046 = vadd.xlane.f32.xlu0 %v6045
  %v6047 = vpop.xlane.xlu0 %6046
  %v6048 = vsel %vm1711, %v6014, 0.0
  %6049 = vadd.xlane.f32.xlu0 %v6048
  %v6050 = vpop.xlane.xlu0 %6049
  %v6051 = vsel %vm1711, %v6015, 0.0
  %6052 = vadd.xlane.f32.xlu0 %v6051
  %v6053 = vpop.xlane.xlu0 %6052
  %v6054 = vsel %vm1711, %v6016, 0.0
  %6055 = vadd.xlane.f32.xlu0 %v6054
  %v6056 = vpop.xlane.xlu0 %6055
  %v6057 = vsel %vm1711, %v6017, 0.0
  %6058 = vadd.xlane.f32.xlu0 %v6057
  %v6059 = vpop.xlane.xlu0 %6058
  %v6060 = vsel %vm1711, %v6018, 0.0
  %6061 = vadd.xlane.f32.xlu0 %v6060
  %v6062 = vpop.xlane.xlu0 %6061
  %v6063 = vsel %vm1711, %v6019, 0.0
  %6064 = vadd.xlane.f32.xlu0 %v6063
  %v6065 = vpop.xlane.xlu0 %6064
  %v6066 = vsel %vm1711, %v6020, 0.0
  %6067 = vadd.xlane.f32.xlu0 %v6066
  %v6068 = vpop.xlane.xlu0 %6067
  %v6069 = vsel %vm1711, %v6021, 0.0
  %6070 = vadd.xlane.f32.xlu0 %v6069
  %v6071 = vpop.xlane.xlu0 %6070
  %v6072 = vsel %vm1711, %v6022, 0.0
  %6073 = vadd.xlane.f32.xlu0 %v6072
  %v6074 = vpop.xlane.xlu0 %6073
  %v6075 = vsel %vm1711, %v6023, 0.0
  %6076 = vadd.xlane.f32.xlu0 %v6075
  %v6077 = vpop.xlane.xlu0 %6076
  %v6078 = vsel %vm1711, %v6024, 0.0
  %6079 = vadd.xlane.f32.xlu0 %v6078
  %v6080 = vpop.xlane.xlu0 %6079
  %v6081 = vsel %vm1711, %v6025, 0.0
  %6082 = vadd.xlane.f32.xlu0 %v6081
  %v6083 = vpop.xlane.xlu0 %6082
  %v6084 = vsel %vm1711, %v6026, 0.0
  %6085 = vadd.xlane.f32.xlu0 %v6084
  %v6086 = vpop.xlane.xlu0 %6085
  %v6087 = vsel %vm1711, %v6027, 0.0
  %6088 = vadd.xlane.f32.xlu0 %v6087
  %v6089 = vpop.xlane.xlu0 %6088
  %v6090 = vsel %vm1711, %v6028, 0.0
  %6091 = vadd.xlane.f32.xlu0 %v6090
  %v6092 = vpop.xlane.xlu0 %6091
  %v6093 = vsel %vm1711, %v6029, 0.0
  %6094 = vadd.xlane.f32.xlu0 %v6093
  %v6095 = vpop.xlane.xlu0 %6094
  %v6096 = vsel %vm1711, %v6030, 0.0
  %6097 = vadd.xlane.f32.xlu0 %v6096
  %v6098 = vpop.xlane.xlu0 %6097
  %v6099 = vsel %vm1711, %v6031, 0.0
  %6100 = vadd.xlane.f32.xlu0 %v6099
  %v6101 = vpop.xlane.xlu0 %6100
  %v6102 = vsel %vm1711, %v6032, 0.0
  %6103 = vadd.xlane.f32.xlu0 %v6102
  %v6104 = vpop.xlane.xlu0 %6103
  %v6105 = vsel %vm1711, %v6033, 0.0
  %6106 = vadd.xlane.f32.xlu0 %v6105
  %v6107 = vpop.xlane.xlu0 %6106
  %v6108 = vsel %vm1711, %v6034, 0.0
  %6109 = vadd.xlane.f32.xlu0 %v6108
  %v6110 = vpop.xlane.xlu0 %6109
  %v6111 = vsel %vm1711, %v6035, 0.0
  %6112 = vadd.xlane.f32.xlu0 %v6111
  %v6113 = vpop.xlane.xlu0 %6112
  %v6114 = vsel %vm1711, %v6036, 0.0
  %6115 = vadd.xlane.f32.xlu0 %v6114
  %v6116 = vpop.xlane.xlu0 %6115
  %v6117 = vsel %vm1711, %v6037, 0.0
  %6118 = vadd.xlane.f32.xlu0 %v6117
  %v6119 = vpop.xlane.xlu0 %6118
  %v6120 = vsel %vm1711, %v6038, 0.0
  %6121 = vadd.xlane.f32.xlu0 %v6120
  %v6122 = vpop.xlane.xlu0 %6121
  %v6123 = vsel %vm1711, %v6039, 0.0
  %6124 = vadd.xlane.f32.xlu0 %v6123
  %v6125 = vpop.xlane.xlu0 %6124
  %v6126 = vsel %vm1711, %v6040, 0.0
  %6127 = vadd.xlane.f32.xlu0 %v6126
  %v6128 = vpop.xlane.xlu0 %6127
  %v6129 = vsel %vm1711, %v6041, 0.0
  %6130 = vadd.xlane.f32.xlu0 %v6129
  %v6131 = vpop.xlane.xlu0 %6130
  %v6132 = vsel %vm1711, %v6042, 0.0
  %6133 = vadd.xlane.f32.xlu0 %v6132
  %v6134 = vpop.xlane.xlu0 %6133
  %v6135 = vsel %vm1711, %v6043, 0.0
  %6136 = vadd.xlane.f32.xlu0 %v6135
  %v6137 = vpop.xlane.xlu0 %6136
  %v6138 = vsel %vm1711, %v6044, 0.0
  %6139 = vadd.xlane.f32.xlu0 %v6138
  %v6140 = vpop.xlane.xlu0 %6139
  %v6141 = vmul.f32 %v6047, %v1808
  %v6142 = vmul.f32 %v6050, %v1808
  %v6143 = vmul.f32 %v6053, %v1808
  %v6144 = vmul.f32 %v6056, %v1808
  %v6145 = vmul.f32 %v6059, %v1808
  %v6146 = vmul.f32 %v6062, %v1808
  %v6147 = vmul.f32 %v6065, %v1808
  %v6148 = vmul.f32 %v6068, %v1808
  %v6149 = vmul.f32 %v6071, %v1808
  %v6150 = vmul.f32 %v6074, %v1808
  %v6151 = vmul.f32 %v6077, %v1808
  %v6152 = vmul.f32 %v6080, %v1808
  %v6153 = vmul.f32 %v6083, %v1808
  %v6154 = vmul.f32 %v6086, %v1808
  %v6155 = vmul.f32 %v6089, %v1808
  %v6156 = vmul.f32 %v6092, %v1808
  %v6157 = vmul.f32 %v6095, %v1808
  %v6158 = vmul.f32 %v6098, %v1808
  %v6159 = vmul.f32 %v6101, %v1808
  %v6160 = vmul.f32 %v6104, %v1808
  %v6161 = vmul.f32 %v6107, %v1808
  %v6162 = vmul.f32 %v6110, %v1808
  %v6163 = vmul.f32 %v6113, %v1808
  %v6164 = vmul.f32 %v6116, %v1808
  %v6165 = vmul.f32 %v6119, %v1808
  %v6166 = vmul.f32 %v6122, %v1808
  %v6167 = vmul.f32 %v6125, %v1808
  %v6168 = vmul.f32 %v6128, %v1808
  %v6169 = vmul.f32 %v6131, %v1808
  %v6170 = vmul.f32 %v6134, %v1808
  %v6171 = vmul.f32 %v6137, %v1808
  %v6172 = vmul.f32 %v6140, %v1808
  %v6173 = vadd.f32 %v6141, 1e-05
  %v6174 = vadd.f32 %v6142, 1e-05
  %v6175 = vadd.f32 %v6143, 1e-05
  %v6176 = vadd.f32 %v6144, 1e-05
  %v6177 = vadd.f32 %v6145, 1e-05
  %v6178 = vadd.f32 %v6146, 1e-05
  %v6179 = vadd.f32 %v6147, 1e-05
  %v6180 = vadd.f32 %v6148, 1e-05
  %v6181 = vadd.f32 %v6149, 1e-05
  %v6182 = vadd.f32 %v6150, 1e-05
  %v6183 = vadd.f32 %v6151, 1e-05
  %v6184 = vadd.f32 %v6152, 1e-05
  %v6185 = vadd.f32 %v6153, 1e-05
  %v6186 = vadd.f32 %v6154, 1e-05
  %v6187 = vadd.f32 %v6155, 1e-05
  %v6188 = vadd.f32 %v6156, 1e-05
  %v6189 = vadd.f32 %v6157, 1e-05
  %v6190 = vadd.f32 %v6158, 1e-05
  %v6191 = vadd.f32 %v6159, 1e-05
  %v6192 = vadd.f32 %v6160, 1e-05
  %v6193 = vadd.f32 %v6161, 1e-05
  %v6194 = vadd.f32 %v6162, 1e-05
  %v6195 = vadd.f32 %v6163, 1e-05
  %v6196 = vadd.f32 %v6164, 1e-05
  %v6197 = vadd.f32 %v6165, 1e-05
  %v6198 = vadd.f32 %v6166, 1e-05
  %v6199 = vadd.f32 %v6167, 1e-05
  %v6200 = vadd.f32 %v6168, 1e-05
  %v6201 = vadd.f32 %v6169, 1e-05
  %v6202 = vadd.f32 %v6170, 1e-05
  %v6203 = vadd.f32 %v6171, 1e-05
  %v6204 = vadd.f32 %v6172, 1e-05
  %v6205 = vrsqrt.pop %v6173
  %v6206 = vrsqrt.pop %v6174
  %v6207 = vrsqrt.pop %v6175
  %v6208 = vrsqrt.pop %v6176
  %v6209 = vrsqrt.pop %v6177
  %v6210 = vrsqrt.pop %v6178
  %v6211 = vrsqrt.pop %v6179
  %v6212 = vrsqrt.pop %v6180
  %v6213 = vrsqrt.pop %v6181
  %v6214 = vrsqrt.pop %v6182
  %v6215 = vrsqrt.pop %v6183
  %v6216 = vrsqrt.pop %v6184
  %v6217 = vrsqrt.pop %v6185
  %v6218 = vrsqrt.pop %v6186
  %v6219 = vrsqrt.pop %v6187
  %v6220 = vrsqrt.pop %v6188
  %v6221 = vrsqrt.pop %v6189
  %v6222 = vrsqrt.pop %v6190
  %v6223 = vrsqrt.pop %v6191
  %v6224 = vrsqrt.pop %v6192
  %v6225 = vrsqrt.pop %v6193
  %v6226 = vrsqrt.pop %v6194
  %v6227 = vrsqrt.pop %v6195
  %v6228 = vrsqrt.pop %v6196
  %v6229 = vrsqrt.pop %v6197
  %v6230 = vrsqrt.pop %v6198
  %v6231 = vrsqrt.pop %v6199
  %v6232 = vrsqrt.pop %v6200
  %v6233 = vrsqrt.pop %v6201
  %v6234 = vrsqrt.pop %v6202
  %v6235 = vrsqrt.pop %v6203
  %v6236 = vrsqrt.pop %v6204
  %v6237 = vmul.f32 %v5981, %v6205
  %v6238 = vmul.f32 %v5982, %v6206
  %v6239 = vmul.f32 %v5983, %v6207
  %v6240 = vmul.f32 %v5984, %v6208
  %v6241 = vmul.f32 %v5985, %v6209
  %v6242 = vmul.f32 %v5986, %v6210
  %v6243 = vmul.f32 %v5987, %v6211
  %v6244 = vmul.f32 %v5988, %v6212
  %v6245 = vmul.f32 %v5989, %v6213
  %v6246 = vmul.f32 %v5990, %v6214
  %v6247 = vmul.f32 %v5991, %v6215
  %v6248 = vmul.f32 %v5992, %v6216
  %v6249 = vmul.f32 %v5993, %v6217
  %v6250 = vmul.f32 %v5994, %v6218
  %v6251 = vmul.f32 %v5995, %v6219
  %v6252 = vmul.f32 %v5996, %v6220
  %v6253 = vmul.f32 %v5997, %v6221
  %v6254 = vmul.f32 %v5998, %v6222
  %v6255 = vmul.f32 %v5999, %v6223
  %v6256 = vmul.f32 %v6000, %v6224
  %v6257 = vmul.f32 %v6001, %v6225
  %v6258 = vmul.f32 %v6002, %v6226
  %v6259 = vmul.f32 %v6003, %v6227
  %v6260 = vmul.f32 %v6004, %v6228
  %v6261 = vmul.f32 %v6005, %v6229
  %v6262 = vmul.f32 %v6006, %v6230
  %v6263 = vmul.f32 %v6007, %v6231
  %v6264 = vmul.f32 %v6008, %v6232
  %v6265 = vmul.f32 %v6009, %v6233
  %v6266 = vmul.f32 %v6010, %v6234
  %v6267 = vmul.f32 %v6011, %v6235
  %v6268 = vmul.f32 %v6012, %v6236
  %v6269 = vlaneseq
  %v6270 = vshrl.u32 %v6269, 7
  %v6271 = vsub.s32 1, %v6270
  %v6272 = vrot.slane %v31, %v6271
  %v6273 = vmul.f32 %v6237, %v6272
  %v6274 = vmul.f32 %v6238, %v6272
  %v6275 = vmul.f32 %v6239, %v6272
  %v6276 = vmul.f32 %v6240, %v6272
  %v6277 = vmul.f32 %v6241, %v6272
  %v6278 = vmul.f32 %v6242, %v6272
  %v6279 = vmul.f32 %v6243, %v6272
  %v6280 = vmul.f32 %v6244, %v6272
  %v6281 = vmul.f32 %v6245, %v6272
  %v6282 = vmul.f32 %v6246, %v6272
  %v6283 = vmul.f32 %v6247, %v6272
  %v6284 = vmul.f32 %v6248, %v6272
  %v6285 = vmul.f32 %v6249, %v6272
  %v6286 = vmul.f32 %v6250, %v6272
  %v6287 = vmul.f32 %v6251, %v6272
  %v6288 = vmul.f32 %v6252, %v6272
  %v6289 = vmul.f32 %v6253, %v6272
  %v6290 = vmul.f32 %v6254, %v6272
  %v6291 = vmul.f32 %v6255, %v6272
  %v6292 = vmul.f32 %v6256, %v6272
  %v6293 = vmul.f32 %v6257, %v6272
  %v6294 = vmul.f32 %v6258, %v6272
  %v6295 = vmul.f32 %v6259, %v6272
  %v6296 = vmul.f32 %v6260, %v6272
  %v6297 = vmul.f32 %v6261, %v6272
  %v6298 = vmul.f32 %v6262, %v6272
  %v6299 = vmul.f32 %v6263, %v6272
  %v6300 = vmul.f32 %v6264, %v6272
  %v6301 = vmul.f32 %v6265, %v6272
  %v6302 = vmul.f32 %v6266, %v6272
  %v6303 = vmul.f32 %v6267, %v6272
  %v6304 = vmul.f32 %v6268, %v6272
  %v6305 = vlaneseq
  %v6306 = vshrl.u32 %v6305, 7
  %v6307 = vsub.s32 2, %v6306
  %v6308 = vrot.slane %v31, %v6307
  %v6309 = vadd.f32 %v6273, %v6308
  %v6310 = vadd.f32 %v6274, %v6308
  %v6311 = vadd.f32 %v6275, %v6308
  %v6312 = vadd.f32 %v6276, %v6308
  %v6313 = vadd.f32 %v6277, %v6308
  %v6314 = vadd.f32 %v6278, %v6308
  %v6315 = vadd.f32 %v6279, %v6308
  %v6316 = vadd.f32 %v6280, %v6308
  %v6317 = vadd.f32 %v6281, %v6308
  %v6318 = vadd.f32 %v6282, %v6308
  %v6319 = vadd.f32 %v6283, %v6308
  %v6320 = vadd.f32 %v6284, %v6308
  %v6321 = vadd.f32 %v6285, %v6308
  %v6322 = vadd.f32 %v6286, %v6308
  %v6323 = vadd.f32 %v6287, %v6308
  %v6324 = vadd.f32 %v6288, %v6308
  %v6325 = vadd.f32 %v6289, %v6308
  %v6326 = vadd.f32 %v6290, %v6308
  %v6327 = vadd.f32 %v6291, %v6308
  %v6328 = vadd.f32 %v6292, %v6308
  %v6329 = vadd.f32 %v6293, %v6308
  %v6330 = vadd.f32 %v6294, %v6308
  %v6331 = vadd.f32 %v6295, %v6308
  %v6332 = vadd.f32 %v6296, %v6308
  %v6333 = vadd.f32 %v6297, %v6308
  %v6334 = vadd.f32 %v6298, %v6308
  %v6335 = vadd.f32 %v6299, %v6308
  %v6336 = vadd.f32 %v6300, %v6308
  %v6337 = vadd.f32 %v6301, %v6308
  %v6338 = vadd.f32 %v6302, %v6308
  %v6339 = vadd.f32 %v6303, %v6308
  %v6340 = vadd.f32 %v6304, %v6308
  %v6341 = vmax.f32 %v6309, 0.0
  %v6342 = vmax.f32 %v6310, 0.0
  %v6343 = vmax.f32 %v6311, 0.0
  %v6344 = vmax.f32 %v6312, 0.0
  %v6345 = vmax.f32 %v6313, 0.0
  %v6346 = vmax.f32 %v6314, 0.0
  %v6347 = vmax.f32 %v6315, 0.0
  %v6348 = vmax.f32 %v6316, 0.0
  %v6349 = vmax.f32 %v6317, 0.0
  %v6350 = vmax.f32 %v6318, 0.0
  %v6351 = vmax.f32 %v6319, 0.0
  %v6352 = vmax.f32 %v6320, 0.0
  %v6353 = vmax.f32 %v6321, 0.0
  %v6354 = vmax.f32 %v6322, 0.0
  %v6355 = vmax.f32 %v6323, 0.0
  %v6356 = vmax.f32 %v6324, 0.0
  %v6357 = vmax.f32 %v6325, 0.0
  %v6358 = vmax.f32 %v6326, 0.0
  %v6359 = vmax.f32 %v6327, 0.0
  %v6360 = vmax.f32 %v6328, 0.0
  %v6361 = vmax.f32 %v6329, 0.0
  %v6362 = vmax.f32 %v6330, 0.0
  %v6363 = vmax.f32 %v6331, 0.0
  %v6364 = vmax.f32 %v6332, 0.0
  %v6365 = vmax.f32 %v6333, 0.0
  %v6366 = vmax.f32 %v6334, 0.0
  %v6367 = vmax.f32 %v6335, 0.0
  %v6368 = vmax.f32 %v6336, 0.0
  %v6369 = vmax.f32 %v6337, 0.0
  %v6370 = vmax.f32 %v6338, 0.0
  %v6371 = vmax.f32 %v6339, 0.0
  %v6372 = vmax.f32 %v6340, 0.0
  %v6373 = vpack.c.bf16 %v6342, %v6341
  %v6374 = vpack.c.bf16 %v6344, %v6343
  %v6375 = vpack.c.bf16 %v6346, %v6345
  %v6376 = vpack.c.bf16 %v6348, %v6347
  %v6377 = vpack.c.bf16 %v6350, %v6349
  %v6378 = vpack.c.bf16 %v6352, %v6351
  %v6379 = vpack.c.bf16 %v6354, %v6353
  %v6380 = vpack.c.bf16 %v6356, %v6355
  %v6381 = vpack.c.bf16 %v6358, %v6357
  %v6382 = vpack.c.bf16 %v6360, %v6359
  %v6383 = vpack.c.bf16 %v6362, %v6361
  %v6384 = vpack.c.bf16 %v6364, %v6363
  %v6385 = vpack.c.bf16 %v6366, %v6365
  %v6386 = vpack.c.bf16 %v6368, %v6367
  %v6387 = vpack.c.bf16 %v6370, %v6369
  %v6388 = vpack.c.bf16 %v6372, %v6371
  %s6389 = scalar_lea.vmem %s4, 64
  %v6390 = vld [vmem:[%s6389] sm:$0xf]
  %v6391 = vld [vmem:[%s6389 + $0x4] sm:$0xf]
  %v6392 = vld [vmem:[%s6389 + $0x8] sm:$0xf]
  %v6393 = vld [vmem:[%s6389 + $0xc] sm:$0xf]
  %v6394 = vlaneseq
  %v6395 = vshrl.u32 %v6394, 7
  %v6396 = vsub.s32 3, %v6395
  %v6397 = vrot.slane %v31, %v6396
  %v6402 = vunpack.c.l.b16 %v6390
  %v6403 = vunpack.c.l.b16 %v6391
  %v6404 = vunpack.c.l.b16 %v6392
  %v6405 = vunpack.c.l.b16 %v6393
  %v6406 = vpack.c.b16 %v6403, %v6402
  %v6407 = vpack.c.b16 %v6405, %v6404
  %v6411 = vsel %vm1711, %v6373, 0
  %v6414 = vsel %vm1711, %v6374, 0
  %v6417 = vsel %vm1711, %v6375, 0
  %v6420 = vsel %vm1711, %v6376, 0
  %v6423 = vsel %vm1711, %v6377, 0
  %v6426 = vsel %vm1711, %v6378, 0
  %v6429 = vsel %vm1711, %v6379, 0
  %v6432 = vsel %vm1711, %v6380, 0
  %v6435 = vsel %vm1711, %v6381, 0
  %v6438 = vsel %vm1711, %v6382, 0
  %v6441 = vsel %vm1711, %v6383, 0
  %v6444 = vsel %vm1711, %v6384, 0
  %v6447 = vsel %vm1711, %v6385, 0
  %v6450 = vsel %vm1711, %v6386, 0
  %v6453 = vsel %vm1711, %v6387, 0
  %v6456 = vsel %vm1711, %v6388, 0
  %6458 = vmatprep.subr.bf16.mxu0 0
  %6459 = vmatpush1.bf16.msra.mxu0 %v6406
  %6460 = vmatprep.subr.bf16.mxu0 0
  %6461 = vmatpush1.bf16.msra.mxu0 %v6407
  %6462 = vmatprep.subr.bf16.mxu0 0
  %6463 = vmatpush1.bf16.msra.mxu0 0
  %6464 = vmatprep.subr.bf16.mxu0 0
  %6465 = vmatpush1.bf16.msra.mxu0 0
  %6466 = vmatprep.subr.bf16.mxu0 0
  %6467 = vmatpush1.bf16.msra.mxu0 0
  %6468 = vmatprep.subr.bf16.mxu0 0
  %6469 = vmatpush1.bf16.msra.mxu0 0
  %6470 = vmatprep.subr.bf16.mxu0 0
  %6471 = vmatpush1.bf16.msra.mxu0 0
  %6472 = vmatprep.subr.bf16.mxu0 0
  %6473 = vmatpush1.bf16.msra.mxu0 0
  %6474 = vmatprep.subr.bf16.mxu0 0
  %6475 = vmatpush1.bf16.msra.mxu0 0
  %6476 = vmatprep.subr.bf16.mxu0 0
  %6477 = vmatpush1.bf16.msra.mxu0 0
  %6478 = vmatprep.subr.bf16.mxu0 0
  %6479 = vmatpush1.bf16.msra.mxu0 0
  %6480 = vmatprep.subr.bf16.mxu0 0
  %6481 = vmatpush1.bf16.msra.mxu0 0
  %6482 = vmatprep.subr.bf16.mxu0 0
  %6483 = vmatpush1.bf16.msra.mxu0 0
  %6484 = vmatprep.subr.bf16.mxu0 0
  %6485 = vmatpush1.bf16.msra.mxu0 0
  %6486 = vmatprep.subr.bf16.mxu0 0
  %6487 = vmatpush1.bf16.msra.mxu0 0
  %6488 = vmatprep.subr.bf16.mxu0 0
  %6489 = vmatpush1.bf16.msra.mxu0 0
  %6490 = vmatprep.mubr.bf16.mxu0 0
  %6491 = vmatmul.mubr.bf16.gmra.mrb[0].mxu0 %v6411
  %v6492 = vpop.f32.mrb[0].mxu0
  %v6493 = vadd.f32 %v6397, %v6492
  %v6494 = vpop.f32.mrb[0].mxu0
  %v6495 = vpop.f32.mrb[0].mxu0
  %v6496 = vadd.f32 %v6397, %v6495
  %v6497 = vpop.f32.mrb[0].mxu0
  %6498 = vmatprep.mubr.bf16.mxu0 0
  %6499 = vmatmul.mubr.bf16.gmra.mrb[0].mxu0 %v6414
  %v6500 = vpop.f32.mrb[0].mxu0
  %v6501 = vadd.f32 %v6397, %v6500
  %v6502 = vpop.f32.mrb[0].mxu0
  %v6503 = vpop.f32.mrb[0].mxu0
  %v6504 = vadd.f32 %v6397, %v6503
  %v6505 = vpop.f32.mrb[0].mxu0
  %6506 = vmatprep.mubr.bf16.mxu0 0
  %6507 = vmatmul.mubr.bf16.gmra.mrb[0].mxu0 %v6417
  %v6508 = vpop.f32.mrb[0].mxu0
  %v6509 = vadd.f32 %v6397, %v6508
  %v6510 = vpop.f32.mrb[0].mxu0
  %v6511 = vpop.f32.mrb[0].mxu0
  %v6512 = vadd.f32 %v6397, %v6511
  %v6513 = vpop.f32.mrb[0].mxu0
  %6514 = vmatprep.mubr.bf16.mxu0 0
  %6515 = vmatmul.mubr.bf16.gmra.mrb[0].mxu0 %v6420
  %v6516 = vpop.f32.mrb[0].mxu0
  %v6517 = vadd.f32 %v6397, %v6516
  %v6518 = vpop.f32.mrb[0].mxu0
  %v6519 = vpop.f32.mrb[0].mxu0
  %v6520 = vadd.f32 %v6397, %v6519
  %v6521 = vpop.f32.mrb[0].mxu0
  %6522 = vmatprep.mubr.bf16.mxu0 0
  %6523 = vmatmul.mubr.bf16.gmra.mrb[0].mxu0 %v6423
  %v6524 = vpop.f32.mrb[0].mxu0
  %v6525 = vadd.f32 %v6397, %v6524
  %v6526 = vpop.f32.mrb[0].mxu0
  %v6527 = vpop.f32.mrb[0].mxu0
  %v6528 = vadd.f32 %v6397, %v6527
  %v6529 = vpop.f32.mrb[0].mxu0
  %6530 = vmatprep.mubr.bf16.mxu0 0
  %6531 = vmatmul.mubr.bf16.gmra.mrb[0].mxu0 %v6426
  %v6532 = vpop.f32.mrb[0].mxu0
  %v6533 = vadd.f32 %v6397, %v6532
  %v6534 = vpop.f32.mrb[0].mxu0
  %v6535 = vpop.f32.mrb[0].mxu0
  %v6536 = vadd.f32 %v6397, %v6535
  %v6537 = vpop.f32.mrb[0].mxu0
  %6538 = vmatprep.mubr.bf16.mxu0 0
  %6539 = vmatmul.mubr.bf16.gmra.mrb[0].mxu0 %v6429
  %v6540 = vpop.f32.mrb[0].mxu0
  %v6541 = vadd.f32 %v6397, %v6540
  %v6542 = vpop.f32.mrb[0].mxu0
  %v6543 = vpop.f32.mrb[0].mxu0
  %v6544 = vadd.f32 %v6397, %v6543
  %v6545 = vpop.f32.mrb[0].mxu0
  %6546 = vmatprep.mubr.bf16.mxu0 0
  %6547 = vmatmul.mubr.bf16.gmra.mrb[0].mxu0 %v6432
  %v6548 = vpop.f32.mrb[0].mxu0
  %v6549 = vadd.f32 %v6397, %v6548
  %v6550 = vpop.f32.mrb[0].mxu0
  %v6551 = vpop.f32.mrb[0].mxu0
  %v6552 = vadd.f32 %v6397, %v6551
  %v6553 = vpop.f32.mrb[0].mxu0
  %6554 = vmatprep.mubr.bf16.mxu0 0
  %6555 = vmatmul.mubr.bf16.gmra.mrb[0].mxu0 %v6435
  %v6556 = vpop.f32.mrb[0].mxu0
  %v6557 = vadd.f32 %v6397, %v6556
  %v6558 = vpop.f32.mrb[0].mxu0
  %v6559 = vpop.f32.mrb[0].mxu0
  %v6560 = vadd.f32 %v6397, %v6559
  %v6561 = vpop.f32.mrb[0].mxu0
  %6562 = vmatprep.mubr.bf16.mxu0 0
  %6563 = vmatmul.mubr.bf16.gmra.mrb[0].mxu0 %v6438
  %v6564 = vpop.f32.mrb[0].mxu0
  %v6565 = vadd.f32 %v6397, %v6564
  %v6566 = vpop.f32.mrb[0].mxu0
  %v6567 = vpop.f32.mrb[0].mxu0
  %v6568 = vadd.f32 %v6397, %v6567
  %v6569 = vpop.f32.mrb[0].mxu0
  %6570 = vmatprep.mubr.bf16.mxu0 0
  %6571 = vmatmul.mubr.bf16.gmra.mrb[0].mxu0 %v6441
  %v6572 = vpop.f32.mrb[0].mxu0
  %v6573 = vadd.f32 %v6397, %v6572
  %v6574 = vpop.f32.mrb[0].mxu0
  %v6575 = vpop.f32.mrb[0].mxu0
  %v6576 = vadd.f32 %v6397, %v6575
  %v6577 = vpop.f32.mrb[0].mxu0
  %6578 = vmatprep.mubr.bf16.mxu0 0
  %6579 = vmatmul.mubr.bf16.gmra.mrb[0].mxu0 %v6444
  %v6580 = vpop.f32.mrb[0].mxu0
  %v6581 = vadd.f32 %v6397, %v6580
  %v6582 = vpop.f32.mrb[0].mxu0
  %v6583 = vpop.f32.mrb[0].mxu0
  %v6584 = vadd.f32 %v6397, %v6583
  %v6585 = vpop.f32.mrb[0].mxu0
  %6586 = vmatprep.mubr.bf16.mxu0 0
  %6587 = vmatmul.mubr.bf16.gmra.mrb[0].mxu0 %v6447
  %v6588 = vpop.f32.mrb[0].mxu0
  %v6589 = vadd.f32 %v6397, %v6588
  %v6590 = vpop.f32.mrb[0].mxu0
  %v6591 = vpop.f32.mrb[0].mxu0
  %v6592 = vadd.f32 %v6397, %v6591
  %v6593 = vpop.f32.mrb[0].mxu0
  %6594 = vmatprep.mubr.bf16.mxu0 0
  %6595 = vmatmul.mubr.bf16.gmra.mrb[0].mxu0 %v6450
  %v6596 = vpop.f32.mrb[0].mxu0
  %v6597 = vadd.f32 %v6397, %v6596
  %v6598 = vpop.f32.mrb[0].mxu0
  %v6599 = vpop.f32.mrb[0].mxu0
  %v6600 = vadd.f32 %v6397, %v6599
  %v6601 = vpop.f32.mrb[0].mxu0
  %6602 = vmatprep.mubr.bf16.mxu0 0
  %6603 = vmatmul.mubr.bf16.gmra.mrb[0].mxu0 %v6453
  %v6604 = vpop.f32.mrb[0].mxu0
  %v6605 = vadd.f32 %v6397, %v6604
  %v6606 = vpop.f32.mrb[0].mxu0
  %v6607 = vpop.f32.mrb[0].mxu0
  %v6608 = vadd.f32 %v6397, %v6607
  %v6609 = vpop.f32.mrb[0].mxu0
  %6610 = vmatprep.mubr.bf16.mxu0 0
  %6611 = vmatmul.mubr.bf16.gmra.mrb[0].mxu0 %v6456
  %v6612 = vpop.f32.mrb[0].mxu0
  %v6613 = vadd.f32 %v6397, %v6612
  %v6614 = vpop.f32.mrb[0].mxu0
  %v6615 = vpop.f32.mrb[0].mxu0
  %v6616 = vadd.f32 %v6397, %v6615
  %v6617 = vpop.f32.mrb[0].mxu0
  %6618 = vdwg.mxu0
  %v6619 = vadd.f32 %v6493, %v2352
  %v6620 = vadd.f32 %v6496, %v2355
  %v6621 = vadd.f32 %v6501, %v2360
  %v6622 = vadd.f32 %v6504, %v2363
  %v6623 = vadd.f32 %v6509, %v2368
  %v6624 = vadd.f32 %v6512, %v2371
  %v6625 = vadd.f32 %v6517, %v2376
  %v6626 = vadd.f32 %v6520, %v2379
  %v6627 = vadd.f32 %v6525, %v2384
  %v6628 = vadd.f32 %v6528, %v2387
  %v6629 = vadd.f32 %v6533, %v2392
  %v6630 = vadd.f32 %v6536, %v2395
  %v6631 = vadd.f32 %v6541, %v2400
  %v6632 = vadd.f32 %v6544, %v2403
  %v6633 = vadd.f32 %v6549, %v2408
  %v6634 = vadd.f32 %v6552, %v2411
  %v6635 = vadd.f32 %v6557, %v2416
  %v6636 = vadd.f32 %v6560, %v2419
  %v6637 = vadd.f32 %v6565, %v2424
  %v6638 = vadd.f32 %v6568, %v2427
  %v6639 = vadd.f32 %v6573, %v2432
  %v6640 = vadd.f32 %v6576, %v2435
  %v6641 = vadd.f32 %v6581, %v2440
  %v6642 = vadd.f32 %v6584, %v2443
  %v6643 = vadd.f32 %v6589, %v2448
  %v6644 = vadd.f32 %v6592, %v2451
  %v6645 = vadd.f32 %v6597, %v2456
  %v6646 = vadd.f32 %v6600, %v2459
  %v6647 = vadd.f32 %v6605, %v2464
  %v6648 = vadd.f32 %v6608, %v2467
  %v6649 = vadd.f32 %v6613, %v2472
  %v6650 = vadd.f32 %v6616, %v2475
  %v6651 = vpack.c.bf16 %v6620, %v6619
  %v6652 = vpack.c.bf16 %v6622, %v6621
  %v6653 = vpack.c.bf16 %v6624, %v6623
  %v6654 = vpack.c.bf16 %v6626, %v6625
  %v6655 = vpack.c.bf16 %v6628, %v6627
  %v6656 = vpack.c.bf16 %v6630, %v6629
  %v6657 = vpack.c.bf16 %v6632, %v6631
  %v6658 = vpack.c.bf16 %v6634, %v6633
  %v6659 = vpack.c.bf16 %v6636, %v6635
  %v6660 = vpack.c.bf16 %v6638, %v6637
  %v6661 = vpack.c.bf16 %v6640, %v6639
  %v6662 = vpack.c.bf16 %v6642, %v6641
  %v6663 = vpack.c.bf16 %v6644, %v6643
  %v6664 = vpack.c.bf16 %v6646, %v6645
  %v6665 = vpack.c.bf16 %v6648, %v6647
  %v6666 = vpack.c.bf16 %v6650, %v6649
  %s6667 = scalar_lea.vmem %s5, 16
  %v6668 = vld [vmem:[%s6667] sm:$0xf]
  %v6669 = vld [vmem:[%s6667 + $0x4] sm:$0xf]
  %v6670 = vld [vmem:[%s6667 + $0x8] sm:$0xf]
  %v6671 = vld [vmem:[%s6667 + $0xc] sm:$0xf]
  %v6676 = vunpack.c.l.b16 %v6668
  %v6677 = vunpack.c.l.b16 %v6669
  %v6678 = vunpack.c.l.b16 %v6670
  %v6679 = vunpack.c.l.b16 %v6671
  %v6680 = vpack.c.b16 %v6677, %v6676
  %v6681 = vpack.c.b16 %v6679, %v6678
  %v6685 = vsel %vm1711, %v6651, 0
  %v6688 = vsel %vm1711, %v6652, 0
  %v6691 = vsel %vm1711, %v6653, 0
  %v6694 = vsel %vm1711, %v6654, 0
  %v6697 = vsel %vm1711, %v6655, 0
  %v6700 = vsel %vm1711, %v6656, 0
  %v6703 = vsel %vm1711, %v6657, 0
  %v6706 = vsel %vm1711, %v6658, 0
  %v6709 = vsel %vm1711, %v6659, 0
  %v6712 = vsel %vm1711, %v6660, 0
  %v6715 = vsel %vm1711, %v6661, 0
  %v6718 = vsel %vm1711, %v6662, 0
  %v6721 = vsel %vm1711, %v6663, 0
  %v6724 = vsel %vm1711, %v6664, 0
  %v6727 = vsel %vm1711, %v6665, 0
  %v6730 = vsel %vm1711, %v6666, 0
  %6732 = vmatprep.subr.bf16.mxu0 0
  %6733 = vmatpush1.bf16.msra.mxu0 %v6680
  %6734 = vmatprep.subr.bf16.mxu0 0
  %6735 = vmatpush1.bf16.msra.mxu0 %v6681
  %6736 = vmatprep.subr.bf16.mxu0 0
  %6737 = vmatpush1.bf16.msra.mxu0 0
  %6738 = vmatprep.subr.bf16.mxu0 0
  %6739 = vmatpush1.bf16.msra.mxu0 0
  %6740 = vmatprep.subr.bf16.mxu0 0
  %6741 = vmatpush1.bf16.msra.mxu0 0
  %6742 = vmatprep.subr.bf16.mxu0 0
  %6743 = vmatpush1.bf16.msra.mxu0 0
  %6744 = vmatprep.subr.bf16.mxu0 0
  %6745 = vmatpush1.bf16.msra.mxu0 0
  %6746 = vmatprep.subr.bf16.mxu0 0
  %6747 = vmatpush1.bf16.msra.mxu0 0
  %6748 = vmatprep.subr.bf16.mxu0 0
  %6749 = vmatpush1.bf16.msra.mxu0 0
  %6750 = vmatprep.subr.bf16.mxu0 0
  %6751 = vmatpush1.bf16.msra.mxu0 0
  %6752 = vmatprep.subr.bf16.mxu0 0
  %6753 = vmatpush1.bf16.msra.mxu0 0
  %6754 = vmatprep.subr.bf16.mxu0 0
  %6755 = vmatpush1.bf16.msra.mxu0 0
  %6756 = vmatprep.subr.bf16.mxu0 0
  %6757 = vmatpush1.bf16.msra.mxu0 0
  %6758 = vmatprep.subr.bf16.mxu0 0
  %6759 = vmatpush1.bf16.msra.mxu0 0
  %6760 = vmatprep.subr.bf16.mxu0 0
  %6761 = vmatpush1.bf16.msra.mxu0 0
  %6762 = vmatprep.subr.bf16.mxu0 0
  %6763 = vmatpush1.bf16.msra.mxu0 0
  %6764 = vmatprep.mubr.bf16.mxu0 0
  %6765 = vmatmul.mubr.bf16.gmra.mrb[0].mxu0 %v6685
  %v6766 = vpop.f32.mrb[0].mxu0
  %v6767 = vadd.f32 0.0, %v6766
  %v6768 = vpop.f32.mrb[0].mxu0
  %v6769 = vpop.f32.mrb[0].mxu0
  %v6770 = vadd.f32 0.0, %v6769
  %v6771 = vpop.f32.mrb[0].mxu0
  %6772 = vmatprep.mubr.bf16.mxu0 0
  %6773 = vmatmul.mubr.bf16.gmra.mrb[0].mxu0 %v6688
  %v6774 = vpop.f32.mrb[0].mxu0
  %v6775 = vadd.f32 0.0, %v6774
  %v6776 = vpop.f32.mrb[0].mxu0
  %v6777 = vpop.f32.mrb[0].mxu0
  %v6778 = vadd.f32 0.0, %v6777
  %v6779 = vpop.f32.mrb[0].mxu0
  %6780 = vmatprep.mubr.bf16.mxu0 0
  %6781 = vmatmul.mubr.bf16.gmra.mrb[0].mxu0 %v6691
  %v6782 = vpop.f32.mrb[0].mxu0
  %v6783 = vadd.f32 0.0, %v6782
  %v6784 = vpop.f32.mrb[0].mxu0
  %v6785 = vpop.f32.mrb[0].mxu0
  %v6786 = vadd.f32 0.0, %v6785
  %v6787 = vpop.f32.mrb[0].mxu0
  %6788 = vmatprep.mubr.bf16.mxu0 0
  %6789 = vmatmul.mubr.bf16.gmra.mrb[0].mxu0 %v6694
  %v6790 = vpop.f32.mrb[0].mxu0
  %v6791 = vadd.f32 0.0, %v6790
  %v6792 = vpop.f32.mrb[0].mxu0
  %v6793 = vpop.f32.mrb[0].mxu0
  %v6794 = vadd.f32 0.0, %v6793
  %v6795 = vpop.f32.mrb[0].mxu0
  %6796 = vmatprep.mubr.bf16.mxu0 0
  %6797 = vmatmul.mubr.bf16.gmra.mrb[0].mxu0 %v6697
  %v6798 = vpop.f32.mrb[0].mxu0
  %v6799 = vadd.f32 0.0, %v6798
  %v6800 = vpop.f32.mrb[0].mxu0
  %v6801 = vpop.f32.mrb[0].mxu0
  %v6802 = vadd.f32 0.0, %v6801
  %v6803 = vpop.f32.mrb[0].mxu0
  %6804 = vmatprep.mubr.bf16.mxu0 0
  %6805 = vmatmul.mubr.bf16.gmra.mrb[0].mxu0 %v6700
  %v6806 = vpop.f32.mrb[0].mxu0
  %v6807 = vadd.f32 0.0, %v6806
  %v6808 = vpop.f32.mrb[0].mxu0
  %v6809 = vpop.f32.mrb[0].mxu0
  %v6810 = vadd.f32 0.0, %v6809
  %v6811 = vpop.f32.mrb[0].mxu0
  %6812 = vmatprep.mubr.bf16.mxu0 0
  %6813 = vmatmul.mubr.bf16.gmra.mrb[0].mxu0 %v6703
  %v6814 = vpop.f32.mrb[0].mxu0
  %v6815 = vadd.f32 0.0, %v6814
  %v6816 = vpop.f32.mrb[0].mxu0
  %v6817 = vpop.f32.mrb[0].mxu0
  %v6818 = vadd.f32 0.0, %v6817
  %v6819 = vpop.f32.mrb[0].mxu0
  %6820 = vmatprep.mubr.bf16.mxu0 0
  %6821 = vmatmul.mubr.bf16.gmra.mrb[0].mxu0 %v6706
  %v6822 = vpop.f32.mrb[0].mxu0
  %v6823 = vadd.f32 0.0, %v6822
  %v6824 = vpop.f32.mrb[0].mxu0
  %v6825 = vpop.f32.mrb[0].mxu0
  %v6826 = vadd.f32 0.0, %v6825
  %v6827 = vpop.f32.mrb[0].mxu0
  %6828 = vmatprep.mubr.bf16.mxu0 0
  %6829 = vmatmul.mubr.bf16.gmra.mrb[0].mxu0 %v6709
  %v6830 = vpop.f32.mrb[0].mxu0
  %v6831 = vadd.f32 0.0, %v6830
  %v6832 = vpop.f32.mrb[0].mxu0
  %v6833 = vpop.f32.mrb[0].mxu0
  %v6834 = vadd.f32 0.0, %v6833
  %v6835 = vpop.f32.mrb[0].mxu0
  %6836 = vmatprep.mubr.bf16.mxu0 0
  %6837 = vmatmul.mubr.bf16.gmra.mrb[0].mxu0 %v6712
  %v6838 = vpop.f32.mrb[0].mxu0
  %v6839 = vadd.f32 0.0, %v6838
  %v6840 = vpop.f32.mrb[0].mxu0
  %v6841 = vpop.f32.mrb[0].mxu0
  %v6842 = vadd.f32 0.0, %v6841
  %v6843 = vpop.f32.mrb[0].mxu0
  %6844 = vmatprep.mubr.bf16.mxu0 0
  %6845 = vmatmul.mubr.bf16.gmra.mrb[0].mxu0 %v6715
  %v6846 = vpop.f32.mrb[0].mxu0
  %v6847 = vadd.f32 0.0, %v6846
  %v6848 = vpop.f32.mrb[0].mxu0
  %v6849 = vpop.f32.mrb[0].mxu0
  %v6850 = vadd.f32 0.0, %v6849
  %v6851 = vpop.f32.mrb[0].mxu0
  %6852 = vmatprep.mubr.bf16.mxu0 0
  %6853 = vmatmul.mubr.bf16.gmra.mrb[0].mxu0 %v6718
  %v6854 = vpop.f32.mrb[0].mxu0
  %v6855 = vadd.f32 0.0, %v6854
  %v6856 = vpop.f32.mrb[0].mxu0
  %v6857 = vpop.f32.mrb[0].mxu0
  %v6858 = vadd.f32 0.0, %v6857
  %v6859 = vpop.f32.mrb[0].mxu0
  %6860 = vmatprep.mubr.bf16.mxu0 0
  %6861 = vmatmul.mubr.bf16.gmra.mrb[0].mxu0 %v6721
  %v6862 = vpop.f32.mrb[0].mxu0
  %v6863 = vadd.f32 0.0, %v6862
  %v6864 = vpop.f32.mrb[0].mxu0
  %v6865 = vpop.f32.mrb[0].mxu0
  %v6866 = vadd.f32 0.0, %v6865
  %v6867 = vpop.f32.mrb[0].mxu0
  %6868 = vmatprep.mubr.bf16.mxu0 0
  %6869 = vmatmul.mubr.bf16.gmra.mrb[0].mxu0 %v6724
  %v6870 = vpop.f32.mrb[0].mxu0
  %v6871 = vadd.f32 0.0, %v6870
  %v6872 = vpop.f32.mrb[0].mxu0
  %v6873 = vpop.f32.mrb[0].mxu0
  %v6874 = vadd.f32 0.0, %v6873
  %v6875 = vpop.f32.mrb[0].mxu0
  %6876 = vmatprep.mubr.bf16.mxu0 0
  %6877 = vmatmul.mubr.bf16.gmra.mrb[0].mxu0 %v6727
  %v6878 = vpop.f32.mrb[0].mxu0
  %v6879 = vadd.f32 0.0, %v6878
  %v6880 = vpop.f32.mrb[0].mxu0
  %v6881 = vpop.f32.mrb[0].mxu0
  %v6882 = vadd.f32 0.0, %v6881
  %v6883 = vpop.f32.mrb[0].mxu0
  %6884 = vmatprep.mubr.bf16.mxu0 0
  %6885 = vmatmul.mubr.bf16.gmra.mrb[0].mxu0 %v6730
  %v6886 = vpop.f32.mrb[0].mxu0
  %v6887 = vadd.f32 0.0, %v6886
  %v6888 = vpop.f32.mrb[0].mxu0
  %v6889 = vpop.f32.mrb[0].mxu0
  %v6890 = vadd.f32 0.0, %v6889
  %v6891 = vpop.f32.mrb[0].mxu0
  %6892 = vdwg.mxu0
  %v6893 = vpack.c.bf16 %v6770, %v6767
  %v6894 = vpack.c.bf16 %v6778, %v6775
  %v6895 = vpack.c.bf16 %v6786, %v6783
  %v6896 = vpack.c.bf16 %v6794, %v6791
  %v6897 = vpack.c.bf16 %v6802, %v6799
  %v6898 = vpack.c.bf16 %v6810, %v6807
  %v6899 = vpack.c.bf16 %v6818, %v6815
  %v6900 = vpack.c.bf16 %v6826, %v6823
  %v6901 = vpack.c.bf16 %v6834, %v6831
  %v6902 = vpack.c.bf16 %v6842, %v6839
  %v6903 = vpack.c.bf16 %v6850, %v6847
  %v6904 = vpack.c.bf16 %v6858, %v6855
  %v6905 = vpack.c.bf16 %v6866, %v6863
  %v6906 = vpack.c.bf16 %v6874, %v6871
  %v6907 = vpack.c.bf16 %v6882, %v6879
  %v6908 = vpack.c.bf16 %v6890, %v6887
  %6925 = vrot.lane.b32.xlu0 %v6893, 96
  %v6926 = vpop.permute.xlu0 %6925
  %6927 = vrot.lane.b32.xlu0 %v6894, 96
  %v6928 = vpop.permute.xlu0 %6927
  %6929 = vrot.lane.b32.xlu0 %v6895, 96
  %v6930 = vpop.permute.xlu0 %6929
  %6931 = vrot.lane.b32.xlu0 %v6896, 96
  %v6932 = vpop.permute.xlu0 %6931
  %6933 = vrot.lane.b32.xlu0 %v6897, 96
  %v6934 = vpop.permute.xlu0 %6933
  %6935 = vrot.lane.b32.xlu0 %v6898, 96
  %v6936 = vpop.permute.xlu0 %6935
  %6937 = vrot.lane.b32.xlu0 %v6899, 96
  %v6938 = vpop.permute.xlu0 %6937
  %6939 = vrot.lane.b32.xlu0 %v6900, 96
  %v6940 = vpop.permute.xlu0 %6939
  %6941 = vrot.lane.b32.xlu0 %v6901, 96
  %v6942 = vpop.permute.xlu0 %6941
  %6943 = vrot.lane.b32.xlu0 %v6902, 96
  %v6944 = vpop.permute.xlu0 %6943
  %6945 = vrot.lane.b32.xlu0 %v6903, 96
  %v6946 = vpop.permute.xlu0 %6945
  %6947 = vrot.lane.b32.xlu0 %v6904, 96
  %v6948 = vpop.permute.xlu0 %6947
  %6949 = vrot.lane.b32.xlu0 %v6905, 96
  %v6950 = vpop.permute.xlu0 %6949
  %6951 = vrot.lane.b32.xlu0 %v6906, 96
  %v6952 = vpop.permute.xlu0 %6951
  %6953 = vrot.lane.b32.xlu0 %v6907, 96
  %v6954 = vpop.permute.xlu0 %6953
  %6955 = vrot.lane.b32.xlu0 %v6908, 96
  %v6956 = vpop.permute.xlu0 %6955
  %6973 = vmatprep.subr.bf16.mxu0 0
  %6974 = vmatpush1.bf16.msra.mxu0 %v6926
  %6975 = vmatprep.subr.bf16.mxu0 0
  %6976 = vmatpush1.bf16.msra.mxu0 %v6928
  %6977 = vmatprep.subr.bf16.mxu0 0
  %6978 = vmatpush1.bf16.msra.mxu0 %v6930
  %6979 = vmatprep.subr.bf16.mxu0 0
  %6980 = vmatpush1.bf16.msra.mxu0 %v6932
  %6981 = vmatprep.subr.bf16.mxu0 0
  %6982 = vmatpush1.bf16.msra.mxu0 %v6934
  %6983 = vmatprep.subr.bf16.mxu0 0
  %6984 = vmatpush1.bf16.msra.mxu0 %v6936
  %6985 = vmatprep.subr.bf16.mxu0 0
  %6986 = vmatpush1.bf16.msra.mxu0 %v6938
  %6987 = vmatprep.subr.bf16.mxu0 0
  %6988 = vmatpush1.bf16.msra.mxu0 %v6940
  %6989 = vmatprep.subr.bf16.mxu0 0
  %6990 = vmatpush1.bf16.msra.mxu0 %v6942
  %6991 = vmatprep.subr.bf16.mxu0 0
  %6992 = vmatpush1.bf16.msra.mxu0 %v6944
  %6993 = vmatprep.subr.bf16.mxu0 0
  %6994 = vmatpush1.bf16.msra.mxu0 %v6946
  %6995 = vmatprep.subr.bf16.mxu0 0
  %6996 = vmatpush1.bf16.msra.mxu0 %v6948
  %6997 = vmatprep.subr.bf16.mxu0 0
  %6998 = vmatpush1.bf16.msra.mxu0 %v6950
  %6999 = vmatprep.subr.bf16.mxu0 0
  %7000 = vmatpush1.bf16.msra.mxu0 %v6952
  %7001 = vmatprep.subr.bf16.mxu0 0
  %7002 = vmatpush1.bf16.msra.mxu0 %v6954
  %7003 = vmatprep.subr.bf16.mxu0 0
  %7004 = vmatpush1.bf16.msra.mxu0 %v6956
  %7005 = vmatprep.mubr.bf16.mxu0 %v1381
  %7006 = vmatmul.mubr.bf16.gmra.mrb[0].mxu0 %v1380
  %v7007 = vpop.f32.mrb[0].mxu0
  %v7008 = vadd.f32 0.0, %v7007
  %v7009 = vpop.f32.mrb[0].mxu0
  %v7010 = vpop.f32.mrb[0].mxu0
  %v7011 = vadd.f32 0.0, %v7010
  %v7012 = vpop.f32.mrb[0].mxu0
  %7013 = vmatprep.mubr.bf16.mxu0 %v1383
  %7014 = vmatmul.mubr.bf16.gmra.mrb[0].mxu0 %v1382
  %v7015 = vpop.f32.mrb[0].mxu0
  %v7016 = vadd.f32 0.0, %v7015
  %v7017 = vpop.f32.mrb[0].mxu0
  %v7018 = vpop.f32.mrb[0].mxu0
  %v7019 = vadd.f32 0.0, %v7018
  %v7020 = vpop.f32.mrb[0].mxu0
  %7021 = vmatprep.mubr.bf16.mxu0 %v1385
  %7022 = vmatmul.mubr.bf16.gmra.mrb[0].mxu0 %v1384
  %v7023 = vpop.f32.mrb[0].mxu0
  %v7024 = vadd.f32 0.0, %v7023
  %v7025 = vpop.f32.mrb[0].mxu0
  %v7026 = vpop.f32.mrb[0].mxu0
  %v7027 = vadd.f32 0.0, %v7026
  %v7028 = vpop.f32.mrb[0].mxu0
  %7029 = vmatprep.mubr.bf16.mxu0 %v1387
  %7030 = vmatmul.mubr.bf16.gmra.mrb[0].mxu0 %v1386
  %v7031 = vpop.f32.mrb[0].mxu0
  %v7032 = vadd.f32 0.0, %v7031
  %v7033 = vpop.f32.mrb[0].mxu0
  %v7034 = vpop.f32.mrb[0].mxu0
  %v7035 = vadd.f32 0.0, %v7034
  %v7036 = vpop.f32.mrb[0].mxu0
  %7037 = vmatprep.mubr.bf16.mxu0 %v1389
  %7038 = vmatmul.mubr.bf16.gmra.mrb[0].mxu0 %v1388
  %v7039 = vpop.f32.mrb[0].mxu0
  %v7040 = vadd.f32 0.0, %v7039
  %v7041 = vpop.f32.mrb[0].mxu0
  %v7042 = vpop.f32.mrb[0].mxu0
  %v7043 = vadd.f32 0.0, %v7042
  %v7044 = vpop.f32.mrb[0].mxu0
  %7045 = vmatprep.mubr.bf16.mxu0 %v1391
  %7046 = vmatmul.mubr.bf16.gmra.mrb[0].mxu0 %v1390
  %v7047 = vpop.f32.mrb[0].mxu0
  %v7048 = vadd.f32 0.0, %v7047
  %v7049 = vpop.f32.mrb[0].mxu0
  %v7050 = vpop.f32.mrb[0].mxu0
  %v7051 = vadd.f32 0.0, %v7050
  %v7052 = vpop.f32.mrb[0].mxu0
  %7053 = vmatprep.mubr.bf16.mxu0 %v1393
  %7054 = vmatmul.mubr.bf16.gmra.mrb[0].mxu0 %v1392
  %v7055 = vpop.f32.mrb[0].mxu0
  %v7056 = vadd.f32 0.0, %v7055
  %v7057 = vpop.f32.mrb[0].mxu0
  %v7058 = vpop.f32.mrb[0].mxu0
  %v7059 = vadd.f32 0.0, %v7058
  %v7060 = vpop.f32.mrb[0].mxu0
  %7061 = vmatprep.mubr.bf16.mxu0 %v1395
  %7062 = vmatmul.mubr.bf16.gmra.mrb[0].mxu0 %v1394
  %v7063 = vpop.f32.mrb[0].mxu0
  %v7064 = vadd.f32 0.0, %v7063
  %v7065 = vpop.f32.mrb[0].mxu0
  %v7066 = vpop.f32.mrb[0].mxu0
  %v7067 = vadd.f32 0.0, %v7066
  %v7068 = vpop.f32.mrb[0].mxu0
  %7069 = vmatprep.mubr.bf16.mxu0 %v1397
  %7070 = vmatmul.mubr.bf16.gmra.mrb[0].mxu0 %v1396
  %v7071 = vpop.f32.mrb[0].mxu0
  %v7072 = vadd.f32 0.0, %v7071
  %v7073 = vpop.f32.mrb[0].mxu0
  %v7074 = vpop.f32.mrb[0].mxu0
  %v7075 = vadd.f32 0.0, %v7074
  %v7076 = vpop.f32.mrb[0].mxu0
  %7077 = vmatprep.mubr.bf16.mxu0 %v1399
  %7078 = vmatmul.mubr.bf16.gmra.mrb[0].mxu0 %v1398
  %v7079 = vpop.f32.mrb[0].mxu0
  %v7080 = vadd.f32 0.0, %v7079
  %v7081 = vpop.f32.mrb[0].mxu0
  %v7082 = vpop.f32.mrb[0].mxu0
  %v7083 = vadd.f32 0.0, %v7082
  %v7084 = vpop.f32.mrb[0].mxu0
  %7085 = vmatprep.mubr.bf16.mxu0 %v1401
  %7086 = vmatmul.mubr.bf16.gmra.mrb[0].mxu0 %v1400
  %v7087 = vpop.f32.mrb[0].mxu0
  %v7088 = vadd.f32 0.0, %v7087
  %v7089 = vpop.f32.mrb[0].mxu0
  %v7090 = vpop.f32.mrb[0].mxu0
  %v7091 = vadd.f32 0.0, %v7090
  %v7092 = vpop.f32.mrb[0].mxu0
  %7093 = vmatprep.mubr.bf16.mxu0 %v1403
  %7094 = vmatmul.mubr.bf16.gmra.mrb[0].mxu0 %v1402
  %v7095 = vpop.f32.mrb[0].mxu0
  %v7096 = vadd.f32 0.0, %v7095
  %v7097 = vpop.f32.mrb[0].mxu0
  %v7098 = vpop.f32.mrb[0].mxu0
  %v7099 = vadd.f32 0.0, %v7098
  %v7100 = vpop.f32.mrb[0].mxu0
  %7101 = vmatprep.mubr.bf16.mxu0 %v1405
  %7102 = vmatmul.mubr.bf16.gmra.mrb[0].mxu0 %v1404
  %v7103 = vpop.f32.mrb[0].mxu0
  %v7104 = vadd.f32 0.0, %v7103
  %v7105 = vpop.f32.mrb[0].mxu0
  %v7106 = vpop.f32.mrb[0].mxu0
  %v7107 = vadd.f32 0.0, %v7106
  %v7108 = vpop.f32.mrb[0].mxu0
  %7109 = vmatprep.mubr.bf16.mxu0 %v1407
  %7110 = vmatmul.mubr.bf16.gmra.mrb[0].mxu0 %v1406
  %v7111 = vpop.f32.mrb[0].mxu0
  %v7112 = vadd.f32 0.0, %v7111
  %v7113 = vpop.f32.mrb[0].mxu0
  %v7114 = vpop.f32.mrb[0].mxu0
  %v7115 = vadd.f32 0.0, %v7114
  %v7116 = vpop.f32.mrb[0].mxu0
  %7117 = vmatprep.mubr.bf16.mxu0 %v1409
  %7118 = vmatmul.mubr.bf16.gmra.mrb[0].mxu0 %v1408
  %v7119 = vpop.f32.mrb[0].mxu0
  %v7120 = vadd.f32 0.0, %v7119
  %v7121 = vpop.f32.mrb[0].mxu0
  %v7122 = vpop.f32.mrb[0].mxu0
  %v7123 = vadd.f32 0.0, %v7122
  %v7124 = vpop.f32.mrb[0].mxu0
  %7125 = vmatprep.mubr.bf16.mxu0 %v1411
  %7126 = vmatmul.mubr.bf16.gmra.mrb[0].mxu0 %v1410
  %v7127 = vpop.f32.mrb[0].mxu0
  %v7128 = vadd.f32 0.0, %v7127
  %v7129 = vpop.f32.mrb[0].mxu0
  %v7130 = vpop.f32.mrb[0].mxu0
  %v7131 = vadd.f32 0.0, %v7130
  %v7132 = vpop.f32.mrb[0].mxu0
  %7133 = vmatprep.mubr.bf16.mxu0 %v1413
  %7134 = vmatmul.mubr.bf16.gmra.mrb[0].mxu0 %v1412
  %v7135 = vpop.f32.mrb[0].mxu0
  %v7136 = vadd.f32 0.0, %v7135
  %v7137 = vpop.f32.mrb[0].mxu0
  %v7138 = vpop.f32.mrb[0].mxu0
  %v7139 = vadd.f32 0.0, %v7138
  %v7140 = vpop.f32.mrb[0].mxu0
  %7141 = vmatprep.mubr.bf16.mxu0 %v1415
  %7142 = vmatmul.mubr.bf16.gmra.mrb[0].mxu0 %v1414
  %v7143 = vpop.f32.mrb[0].mxu0
  %v7144 = vadd.f32 0.0, %v7143
  %v7145 = vpop.f32.mrb[0].mxu0
  %v7146 = vpop.f32.mrb[0].mxu0
  %v7147 = vadd.f32 0.0, %v7146
  %v7148 = vpop.f32.mrb[0].mxu0
  %7149 = vmatprep.mubr.bf16.mxu0 %v1417
  %7150 = vmatmul.mubr.bf16.gmra.mrb[0].mxu0 %v1416
  %v7151 = vpop.f32.mrb[0].mxu0
  %v7152 = vadd.f32 0.0, %v7151
  %v7153 = vpop.f32.mrb[0].mxu0
  %v7154 = vpop.f32.mrb[0].mxu0
  %v7155 = vadd.f32 0.0, %v7154
  %v7156 = vpop.f32.mrb[0].mxu0
  %7157 = vmatprep.mubr.bf16.mxu0 %v1419
  %7158 = vmatmul.mubr.bf16.gmra.mrb[0].mxu0 %v1418
  %v7159 = vpop.f32.mrb[0].mxu0
  %v7160 = vadd.f32 0.0, %v7159
  %v7161 = vpop.f32.mrb[0].mxu0
  %v7162 = vpop.f32.mrb[0].mxu0
  %v7163 = vadd.f32 0.0, %v7162
  %v7164 = vpop.f32.mrb[0].mxu0
  %7165 = vmatprep.mubr.bf16.mxu0 %v1421
  %7166 = vmatmul.mubr.bf16.gmra.mrb[0].mxu0 %v1420
  %v7167 = vpop.f32.mrb[0].mxu0
  %v7168 = vadd.f32 0.0, %v7167
  %v7169 = vpop.f32.mrb[0].mxu0
  %v7170 = vpop.f32.mrb[0].mxu0
  %v7171 = vadd.f32 0.0, %v7170
  %v7172 = vpop.f32.mrb[0].mxu0
  %7173 = vmatprep.mubr.bf16.mxu0 %v1423
  %7174 = vmatmul.mubr.bf16.gmra.mrb[0].mxu0 %v1422
  %v7175 = vpop.f32.mrb[0].mxu0
  %v7176 = vadd.f32 0.0, %v7175
  %v7177 = vpop.f32.mrb[0].mxu0
  %v7178 = vpop.f32.mrb[0].mxu0
  %v7179 = vadd.f32 0.0, %v7178
  %v7180 = vpop.f32.mrb[0].mxu0
  %7181 = vmatprep.mubr.bf16.mxu0 %v1425
  %7182 = vmatmul.mubr.bf16.gmra.mrb[0].mxu0 %v1424
  %v7183 = vpop.f32.mrb[0].mxu0
  %v7184 = vadd.f32 0.0, %v7183
  %v7185 = vpop.f32.mrb[0].mxu0
  %v7186 = vpop.f32.mrb[0].mxu0
  %v7187 = vadd.f32 0.0, %v7186
  %v7188 = vpop.f32.mrb[0].mxu0
  %7189 = vmatprep.mubr.bf16.mxu0 %v1427
  %7190 = vmatmul.mubr.bf16.gmra.mrb[0].mxu0 %v1426
  %v7191 = vpop.f32.mrb[0].mxu0
  %v7192 = vadd.f32 0.0, %v7191
  %v7193 = vpop.f32.mrb[0].mxu0
  %v7194 = vpop.f32.mrb[0].mxu0
  %v7195 = vadd.f32 0.0, %v7194
  %v7196 = vpop.f32.mrb[0].mxu0
  %7197 = vmatprep.mubr.bf16.mxu0 %v1429
  %7198 = vmatmul.mubr.bf16.gmra.mrb[0].mxu0 %v1428
  %v7199 = vpop.f32.mrb[0].mxu0
  %v7200 = vadd.f32 0.0, %v7199
  %v7201 = vpop.f32.mrb[0].mxu0
  %v7202 = vpop.f32.mrb[0].mxu0
  %v7203 = vadd.f32 0.0, %v7202
  %v7204 = vpop.f32.mrb[0].mxu0
  %7205 = vmatprep.mubr.bf16.mxu0 %v1431
  %7206 = vmatmul.mubr.bf16.gmra.mrb[0].mxu0 %v1430
  %v7207 = vpop.f32.mrb[0].mxu0
  %v7208 = vadd.f32 0.0, %v7207
  %v7209 = vpop.f32.mrb[0].mxu0
  %v7210 = vpop.f32.mrb[0].mxu0
  %v7211 = vadd.f32 0.0, %v7210
  %v7212 = vpop.f32.mrb[0].mxu0
  %7213 = vmatprep.mubr.bf16.mxu0 %v1433
  %7214 = vmatmul.mubr.bf16.gmra.mrb[0].mxu0 %v1432
  %v7215 = vpop.f32.mrb[0].mxu0
  %v7216 = vadd.f32 0.0, %v7215
  %v7217 = vpop.f32.mrb[0].mxu0
  %v7218 = vpop.f32.mrb[0].mxu0
  %v7219 = vadd.f32 0.0, %v7218
  %v7220 = vpop.f32.mrb[0].mxu0
  %7221 = vmatprep.mubr.bf16.mxu0 %v1435
  %7222 = vmatmul.mubr.bf16.gmra.mrb[0].mxu0 %v1434
  %v7223 = vpop.f32.mrb[0].mxu0
  %v7224 = vadd.f32 0.0, %v7223
  %v7225 = vpop.f32.mrb[0].mxu0
  %v7226 = vpop.f32.mrb[0].mxu0
  %v7227 = vadd.f32 0.0, %v7226
  %v7228 = vpop.f32.mrb[0].mxu0
  %7229 = vmatprep.mubr.bf16.mxu0 %v1437
  %7230 = vmatmul.mubr.bf16.gmra.mrb[0].mxu0 %v1436
  %v7231 = vpop.f32.mrb[0].mxu0
  %v7232 = vadd.f32 0.0, %v7231
  %v7233 = vpop.f32.mrb[0].mxu0
  %v7234 = vpop.f32.mrb[0].mxu0
  %v7235 = vadd.f32 0.0, %v7234
  %v7236 = vpop.f32.mrb[0].mxu0
  %7237 = vmatprep.mubr.bf16.mxu0 %v1439
  %7238 = vmatmul.mubr.bf16.gmra.mrb[0].mxu0 %v1438
  %v7239 = vpop.f32.mrb[0].mxu0
  %v7240 = vadd.f32 0.0, %v7239
  %v7241 = vpop.f32.mrb[0].mxu0
  %v7242 = vpop.f32.mrb[0].mxu0
  %v7243 = vadd.f32 0.0, %v7242
  %v7244 = vpop.f32.mrb[0].mxu0
  %7245 = vmatprep.mubr.bf16.mxu0 %v1441
  %7246 = vmatmul.mubr.bf16.gmra.mrb[0].mxu0 %v1440
  %v7247 = vpop.f32.mrb[0].mxu0
  %v7248 = vadd.f32 0.0, %v7247
  %v7249 = vpop.f32.mrb[0].mxu0
  %v7250 = vpop.f32.mrb[0].mxu0
  %v7251 = vadd.f32 0.0, %v7250
  %v7252 = vpop.f32.mrb[0].mxu0
  %7253 = vmatprep.mubr.bf16.mxu0 %v1443
  %7254 = vmatmul.mubr.bf16.gmra.mrb[0].mxu0 %v1442
  %v7255 = vpop.f32.mrb[0].mxu0
  %v7256 = vadd.f32 0.0, %v7255
  %v7257 = vpop.f32.mrb[0].mxu0
  %v7258 = vpop.f32.mrb[0].mxu0
  %v7259 = vadd.f32 0.0, %v7258
  %v7260 = vpop.f32.mrb[0].mxu0
  %7261 = vdwg.mxu0
  %7262 = vmatprep.subr.bf16.mxu0 0
  %7263 = vmatpush1.bf16.msra.mxu0 %v6893
  %7264 = vmatprep.subr.bf16.mxu0 0
  %7265 = vmatpush1.bf16.msra.mxu0 %v6894
  %7266 = vmatprep.subr.bf16.mxu0 0
  %7267 = vmatpush1.bf16.msra.mxu0 %v6895
  %7268 = vmatprep.subr.bf16.mxu0 0
  %7269 = vmatpush1.bf16.msra.mxu0 %v6896
  %7270 = vmatprep.subr.bf16.mxu0 0
  %7271 = vmatpush1.bf16.msra.mxu0 %v6897
  %7272 = vmatprep.subr.bf16.mxu0 0
  %7273 = vmatpush1.bf16.msra.mxu0 %v6898
  %7274 = vmatprep.subr.bf16.mxu0 0
  %7275 = vmatpush1.bf16.msra.mxu0 %v6899
  %7276 = vmatprep.subr.bf16.mxu0 0
  %7277 = vmatpush1.bf16.msra.mxu0 %v6900
  %7278 = vmatprep.subr.bf16.mxu0 0
  %7279 = vmatpush1.bf16.msra.mxu0 %v6901
  %7280 = vmatprep.subr.bf16.mxu0 0
  %7281 = vmatpush1.bf16.msra.mxu0 %v6902
  %7282 = vmatprep.subr.bf16.mxu0 0
  %7283 = vmatpush1.bf16.msra.mxu0 %v6903
  %7284 = vmatprep.subr.bf16.mxu0 0
  %7285 = vmatpush1.bf16.msra.mxu0 %v6904
  %7286 = vmatprep.subr.bf16.mxu0 0
  %7287 = vmatpush1.bf16.msra.mxu0 %v6905
  %7288 = vmatprep.subr.bf16.mxu0 0
  %7289 = vmatpush1.bf16.msra.mxu0 %v6906
  %7290 = vmatprep.subr.bf16.mxu0 0
  %7291 = vmatpush1.bf16.msra.mxu0 %v6907
  %7292 = vmatprep.subr.bf16.mxu0 0
  %7293 = vmatpush1.bf16.msra.mxu0 %v6908
  %7294 = vmatprep.mubr.bf16.mxu0 %v677
  %7295 = vmatmul.mubr.bf16.gmra.mrb[0].mxu0 %v676
  %v7296 = vpop.f32.mrb[0].mxu0
  %v7297 = vadd.f32 %v7008, %v7296
  %v7298 = vpop.f32.mrb[0].mxu0
  %v7299 = vpop.f32.mrb[0].mxu0
  %v7300 = vadd.f32 %v7011, %v7299
  %v7301 = vpop.f32.mrb[0].mxu0
  %7302 = vmatprep.mubr.bf16.mxu0 %v679
  %7303 = vmatmul.mubr.bf16.gmra.mrb[0].mxu0 %v678
  %v7304 = vpop.f32.mrb[0].mxu0
  %v7305 = vadd.f32 %v7016, %v7304
  %v7306 = vpop.f32.mrb[0].mxu0
  %v7307 = vpop.f32.mrb[0].mxu0
  %v7308 = vadd.f32 %v7019, %v7307
  %v7309 = vpop.f32.mrb[0].mxu0
  %7310 = vmatprep.mubr.bf16.mxu0 %v681
  %7311 = vmatmul.mubr.bf16.gmra.mrb[0].mxu0 %v680
  %v7312 = vpop.f32.mrb[0].mxu0
  %v7313 = vadd.f32 %v7024, %v7312
  %v7314 = vpop.f32.mrb[0].mxu0
  %v7315 = vpop.f32.mrb[0].mxu0
  %v7316 = vadd.f32 %v7027, %v7315
  %v7317 = vpop.f32.mrb[0].mxu0
  %7318 = vmatprep.mubr.bf16.mxu0 %v683
  %7319 = vmatmul.mubr.bf16.gmra.mrb[0].mxu0 %v682
  %v7320 = vpop.f32.mrb[0].mxu0
  %v7321 = vadd.f32 %v7032, %v7320
  %v7322 = vpop.f32.mrb[0].mxu0
  %v7323 = vpop.f32.mrb[0].mxu0
  %v7324 = vadd.f32 %v7035, %v7323
  %v7325 = vpop.f32.mrb[0].mxu0
  %7326 = vmatprep.mubr.bf16.mxu0 %v685
  %7327 = vmatmul.mubr.bf16.gmra.mrb[0].mxu0 %v684
  %v7328 = vpop.f32.mrb[0].mxu0
  %v7329 = vadd.f32 %v7040, %v7328
  %v7330 = vpop.f32.mrb[0].mxu0
  %v7331 = vpop.f32.mrb[0].mxu0
  %v7332 = vadd.f32 %v7043, %v7331
  %v7333 = vpop.f32.mrb[0].mxu0
  %7334 = vmatprep.mubr.bf16.mxu0 %v687
  %7335 = vmatmul.mubr.bf16.gmra.mrb[0].mxu0 %v686
  %v7336 = vpop.f32.mrb[0].mxu0
  %v7337 = vadd.f32 %v7048, %v7336
  %v7338 = vpop.f32.mrb[0].mxu0
  %v7339 = vpop.f32.mrb[0].mxu0
  %v7340 = vadd.f32 %v7051, %v7339
  %v7341 = vpop.f32.mrb[0].mxu0
  %7342 = vmatprep.mubr.bf16.mxu0 %v689
  %7343 = vmatmul.mubr.bf16.gmra.mrb[0].mxu0 %v688
  %v7344 = vpop.f32.mrb[0].mxu0
  %v7345 = vadd.f32 %v7056, %v7344
  %v7346 = vpop.f32.mrb[0].mxu0
  %v7347 = vpop.f32.mrb[0].mxu0
  %v7348 = vadd.f32 %v7059, %v7347
  %v7349 = vpop.f32.mrb[0].mxu0
  %7350 = vmatprep.mubr.bf16.mxu0 %v691
  %7351 = vmatmul.mubr.bf16.gmra.mrb[0].mxu0 %v690
  %v7352 = vpop.f32.mrb[0].mxu0
  %v7353 = vadd.f32 %v7064, %v7352
  %v7354 = vpop.f32.mrb[0].mxu0
  %v7355 = vpop.f32.mrb[0].mxu0
  %v7356 = vadd.f32 %v7067, %v7355
  %v7357 = vpop.f32.mrb[0].mxu0
  %7358 = vmatprep.mubr.bf16.mxu0 %v693
  %7359 = vmatmul.mubr.bf16.gmra.mrb[0].mxu0 %v692
  %v7360 = vpop.f32.mrb[0].mxu0
  %v7361 = vadd.f32 %v7072, %v7360
  %v7362 = vpop.f32.mrb[0].mxu0
  %v7363 = vpop.f32.mrb[0].mxu0
  %v7364 = vadd.f32 %v7075, %v7363
  %v7365 = vpop.f32.mrb[0].mxu0
  %7366 = vmatprep.mubr.bf16.mxu0 %v695
  %7367 = vmatmul.mubr.bf16.gmra.mrb[0].mxu0 %v694
  %v7368 = vpop.f32.mrb[0].mxu0
  %v7369 = vadd.f32 %v7080, %v7368
  %v7370 = vpop.f32.mrb[0].mxu0
  %v7371 = vpop.f32.mrb[0].mxu0
  %v7372 = vadd.f32 %v7083, %v7371
  %v7373 = vpop.f32.mrb[0].mxu0
  %7374 = vmatprep.mubr.bf16.mxu0 %v697
  %7375 = vmatmul.mubr.bf16.gmra.mrb[0].mxu0 %v696
  %v7376 = vpop.f32.mrb[0].mxu0
  %v7377 = vadd.f32 %v7088, %v7376
  %v7378 = vpop.f32.mrb[0].mxu0
  %v7379 = vpop.f32.mrb[0].mxu0
  %v7380 = vadd.f32 %v7091, %v7379
  %v7381 = vpop.f32.mrb[0].mxu0
  %7382 = vmatprep.mubr.bf16.mxu0 %v699
  %7383 = vmatmul.mubr.bf16.gmra.mrb[0].mxu0 %v698
  %v7384 = vpop.f32.mrb[0].mxu0
  %v7385 = vadd.f32 %v7096, %v7384
  %v7386 = vpop.f32.mrb[0].mxu0
  %v7387 = vpop.f32.mrb[0].mxu0
  %v7388 = vadd.f32 %v7099, %v7387
  %v7389 = vpop.f32.mrb[0].mxu0
  %7390 = vmatprep.mubr.bf16.mxu0 %v701
  %7391 = vmatmul.mubr.bf16.gmra.mrb[0].mxu0 %v700
  %v7392 = vpop.f32.mrb[0].mxu0
  %v7393 = vadd.f32 %v7104, %v7392
  %v7394 = vpop.f32.mrb[0].mxu0
  %v7395 = vpop.f32.mrb[0].mxu0
  %v7396 = vadd.f32 %v7107, %v7395
  %v7397 = vpop.f32.mrb[0].mxu0
  %7398 = vmatprep.mubr.bf16.mxu0 %v703
  %7399 = vmatmul.mubr.bf16.gmra.mrb[0].mxu0 %v702
  %v7400 = vpop.f32.mrb[0].mxu0
  %v7401 = vadd.f32 %v7112, %v7400
  %v7402 = vpop.f32.mrb[0].mxu0
  %v7403 = vpop.f32.mrb[0].mxu0
  %v7404 = vadd.f32 %v7115, %v7403
  %v7405 = vpop.f32.mrb[0].mxu0
  %7406 = vmatprep.mubr.bf16.mxu0 %v705
  %7407 = vmatmul.mubr.bf16.gmra.mrb[0].mxu0 %v704
  %v7408 = vpop.f32.mrb[0].mxu0
  %v7409 = vadd.f32 %v7120, %v7408
  %v7410 = vpop.f32.mrb[0].mxu0
  %v7411 = vpop.f32.mrb[0].mxu0
  %v7412 = vadd.f32 %v7123, %v7411
  %v7413 = vpop.f32.mrb[0].mxu0
  %7414 = vmatprep.mubr.bf16.mxu0 %v707
  %7415 = vmatmul.mubr.bf16.gmra.mrb[0].mxu0 %v706
  %v7416 = vpop.f32.mrb[0].mxu0
  %v7417 = vadd.f32 %v7128, %v7416
  %v7418 = vpop.f32.mrb[0].mxu0
  %v7419 = vpop.f32.mrb[0].mxu0
  %v7420 = vadd.f32 %v7131, %v7419
  %v7421 = vpop.f32.mrb[0].mxu0
  %7422 = vmatprep.mubr.bf16.mxu0 %v709
  %7423 = vmatmul.mubr.bf16.gmra.mrb[0].mxu0 %v708
  %v7424 = vpop.f32.mrb[0].mxu0
  %v7425 = vadd.f32 %v7136, %v7424
  %v7426 = vpop.f32.mrb[0].mxu0
  %v7427 = vpop.f32.mrb[0].mxu0
  %v7428 = vadd.f32 %v7139, %v7427
  %v7429 = vpop.f32.mrb[0].mxu0
  %7430 = vmatprep.mubr.bf16.mxu0 %v711
  %7431 = vmatmul.mubr.bf16.gmra.mrb[0].mxu0 %v710
  %v7432 = vpop.f32.mrb[0].mxu0
  %v7433 = vadd.f32 %v7144, %v7432
  %v7434 = vpop.f32.mrb[0].mxu0
  %v7435 = vpop.f32.mrb[0].mxu0
  %v7436 = vadd.f32 %v7147, %v7435
  %v7437 = vpop.f32.mrb[0].mxu0
  %7438 = vmatprep.mubr.bf16.mxu0 %v713
  %7439 = vmatmul.mubr.bf16.gmra.mrb[0].mxu0 %v712
  %v7440 = vpop.f32.mrb[0].mxu0
  %v7441 = vadd.f32 %v7152, %v7440
  %v7442 = vpop.f32.mrb[0].mxu0
  %v7443 = vpop.f32.mrb[0].mxu0
  %v7444 = vadd.f32 %v7155, %v7443
  %v7445 = vpop.f32.mrb[0].mxu0
  %7446 = vmatprep.mubr.bf16.mxu0 %v715
  %7447 = vmatmul.mubr.bf16.gmra.mrb[0].mxu0 %v714
  %v7448 = vpop.f32.mrb[0].mxu0
  %v7449 = vadd.f32 %v7160, %v7448
  %v7450 = vpop.f32.mrb[0].mxu0
  %v7451 = vpop.f32.mrb[0].mxu0
  %v7452 = vadd.f32 %v7163, %v7451
  %v7453 = vpop.f32.mrb[0].mxu0
  %7454 = vmatprep.mubr.bf16.mxu0 %v717
  %7455 = vmatmul.mubr.bf16.gmra.mrb[0].mxu0 %v716
  %v7456 = vpop.f32.mrb[0].mxu0
  %v7457 = vadd.f32 %v7168, %v7456
  %v7458 = vpop.f32.mrb[0].mxu0
  %v7459 = vpop.f32.mrb[0].mxu0
  %v7460 = vadd.f32 %v7171, %v7459
  %v7461 = vpop.f32.mrb[0].mxu0
  %7462 = vmatprep.mubr.bf16.mxu0 %v719
  %7463 = vmatmul.mubr.bf16.gmra.mrb[0].mxu0 %v718
  %v7464 = vpop.f32.mrb[0].mxu0
  %v7465 = vadd.f32 %v7176, %v7464
  %v7466 = vpop.f32.mrb[0].mxu0
  %v7467 = vpop.f32.mrb[0].mxu0
  %v7468 = vadd.f32 %v7179, %v7467
  %v7469 = vpop.f32.mrb[0].mxu0
  %7470 = vmatprep.mubr.bf16.mxu0 %v721
  %7471 = vmatmul.mubr.bf16.gmra.mrb[0].mxu0 %v720
  %v7472 = vpop.f32.mrb[0].mxu0
  %v7473 = vadd.f32 %v7184, %v7472
  %v7474 = vpop.f32.mrb[0].mxu0
  %v7475 = vpop.f32.mrb[0].mxu0
  %v7476 = vadd.f32 %v7187, %v7475
  %v7477 = vpop.f32.mrb[0].mxu0
  %7478 = vmatprep.mubr.bf16.mxu0 %v723
  %7479 = vmatmul.mubr.bf16.gmra.mrb[0].mxu0 %v722
  %v7480 = vpop.f32.mrb[0].mxu0
  %v7481 = vadd.f32 %v7192, %v7480
  %v7482 = vpop.f32.mrb[0].mxu0
  %v7483 = vpop.f32.mrb[0].mxu0
  %v7484 = vadd.f32 %v7195, %v7483
  %v7485 = vpop.f32.mrb[0].mxu0
  %7486 = vmatprep.mubr.bf16.mxu0 %v725
  %7487 = vmatmul.mubr.bf16.gmra.mrb[0].mxu0 %v724
  %v7488 = vpop.f32.mrb[0].mxu0
  %v7489 = vadd.f32 %v7200, %v7488
  %v7490 = vpop.f32.mrb[0].mxu0
  %v7491 = vpop.f32.mrb[0].mxu0
  %v7492 = vadd.f32 %v7203, %v7491
  %v7493 = vpop.f32.mrb[0].mxu0
  %7494 = vmatprep.mubr.bf16.mxu0 %v727
  %7495 = vmatmul.mubr.bf16.gmra.mrb[0].mxu0 %v726
  %v7496 = vpop.f32.mrb[0].mxu0
  %v7497 = vadd.f32 %v7208, %v7496
  %v7498 = vpop.f32.mrb[0].mxu0
  %v7499 = vpop.f32.mrb[0].mxu0
  %v7500 = vadd.f32 %v7211, %v7499
  %v7501 = vpop.f32.mrb[0].mxu0
  %7502 = vmatprep.mubr.bf16.mxu0 %v729
  %7503 = vmatmul.mubr.bf16.gmra.mrb[0].mxu0 %v728
  %v7504 = vpop.f32.mrb[0].mxu0
  %v7505 = vadd.f32 %v7216, %v7504
  %v7506 = vpop.f32.mrb[0].mxu0
  %v7507 = vpop.f32.mrb[0].mxu0
  %v7508 = vadd.f32 %v7219, %v7507
  %v7509 = vpop.f32.mrb[0].mxu0
  %7510 = vmatprep.mubr.bf16.mxu0 %v731
  %7511 = vmatmul.mubr.bf16.gmra.mrb[0].mxu0 %v730
  %v7512 = vpop.f32.mrb[0].mxu0
  %v7513 = vadd.f32 %v7224, %v7512
  %v7514 = vpop.f32.mrb[0].mxu0
  %v7515 = vpop.f32.mrb[0].mxu0
  %v7516 = vadd.f32 %v7227, %v7515
  %v7517 = vpop.f32.mrb[0].mxu0
  %7518 = vmatprep.mubr.bf16.mxu0 %v733
  %7519 = vmatmul.mubr.bf16.gmra.mrb[0].mxu0 %v732
  %v7520 = vpop.f32.mrb[0].mxu0
  %v7521 = vadd.f32 %v7232, %v7520
  %v7522 = vpop.f32.mrb[0].mxu0
  %v7523 = vpop.f32.mrb[0].mxu0
  %v7524 = vadd.f32 %v7235, %v7523
  %v7525 = vpop.f32.mrb[0].mxu0
  %7526 = vmatprep.mubr.bf16.mxu0 %v735
  %7527 = vmatmul.mubr.bf16.gmra.mrb[0].mxu0 %v734
  %v7528 = vpop.f32.mrb[0].mxu0
  %v7529 = vadd.f32 %v7240, %v7528
  %v7530 = vpop.f32.mrb[0].mxu0
  %v7531 = vpop.f32.mrb[0].mxu0
  %v7532 = vadd.f32 %v7243, %v7531
  %v7533 = vpop.f32.mrb[0].mxu0
  %7534 = vmatprep.mubr.bf16.mxu0 %v737
  %7535 = vmatmul.mubr.bf16.gmra.mrb[0].mxu0 %v736
  %v7536 = vpop.f32.mrb[0].mxu0
  %v7537 = vadd.f32 %v7248, %v7536
  %v7538 = vpop.f32.mrb[0].mxu0
  %v7539 = vpop.f32.mrb[0].mxu0
  %v7540 = vadd.f32 %v7251, %v7539
  %v7541 = vpop.f32.mrb[0].mxu0
  %7542 = vmatprep.mubr.bf16.mxu0 %v739
  %7543 = vmatmul.mubr.bf16.gmra.mrb[0].mxu0 %v738
  %v7544 = vpop.f32.mrb[0].mxu0
  %v7545 = vadd.f32 %v7256, %v7544
  %v7546 = vpop.f32.mrb[0].mxu0
  %v7547 = vpop.f32.mrb[0].mxu0
  %v7548 = vadd.f32 %v7259, %v7547
  %v7549 = vpop.f32.mrb[0].mxu0
  %7550 = vdwg.mxu0
  %v7551 = vlaneseq
  %v7552 = vshrl.u32 %v7551, 7
  %v7553 = vsub.s32 4, %v7552
  %v7554 = vrot.slane %v31, %v7553
  %v7555 = vadd.f32 %v7297, %v7554
  %v7556 = vadd.f32 %v7300, %v7554
  %v7557 = vadd.f32 %v7305, %v7554
  %v7558 = vadd.f32 %v7308, %v7554
  %v7559 = vadd.f32 %v7313, %v7554
  %v7560 = vadd.f32 %v7316, %v7554
  %v7561 = vadd.f32 %v7321, %v7554
  %v7562 = vadd.f32 %v7324, %v7554
  %v7563 = vadd.f32 %v7329, %v7554
  %v7564 = vadd.f32 %v7332, %v7554
  %v7565 = vadd.f32 %v7337, %v7554
  %v7566 = vadd.f32 %v7340, %v7554
  %v7567 = vadd.f32 %v7345, %v7554
  %v7568 = vadd.f32 %v7348, %v7554
  %v7569 = vadd.f32 %v7353, %v7554
  %v7570 = vadd.f32 %v7356, %v7554
  %v7571 = vadd.f32 %v7361, %v7554
  %v7572 = vadd.f32 %v7364, %v7554
  %v7573 = vadd.f32 %v7369, %v7554
  %v7574 = vadd.f32 %v7372, %v7554
  %v7575 = vadd.f32 %v7377, %v7554
  %v7576 = vadd.f32 %v7380, %v7554
  %v7577 = vadd.f32 %v7385, %v7554
  %v7578 = vadd.f32 %v7388, %v7554
  %v7579 = vadd.f32 %v7393, %v7554
  %v7580 = vadd.f32 %v7396, %v7554
  %v7581 = vadd.f32 %v7401, %v7554
  %v7582 = vadd.f32 %v7404, %v7554
  %v7583 = vadd.f32 %v7409, %v7554
  %v7584 = vadd.f32 %v7412, %v7554
  %v7585 = vadd.f32 %v7417, %v7554
  %v7586 = vadd.f32 %v7420, %v7554
  %v7587 = vadd.f32 %v7425, %v7554
  %v7588 = vadd.f32 %v7428, %v7554
  %v7589 = vadd.f32 %v7433, %v7554
  %v7590 = vadd.f32 %v7436, %v7554
  %v7591 = vadd.f32 %v7441, %v7554
  %v7592 = vadd.f32 %v7444, %v7554
  %v7593 = vadd.f32 %v7449, %v7554
  %v7594 = vadd.f32 %v7452, %v7554
  %v7595 = vadd.f32 %v7457, %v7554
  %v7596 = vadd.f32 %v7460, %v7554
  %v7597 = vadd.f32 %v7465, %v7554
  %v7598 = vadd.f32 %v7468, %v7554
  %v7599 = vadd.f32 %v7473, %v7554
  %v7600 = vadd.f32 %v7476, %v7554
  %v7601 = vadd.f32 %v7481, %v7554
  %v7602 = vadd.f32 %v7484, %v7554
  %v7603 = vadd.f32 %v7489, %v7554
  %v7604 = vadd.f32 %v7492, %v7554
  %v7605 = vadd.f32 %v7497, %v7554
  %v7606 = vadd.f32 %v7500, %v7554
  %v7607 = vadd.f32 %v7505, %v7554
  %v7608 = vadd.f32 %v7508, %v7554
  %v7609 = vadd.f32 %v7513, %v7554
  %v7610 = vadd.f32 %v7516, %v7554
  %v7611 = vadd.f32 %v7521, %v7554
  %v7612 = vadd.f32 %v7524, %v7554
  %v7613 = vadd.f32 %v7529, %v7554
  %v7614 = vadd.f32 %v7532, %v7554
  %v7615 = vadd.f32 %v7537, %v7554
  %v7616 = vadd.f32 %v7540, %v7554
  %v7617 = vadd.f32 %v7545, %v7554
  %v7618 = vadd.f32 %v7548, %v7554
  %v7619 = vsel %vm1711, %v7555, 0.0
  %7620 = vadd.xlane.f32.xlu0 %v7619
  %v7621 = vpop.xlane.xlu0 %7620
  %v7622 = vsel %vm1711, %v7556, 0.0
  %7623 = vadd.xlane.f32.xlu0 %v7622
  %v7624 = vpop.xlane.xlu0 %7623
  %v7625 = vsel %vm1711, %v7557, 0.0
  %7626 = vadd.xlane.f32.xlu0 %v7625
  %v7627 = vpop.xlane.xlu0 %7626
  %v7628 = vsel %vm1711, %v7558, 0.0
  %7629 = vadd.xlane.f32.xlu0 %v7628
  %v7630 = vpop.xlane.xlu0 %7629
  %v7631 = vsel %vm1711, %v7559, 0.0
  %7632 = vadd.xlane.f32.xlu0 %v7631
  %v7633 = vpop.xlane.xlu0 %7632
  %v7634 = vsel %vm1711, %v7560, 0.0
  %7635 = vadd.xlane.f32.xlu0 %v7634
  %v7636 = vpop.xlane.xlu0 %7635
  %v7637 = vsel %vm1711, %v7561, 0.0
  %7638 = vadd.xlane.f32.xlu0 %v7637
  %v7639 = vpop.xlane.xlu0 %7638
  %v7640 = vsel %vm1711, %v7562, 0.0
  %7641 = vadd.xlane.f32.xlu0 %v7640
  %v7642 = vpop.xlane.xlu0 %7641
  %v7643 = vsel %vm1711, %v7563, 0.0
  %7644 = vadd.xlane.f32.xlu0 %v7643
  %v7645 = vpop.xlane.xlu0 %7644
  %v7646 = vsel %vm1711, %v7564, 0.0
  %7647 = vadd.xlane.f32.xlu0 %v7646
  %v7648 = vpop.xlane.xlu0 %7647
  %v7649 = vsel %vm1711, %v7565, 0.0
  %7650 = vadd.xlane.f32.xlu0 %v7649
  %v7651 = vpop.xlane.xlu0 %7650
  %v7652 = vsel %vm1711, %v7566, 0.0
  %7653 = vadd.xlane.f32.xlu0 %v7652
  %v7654 = vpop.xlane.xlu0 %7653
  %v7655 = vsel %vm1711, %v7567, 0.0
  %7656 = vadd.xlane.f32.xlu0 %v7655
  %v7657 = vpop.xlane.xlu0 %7656
  %v7658 = vsel %vm1711, %v7568, 0.0
  %7659 = vadd.xlane.f32.xlu0 %v7658
  %v7660 = vpop.xlane.xlu0 %7659
  %v7661 = vsel %vm1711, %v7569, 0.0
  %7662 = vadd.xlane.f32.xlu0 %v7661
  %v7663 = vpop.xlane.xlu0 %7662
  %v7664 = vsel %vm1711, %v7570, 0.0
  %7665 = vadd.xlane.f32.xlu0 %v7664
  %v7666 = vpop.xlane.xlu0 %7665
  %v7667 = vsel %vm1711, %v7571, 0.0
  %7668 = vadd.xlane.f32.xlu0 %v7667
  %v7669 = vpop.xlane.xlu0 %7668
  %v7670 = vsel %vm1711, %v7572, 0.0
  %7671 = vadd.xlane.f32.xlu0 %v7670
  %v7672 = vpop.xlane.xlu0 %7671
  %v7673 = vsel %vm1711, %v7573, 0.0
  %7674 = vadd.xlane.f32.xlu0 %v7673
  %v7675 = vpop.xlane.xlu0 %7674
  %v7676 = vsel %vm1711, %v7574, 0.0
  %7677 = vadd.xlane.f32.xlu0 %v7676
  %v7678 = vpop.xlane.xlu0 %7677
  %v7679 = vsel %vm1711, %v7575, 0.0
  %7680 = vadd.xlane.f32.xlu0 %v7679
  %v7681 = vpop.xlane.xlu0 %7680
  %v7682 = vsel %vm1711, %v7576, 0.0
  %7683 = vadd.xlane.f32.xlu0 %v7682
  %v7684 = vpop.xlane.xlu0 %7683
  %v7685 = vsel %vm1711, %v7577, 0.0
  %7686 = vadd.xlane.f32.xlu0 %v7685
  %v7687 = vpop.xlane.xlu0 %7686
  %v7688 = vsel %vm1711, %v7578, 0.0
  %7689 = vadd.xlane.f32.xlu0 %v7688
  %v7690 = vpop.xlane.xlu0 %7689
  %v7691 = vsel %vm1711, %v7579, 0.0
  %7692 = vadd.xlane.f32.xlu0 %v7691
  %v7693 = vpop.xlane.xlu0 %7692
  %v7694 = vsel %vm1711, %v7580, 0.0
  %7695 = vadd.xlane.f32.xlu0 %v7694
  %v7696 = vpop.xlane.xlu0 %7695
  %v7697 = vsel %vm1711, %v7581, 0.0
  %7698 = vadd.xlane.f32.xlu0 %v7697
  %v7699 = vpop.xlane.xlu0 %7698
  %v7700 = vsel %vm1711, %v7582, 0.0
  %7701 = vadd.xlane.f32.xlu0 %v7700
  %v7702 = vpop.xlane.xlu0 %7701
  %v7703 = vsel %vm1711, %v7583, 0.0
  %7704 = vadd.xlane.f32.xlu0 %v7703
  %v7705 = vpop.xlane.xlu0 %7704
  %v7706 = vsel %vm1711, %v7584, 0.0
  %7707 = vadd.xlane.f32.xlu0 %v7706
  %v7708 = vpop.xlane.xlu0 %7707
  %v7709 = vsel %vm1711, %v7585, 0.0
  %7710 = vadd.xlane.f32.xlu0 %v7709
  %v7711 = vpop.xlane.xlu0 %7710
  %v7712 = vsel %vm1711, %v7586, 0.0
  %7713 = vadd.xlane.f32.xlu0 %v7712
  %v7714 = vpop.xlane.xlu0 %7713
  %v7715 = vsel %vm1711, %v7587, 0.0
  %7716 = vadd.xlane.f32.xlu0 %v7715
  %v7717 = vpop.xlane.xlu0 %7716
  %v7718 = vsel %vm1711, %v7588, 0.0
  %7719 = vadd.xlane.f32.xlu0 %v7718
  %v7720 = vpop.xlane.xlu0 %7719
  %v7721 = vsel %vm1711, %v7589, 0.0
  %7722 = vadd.xlane.f32.xlu0 %v7721
  %v7723 = vpop.xlane.xlu0 %7722
  %v7724 = vsel %vm1711, %v7590, 0.0
  %7725 = vadd.xlane.f32.xlu0 %v7724
  %v7726 = vpop.xlane.xlu0 %7725
  %v7727 = vsel %vm1711, %v7591, 0.0
  %7728 = vadd.xlane.f32.xlu0 %v7727
  %v7729 = vpop.xlane.xlu0 %7728
  %v7730 = vsel %vm1711, %v7592, 0.0
  %7731 = vadd.xlane.f32.xlu0 %v7730
  %v7732 = vpop.xlane.xlu0 %7731
  %v7733 = vsel %vm1711, %v7593, 0.0
  %7734 = vadd.xlane.f32.xlu0 %v7733
  %v7735 = vpop.xlane.xlu0 %7734
  %v7736 = vsel %vm1711, %v7594, 0.0
  %7737 = vadd.xlane.f32.xlu0 %v7736
  %v7738 = vpop.xlane.xlu0 %7737
  %v7739 = vsel %vm1711, %v7595, 0.0
  %7740 = vadd.xlane.f32.xlu0 %v7739
  %v7741 = vpop.xlane.xlu0 %7740
  %v7742 = vsel %vm1711, %v7596, 0.0
  %7743 = vadd.xlane.f32.xlu0 %v7742
  %v7744 = vpop.xlane.xlu0 %7743
  %v7745 = vsel %vm1711, %v7597, 0.0
  %7746 = vadd.xlane.f32.xlu0 %v7745
  %v7747 = vpop.xlane.xlu0 %7746
  %v7748 = vsel %vm1711, %v7598, 0.0
  %7749 = vadd.xlane.f32.xlu0 %v7748
  %v7750 = vpop.xlane.xlu0 %7749
  %v7751 = vsel %vm1711, %v7599, 0.0
  %7752 = vadd.xlane.f32.xlu0 %v7751
  %v7753 = vpop.xlane.xlu0 %7752
  %v7754 = vsel %vm1711, %v7600, 0.0
  %7755 = vadd.xlane.f32.xlu0 %v7754
  %v7756 = vpop.xlane.xlu0 %7755
  %v7757 = vsel %vm1711, %v7601, 0.0
  %7758 = vadd.xlane.f32.xlu0 %v7757
  %v7759 = vpop.xlane.xlu0 %7758
  %v7760 = vsel %vm1711, %v7602, 0.0
  %7761 = vadd.xlane.f32.xlu0 %v7760
  %v7762 = vpop.xlane.xlu0 %7761
  %v7763 = vsel %vm1711, %v7603, 0.0
  %7764 = vadd.xlane.f32.xlu0 %v7763
  %v7765 = vpop.xlane.xlu0 %7764
  %v7766 = vsel %vm1711, %v7604, 0.0
  %7767 = vadd.xlane.f32.xlu0 %v7766
  %v7768 = vpop.xlane.xlu0 %7767
  %v7769 = vsel %vm1711, %v7605, 0.0
  %7770 = vadd.xlane.f32.xlu0 %v7769
  %v7771 = vpop.xlane.xlu0 %7770
  %v7772 = vsel %vm1711, %v7606, 0.0
  %7773 = vadd.xlane.f32.xlu0 %v7772
  %v7774 = vpop.xlane.xlu0 %7773
  %v7775 = vsel %vm1711, %v7607, 0.0
  %7776 = vadd.xlane.f32.xlu0 %v7775
  %v7777 = vpop.xlane.xlu0 %7776
  %v7778 = vsel %vm1711, %v7608, 0.0
  %7779 = vadd.xlane.f32.xlu0 %v7778
  %v7780 = vpop.xlane.xlu0 %7779
  %v7781 = vsel %vm1711, %v7609, 0.0
  %7782 = vadd.xlane.f32.xlu0 %v7781
  %v7783 = vpop.xlane.xlu0 %7782
  %v7784 = vsel %vm1711, %v7610, 0.0
  %7785 = vadd.xlane.f32.xlu0 %v7784
  %v7786 = vpop.xlane.xlu0 %7785
  %v7787 = vsel %vm1711, %v7611, 0.0
  %7788 = vadd.xlane.f32.xlu0 %v7787
  %v7789 = vpop.xlane.xlu0 %7788
  %v7790 = vsel %vm1711, %v7612, 0.0
  %7791 = vadd.xlane.f32.xlu0 %v7790
  %v7792 = vpop.xlane.xlu0 %7791
  %v7793 = vsel %vm1711, %v7613, 0.0
  %7794 = vadd.xlane.f32.xlu0 %v7793
  %v7795 = vpop.xlane.xlu0 %7794
  %v7796 = vsel %vm1711, %v7614, 0.0
  %7797 = vadd.xlane.f32.xlu0 %v7796
  %v7798 = vpop.xlane.xlu0 %7797
  %v7799 = vsel %vm1711, %v7615, 0.0
  %7800 = vadd.xlane.f32.xlu0 %v7799
  %v7801 = vpop.xlane.xlu0 %7800
  %v7802 = vsel %vm1711, %v7616, 0.0
  %7803 = vadd.xlane.f32.xlu0 %v7802
  %v7804 = vpop.xlane.xlu0 %7803
  %v7805 = vsel %vm1711, %v7617, 0.0
  %7806 = vadd.xlane.f32.xlu0 %v7805
  %v7807 = vpop.xlane.xlu0 %7806
  %v7808 = vsel %vm1711, %v7618, 0.0
  %7809 = vadd.xlane.f32.xlu0 %v7808
  %v7810 = vpop.xlane.xlu0 %7809
  %v7811 = vmul.f32 %v7621, %v1808
  %v7812 = vmul.f32 %v7624, %v1808
  %v7813 = vmul.f32 %v7627, %v1808
  %v7814 = vmul.f32 %v7630, %v1808
  %v7815 = vmul.f32 %v7633, %v1808
  %v7816 = vmul.f32 %v7636, %v1808
  %v7817 = vmul.f32 %v7639, %v1808
  %v7818 = vmul.f32 %v7642, %v1808
  %v7819 = vmul.f32 %v7645, %v1808
  %v7820 = vmul.f32 %v7648, %v1808
  %v7821 = vmul.f32 %v7651, %v1808
  %v7822 = vmul.f32 %v7654, %v1808
  %v7823 = vmul.f32 %v7657, %v1808
  %v7824 = vmul.f32 %v7660, %v1808
  %v7825 = vmul.f32 %v7663, %v1808
  %v7826 = vmul.f32 %v7666, %v1808
  %v7827 = vmul.f32 %v7669, %v1808
  %v7828 = vmul.f32 %v7672, %v1808
  %v7829 = vmul.f32 %v7675, %v1808
  %v7830 = vmul.f32 %v7678, %v1808
  %v7831 = vmul.f32 %v7681, %v1808
  %v7832 = vmul.f32 %v7684, %v1808
  %v7833 = vmul.f32 %v7687, %v1808
  %v7834 = vmul.f32 %v7690, %v1808
  %v7835 = vmul.f32 %v7693, %v1808
  %v7836 = vmul.f32 %v7696, %v1808
  %v7837 = vmul.f32 %v7699, %v1808
  %v7838 = vmul.f32 %v7702, %v1808
  %v7839 = vmul.f32 %v7705, %v1808
  %v7840 = vmul.f32 %v7708, %v1808
  %v7841 = vmul.f32 %v7711, %v1808
  %v7842 = vmul.f32 %v7714, %v1808
  %v7843 = vmul.f32 %v7717, %v1808
  %v7844 = vmul.f32 %v7720, %v1808
  %v7845 = vmul.f32 %v7723, %v1808
  %v7846 = vmul.f32 %v7726, %v1808
  %v7847 = vmul.f32 %v7729, %v1808
  %v7848 = vmul.f32 %v7732, %v1808
  %v7849 = vmul.f32 %v7735, %v1808
  %v7850 = vmul.f32 %v7738, %v1808
  %v7851 = vmul.f32 %v7741, %v1808
  %v7852 = vmul.f32 %v7744, %v1808
  %v7853 = vmul.f32 %v7747, %v1808
  %v7854 = vmul.f32 %v7750, %v1808
  %v7855 = vmul.f32 %v7753, %v1808
  %v7856 = vmul.f32 %v7756, %v1808
  %v7857 = vmul.f32 %v7759, %v1808
  %v7858 = vmul.f32 %v7762, %v1808
  %v7859 = vmul.f32 %v7765, %v1808
  %v7860 = vmul.f32 %v7768, %v1808
  %v7861 = vmul.f32 %v7771, %v1808
  %v7862 = vmul.f32 %v7774, %v1808
  %v7863 = vmul.f32 %v7777, %v1808
  %v7864 = vmul.f32 %v7780, %v1808
  %v7865 = vmul.f32 %v7783, %v1808
  %v7866 = vmul.f32 %v7786, %v1808
  %v7867 = vmul.f32 %v7789, %v1808
  %v7868 = vmul.f32 %v7792, %v1808
  %v7869 = vmul.f32 %v7795, %v1808
  %v7870 = vmul.f32 %v7798, %v1808
  %v7871 = vmul.f32 %v7801, %v1808
  %v7872 = vmul.f32 %v7804, %v1808
  %v7873 = vmul.f32 %v7807, %v1808
  %v7874 = vmul.f32 %v7810, %v1808
  %v7875 = vsub.f32 %v7555, %v7811
  %v7876 = vsub.f32 %v7556, %v7812
  %v7877 = vsub.f32 %v7557, %v7813
  %v7878 = vsub.f32 %v7558, %v7814
  %v7879 = vsub.f32 %v7559, %v7815
  %v7880 = vsub.f32 %v7560, %v7816
  %v7881 = vsub.f32 %v7561, %v7817
  %v7882 = vsub.f32 %v7562, %v7818
  %v7883 = vsub.f32 %v7563, %v7819
  %v7884 = vsub.f32 %v7564, %v7820
  %v7885 = vsub.f32 %v7565, %v7821
  %v7886 = vsub.f32 %v7566, %v7822
  %v7887 = vsub.f32 %v7567, %v7823
  %v7888 = vsub.f32 %v7568, %v7824
  %v7889 = vsub.f32 %v7569, %v7825
  %v7890 = vsub.f32 %v7570, %v7826
  %v7891 = vsub.f32 %v7571, %v7827
  %v7892 = vsub.f32 %v7572, %v7828
  %v7893 = vsub.f32 %v7573, %v7829
  %v7894 = vsub.f32 %v7574, %v7830
  %v7895 = vsub.f32 %v7575, %v7831
  %v7896 = vsub.f32 %v7576, %v7832
  %v7897 = vsub.f32 %v7577, %v7833
  %v7898 = vsub.f32 %v7578, %v7834
  %v7899 = vsub.f32 %v7579, %v7835
  %v7900 = vsub.f32 %v7580, %v7836
  %v7901 = vsub.f32 %v7581, %v7837
  %v7902 = vsub.f32 %v7582, %v7838
  %v7903 = vsub.f32 %v7583, %v7839
  %v7904 = vsub.f32 %v7584, %v7840
  %v7905 = vsub.f32 %v7585, %v7841
  %v7906 = vsub.f32 %v7586, %v7842
  %v7907 = vsub.f32 %v7587, %v7843
  %v7908 = vsub.f32 %v7588, %v7844
  %v7909 = vsub.f32 %v7589, %v7845
  %v7910 = vsub.f32 %v7590, %v7846
  %v7911 = vsub.f32 %v7591, %v7847
  %v7912 = vsub.f32 %v7592, %v7848
  %v7913 = vsub.f32 %v7593, %v7849
  %v7914 = vsub.f32 %v7594, %v7850
  %v7915 = vsub.f32 %v7595, %v7851
  %v7916 = vsub.f32 %v7596, %v7852
  %v7917 = vsub.f32 %v7597, %v7853
  %v7918 = vsub.f32 %v7598, %v7854
  %v7919 = vsub.f32 %v7599, %v7855
  %v7920 = vsub.f32 %v7600, %v7856
  %v7921 = vsub.f32 %v7601, %v7857
  %v7922 = vsub.f32 %v7602, %v7858
  %v7923 = vsub.f32 %v7603, %v7859
  %v7924 = vsub.f32 %v7604, %v7860
  %v7925 = vsub.f32 %v7605, %v7861
  %v7926 = vsub.f32 %v7606, %v7862
  %v7927 = vsub.f32 %v7607, %v7863
  %v7928 = vsub.f32 %v7608, %v7864
  %v7929 = vsub.f32 %v7609, %v7865
  %v7930 = vsub.f32 %v7610, %v7866
  %v7931 = vsub.f32 %v7611, %v7867
  %v7932 = vsub.f32 %v7612, %v7868
  %v7933 = vsub.f32 %v7613, %v7869
  %v7934 = vsub.f32 %v7614, %v7870
  %v7935 = vsub.f32 %v7615, %v7871
  %v7936 = vsub.f32 %v7616, %v7872
  %v7937 = vsub.f32 %v7617, %v7873
  %v7938 = vsub.f32 %v7618, %v7874
  %v7939 = vmul.f32 %v7875, %v7875
  %v7940 = vmul.f32 %v7876, %v7876
  %v7941 = vmul.f32 %v7877, %v7877
  %v7942 = vmul.f32 %v7878, %v7878
  %v7943 = vmul.f32 %v7879, %v7879
  %v7944 = vmul.f32 %v7880, %v7880
  %v7945 = vmul.f32 %v7881, %v7881
  %v7946 = vmul.f32 %v7882, %v7882
  %v7947 = vmul.f32 %v7883, %v7883
  %v7948 = vmul.f32 %v7884, %v7884
  %v7949 = vmul.f32 %v7885, %v7885
  %v7950 = vmul.f32 %v7886, %v7886
  %v7951 = vmul.f32 %v7887, %v7887
  %v7952 = vmul.f32 %v7888, %v7888
  %v7953 = vmul.f32 %v7889, %v7889
  %v7954 = vmul.f32 %v7890, %v7890
  %v7955 = vmul.f32 %v7891, %v7891
  %v7956 = vmul.f32 %v7892, %v7892
  %v7957 = vmul.f32 %v7893, %v7893
  %v7958 = vmul.f32 %v7894, %v7894
  %v7959 = vmul.f32 %v7895, %v7895
  %v7960 = vmul.f32 %v7896, %v7896
  %v7961 = vmul.f32 %v7897, %v7897
  %v7962 = vmul.f32 %v7898, %v7898
  %v7963 = vmul.f32 %v7899, %v7899
  %v7964 = vmul.f32 %v7900, %v7900
  %v7965 = vmul.f32 %v7901, %v7901
  %v7966 = vmul.f32 %v7902, %v7902
  %v7967 = vmul.f32 %v7903, %v7903
  %v7968 = vmul.f32 %v7904, %v7904
  %v7969 = vmul.f32 %v7905, %v7905
  %v7970 = vmul.f32 %v7906, %v7906
  %v7971 = vmul.f32 %v7907, %v7907
  %v7972 = vmul.f32 %v7908, %v7908
  %v7973 = vmul.f32 %v7909, %v7909
  %v7974 = vmul.f32 %v7910, %v7910
  %v7975 = vmul.f32 %v7911, %v7911
  %v7976 = vmul.f32 %v7912, %v7912
  %v7977 = vmul.f32 %v7913, %v7913
  %v7978 = vmul.f32 %v7914, %v7914
  %v7979 = vmul.f32 %v7915, %v7915
  %v7980 = vmul.f32 %v7916, %v7916
  %v7981 = vmul.f32 %v7917, %v7917
  %v7982 = vmul.f32 %v7918, %v7918
  %v7983 = vmul.f32 %v7919, %v7919
  %v7984 = vmul.f32 %v7920, %v7920
  %v7985 = vmul.f32 %v7921, %v7921
  %v7986 = vmul.f32 %v7922, %v7922
  %v7987 = vmul.f32 %v7923, %v7923
  %v7988 = vmul.f32 %v7924, %v7924
  %v7989 = vmul.f32 %v7925, %v7925
  %v7990 = vmul.f32 %v7926, %v7926
  %v7991 = vmul.f32 %v7927, %v7927
  %v7992 = vmul.f32 %v7928, %v7928
  %v7993 = vmul.f32 %v7929, %v7929
  %v7994 = vmul.f32 %v7930, %v7930
  %v7995 = vmul.f32 %v7931, %v7931
  %v7996 = vmul.f32 %v7932, %v7932
  %v7997 = vmul.f32 %v7933, %v7933
  %v7998 = vmul.f32 %v7934, %v7934
  %v7999 = vmul.f32 %v7935, %v7935
  %v8000 = vmul.f32 %v7936, %v7936
  %v8001 = vmul.f32 %v7937, %v7937
  %v8002 = vmul.f32 %v7938, %v7938
  %v8003 = vsel %vm1711, %v7939, 0.0
  %8004 = vadd.xlane.f32.xlu0 %v8003
  %v8005 = vpop.xlane.xlu0 %8004
  %v8006 = vsel %vm1711, %v7940, 0.0
  %8007 = vadd.xlane.f32.xlu0 %v8006
  %v8008 = vpop.xlane.xlu0 %8007
  %v8009 = vsel %vm1711, %v7941, 0.0
  %8010 = vadd.xlane.f32.xlu0 %v8009
  %v8011 = vpop.xlane.xlu0 %8010
  %v8012 = vsel %vm1711, %v7942, 0.0
  %8013 = vadd.xlane.f32.xlu0 %v8012
  %v8014 = vpop.xlane.xlu0 %8013
  %v8015 = vsel %vm1711, %v7943, 0.0
  %8016 = vadd.xlane.f32.xlu0 %v8015
  %v8017 = vpop.xlane.xlu0 %8016
  %v8018 = vsel %vm1711, %v7944, 0.0
  %8019 = vadd.xlane.f32.xlu0 %v8018
  %v8020 = vpop.xlane.xlu0 %8019
  %v8021 = vsel %vm1711, %v7945, 0.0
  %8022 = vadd.xlane.f32.xlu0 %v8021
  %v8023 = vpop.xlane.xlu0 %8022
  %v8024 = vsel %vm1711, %v7946, 0.0
  %8025 = vadd.xlane.f32.xlu0 %v8024
  %v8026 = vpop.xlane.xlu0 %8025
  %v8027 = vsel %vm1711, %v7947, 0.0
  %8028 = vadd.xlane.f32.xlu0 %v8027
  %v8029 = vpop.xlane.xlu0 %8028
  %v8030 = vsel %vm1711, %v7948, 0.0
  %8031 = vadd.xlane.f32.xlu0 %v8030
  %v8032 = vpop.xlane.xlu0 %8031
  %v8033 = vsel %vm1711, %v7949, 0.0
  %8034 = vadd.xlane.f32.xlu0 %v8033
  %v8035 = vpop.xlane.xlu0 %8034
  %v8036 = vsel %vm1711, %v7950, 0.0
  %8037 = vadd.xlane.f32.xlu0 %v8036
  %v8038 = vpop.xlane.xlu0 %8037
  %v8039 = vsel %vm1711, %v7951, 0.0
  %8040 = vadd.xlane.f32.xlu0 %v8039
  %v8041 = vpop.xlane.xlu0 %8040
  %v8042 = vsel %vm1711, %v7952, 0.0
  %8043 = vadd.xlane.f32.xlu0 %v8042
  %v8044 = vpop.xlane.xlu0 %8043
  %v8045 = vsel %vm1711, %v7953, 0.0
  %8046 = vadd.xlane.f32.xlu0 %v8045
  %v8047 = vpop.xlane.xlu0 %8046
  %v8048 = vsel %vm1711, %v7954, 0.0
  %8049 = vadd.xlane.f32.xlu0 %v8048
  %v8050 = vpop.xlane.xlu0 %8049
  %v8051 = vsel %vm1711, %v7955, 0.0
  %8052 = vadd.xlane.f32.xlu0 %v8051
  %v8053 = vpop.xlane.xlu0 %8052
  %v8054 = vsel %vm1711, %v7956, 0.0
  %8055 = vadd.xlane.f32.xlu0 %v8054
  %v8056 = vpop.xlane.xlu0 %8055
  %v8057 = vsel %vm1711, %v7957, 0.0
  %8058 = vadd.xlane.f32.xlu0 %v8057
  %v8059 = vpop.xlane.xlu0 %8058
  %v8060 = vsel %vm1711, %v7958, 0.0
  %8061 = vadd.xlane.f32.xlu0 %v8060
  %v8062 = vpop.xlane.xlu0 %8061
  %v8063 = vsel %vm1711, %v7959, 0.0
  %8064 = vadd.xlane.f32.xlu0 %v8063
  %v8065 = vpop.xlane.xlu0 %8064
  %v8066 = vsel %vm1711, %v7960, 0.0
  %8067 = vadd.xlane.f32.xlu0 %v8066
  %v8068 = vpop.xlane.xlu0 %8067
  %v8069 = vsel %vm1711, %v7961, 0.0
  %8070 = vadd.xlane.f32.xlu0 %v8069
  %v8071 = vpop.xlane.xlu0 %8070
  %v8072 = vsel %vm1711, %v7962, 0.0
  %8073 = vadd.xlane.f32.xlu0 %v8072
  %v8074 = vpop.xlane.xlu0 %8073
  %v8075 = vsel %vm1711, %v7963, 0.0
  %8076 = vadd.xlane.f32.xlu0 %v8075
  %v8077 = vpop.xlane.xlu0 %8076
  %v8078 = vsel %vm1711, %v7964, 0.0
  %8079 = vadd.xlane.f32.xlu0 %v8078
  %v8080 = vpop.xlane.xlu0 %8079
  %v8081 = vsel %vm1711, %v7965, 0.0
  %8082 = vadd.xlane.f32.xlu0 %v8081
  %v8083 = vpop.xlane.xlu0 %8082
  %v8084 = vsel %vm1711, %v7966, 0.0
  %8085 = vadd.xlane.f32.xlu0 %v8084
  %v8086 = vpop.xlane.xlu0 %8085
  %v8087 = vsel %vm1711, %v7967, 0.0
  %8088 = vadd.xlane.f32.xlu0 %v8087
  %v8089 = vpop.xlane.xlu0 %8088
  %v8090 = vsel %vm1711, %v7968, 0.0
  %8091 = vadd.xlane.f32.xlu0 %v8090
  %v8092 = vpop.xlane.xlu0 %8091
  %v8093 = vsel %vm1711, %v7969, 0.0
  %8094 = vadd.xlane.f32.xlu0 %v8093
  %v8095 = vpop.xlane.xlu0 %8094
  %v8096 = vsel %vm1711, %v7970, 0.0
  %8097 = vadd.xlane.f32.xlu0 %v8096
  %v8098 = vpop.xlane.xlu0 %8097
  %v8099 = vsel %vm1711, %v7971, 0.0
  %8100 = vadd.xlane.f32.xlu0 %v8099
  %v8101 = vpop.xlane.xlu0 %8100
  %v8102 = vsel %vm1711, %v7972, 0.0
  %8103 = vadd.xlane.f32.xlu0 %v8102
  %v8104 = vpop.xlane.xlu0 %8103
  %v8105 = vsel %vm1711, %v7973, 0.0
  %8106 = vadd.xlane.f32.xlu0 %v8105
  %v8107 = vpop.xlane.xlu0 %8106
  %v8108 = vsel %vm1711, %v7974, 0.0
  %8109 = vadd.xlane.f32.xlu0 %v8108
  %v8110 = vpop.xlane.xlu0 %8109
  %v8111 = vsel %vm1711, %v7975, 0.0
  %8112 = vadd.xlane.f32.xlu0 %v8111
  %v8113 = vpop.xlane.xlu0 %8112
  %v8114 = vsel %vm1711, %v7976, 0.0
  %8115 = vadd.xlane.f32.xlu0 %v8114
  %v8116 = vpop.xlane.xlu0 %8115
  %v8117 = vsel %vm1711, %v7977, 0.0
  %8118 = vadd.xlane.f32.xlu0 %v8117
  %v8119 = vpop.xlane.xlu0 %8118
  %v8120 = vsel %vm1711, %v7978, 0.0
  %8121 = vadd.xlane.f32.xlu0 %v8120
  %v8122 = vpop.xlane.xlu0 %8121
  %v8123 = vsel %vm1711, %v7979, 0.0
  %8124 = vadd.xlane.f32.xlu0 %v8123
  %v8125 = vpop.xlane.xlu0 %8124
  %v8126 = vsel %vm1711, %v7980, 0.0
  %8127 = vadd.xlane.f32.xlu0 %v8126
  %v8128 = vpop.xlane.xlu0 %8127
  %v8129 = vsel %vm1711, %v7981, 0.0
  %8130 = vadd.xlane.f32.xlu0 %v8129
  %v8131 = vpop.xlane.xlu0 %8130
  %v8132 = vsel %vm1711, %v7982, 0.0
  %8133 = vadd.xlane.f32.xlu0 %v8132
  %v8134 = vpop.xlane.xlu0 %8133
  %v8135 = vsel %vm1711, %v7983, 0.0
  %8136 = vadd.xlane.f32.xlu0 %v8135
  %v8137 = vpop.xlane.xlu0 %8136
  %v8138 = vsel %vm1711, %v7984, 0.0
  %8139 = vadd.xlane.f32.xlu0 %v8138
  %v8140 = vpop.xlane.xlu0 %8139
  %v8141 = vsel %vm1711, %v7985, 0.0
  %8142 = vadd.xlane.f32.xlu0 %v8141
  %v8143 = vpop.xlane.xlu0 %8142
  %v8144 = vsel %vm1711, %v7986, 0.0
  %8145 = vadd.xlane.f32.xlu0 %v8144
  %v8146 = vpop.xlane.xlu0 %8145
  %v8147 = vsel %vm1711, %v7987, 0.0
  %8148 = vadd.xlane.f32.xlu0 %v8147
  %v8149 = vpop.xlane.xlu0 %8148
  %v8150 = vsel %vm1711, %v7988, 0.0
  %8151 = vadd.xlane.f32.xlu0 %v8150
  %v8152 = vpop.xlane.xlu0 %8151
  %v8153 = vsel %vm1711, %v7989, 0.0
  %8154 = vadd.xlane.f32.xlu0 %v8153
  %v8155 = vpop.xlane.xlu0 %8154
  %v8156 = vsel %vm1711, %v7990, 0.0
  %8157 = vadd.xlane.f32.xlu0 %v8156
  %v8158 = vpop.xlane.xlu0 %8157
  %v8159 = vsel %vm1711, %v7991, 0.0
  %8160 = vadd.xlane.f32.xlu0 %v8159
  %v8161 = vpop.xlane.xlu0 %8160
  %v8162 = vsel %vm1711, %v7992, 0.0
  %8163 = vadd.xlane.f32.xlu0 %v8162
  %v8164 = vpop.xlane.xlu0 %8163
  %v8165 = vsel %vm1711, %v7993, 0.0
  %8166 = vadd.xlane.f32.xlu0 %v8165
  %v8167 = vpop.xlane.xlu0 %8166
  %v8168 = vsel %vm1711, %v7994, 0.0
  %8169 = vadd.xlane.f32.xlu0 %v8168
  %v8170 = vpop.xlane.xlu0 %8169
  %v8171 = vsel %vm1711, %v7995, 0.0
  %8172 = vadd.xlane.f32.xlu0 %v8171
  %v8173 = vpop.xlane.xlu0 %8172
  %v8174 = vsel %vm1711, %v7996, 0.0
  %8175 = vadd.xlane.f32.xlu0 %v8174
  %v8176 = vpop.xlane.xlu0 %8175
  %v8177 = vsel %vm1711, %v7997, 0.0
  %8178 = vadd.xlane.f32.xlu0 %v8177
  %v8179 = vpop.xlane.xlu0 %8178
  %v8180 = vsel %vm1711, %v7998, 0.0
  %8181 = vadd.xlane.f32.xlu0 %v8180
  %v8182 = vpop.xlane.xlu0 %8181
  %v8183 = vsel %vm1711, %v7999, 0.0
  %8184 = vadd.xlane.f32.xlu0 %v8183
  %v8185 = vpop.xlane.xlu0 %8184
  %v8186 = vsel %vm1711, %v8000, 0.0
  %8187 = vadd.xlane.f32.xlu0 %v8186
  %v8188 = vpop.xlane.xlu0 %8187
  %v8189 = vsel %vm1711, %v8001, 0.0
  %8190 = vadd.xlane.f32.xlu0 %v8189
  %v8191 = vpop.xlane.xlu0 %8190
  %v8192 = vsel %vm1711, %v8002, 0.0
  %8193 = vadd.xlane.f32.xlu0 %v8192
  %v8194 = vpop.xlane.xlu0 %8193
  %v8195 = vmul.f32 %v8005, %v1808
  %v8196 = vmul.f32 %v8008, %v1808
  %v8197 = vmul.f32 %v8011, %v1808
  %v8198 = vmul.f32 %v8014, %v1808
  %v8199 = vmul.f32 %v8017, %v1808
  %v8200 = vmul.f32 %v8020, %v1808
  %v8201 = vmul.f32 %v8023, %v1808
  %v8202 = vmul.f32 %v8026, %v1808
  %v8203 = vmul.f32 %v8029, %v1808
  %v8204 = vmul.f32 %v8032, %v1808
  %v8205 = vmul.f32 %v8035, %v1808
  %v8206 = vmul.f32 %v8038, %v1808
  %v8207 = vmul.f32 %v8041, %v1808
  %v8208 = vmul.f32 %v8044, %v1808
  %v8209 = vmul.f32 %v8047, %v1808
  %v8210 = vmul.f32 %v8050, %v1808
  %v8211 = vmul.f32 %v8053, %v1808
  %v8212 = vmul.f32 %v8056, %v1808
  %v8213 = vmul.f32 %v8059, %v1808
  %v8214 = vmul.f32 %v8062, %v1808
  %v8215 = vmul.f32 %v8065, %v1808
  %v8216 = vmul.f32 %v8068, %v1808
  %v8217 = vmul.f32 %v8071, %v1808
  %v8218 = vmul.f32 %v8074, %v1808
  %v8219 = vmul.f32 %v8077, %v1808
  %v8220 = vmul.f32 %v8080, %v1808
  %v8221 = vmul.f32 %v8083, %v1808
  %v8222 = vmul.f32 %v8086, %v1808
  %v8223 = vmul.f32 %v8089, %v1808
  %v8224 = vmul.f32 %v8092, %v1808
  %v8225 = vmul.f32 %v8095, %v1808
  %v8226 = vmul.f32 %v8098, %v1808
  %v8227 = vmul.f32 %v8101, %v1808
  %v8228 = vmul.f32 %v8104, %v1808
  %v8229 = vmul.f32 %v8107, %v1808
  %v8230 = vmul.f32 %v8110, %v1808
  %v8231 = vmul.f32 %v8113, %v1808
  %v8232 = vmul.f32 %v8116, %v1808
  %v8233 = vmul.f32 %v8119, %v1808
  %v8234 = vmul.f32 %v8122, %v1808
  %v8235 = vmul.f32 %v8125, %v1808
  %v8236 = vmul.f32 %v8128, %v1808
  %v8237 = vmul.f32 %v8131, %v1808
  %v8238 = vmul.f32 %v8134, %v1808
  %v8239 = vmul.f32 %v8137, %v1808
  %v8240 = vmul.f32 %v8140, %v1808
  %v8241 = vmul.f32 %v8143, %v1808
  %v8242 = vmul.f32 %v8146, %v1808
  %v8243 = vmul.f32 %v8149, %v1808
  %v8244 = vmul.f32 %v8152, %v1808
  %v8245 = vmul.f32 %v8155, %v1808
  %v8246 = vmul.f32 %v8158, %v1808
  %v8247 = vmul.f32 %v8161, %v1808
  %v8248 = vmul.f32 %v8164, %v1808
  %v8249 = vmul.f32 %v8167, %v1808
  %v8250 = vmul.f32 %v8170, %v1808
  %v8251 = vmul.f32 %v8173, %v1808
  %v8252 = vmul.f32 %v8176, %v1808
  %v8253 = vmul.f32 %v8179, %v1808
  %v8254 = vmul.f32 %v8182, %v1808
  %v8255 = vmul.f32 %v8185, %v1808
  %v8256 = vmul.f32 %v8188, %v1808
  %v8257 = vmul.f32 %v8191, %v1808
  %v8258 = vmul.f32 %v8194, %v1808
  %v8259 = vadd.f32 %v8195, 1e-05
  %v8260 = vadd.f32 %v8196, 1e-05
  %v8261 = vadd.f32 %v8197, 1e-05
  %v8262 = vadd.f32 %v8198, 1e-05
  %v8263 = vadd.f32 %v8199, 1e-05
  %v8264 = vadd.f32 %v8200, 1e-05
  %v8265 = vadd.f32 %v8201, 1e-05
  %v8266 = vadd.f32 %v8202, 1e-05
  %v8267 = vadd.f32 %v8203, 1e-05
  %v8268 = vadd.f32 %v8204, 1e-05
  %v8269 = vadd.f32 %v8205, 1e-05
  %v8270 = vadd.f32 %v8206, 1e-05
  %v8271 = vadd.f32 %v8207, 1e-05
  %v8272 = vadd.f32 %v8208, 1e-05
  %v8273 = vadd.f32 %v8209, 1e-05
  %v8274 = vadd.f32 %v8210, 1e-05
  %v8275 = vadd.f32 %v8211, 1e-05
  %v8276 = vadd.f32 %v8212, 1e-05
  %v8277 = vadd.f32 %v8213, 1e-05
  %v8278 = vadd.f32 %v8214, 1e-05
  %v8279 = vadd.f32 %v8215, 1e-05
  %v8280 = vadd.f32 %v8216, 1e-05
  %v8281 = vadd.f32 %v8217, 1e-05
  %v8282 = vadd.f32 %v8218, 1e-05
  %v8283 = vadd.f32 %v8219, 1e-05
  %v8284 = vadd.f32 %v8220, 1e-05
  %v8285 = vadd.f32 %v8221, 1e-05
  %v8286 = vadd.f32 %v8222, 1e-05
  %v8287 = vadd.f32 %v8223, 1e-05
  %v8288 = vadd.f32 %v8224, 1e-05
  %v8289 = vadd.f32 %v8225, 1e-05
  %v8290 = vadd.f32 %v8226, 1e-05
  %v8291 = vadd.f32 %v8227, 1e-05
  %v8292 = vadd.f32 %v8228, 1e-05
  %v8293 = vadd.f32 %v8229, 1e-05
  %v8294 = vadd.f32 %v8230, 1e-05
  %v8295 = vadd.f32 %v8231, 1e-05
  %v8296 = vadd.f32 %v8232, 1e-05
  %v8297 = vadd.f32 %v8233, 1e-05
  %v8298 = vadd.f32 %v8234, 1e-05
  %v8299 = vadd.f32 %v8235, 1e-05
  %v8300 = vadd.f32 %v8236, 1e-05
  %v8301 = vadd.f32 %v8237, 1e-05
  %v8302 = vadd.f32 %v8238, 1e-05
  %v8303 = vadd.f32 %v8239, 1e-05
  %v8304 = vadd.f32 %v8240, 1e-05
  %v8305 = vadd.f32 %v8241, 1e-05
  %v8306 = vadd.f32 %v8242, 1e-05
  %v8307 = vadd.f32 %v8243, 1e-05
  %v8308 = vadd.f32 %v8244, 1e-05
  %v8309 = vadd.f32 %v8245, 1e-05
  %v8310 = vadd.f32 %v8246, 1e-05
  %v8311 = vadd.f32 %v8247, 1e-05
  %v8312 = vadd.f32 %v8248, 1e-05
  %v8313 = vadd.f32 %v8249, 1e-05
  %v8314 = vadd.f32 %v8250, 1e-05
  %v8315 = vadd.f32 %v8251, 1e-05
  %v8316 = vadd.f32 %v8252, 1e-05
  %v8317 = vadd.f32 %v8253, 1e-05
  %v8318 = vadd.f32 %v8254, 1e-05
  %v8319 = vadd.f32 %v8255, 1e-05
  %v8320 = vadd.f32 %v8256, 1e-05
  %v8321 = vadd.f32 %v8257, 1e-05
  %v8322 = vadd.f32 %v8258, 1e-05
  %v8323 = vrsqrt.pop %v8259
  %v8324 = vrsqrt.pop %v8260
  %v8325 = vrsqrt.pop %v8261
  %v8326 = vrsqrt.pop %v8262
  %v8327 = vrsqrt.pop %v8263
  %v8328 = vrsqrt.pop %v8264
  %v8329 = vrsqrt.pop %v8265
  %v8330 = vrsqrt.pop %v8266
  %v8331 = vrsqrt.pop %v8267
  %v8332 = vrsqrt.pop %v8268
  %v8333 = vrsqrt.pop %v8269
  %v8334 = vrsqrt.pop %v8270
  %v8335 = vrsqrt.pop %v8271
  %v8336 = vrsqrt.pop %v8272
  %v8337 = vrsqrt.pop %v8273
  %v8338 = vrsqrt.pop %v8274
  %v8339 = vrsqrt.pop %v8275
  %v8340 = vrsqrt.pop %v8276
  %v8341 = vrsqrt.pop %v8277
  %v8342 = vrsqrt.pop %v8278
  %v8343 = vrsqrt.pop %v8279
  %v8344 = vrsqrt.pop %v8280
  %v8345 = vrsqrt.pop %v8281
  %v8346 = vrsqrt.pop %v8282
  %v8347 = vrsqrt.pop %v8283
  %v8348 = vrsqrt.pop %v8284
  %v8349 = vrsqrt.pop %v8285
  %v8350 = vrsqrt.pop %v8286
  %v8351 = vrsqrt.pop %v8287
  %v8352 = vrsqrt.pop %v8288
  %v8353 = vrsqrt.pop %v8289
  %v8354 = vrsqrt.pop %v8290
  %v8355 = vrsqrt.pop %v8291
  %v8356 = vrsqrt.pop %v8292
  %v8357 = vrsqrt.pop %v8293
  %v8358 = vrsqrt.pop %v8294
  %v8359 = vrsqrt.pop %v8295
  %v8360 = vrsqrt.pop %v8296
  %v8361 = vrsqrt.pop %v8297
  %v8362 = vrsqrt.pop %v8298
  %v8363 = vrsqrt.pop %v8299
  %v8364 = vrsqrt.pop %v8300
  %v8365 = vrsqrt.pop %v8301
  %v8366 = vrsqrt.pop %v8302
  %v8367 = vrsqrt.pop %v8303
  %v8368 = vrsqrt.pop %v8304
  %v8369 = vrsqrt.pop %v8305
  %v8370 = vrsqrt.pop %v8306
  %v8371 = vrsqrt.pop %v8307
  %v8372 = vrsqrt.pop %v8308
  %v8373 = vrsqrt.pop %v8309
  %v8374 = vrsqrt.pop %v8310
  %v8375 = vrsqrt.pop %v8311
  %v8376 = vrsqrt.pop %v8312
  %v8377 = vrsqrt.pop %v8313
  %v8378 = vrsqrt.pop %v8314
  %v8379 = vrsqrt.pop %v8315
  %v8380 = vrsqrt.pop %v8316
  %v8381 = vrsqrt.pop %v8317
  %v8382 = vrsqrt.pop %v8318
  %v8383 = vrsqrt.pop %v8319
  %v8384 = vrsqrt.pop %v8320
  %v8385 = vrsqrt.pop %v8321
  %v8386 = vrsqrt.pop %v8322
  %v8387 = vmul.f32 %v7875, %v8323
  %v8388 = vmul.f32 %v7876, %v8324
  %v8389 = vmul.f32 %v7877, %v8325
  %v8390 = vmul.f32 %v7878, %v8326
  %v8391 = vmul.f32 %v7879, %v8327
  %v8392 = vmul.f32 %v7880, %v8328
  %v8393 = vmul.f32 %v7881, %v8329
  %v8394 = vmul.f32 %v7882, %v8330
  %v8395 = vmul.f32 %v7883, %v8331
  %v8396 = vmul.f32 %v7884, %v8332
  %v8397 = vmul.f32 %v7885, %v8333
  %v8398 = vmul.f32 %v7886, %v8334
  %v8399 = vmul.f32 %v7887, %v8335
  %v8400 = vmul.f32 %v7888, %v8336
  %v8401 = vmul.f32 %v7889, %v8337
  %v8402 = vmul.f32 %v7890, %v8338
  %v8403 = vmul.f32 %v7891, %v8339
  %v8404 = vmul.f32 %v7892, %v8340
  %v8405 = vmul.f32 %v7893, %v8341
  %v8406 = vmul.f32 %v7894, %v8342
  %v8407 = vmul.f32 %v7895, %v8343
  %v8408 = vmul.f32 %v7896, %v8344
  %v8409 = vmul.f32 %v7897, %v8345
  %v8410 = vmul.f32 %v7898, %v8346
  %v8411 = vmul.f32 %v7899, %v8347
  %v8412 = vmul.f32 %v7900, %v8348
  %v8413 = vmul.f32 %v7901, %v8349
  %v8414 = vmul.f32 %v7902, %v8350
  %v8415 = vmul.f32 %v7903, %v8351
  %v8416 = vmul.f32 %v7904, %v8352
  %v8417 = vmul.f32 %v7905, %v8353
  %v8418 = vmul.f32 %v7906, %v8354
  %v8419 = vmul.f32 %v7907, %v8355
  %v8420 = vmul.f32 %v7908, %v8356
  %v8421 = vmul.f32 %v7909, %v8357
  %v8422 = vmul.f32 %v7910, %v8358
  %v8423 = vmul.f32 %v7911, %v8359
  %v8424 = vmul.f32 %v7912, %v8360
  %v8425 = vmul.f32 %v7913, %v8361
  %v8426 = vmul.f32 %v7914, %v8362
  %v8427 = vmul.f32 %v7915, %v8363
  %v8428 = vmul.f32 %v7916, %v8364
  %v8429 = vmul.f32 %v7917, %v8365
  %v8430 = vmul.f32 %v7918, %v8366
  %v8431 = vmul.f32 %v7919, %v8367
  %v8432 = vmul.f32 %v7920, %v8368
  %v8433 = vmul.f32 %v7921, %v8369
  %v8434 = vmul.f32 %v7922, %v8370
  %v8435 = vmul.f32 %v7923, %v8371
  %v8436 = vmul.f32 %v7924, %v8372
  %v8437 = vmul.f32 %v7925, %v8373
  %v8438 = vmul.f32 %v7926, %v8374
  %v8439 = vmul.f32 %v7927, %v8375
  %v8440 = vmul.f32 %v7928, %v8376
  %v8441 = vmul.f32 %v7929, %v8377
  %v8442 = vmul.f32 %v7930, %v8378
  %v8443 = vmul.f32 %v7931, %v8379
  %v8444 = vmul.f32 %v7932, %v8380
  %v8445 = vmul.f32 %v7933, %v8381
  %v8446 = vmul.f32 %v7934, %v8382
  %v8447 = vmul.f32 %v7935, %v8383
  %v8448 = vmul.f32 %v7936, %v8384
  %v8449 = vmul.f32 %v7937, %v8385
  %v8450 = vmul.f32 %v7938, %v8386
  %v8451 = vlaneseq
  %v8452 = vshrl.u32 %v8451, 7
  %v8453 = vsub.s32 5, %v8452
  %v8454 = vrot.slane %v31, %v8453
  %v8455 = vmul.f32 %v8387, %v8454
  %v8456 = vmul.f32 %v8388, %v8454
  %v8457 = vmul.f32 %v8389, %v8454
  %v8458 = vmul.f32 %v8390, %v8454
  %v8459 = vmul.f32 %v8391, %v8454
  %v8460 = vmul.f32 %v8392, %v8454
  %v8461 = vmul.f32 %v8393, %v8454
  %v8462 = vmul.f32 %v8394, %v8454
  %v8463 = vmul.f32 %v8395, %v8454
  %v8464 = vmul.f32 %v8396, %v8454
  %v8465 = vmul.f32 %v8397, %v8454
  %v8466 = vmul.f32 %v8398, %v8454
  %v8467 = vmul.f32 %v8399, %v8454
  %v8468 = vmul.f32 %v8400, %v8454
  %v8469 = vmul.f32 %v8401, %v8454
  %v8470 = vmul.f32 %v8402, %v8454
  %v8471 = vmul.f32 %v8403, %v8454
  %v8472 = vmul.f32 %v8404, %v8454
  %v8473 = vmul.f32 %v8405, %v8454
  %v8474 = vmul.f32 %v8406, %v8454
  %v8475 = vmul.f32 %v8407, %v8454
  %v8476 = vmul.f32 %v8408, %v8454
  %v8477 = vmul.f32 %v8409, %v8454
  %v8478 = vmul.f32 %v8410, %v8454
  %v8479 = vmul.f32 %v8411, %v8454
  %v8480 = vmul.f32 %v8412, %v8454
  %v8481 = vmul.f32 %v8413, %v8454
  %v8482 = vmul.f32 %v8414, %v8454
  %v8483 = vmul.f32 %v8415, %v8454
  %v8484 = vmul.f32 %v8416, %v8454
  %v8485 = vmul.f32 %v8417, %v8454
  %v8486 = vmul.f32 %v8418, %v8454
  %v8487 = vmul.f32 %v8419, %v8454
  %v8488 = vmul.f32 %v8420, %v8454
  %v8489 = vmul.f32 %v8421, %v8454
  %v8490 = vmul.f32 %v8422, %v8454
  %v8491 = vmul.f32 %v8423, %v8454
  %v8492 = vmul.f32 %v8424, %v8454
  %v8493 = vmul.f32 %v8425, %v8454
  %v8494 = vmul.f32 %v8426, %v8454
  %v8495 = vmul.f32 %v8427, %v8454
  %v8496 = vmul.f32 %v8428, %v8454
  %v8497 = vmul.f32 %v8429, %v8454
  %v8498 = vmul.f32 %v8430, %v8454
  %v8499 = vmul.f32 %v8431, %v8454
  %v8500 = vmul.f32 %v8432, %v8454
  %v8501 = vmul.f32 %v8433, %v8454
  %v8502 = vmul.f32 %v8434, %v8454
  %v8503 = vmul.f32 %v8435, %v8454
  %v8504 = vmul.f32 %v8436, %v8454
  %v8505 = vmul.f32 %v8437, %v8454
  %v8506 = vmul.f32 %v8438, %v8454
  %v8507 = vmul.f32 %v8439, %v8454
  %v8508 = vmul.f32 %v8440, %v8454
  %v8509 = vmul.f32 %v8441, %v8454
  %v8510 = vmul.f32 %v8442, %v8454
  %v8511 = vmul.f32 %v8443, %v8454
  %v8512 = vmul.f32 %v8444, %v8454
  %v8513 = vmul.f32 %v8445, %v8454
  %v8514 = vmul.f32 %v8446, %v8454
  %v8515 = vmul.f32 %v8447, %v8454
  %v8516 = vmul.f32 %v8448, %v8454
  %v8517 = vmul.f32 %v8449, %v8454
  %v8518 = vmul.f32 %v8450, %v8454
  %v8519 = vlaneseq
  %v8520 = vshrl.u32 %v8519, 7
  %v8521 = vsub.s32 6, %v8520
  %v8522 = vrot.slane %v31, %v8521
  %v8523 = vadd.f32 %v8455, %v8522
  %v8524 = vadd.f32 %v8456, %v8522
  %v8525 = vadd.f32 %v8457, %v8522
  %v8526 = vadd.f32 %v8458, %v8522
  %v8527 = vadd.f32 %v8459, %v8522
  %v8528 = vadd.f32 %v8460, %v8522
  %v8529 = vadd.f32 %v8461, %v8522
  %v8530 = vadd.f32 %v8462, %v8522
  %v8531 = vadd.f32 %v8463, %v8522
  %v8532 = vadd.f32 %v8464, %v8522
  %v8533 = vadd.f32 %v8465, %v8522
  %v8534 = vadd.f32 %v8466, %v8522
  %v8535 = vadd.f32 %v8467, %v8522
  %v8536 = vadd.f32 %v8468, %v8522
  %v8537 = vadd.f32 %v8469, %v8522
  %v8538 = vadd.f32 %v8470, %v8522
  %v8539 = vadd.f32 %v8471, %v8522
  %v8540 = vadd.f32 %v8472, %v8522
  %v8541 = vadd.f32 %v8473, %v8522
  %v8542 = vadd.f32 %v8474, %v8522
  %v8543 = vadd.f32 %v8475, %v8522
  %v8544 = vadd.f32 %v8476, %v8522
  %v8545 = vadd.f32 %v8477, %v8522
  %v8546 = vadd.f32 %v8478, %v8522
  %v8547 = vadd.f32 %v8479, %v8522
  %v8548 = vadd.f32 %v8480, %v8522
  %v8549 = vadd.f32 %v8481, %v8522
  %v8550 = vadd.f32 %v8482, %v8522
  %v8551 = vadd.f32 %v8483, %v8522
  %v8552 = vadd.f32 %v8484, %v8522
  %v8553 = vadd.f32 %v8485, %v8522
  %v8554 = vadd.f32 %v8486, %v8522
  %v8555 = vadd.f32 %v8487, %v8522
  %v8556 = vadd.f32 %v8488, %v8522
  %v8557 = vadd.f32 %v8489, %v8522
  %v8558 = vadd.f32 %v8490, %v8522
  %v8559 = vadd.f32 %v8491, %v8522
  %v8560 = vadd.f32 %v8492, %v8522
  %v8561 = vadd.f32 %v8493, %v8522
  %v8562 = vadd.f32 %v8494, %v8522
  %v8563 = vadd.f32 %v8495, %v8522
  %v8564 = vadd.f32 %v8496, %v8522
  %v8565 = vadd.f32 %v8497, %v8522
  %v8566 = vadd.f32 %v8498, %v8522
  %v8567 = vadd.f32 %v8499, %v8522
  %v8568 = vadd.f32 %v8500, %v8522
  %v8569 = vadd.f32 %v8501, %v8522
  %v8570 = vadd.f32 %v8502, %v8522
  %v8571 = vadd.f32 %v8503, %v8522
  %v8572 = vadd.f32 %v8504, %v8522
  %v8573 = vadd.f32 %v8505, %v8522
  %v8574 = vadd.f32 %v8506, %v8522
  %v8575 = vadd.f32 %v8507, %v8522
  %v8576 = vadd.f32 %v8508, %v8522
  %v8577 = vadd.f32 %v8509, %v8522
  %v8578 = vadd.f32 %v8510, %v8522
  %v8579 = vadd.f32 %v8511, %v8522
  %v8580 = vadd.f32 %v8512, %v8522
  %v8581 = vadd.f32 %v8513, %v8522
  %v8582 = vadd.f32 %v8514, %v8522
  %v8583 = vadd.f32 %v8515, %v8522
  %v8584 = vadd.f32 %v8516, %v8522
  %v8585 = vadd.f32 %v8517, %v8522
  %v8586 = vadd.f32 %v8518, %v8522
  %v8587 = vmax.f32 %v8523, 0.0
  %v8588 = vmax.f32 %v8524, 0.0
  %v8589 = vmax.f32 %v8525, 0.0
  %v8590 = vmax.f32 %v8526, 0.0
  %v8591 = vmax.f32 %v8527, 0.0
  %v8592 = vmax.f32 %v8528, 0.0
  %v8593 = vmax.f32 %v8529, 0.0
  %v8594 = vmax.f32 %v8530, 0.0
  %v8595 = vmax.f32 %v8531, 0.0
  %v8596 = vmax.f32 %v8532, 0.0
  %v8597 = vmax.f32 %v8533, 0.0
  %v8598 = vmax.f32 %v8534, 0.0
  %v8599 = vmax.f32 %v8535, 0.0
  %v8600 = vmax.f32 %v8536, 0.0
  %v8601 = vmax.f32 %v8537, 0.0
  %v8602 = vmax.f32 %v8538, 0.0
  %v8603 = vmax.f32 %v8539, 0.0
  %v8604 = vmax.f32 %v8540, 0.0
  %v8605 = vmax.f32 %v8541, 0.0
  %v8606 = vmax.f32 %v8542, 0.0
  %v8607 = vmax.f32 %v8543, 0.0
  %v8608 = vmax.f32 %v8544, 0.0
  %v8609 = vmax.f32 %v8545, 0.0
  %v8610 = vmax.f32 %v8546, 0.0
  %v8611 = vmax.f32 %v8547, 0.0
  %v8612 = vmax.f32 %v8548, 0.0
  %v8613 = vmax.f32 %v8549, 0.0
  %v8614 = vmax.f32 %v8550, 0.0
  %v8615 = vmax.f32 %v8551, 0.0
  %v8616 = vmax.f32 %v8552, 0.0
  %v8617 = vmax.f32 %v8553, 0.0
  %v8618 = vmax.f32 %v8554, 0.0
  %v8619 = vmax.f32 %v8555, 0.0
  %v8620 = vmax.f32 %v8556, 0.0
  %v8621 = vmax.f32 %v8557, 0.0
  %v8622 = vmax.f32 %v8558, 0.0
  %v8623 = vmax.f32 %v8559, 0.0
  %v8624 = vmax.f32 %v8560, 0.0
  %v8625 = vmax.f32 %v8561, 0.0
  %v8626 = vmax.f32 %v8562, 0.0
  %v8627 = vmax.f32 %v8563, 0.0
  %v8628 = vmax.f32 %v8564, 0.0
  %v8629 = vmax.f32 %v8565, 0.0
  %v8630 = vmax.f32 %v8566, 0.0
  %v8631 = vmax.f32 %v8567, 0.0
  %v8632 = vmax.f32 %v8568, 0.0
  %v8633 = vmax.f32 %v8569, 0.0
  %v8634 = vmax.f32 %v8570, 0.0
  %v8635 = vmax.f32 %v8571, 0.0
  %v8636 = vmax.f32 %v8572, 0.0
  %v8637 = vmax.f32 %v8573, 0.0
  %v8638 = vmax.f32 %v8574, 0.0
  %v8639 = vmax.f32 %v8575, 0.0
  %v8640 = vmax.f32 %v8576, 0.0
  %v8641 = vmax.f32 %v8577, 0.0
  %v8642 = vmax.f32 %v8578, 0.0
  %v8643 = vmax.f32 %v8579, 0.0
  %v8644 = vmax.f32 %v8580, 0.0
  %v8645 = vmax.f32 %v8581, 0.0
  %v8646 = vmax.f32 %v8582, 0.0
  %v8647 = vmax.f32 %v8583, 0.0
  %v8648 = vmax.f32 %v8584, 0.0
  %v8649 = vmax.f32 %v8585, 0.0
  %v8650 = vmax.f32 %v8586, 0.0
  %v8651 = vpack.c.bf16 %v8588, %v8587
  %v8652 = vpack.c.bf16 %v8590, %v8589
  %v8653 = vpack.c.bf16 %v8592, %v8591
  %v8654 = vpack.c.bf16 %v8594, %v8593
  %v8655 = vpack.c.bf16 %v8596, %v8595
  %v8656 = vpack.c.bf16 %v8598, %v8597
  %v8657 = vpack.c.bf16 %v8600, %v8599
  %v8658 = vpack.c.bf16 %v8602, %v8601
  %v8659 = vpack.c.bf16 %v8604, %v8603
  %v8660 = vpack.c.bf16 %v8606, %v8605
  %v8661 = vpack.c.bf16 %v8608, %v8607
  %v8662 = vpack.c.bf16 %v8610, %v8609
  %v8663 = vpack.c.bf16 %v8612, %v8611
  %v8664 = vpack.c.bf16 %v8614, %v8613
  %v8665 = vpack.c.bf16 %v8616, %v8615
  %v8666 = vpack.c.bf16 %v8618, %v8617
  %v8667 = vpack.c.bf16 %v8620, %v8619
  %v8668 = vpack.c.bf16 %v8622, %v8621
  %v8669 = vpack.c.bf16 %v8624, %v8623
  %v8670 = vpack.c.bf16 %v8626, %v8625
  %v8671 = vpack.c.bf16 %v8628, %v8627
  %v8672 = vpack.c.bf16 %v8630, %v8629
  %v8673 = vpack.c.bf16 %v8632, %v8631
  %v8674 = vpack.c.bf16 %v8634, %v8633
  %v8675 = vpack.c.bf16 %v8636, %v8635
  %v8676 = vpack.c.bf16 %v8638, %v8637
  %v8677 = vpack.c.bf16 %v8640, %v8639
  %v8678 = vpack.c.bf16 %v8642, %v8641
  %v8679 = vpack.c.bf16 %v8644, %v8643
  %v8680 = vpack.c.bf16 %v8646, %v8645
  %v8681 = vpack.c.bf16 %v8648, %v8647
  %v8682 = vpack.c.bf16 %v8650, %v8649
  %s8683 = scalar_lea.vmem %s4, 80
  %v8684 = vld [vmem:[%s8683] sm:$0xf]
  %v8685 = vld [vmem:[%s8683 + $0x4] sm:$0xf]
  %v8686 = vld [vmem:[%s8683 + $0x8] sm:$0xf]
  %v8687 = vld [vmem:[%s8683 + $0xc] sm:$0xf]
  %v8688 = vlaneseq
  %v8689 = vshrl.u32 %v8688, 7
  %v8690 = vsub.s32 7, %v8689
  %v8691 = vrot.slane %v31, %v8690
  %v8696 = vunpack.c.l.b16 %v8684
  %v8697 = vunpack.c.l.b16 %v8685
  %v8698 = vunpack.c.l.b16 %v8686
  %v8699 = vunpack.c.l.b16 %v8687
  %v8700 = vpack.c.b16 %v8697, %v8696
  %v8701 = vpack.c.b16 %v8699, %v8698
  %v8705 = vsel %vm1711, %v8651, 0
  %v8708 = vsel %vm1711, %v8652, 0
  %v8711 = vsel %vm1711, %v8653, 0
  %v8714 = vsel %vm1711, %v8654, 0
  %v8717 = vsel %vm1711, %v8655, 0
  %v8720 = vsel %vm1711, %v8656, 0
  %v8723 = vsel %vm1711, %v8657, 0
  %v8726 = vsel %vm1711, %v8658, 0
  %v8729 = vsel %vm1711, %v8659, 0
  %v8732 = vsel %vm1711, %v8660, 0
  %v8735 = vsel %vm1711, %v8661, 0
  %v8738 = vsel %vm1711, %v8662, 0
  %v8741 = vsel %vm1711, %v8663, 0
  %v8744 = vsel %vm1711, %v8664, 0
  %v8747 = vsel %vm1711, %v8665, 0
  %v8750 = vsel %vm1711, %v8666, 0
  %v8753 = vsel %vm1711, %v8667, 0
  %v8756 = vsel %vm1711, %v8668, 0
  %v8759 = vsel %vm1711, %v8669, 0
  %v8762 = vsel %vm1711, %v8670, 0
  %v8765 = vsel %vm1711, %v8671, 0
  %v8768 = vsel %vm1711, %v8672, 0
  %v8771 = vsel %vm1711, %v8673, 0
  %v8774 = vsel %vm1711, %v8674, 0
  %v8777 = vsel %vm1711, %v8675, 0
  %v8780 = vsel %vm1711, %v8676, 0
  %v8783 = vsel %vm1711, %v8677, 0
  %v8786 = vsel %vm1711, %v8678, 0
  %v8789 = vsel %vm1711, %v8679, 0
  %v8792 = vsel %vm1711, %v8680, 0
  %v8795 = vsel %vm1711, %v8681, 0
  %v8798 = vsel %vm1711, %v8682, 0
  %8800 = vmatprep.subr.bf16.mxu0 0
  %8801 = vmatpush1.bf16.msra.mxu0 %v8700
  %8802 = vmatprep.subr.bf16.mxu0 0
  %8803 = vmatpush1.bf16.msra.mxu0 %v8701
  %8804 = vmatprep.subr.bf16.mxu0 0
  %8805 = vmatpush1.bf16.msra.mxu0 0
  %8806 = vmatprep.subr.bf16.mxu0 0
  %8807 = vmatpush1.bf16.msra.mxu0 0
  %8808 = vmatprep.subr.bf16.mxu0 0
  %8809 = vmatpush1.bf16.msra.mxu0 0
  %8810 = vmatprep.subr.bf16.mxu0 0
  %8811 = vmatpush1.bf16.msra.mxu0 0
  %8812 = vmatprep.subr.bf16.mxu0 0
  %8813 = vmatpush1.bf16.msra.mxu0 0
  %8814 = vmatprep.subr.bf16.mxu0 0
  %8815 = vmatpush1.bf16.msra.mxu0 0
  %8816 = vmatprep.subr.bf16.mxu0 0
  %8817 = vmatpush1.bf16.msra.mxu0 0
  %8818 = vmatprep.subr.bf16.mxu0 0
  %8819 = vmatpush1.bf16.msra.mxu0 0
  %8820 = vmatprep.subr.bf16.mxu0 0
  %8821 = vmatpush1.bf16.msra.mxu0 0
  %8822 = vmatprep.subr.bf16.mxu0 0
  %8823 = vmatpush1.bf16.msra.mxu0 0
  %8824 = vmatprep.subr.bf16.mxu0 0
  %8825 = vmatpush1.bf16.msra.mxu0 0
  %8826 = vmatprep.subr.bf16.mxu0 0
  %8827 = vmatpush1.bf16.msra.mxu0 0
  %8828 = vmatprep.subr.bf16.mxu0 0
  %8829 = vmatpush1.bf16.msra.mxu0 0
  %8830 = vmatprep.subr.bf16.mxu0 0
  %8831 = vmatpush1.bf16.msra.mxu0 0
  %8832 = vmatprep.mubr.bf16.mxu0 0
  %8833 = vmatmul.mubr.bf16.gmra.mrb[0].mxu0 %v8705
  %v8834 = vpop.f32.mrb[0].mxu0
  %v8835 = vadd.f32 %v8691, %v8834
  %v8836 = vpop.f32.mrb[0].mxu0
  %v8837 = vpop.f32.mrb[0].mxu0
  %v8838 = vadd.f32 %v8691, %v8837
  %v8839 = vpop.f32.mrb[0].mxu0
  %8840 = vmatprep.mubr.bf16.mxu0 0
  %8841 = vmatmul.mubr.bf16.gmra.mrb[0].mxu0 %v8708
  %v8842 = vpop.f32.mrb[0].mxu0
  %v8843 = vadd.f32 %v8691, %v8842
  %v8844 = vpop.f32.mrb[0].mxu0
  %v8845 = vpop.f32.mrb[0].mxu0
  %v8846 = vadd.f32 %v8691, %v8845
  %v8847 = vpop.f32.mrb[0].mxu0
  %8848 = vmatprep.mubr.bf16.mxu0 0
  %8849 = vmatmul.mubr.bf16.gmra.mrb[0].mxu0 %v8711
  %v8850 = vpop.f32.mrb[0].mxu0
  %v8851 = vadd.f32 %v8691, %v8850
  %v8852 = vpop.f32.mrb[0].mxu0
  %v8853 = vpop.f32.mrb[0].mxu0
  %v8854 = vadd.f32 %v8691, %v8853
  %v8855 = vpop.f32.mrb[0].mxu0
  %8856 = vmatprep.mubr.bf16.mxu0 0
  %8857 = vmatmul.mubr.bf16.gmra.mrb[0].mxu0 %v8714
  %v8858 = vpop.f32.mrb[0].mxu0
  %v8859 = vadd.f32 %v8691, %v8858
  %v8860 = vpop.f32.mrb[0].mxu0
  %v8861 = vpop.f32.mrb[0].mxu0
  %v8862 = vadd.f32 %v8691, %v8861
  %v8863 = vpop.f32.mrb[0].mxu0
  %8864 = vmatprep.mubr.bf16.mxu0 0
  %8865 = vmatmul.mubr.bf16.gmra.mrb[0].mxu0 %v8717
  %v8866 = vpop.f32.mrb[0].mxu0
  %v8867 = vadd.f32 %v8691, %v8866
  %v8868 = vpop.f32.mrb[0].mxu0
  %v8869 = vpop.f32.mrb[0].mxu0
  %v8870 = vadd.f32 %v8691, %v8869
  %v8871 = vpop.f32.mrb[0].mxu0
  %8872 = vmatprep.mubr.bf16.mxu0 0
  %8873 = vmatmul.mubr.bf16.gmra.mrb[0].mxu0 %v8720
  %v8874 = vpop.f32.mrb[0].mxu0
  %v8875 = vadd.f32 %v8691, %v8874
  %v8876 = vpop.f32.mrb[0].mxu0
  %v8877 = vpop.f32.mrb[0].mxu0
  %v8878 = vadd.f32 %v8691, %v8877
  %v8879 = vpop.f32.mrb[0].mxu0
  %8880 = vmatprep.mubr.bf16.mxu0 0
  %8881 = vmatmul.mubr.bf16.gmra.mrb[0].mxu0 %v8723
  %v8882 = vpop.f32.mrb[0].mxu0
  %v8883 = vadd.f32 %v8691, %v8882
  %v8884 = vpop.f32.mrb[0].mxu0
  %v8885 = vpop.f32.mrb[0].mxu0
  %v8886 = vadd.f32 %v8691, %v8885
  %v8887 = vpop.f32.mrb[0].mxu0
  %8888 = vmatprep.mubr.bf16.mxu0 0
  %8889 = vmatmul.mubr.bf16.gmra.mrb[0].mxu0 %v8726
  %v8890 = vpop.f32.mrb[0].mxu0
  %v8891 = vadd.f32 %v8691, %v8890
  %v8892 = vpop.f32.mrb[0].mxu0
  %v8893 = vpop.f32.mrb[0].mxu0
  %v8894 = vadd.f32 %v8691, %v8893
  %v8895 = vpop.f32.mrb[0].mxu0
  %8896 = vmatprep.mubr.bf16.mxu0 0
  %8897 = vmatmul.mubr.bf16.gmra.mrb[0].mxu0 %v8729
  %v8898 = vpop.f32.mrb[0].mxu0
  %v8899 = vadd.f32 %v8691, %v8898
  %v8900 = vpop.f32.mrb[0].mxu0
  %v8901 = vpop.f32.mrb[0].mxu0
  %v8902 = vadd.f32 %v8691, %v8901
  %v8903 = vpop.f32.mrb[0].mxu0
  %8904 = vmatprep.mubr.bf16.mxu0 0
  %8905 = vmatmul.mubr.bf16.gmra.mrb[0].mxu0 %v8732
  %v8906 = vpop.f32.mrb[0].mxu0
  %v8907 = vadd.f32 %v8691, %v8906
  %v8908 = vpop.f32.mrb[0].mxu0
  %v8909 = vpop.f32.mrb[0].mxu0
  %v8910 = vadd.f32 %v8691, %v8909
  %v8911 = vpop.f32.mrb[0].mxu0
  %8912 = vmatprep.mubr.bf16.mxu0 0
  %8913 = vmatmul.mubr.bf16.gmra.mrb[0].mxu0 %v8735
  %v8914 = vpop.f32.mrb[0].mxu0
  %v8915 = vadd.f32 %v8691, %v8914
  %v8916 = vpop.f32.mrb[0].mxu0
  %v8917 = vpop.f32.mrb[0].mxu0
  %v8918 = vadd.f32 %v8691, %v8917
  %v8919 = vpop.f32.mrb[0].mxu0
  %8920 = vmatprep.mubr.bf16.mxu0 0
  %8921 = vmatmul.mubr.bf16.gmra.mrb[0].mxu0 %v8738
  %v8922 = vpop.f32.mrb[0].mxu0
  %v8923 = vadd.f32 %v8691, %v8922
  %v8924 = vpop.f32.mrb[0].mxu0
  %v8925 = vpop.f32.mrb[0].mxu0
  %v8926 = vadd.f32 %v8691, %v8925
  %v8927 = vpop.f32.mrb[0].mxu0
  %8928 = vmatprep.mubr.bf16.mxu0 0
  %8929 = vmatmul.mubr.bf16.gmra.mrb[0].mxu0 %v8741
  %v8930 = vpop.f32.mrb[0].mxu0
  %v8931 = vadd.f32 %v8691, %v8930
  %v8932 = vpop.f32.mrb[0].mxu0
  %v8933 = vpop.f32.mrb[0].mxu0
  %v8934 = vadd.f32 %v8691, %v8933
  %v8935 = vpop.f32.mrb[0].mxu0
  %8936 = vmatprep.mubr.bf16.mxu0 0
  %8937 = vmatmul.mubr.bf16.gmra.mrb[0].mxu0 %v8744
  %v8938 = vpop.f32.mrb[0].mxu0
  %v8939 = vadd.f32 %v8691, %v8938
  %v8940 = vpop.f32.mrb[0].mxu0
  %v8941 = vpop.f32.mrb[0].mxu0
  %v8942 = vadd.f32 %v8691, %v8941
  %v8943 = vpop.f32.mrb[0].mxu0
  %8944 = vmatprep.mubr.bf16.mxu0 0
  %8945 = vmatmul.mubr.bf16.gmra.mrb[0].mxu0 %v8747
  %v8946 = vpop.f32.mrb[0].mxu0
  %v8947 = vadd.f32 %v8691, %v8946
  %v8948 = vpop.f32.mrb[0].mxu0
  %v8949 = vpop.f32.mrb[0].mxu0
  %v8950 = vadd.f32 %v8691, %v8949
  %v8951 = vpop.f32.mrb[0].mxu0
  %8952 = vmatprep.mubr.bf16.mxu0 0
  %8953 = vmatmul.mubr.bf16.gmra.mrb[0].mxu0 %v8750
  %v8954 = vpop.f32.mrb[0].mxu0
  %v8955 = vadd.f32 %v8691, %v8954
  %v8956 = vpop.f32.mrb[0].mxu0
  %v8957 = vpop.f32.mrb[0].mxu0
  %v8958 = vadd.f32 %v8691, %v8957
  %v8959 = vpop.f32.mrb[0].mxu0
  %8960 = vmatprep.mubr.bf16.mxu0 0
  %8961 = vmatmul.mubr.bf16.gmra.mrb[0].mxu0 %v8753
  %v8962 = vpop.f32.mrb[0].mxu0
  %v8963 = vadd.f32 %v8691, %v8962
  %v8964 = vpop.f32.mrb[0].mxu0
  %v8965 = vpop.f32.mrb[0].mxu0
  %v8966 = vadd.f32 %v8691, %v8965
  %v8967 = vpop.f32.mrb[0].mxu0
  %8968 = vmatprep.mubr.bf16.mxu0 0
  %8969 = vmatmul.mubr.bf16.gmra.mrb[0].mxu0 %v8756
  %v8970 = vpop.f32.mrb[0].mxu0
  %v8971 = vadd.f32 %v8691, %v8970
  %v8972 = vpop.f32.mrb[0].mxu0
  %v8973 = vpop.f32.mrb[0].mxu0
  %v8974 = vadd.f32 %v8691, %v8973
  %v8975 = vpop.f32.mrb[0].mxu0
  %8976 = vmatprep.mubr.bf16.mxu0 0
  %8977 = vmatmul.mubr.bf16.gmra.mrb[0].mxu0 %v8759
  %v8978 = vpop.f32.mrb[0].mxu0
  %v8979 = vadd.f32 %v8691, %v8978
  %v8980 = vpop.f32.mrb[0].mxu0
  %v8981 = vpop.f32.mrb[0].mxu0
  %v8982 = vadd.f32 %v8691, %v8981
  %v8983 = vpop.f32.mrb[0].mxu0
  %8984 = vmatprep.mubr.bf16.mxu0 0
  %8985 = vmatmul.mubr.bf16.gmra.mrb[0].mxu0 %v8762
  %v8986 = vpop.f32.mrb[0].mxu0
  %v8987 = vadd.f32 %v8691, %v8986
  %v8988 = vpop.f32.mrb[0].mxu0
  %v8989 = vpop.f32.mrb[0].mxu0
  %v8990 = vadd.f32 %v8691, %v8989
  %v8991 = vpop.f32.mrb[0].mxu0
  %8992 = vmatprep.mubr.bf16.mxu0 0
  %8993 = vmatmul.mubr.bf16.gmra.mrb[0].mxu0 %v8765
  %v8994 = vpop.f32.mrb[0].mxu0
  %v8995 = vadd.f32 %v8691, %v8994
  %v8996 = vpop.f32.mrb[0].mxu0
  %v8997 = vpop.f32.mrb[0].mxu0
  %v8998 = vadd.f32 %v8691, %v8997
  %v8999 = vpop.f32.mrb[0].mxu0
  %9000 = vmatprep.mubr.bf16.mxu0 0
  %9001 = vmatmul.mubr.bf16.gmra.mrb[0].mxu0 %v8768
  %v9002 = vpop.f32.mrb[0].mxu0
  %v9003 = vadd.f32 %v8691, %v9002
  %v9004 = vpop.f32.mrb[0].mxu0
  %v9005 = vpop.f32.mrb[0].mxu0
  %v9006 = vadd.f32 %v8691, %v9005
  %v9007 = vpop.f32.mrb[0].mxu0
  %9008 = vmatprep.mubr.bf16.mxu0 0
  %9009 = vmatmul.mubr.bf16.gmra.mrb[0].mxu0 %v8771
  %v9010 = vpop.f32.mrb[0].mxu0
  %v9011 = vadd.f32 %v8691, %v9010
  %v9012 = vpop.f32.mrb[0].mxu0
  %v9013 = vpop.f32.mrb[0].mxu0
  %v9014 = vadd.f32 %v8691, %v9013
  %v9015 = vpop.f32.mrb[0].mxu0
  %9016 = vmatprep.mubr.bf16.mxu0 0
  %9017 = vmatmul.mubr.bf16.gmra.mrb[0].mxu0 %v8774
  %v9018 = vpop.f32.mrb[0].mxu0
  %v9019 = vadd.f32 %v8691, %v9018
  %v9020 = vpop.f32.mrb[0].mxu0
  %v9021 = vpop.f32.mrb[0].mxu0
  %v9022 = vadd.f32 %v8691, %v9021
  %v9023 = vpop.f32.mrb[0].mxu0
  %9024 = vmatprep.mubr.bf16.mxu0 0
  %9025 = vmatmul.mubr.bf16.gmra.mrb[0].mxu0 %v8777
  %v9026 = vpop.f32.mrb[0].mxu0
  %v9027 = vadd.f32 %v8691, %v9026
  %v9028 = vpop.f32.mrb[0].mxu0
  %v9029 = vpop.f32.mrb[0].mxu0
  %v9030 = vadd.f32 %v8691, %v9029
  %v9031 = vpop.f32.mrb[0].mxu0
  %9032 = vmatprep.mubr.bf16.mxu0 0
  %9033 = vmatmul.mubr.bf16.gmra.mrb[0].mxu0 %v8780
  %v9034 = vpop.f32.mrb[0].mxu0
  %v9035 = vadd.f32 %v8691, %v9034
  %v9036 = vpop.f32.mrb[0].mxu0
  %v9037 = vpop.f32.mrb[0].mxu0
  %v9038 = vadd.f32 %v8691, %v9037
  %v9039 = vpop.f32.mrb[0].mxu0
  %9040 = vmatprep.mubr.bf16.mxu0 0
  %9041 = vmatmul.mubr.bf16.gmra.mrb[0].mxu0 %v8783
  %v9042 = vpop.f32.mrb[0].mxu0
  %v9043 = vadd.f32 %v8691, %v9042
  %v9044 = vpop.f32.mrb[0].mxu0
  %v9045 = vpop.f32.mrb[0].mxu0
  %v9046 = vadd.f32 %v8691, %v9045
  %v9047 = vpop.f32.mrb[0].mxu0
  %9048 = vmatprep.mubr.bf16.mxu0 0
  %9049 = vmatmul.mubr.bf16.gmra.mrb[0].mxu0 %v8786
  %v9050 = vpop.f32.mrb[0].mxu0
  %v9051 = vadd.f32 %v8691, %v9050
  %v9052 = vpop.f32.mrb[0].mxu0
  %v9053 = vpop.f32.mrb[0].mxu0
  %v9054 = vadd.f32 %v8691, %v9053
  %v9055 = vpop.f32.mrb[0].mxu0
  %9056 = vmatprep.mubr.bf16.mxu0 0
  %9057 = vmatmul.mubr.bf16.gmra.mrb[0].mxu0 %v8789
  %v9058 = vpop.f32.mrb[0].mxu0
  %v9059 = vadd.f32 %v8691, %v9058
  %v9060 = vpop.f32.mrb[0].mxu0
  %v9061 = vpop.f32.mrb[0].mxu0
  %v9062 = vadd.f32 %v8691, %v9061
  %v9063 = vpop.f32.mrb[0].mxu0
  %9064 = vmatprep.mubr.bf16.mxu0 0
  %9065 = vmatmul.mubr.bf16.gmra.mrb[0].mxu0 %v8792
  %v9066 = vpop.f32.mrb[0].mxu0
  %v9067 = vadd.f32 %v8691, %v9066
  %v9068 = vpop.f32.mrb[0].mxu0
  %v9069 = vpop.f32.mrb[0].mxu0
  %v9070 = vadd.f32 %v8691, %v9069
  %v9071 = vpop.f32.mrb[0].mxu0
  %9072 = vmatprep.mubr.bf16.mxu0 0
  %9073 = vmatmul.mubr.bf16.gmra.mrb[0].mxu0 %v8795
  %v9074 = vpop.f32.mrb[0].mxu0
  %v9075 = vadd.f32 %v8691, %v9074
  %v9076 = vpop.f32.mrb[0].mxu0
  %v9077 = vpop.f32.mrb[0].mxu0
  %v9078 = vadd.f32 %v8691, %v9077
  %v9079 = vpop.f32.mrb[0].mxu0
  %9080 = vmatprep.mubr.bf16.mxu0 0
  %9081 = vmatmul.mubr.bf16.gmra.mrb[0].mxu0 %v8798
  %v9082 = vpop.f32.mrb[0].mxu0
  %v9083 = vadd.f32 %v8691, %v9082
  %v9084 = vpop.f32.mrb[0].mxu0
  %v9085 = vpop.f32.mrb[0].mxu0
  %v9086 = vadd.f32 %v8691, %v9085
  %v9087 = vpop.f32.mrb[0].mxu0
  %9088 = vdwg.mxu0
  %v9089 = vadd.f32 %v8835, %v4661
  %v9090 = vadd.f32 %v8838, %v4664
  %v9091 = vadd.f32 %v8843, %v4669
  %v9092 = vadd.f32 %v8846, %v4672
  %v9093 = vadd.f32 %v8851, %v4677
  %v9094 = vadd.f32 %v8854, %v4680
  %v9095 = vadd.f32 %v8859, %v4685
  %v9096 = vadd.f32 %v8862, %v4688
  %v9097 = vadd.f32 %v8867, %v4693
  %v9098 = vadd.f32 %v8870, %v4696
  %v9099 = vadd.f32 %v8875, %v4701
  %v9100 = vadd.f32 %v8878, %v4704
  %v9101 = vadd.f32 %v8883, %v4709
  %v9102 = vadd.f32 %v8886, %v4712
  %v9103 = vadd.f32 %v8891, %v4717
  %v9104 = vadd.f32 %v8894, %v4720
  %v9105 = vadd.f32 %v8899, %v4725
  %v9106 = vadd.f32 %v8902, %v4728
  %v9107 = vadd.f32 %v8907, %v4733
  %v9108 = vadd.f32 %v8910, %v4736
  %v9109 = vadd.f32 %v8915, %v4741
  %v9110 = vadd.f32 %v8918, %v4744
  %v9111 = vadd.f32 %v8923, %v4749
  %v9112 = vadd.f32 %v8926, %v4752
  %v9113 = vadd.f32 %v8931, %v4757
  %v9114 = vadd.f32 %v8934, %v4760
  %v9115 = vadd.f32 %v8939, %v4765
  %v9116 = vadd.f32 %v8942, %v4768
  %v9117 = vadd.f32 %v8947, %v4773
  %v9118 = vadd.f32 %v8950, %v4776
  %v9119 = vadd.f32 %v8955, %v4781
  %v9120 = vadd.f32 %v8958, %v4784
  %v9121 = vadd.f32 %v8963, %v4789
  %v9122 = vadd.f32 %v8966, %v4792
  %v9123 = vadd.f32 %v8971, %v4797
  %v9124 = vadd.f32 %v8974, %v4800
  %v9125 = vadd.f32 %v8979, %v4805
  %v9126 = vadd.f32 %v8982, %v4808
  %v9127 = vadd.f32 %v8987, %v4813
  %v9128 = vadd.f32 %v8990, %v4816
  %v9129 = vadd.f32 %v8995, %v4821
  %v9130 = vadd.f32 %v8998, %v4824
  %v9131 = vadd.f32 %v9003, %v4829
  %v9132 = vadd.f32 %v9006, %v4832
  %v9133 = vadd.f32 %v9011, %v4837
  %v9134 = vadd.f32 %v9014, %v4840
  %v9135 = vadd.f32 %v9019, %v4845
  %v9136 = vadd.f32 %v9022, %v4848
  %v9137 = vadd.f32 %v9027, %v4853
  %v9138 = vadd.f32 %v9030, %v4856
  %v9139 = vadd.f32 %v9035, %v4861
  %v9140 = vadd.f32 %v9038, %v4864
  %v9141 = vadd.f32 %v9043, %v4869
  %v9142 = vadd.f32 %v9046, %v4872
  %v9143 = vadd.f32 %v9051, %v4877
  %v9144 = vadd.f32 %v9054, %v4880
  %v9145 = vadd.f32 %v9059, %v4885
  %v9146 = vadd.f32 %v9062, %v4888
  %v9147 = vadd.f32 %v9067, %v4893
  %v9148 = vadd.f32 %v9070, %v4896
  %v9149 = vadd.f32 %v9075, %v4901
  %v9150 = vadd.f32 %v9078, %v4904
  %v9151 = vadd.f32 %v9083, %v4909
  %v9152 = vadd.f32 %v9086, %v4912
  %v9153 = vpack.c.bf16 %v9090, %v9089
  %v9154 = vpack.c.bf16 %v9092, %v9091
  %v9155 = vpack.c.bf16 %v9094, %v9093
  %v9156 = vpack.c.bf16 %v9096, %v9095
  %v9157 = vpack.c.bf16 %v9098, %v9097
  %v9158 = vpack.c.bf16 %v9100, %v9099
  %v9159 = vpack.c.bf16 %v9102, %v9101
  %v9160 = vpack.c.bf16 %v9104, %v9103
  %v9161 = vpack.c.bf16 %v9106, %v9105
  %v9162 = vpack.c.bf16 %v9108, %v9107
  %v9163 = vpack.c.bf16 %v9110, %v9109
  %v9164 = vpack.c.bf16 %v9112, %v9111
  %v9165 = vpack.c.bf16 %v9114, %v9113
  %v9166 = vpack.c.bf16 %v9116, %v9115
  %v9167 = vpack.c.bf16 %v9118, %v9117
  %v9168 = vpack.c.bf16 %v9120, %v9119
  %v9169 = vpack.c.bf16 %v9122, %v9121
  %v9170 = vpack.c.bf16 %v9124, %v9123
  %v9171 = vpack.c.bf16 %v9126, %v9125
  %v9172 = vpack.c.bf16 %v9128, %v9127
  %v9173 = vpack.c.bf16 %v9130, %v9129
  %v9174 = vpack.c.bf16 %v9132, %v9131
  %v9175 = vpack.c.bf16 %v9134, %v9133
  %v9176 = vpack.c.bf16 %v9136, %v9135
  %v9177 = vpack.c.bf16 %v9138, %v9137
  %v9178 = vpack.c.bf16 %v9140, %v9139
  %v9179 = vpack.c.bf16 %v9142, %v9141
  %v9180 = vpack.c.bf16 %v9144, %v9143
  %v9181 = vpack.c.bf16 %v9146, %v9145
  %v9182 = vpack.c.bf16 %v9148, %v9147
  %v9183 = vpack.c.bf16 %v9150, %v9149
  %v9184 = vpack.c.bf16 %v9152, %v9151
  %9185 = vmatprep.subr.bf16.mxu0 0
  %9186 = vmatpush1.bf16.msra.mxu0 %v9153
  %9187 = vmatprep.subr.bf16.mxu0 0
  %9188 = vmatpush1.bf16.msra.mxu0 %v9154
  %9189 = vmatprep.subr.bf16.mxu0 0
  %9190 = vmatpush1.bf16.msra.mxu0 %v9155
  %9191 = vmatprep.subr.bf16.mxu0 0
  %9192 = vmatpush1.bf16.msra.mxu0 %v9156
  %9193 = vmatprep.subr.bf16.mxu0 0
  %9194 = vmatpush1.bf16.msra.mxu0 %v9157
  %9195 = vmatprep.subr.bf16.mxu0 0
  %9196 = vmatpush1.bf16.msra.mxu0 %v9158
  %9197 = vmatprep.subr.bf16.mxu0 0
  %9198 = vmatpush1.bf16.msra.mxu0 %v9159
  %9199 = vmatprep.subr.bf16.mxu0 0
  %9200 = vmatpush1.bf16.msra.mxu0 %v9160
  %9201 = vmatprep.subr.bf16.mxu0 0
  %9202 = vmatpush1.bf16.msra.mxu0 %v9161
  %9203 = vmatprep.subr.bf16.mxu0 0
  %9204 = vmatpush1.bf16.msra.mxu0 %v9162
  %9205 = vmatprep.subr.bf16.mxu0 0
  %9206 = vmatpush1.bf16.msra.mxu0 %v9163
  %9207 = vmatprep.subr.bf16.mxu0 0
  %9208 = vmatpush1.bf16.msra.mxu0 %v9164
  %9209 = vmatprep.subr.bf16.mxu0 0
  %9210 = vmatpush1.bf16.msra.mxu0 %v9165
  %9211 = vmatprep.subr.bf16.mxu0 0
  %9212 = vmatpush1.bf16.msra.mxu0 %v9166
  %9213 = vmatprep.subr.bf16.mxu0 0
  %9214 = vmatpush1.bf16.msra.mxu0 %v9167
  %9215 = vmatprep.subr.bf16.mxu0 0
  %9216 = vmatpush1.bf16.msra.mxu0 %v9168
  %9217 = vmatprep.mubr.bf16.mxu0 %v4987
  %9218 = vmatmul.mubr.bf16.gmra.mrb[0].mxu0 %v4955
  %v9219 = vpop.f32.mrb[0].mxu0
  %v9220 = vadd.f32 0.0, %v9219
  %v9221 = vpop.f32.mrb[0].mxu0
  %v9222 = vpop.f32.mrb[0].mxu0
  %v9223 = vadd.f32 0.0, %v9222
  %v9224 = vpop.f32.mrb[0].mxu0
  %9225 = vmatprep.mubr.bf16.mxu0 %v4988
  %9226 = vmatmul.mubr.bf16.gmra.mrb[0].mxu0 %v4956
  %v9227 = vpop.f32.mrb[0].mxu0
  %v9228 = vadd.f32 0.0, %v9227
  %v9229 = vpop.f32.mrb[0].mxu0
  %v9230 = vpop.f32.mrb[0].mxu0
  %v9231 = vadd.f32 0.0, %v9230
  %v9232 = vpop.f32.mrb[0].mxu0
  %9233 = vmatprep.mubr.bf16.mxu0 %v4989
  %9234 = vmatmul.mubr.bf16.gmra.mrb[0].mxu0 %v4957
  %v9235 = vpop.f32.mrb[0].mxu0
  %v9236 = vadd.f32 0.0, %v9235
  %v9237 = vpop.f32.mrb[0].mxu0
  %v9238 = vpop.f32.mrb[0].mxu0
  %v9239 = vadd.f32 0.0, %v9238
  %v9240 = vpop.f32.mrb[0].mxu0
  %9241 = vmatprep.mubr.bf16.mxu0 %v4990
  %9242 = vmatmul.mubr.bf16.gmra.mrb[0].mxu0 %v4958
  %v9243 = vpop.f32.mrb[0].mxu0
  %v9244 = vadd.f32 0.0, %v9243
  %v9245 = vpop.f32.mrb[0].mxu0
  %v9246 = vpop.f32.mrb[0].mxu0
  %v9247 = vadd.f32 0.0, %v9246
  %v9248 = vpop.f32.mrb[0].mxu0
  %9249 = vmatprep.mubr.bf16.mxu0 %v4991
  %9250 = vmatmul.mubr.bf16.gmra.mrb[0].mxu0 %v4959
  %v9251 = vpop.f32.mrb[0].mxu0
  %v9252 = vadd.f32 0.0, %v9251
  %v9253 = vpop.f32.mrb[0].mxu0
  %v9254 = vpop.f32.mrb[0].mxu0
  %v9255 = vadd.f32 0.0, %v9254
  %v9256 = vpop.f32.mrb[0].mxu0
  %9257 = vmatprep.mubr.bf16.mxu0 %v4992
  %9258 = vmatmul.mubr.bf16.gmra.mrb[0].mxu0 %v4960
  %v9259 = vpop.f32.mrb[0].mxu0
  %v9260 = vadd.f32 0.0, %v9259
  %v9261 = vpop.f32.mrb[0].mxu0
  %v9262 = vpop.f32.mrb[0].mxu0
  %v9263 = vadd.f32 0.0, %v9262
  %v9264 = vpop.f32.mrb[0].mxu0
  %9265 = vmatprep.mubr.bf16.mxu0 %v4993
  %9266 = vmatmul.mubr.bf16.gmra.mrb[0].mxu0 %v4961
  %v9267 = vpop.f32.mrb[0].mxu0
  %v9268 = vadd.f32 0.0, %v9267
  %v9269 = vpop.f32.mrb[0].mxu0
  %v9270 = vpop.f32.mrb[0].mxu0
  %v9271 = vadd.f32 0.0, %v9270
  %v9272 = vpop.f32.mrb[0].mxu0
  %9273 = vmatprep.mubr.bf16.mxu0 %v4994
  %9274 = vmatmul.mubr.bf16.gmra.mrb[0].mxu0 %v4962
  %v9275 = vpop.f32.mrb[0].mxu0
  %v9276 = vadd.f32 0.0, %v9275
  %v9277 = vpop.f32.mrb[0].mxu0
  %v9278 = vpop.f32.mrb[0].mxu0
  %v9279 = vadd.f32 0.0, %v9278
  %v9280 = vpop.f32.mrb[0].mxu0
  %9281 = vmatprep.mubr.bf16.mxu0 %v5003
  %9282 = vmatmul.mubr.bf16.gmra.mrb[0].mxu0 %v4971
  %v9283 = vpop.f32.mrb[0].mxu0
  %v9284 = vadd.f32 0.0, %v9283
  %v9285 = vpop.f32.mrb[0].mxu0
  %v9286 = vpop.f32.mrb[0].mxu0
  %v9287 = vadd.f32 0.0, %v9286
  %v9288 = vpop.f32.mrb[0].mxu0
  %9289 = vmatprep.mubr.bf16.mxu0 %v5004
  %9290 = vmatmul.mubr.bf16.gmra.mrb[0].mxu0 %v4972
  %v9291 = vpop.f32.mrb[0].mxu0
  %v9292 = vadd.f32 0.0, %v9291
  %v9293 = vpop.f32.mrb[0].mxu0
  %v9294 = vpop.f32.mrb[0].mxu0
  %v9295 = vadd.f32 0.0, %v9294
  %v9296 = vpop.f32.mrb[0].mxu0
  %9297 = vmatprep.mubr.bf16.mxu0 %v5005
  %9298 = vmatmul.mubr.bf16.gmra.mrb[0].mxu0 %v4973
  %v9299 = vpop.f32.mrb[0].mxu0
  %v9300 = vadd.f32 0.0, %v9299
  %v9301 = vpop.f32.mrb[0].mxu0
  %v9302 = vpop.f32.mrb[0].mxu0
  %v9303 = vadd.f32 0.0, %v9302
  %v9304 = vpop.f32.mrb[0].mxu0
  %9305 = vmatprep.mubr.bf16.mxu0 %v5006
  %9306 = vmatmul.mubr.bf16.gmra.mrb[0].mxu0 %v4974
  %v9307 = vpop.f32.mrb[0].mxu0
  %v9308 = vadd.f32 0.0, %v9307
  %v9309 = vpop.f32.mrb[0].mxu0
  %v9310 = vpop.f32.mrb[0].mxu0
  %v9311 = vadd.f32 0.0, %v9310
  %v9312 = vpop.f32.mrb[0].mxu0
  %9313 = vmatprep.mubr.bf16.mxu0 %v5007
  %9314 = vmatmul.mubr.bf16.gmra.mrb[0].mxu0 %v4975
  %v9315 = vpop.f32.mrb[0].mxu0
  %v9316 = vadd.f32 0.0, %v9315
  %v9317 = vpop.f32.mrb[0].mxu0
  %v9318 = vpop.f32.mrb[0].mxu0
  %v9319 = vadd.f32 0.0, %v9318
  %v9320 = vpop.f32.mrb[0].mxu0
  %9321 = vmatprep.mubr.bf16.mxu0 %v5008
  %9322 = vmatmul.mubr.bf16.gmra.mrb[0].mxu0 %v4976
  %v9323 = vpop.f32.mrb[0].mxu0
  %v9324 = vadd.f32 0.0, %v9323
  %v9325 = vpop.f32.mrb[0].mxu0
  %v9326 = vpop.f32.mrb[0].mxu0
  %v9327 = vadd.f32 0.0, %v9326
  %v9328 = vpop.f32.mrb[0].mxu0
  %9329 = vmatprep.mubr.bf16.mxu0 %v5009
  %9330 = vmatmul.mubr.bf16.gmra.mrb[0].mxu0 %v4977
  %v9331 = vpop.f32.mrb[0].mxu0
  %v9332 = vadd.f32 0.0, %v9331
  %v9333 = vpop.f32.mrb[0].mxu0
  %v9334 = vpop.f32.mrb[0].mxu0
  %v9335 = vadd.f32 0.0, %v9334
  %v9336 = vpop.f32.mrb[0].mxu0
  %9337 = vmatprep.mubr.bf16.mxu0 %v5010
  %9338 = vmatmul.mubr.bf16.gmra.mrb[0].mxu0 %v4978
  %v9339 = vpop.f32.mrb[0].mxu0
  %v9340 = vadd.f32 0.0, %v9339
  %v9341 = vpop.f32.mrb[0].mxu0
  %v9342 = vpop.f32.mrb[0].mxu0
  %v9343 = vadd.f32 0.0, %v9342
  %v9344 = vpop.f32.mrb[0].mxu0
  %9345 = vdwg.mxu0
  %9346 = vmatprep.subr.bf16.mxu0 0
  %9347 = vmatpush1.bf16.msra.mxu0 %v9169
  %9348 = vmatprep.subr.bf16.mxu0 0
  %9349 = vmatpush1.bf16.msra.mxu0 %v9170
  %9350 = vmatprep.subr.bf16.mxu0 0
  %9351 = vmatpush1.bf16.msra.mxu0 %v9171
  %9352 = vmatprep.subr.bf16.mxu0 0
  %9353 = vmatpush1.bf16.msra.mxu0 %v9172
  %9354 = vmatprep.subr.bf16.mxu0 0
  %9355 = vmatpush1.bf16.msra.mxu0 %v9173
  %9356 = vmatprep.subr.bf16.mxu0 0
  %9357 = vmatpush1.bf16.msra.mxu0 %v9174
  %9358 = vmatprep.subr.bf16.mxu0 0
  %9359 = vmatpush1.bf16.msra.mxu0 %v9175
  %9360 = vmatprep.subr.bf16.mxu0 0
  %9361 = vmatpush1.bf16.msra.mxu0 %v9176
  %9362 = vmatprep.subr.bf16.mxu0 0
  %9363 = vmatpush1.bf16.msra.mxu0 %v9177
  %9364 = vmatprep.subr.bf16.mxu0 0
  %9365 = vmatpush1.bf16.msra.mxu0 %v9178
  %9366 = vmatprep.subr.bf16.mxu0 0
  %9367 = vmatpush1.bf16.msra.mxu0 %v9179
  %9368 = vmatprep.subr.bf16.mxu0 0
  %9369 = vmatpush1.bf16.msra.mxu0 %v9180
  %9370 = vmatprep.subr.bf16.mxu0 0
  %9371 = vmatpush1.bf16.msra.mxu0 %v9181
  %9372 = vmatprep.subr.bf16.mxu0 0
  %9373 = vmatpush1.bf16.msra.mxu0 %v9182
  %9374 = vmatprep.subr.bf16.mxu0 0
  %9375 = vmatpush1.bf16.msra.mxu0 %v9183
  %9376 = vmatprep.subr.bf16.mxu0 0
  %9377 = vmatpush1.bf16.msra.mxu0 %v9184
  %9378 = vmatprep.mubr.bf16.mxu0 %v5051
  %9379 = vmatmul.mubr.bf16.gmra.mrb[0].mxu0 %v5019
  %v9380 = vpop.f32.mrb[0].mxu0
  %v9381 = vadd.f32 %v9220, %v9380
  %v9382 = vpop.f32.mrb[0].mxu0
  %v9383 = vpop.f32.mrb[0].mxu0
  %v9384 = vadd.f32 %v9223, %v9383
  %v9385 = vpop.f32.mrb[0].mxu0
  %9386 = vmatprep.mubr.bf16.mxu0 %v5052
  %9387 = vmatmul.mubr.bf16.gmra.mrb[0].mxu0 %v5020
  %v9388 = vpop.f32.mrb[0].mxu0
  %v9389 = vadd.f32 %v9228, %v9388
  %v9390 = vpop.f32.mrb[0].mxu0
  %v9391 = vpop.f32.mrb[0].mxu0
  %v9392 = vadd.f32 %v9231, %v9391
  %v9393 = vpop.f32.mrb[0].mxu0
  %9394 = vmatprep.mubr.bf16.mxu0 %v5053
  %9395 = vmatmul.mubr.bf16.gmra.mrb[0].mxu0 %v5021
  %v9396 = vpop.f32.mrb[0].mxu0
  %v9397 = vadd.f32 %v9236, %v9396
  %v9398 = vpop.f32.mrb[0].mxu0
  %v9399 = vpop.f32.mrb[0].mxu0
  %v9400 = vadd.f32 %v9239, %v9399
  %v9401 = vpop.f32.mrb[0].mxu0
  %9402 = vmatprep.mubr.bf16.mxu0 %v5054
  %9403 = vmatmul.mubr.bf16.gmra.mrb[0].mxu0 %v5022
  %v9404 = vpop.f32.mrb[0].mxu0
  %v9405 = vadd.f32 %v9244, %v9404
  %v9406 = vpop.f32.mrb[0].mxu0
  %v9407 = vpop.f32.mrb[0].mxu0
  %v9408 = vadd.f32 %v9247, %v9407
  %v9409 = vpop.f32.mrb[0].mxu0
  %9410 = vmatprep.mubr.bf16.mxu0 %v5055
  %9411 = vmatmul.mubr.bf16.gmra.mrb[0].mxu0 %v5023
  %v9412 = vpop.f32.mrb[0].mxu0
  %v9413 = vadd.f32 %v9252, %v9412
  %v9414 = vpop.f32.mrb[0].mxu0
  %v9415 = vpop.f32.mrb[0].mxu0
  %v9416 = vadd.f32 %v9255, %v9415
  %v9417 = vpop.f32.mrb[0].mxu0
  %9418 = vmatprep.mubr.bf16.mxu0 %v5056
  %9419 = vmatmul.mubr.bf16.gmra.mrb[0].mxu0 %v5024
  %v9420 = vpop.f32.mrb[0].mxu0
  %v9421 = vadd.f32 %v9260, %v9420
  %v9422 = vpop.f32.mrb[0].mxu0
  %v9423 = vpop.f32.mrb[0].mxu0
  %v9424 = vadd.f32 %v9263, %v9423
  %v9425 = vpop.f32.mrb[0].mxu0
  %9426 = vmatprep.mubr.bf16.mxu0 %v5057
  %9427 = vmatmul.mubr.bf16.gmra.mrb[0].mxu0 %v5025
  %v9428 = vpop.f32.mrb[0].mxu0
  %v9429 = vadd.f32 %v9268, %v9428
  %v9430 = vpop.f32.mrb[0].mxu0
  %v9431 = vpop.f32.mrb[0].mxu0
  %v9432 = vadd.f32 %v9271, %v9431
  %v9433 = vpop.f32.mrb[0].mxu0
  %9434 = vmatprep.mubr.bf16.mxu0 %v5058
  %9435 = vmatmul.mubr.bf16.gmra.mrb[0].mxu0 %v5026
  %v9436 = vpop.f32.mrb[0].mxu0
  %v9437 = vadd.f32 %v9276, %v9436
  %v9438 = vpop.f32.mrb[0].mxu0
  %v9439 = vpop.f32.mrb[0].mxu0
  %v9440 = vadd.f32 %v9279, %v9439
  %v9441 = vpop.f32.mrb[0].mxu0
  %9442 = vmatprep.mubr.bf16.mxu0 %v5067
  %9443 = vmatmul.mubr.bf16.gmra.mrb[0].mxu0 %v5035
  %v9444 = vpop.f32.mrb[0].mxu0
  %v9445 = vadd.f32 %v9284, %v9444
  %v9446 = vpop.f32.mrb[0].mxu0
  %v9447 = vpop.f32.mrb[0].mxu0
  %v9448 = vadd.f32 %v9287, %v9447
  %v9449 = vpop.f32.mrb[0].mxu0
  %9450 = vmatprep.mubr.bf16.mxu0 %v5068
  %9451 = vmatmul.mubr.bf16.gmra.mrb[0].mxu0 %v5036
  %v9452 = vpop.f32.mrb[0].mxu0
  %v9453 = vadd.f32 %v9292, %v9452
  %v9454 = vpop.f32.mrb[0].mxu0
  %v9455 = vpop.f32.mrb[0].mxu0
  %v9456 = vadd.f32 %v9295, %v9455
  %v9457 = vpop.f32.mrb[0].mxu0
  %9458 = vmatprep.mubr.bf16.mxu0 %v5069
  %9459 = vmatmul.mubr.bf16.gmra.mrb[0].mxu0 %v5037
  %v9460 = vpop.f32.mrb[0].mxu0
  %v9461 = vadd.f32 %v9300, %v9460
  %v9462 = vpop.f32.mrb[0].mxu0
  %v9463 = vpop.f32.mrb[0].mxu0
  %v9464 = vadd.f32 %v9303, %v9463
  %v9465 = vpop.f32.mrb[0].mxu0
  %9466 = vmatprep.mubr.bf16.mxu0 %v5070
  %9467 = vmatmul.mubr.bf16.gmra.mrb[0].mxu0 %v5038
  %v9468 = vpop.f32.mrb[0].mxu0
  %v9469 = vadd.f32 %v9308, %v9468
  %v9470 = vpop.f32.mrb[0].mxu0
  %v9471 = vpop.f32.mrb[0].mxu0
  %v9472 = vadd.f32 %v9311, %v9471
  %v9473 = vpop.f32.mrb[0].mxu0
  %9474 = vmatprep.mubr.bf16.mxu0 %v5071
  %9475 = vmatmul.mubr.bf16.gmra.mrb[0].mxu0 %v5039
  %v9476 = vpop.f32.mrb[0].mxu0
  %v9477 = vadd.f32 %v9316, %v9476
  %v9478 = vpop.f32.mrb[0].mxu0
  %v9479 = vpop.f32.mrb[0].mxu0
  %v9480 = vadd.f32 %v9319, %v9479
  %v9481 = vpop.f32.mrb[0].mxu0
  %9482 = vmatprep.mubr.bf16.mxu0 %v5072
  %9483 = vmatmul.mubr.bf16.gmra.mrb[0].mxu0 %v5040
  %v9484 = vpop.f32.mrb[0].mxu0
  %v9485 = vadd.f32 %v9324, %v9484
  %v9486 = vpop.f32.mrb[0].mxu0
  %v9487 = vpop.f32.mrb[0].mxu0
  %v9488 = vadd.f32 %v9327, %v9487
  %v9489 = vpop.f32.mrb[0].mxu0
  %9490 = vmatprep.mubr.bf16.mxu0 %v5073
  %9491 = vmatmul.mubr.bf16.gmra.mrb[0].mxu0 %v5041
  %v9492 = vpop.f32.mrb[0].mxu0
  %v9493 = vadd.f32 %v9332, %v9492
  %v9494 = vpop.f32.mrb[0].mxu0
  %v9495 = vpop.f32.mrb[0].mxu0
  %v9496 = vadd.f32 %v9335, %v9495
  %v9497 = vpop.f32.mrb[0].mxu0
  %9498 = vmatprep.mubr.bf16.mxu0 %v5074
  %9499 = vmatmul.mubr.bf16.gmra.mrb[0].mxu0 %v5042
  %v9500 = vpop.f32.mrb[0].mxu0
  %v9501 = vadd.f32 %v9340, %v9500
  %v9502 = vpop.f32.mrb[0].mxu0
  %v9503 = vpop.f32.mrb[0].mxu0
  %v9504 = vadd.f32 %v9343, %v9503
  %v9505 = vpop.f32.mrb[0].mxu0
  %9506 = vdwg.mxu0
  %v9507 = vpack.c.bf16 %v9384, %v9381
  %v9508 = vpack.c.bf16 %v9392, %v9389
  %v9509 = vpack.c.bf16 %v9400, %v9397
  %v9510 = vpack.c.bf16 %v9408, %v9405
  %v9511 = vpack.c.bf16 %v9416, %v9413
  %v9512 = vpack.c.bf16 %v9424, %v9421
  %v9513 = vpack.c.bf16 %v9432, %v9429
  %v9514 = vpack.c.bf16 %v9440, %v9437
  %v9515 = vpack.c.bf16 %v9448, %v9445
  %v9516 = vpack.c.bf16 %v9456, %v9453
  %v9517 = vpack.c.bf16 %v9464, %v9461
  %v9518 = vpack.c.bf16 %v9472, %v9469
  %v9519 = vpack.c.bf16 %v9480, %v9477
  %v9520 = vpack.c.bf16 %v9488, %v9485
  %v9521 = vpack.c.bf16 %v9496, %v9493
  %v9522 = vpack.c.bf16 %v9504, %v9501
  %v9524 = vsel %vm1711, %v9507, 0
  %v9527 = vsel %vm1711, %v9508, 0
  %v9530 = vsel %vm1711, %v9509, 0
  %v9533 = vsel %vm1711, %v9510, 0
  %v9536 = vsel %vm1711, %v9511, 0
  %v9539 = vsel %vm1711, %v9512, 0
  %v9542 = vsel %vm1711, %v9513, 0
  %v9545 = vsel %vm1711, %v9514, 0
  %v9548 = vsel %vm1711, %v9515, 0
  %v9551 = vsel %vm1711, %v9516, 0
  %v9554 = vsel %vm1711, %v9517, 0
  %v9557 = vsel %vm1711, %v9518, 0
  %v9560 = vsel %vm1711, %v9519, 0
  %v9563 = vsel %vm1711, %v9520, 0
  %v9566 = vsel %vm1711, %v9521, 0
  %v9569 = vsel %vm1711, %v9522, 0
  %9571 = vmatprep.subr.bf16.mxu0 0
  %9572 = vmatpush1.bf16.msra.mxu0 %v5431
  %9573 = vmatprep.subr.bf16.mxu0 0
  %9574 = vmatpush1.bf16.msra.mxu0 %v5432
  %9575 = vmatprep.subr.bf16.mxu0 0
  %9576 = vmatpush1.bf16.msra.mxu0 0
  %9577 = vmatprep.subr.bf16.mxu0 0
  %9578 = vmatpush1.bf16.msra.mxu0 0
  %9579 = vmatprep.subr.bf16.mxu0 0
  %9580 = vmatpush1.bf16.msra.mxu0 0
  %9581 = vmatprep.subr.bf16.mxu0 0
  %9582 = vmatpush1.bf16.msra.mxu0 0
  %9583 = vmatprep.subr.bf16.mxu0 0
  %9584 = vmatpush1.bf16.msra.mxu0 0
  %9585 = vmatprep.subr.bf16.mxu0 0
  %9586 = vmatpush1.bf16.msra.mxu0 0
  %9587 = vmatprep.subr.bf16.mxu0 0
  %9588 = vmatpush1.bf16.msra.mxu0 0
  %9589 = vmatprep.subr.bf16.mxu0 0
  %9590 = vmatpush1.bf16.msra.mxu0 0
  %9591 = vmatprep.subr.bf16.mxu0 0
  %9592 = vmatpush1.bf16.msra.mxu0 0
  %9593 = vmatprep.subr.bf16.mxu0 0
  %9594 = vmatpush1.bf16.msra.mxu0 0
  %9595 = vmatprep.subr.bf16.mxu0 0
  %9596 = vmatpush1.bf16.msra.mxu0 0
  %9597 = vmatprep.subr.bf16.mxu0 0
  %9598 = vmatpush1.bf16.msra.mxu0 0
  %9599 = vmatprep.subr.bf16.mxu0 0
  %9600 = vmatpush1.bf16.msra.mxu0 0
  %9601 = vmatprep.subr.bf16.mxu0 0
  %9602 = vmatpush1.bf16.msra.mxu0 0
  %9603 = vmatprep.mubr.bf16.mxu0 0
  %9604 = vmatmul.mubr.bf16.gmra.mrb[0].mxu0 %v9524
  %v9605 = vpop.f32.mrb[0].mxu0
  %v9606 = vadd.f32 0.0, %v9605
  %v9607 = vpop.f32.mrb[0].mxu0
  %v9608 = vpop.f32.mrb[0].mxu0
  %v9609 = vadd.f32 0.0, %v9608
  %v9610 = vpop.f32.mrb[0].mxu0
  %9611 = vmatprep.mubr.bf16.mxu0 0
  %9612 = vmatmul.mubr.bf16.gmra.mrb[0].mxu0 %v9527
  %v9613 = vpop.f32.mrb[0].mxu0
  %v9614 = vadd.f32 0.0, %v9613
  %v9615 = vpop.f32.mrb[0].mxu0
  %v9616 = vpop.f32.mrb[0].mxu0
  %v9617 = vadd.f32 0.0, %v9616
  %v9618 = vpop.f32.mrb[0].mxu0
  %9619 = vmatprep.mubr.bf16.mxu0 0
  %9620 = vmatmul.mubr.bf16.gmra.mrb[0].mxu0 %v9530
  %v9621 = vpop.f32.mrb[0].mxu0
  %v9622 = vadd.f32 0.0, %v9621
  %v9623 = vpop.f32.mrb[0].mxu0
  %v9624 = vpop.f32.mrb[0].mxu0
  %v9625 = vadd.f32 0.0, %v9624
  %v9626 = vpop.f32.mrb[0].mxu0
  %9627 = vmatprep.mubr.bf16.mxu0 0
  %9628 = vmatmul.mubr.bf16.gmra.mrb[0].mxu0 %v9533
  %v9629 = vpop.f32.mrb[0].mxu0
  %v9630 = vadd.f32 0.0, %v9629
  %v9631 = vpop.f32.mrb[0].mxu0
  %v9632 = vpop.f32.mrb[0].mxu0
  %v9633 = vadd.f32 0.0, %v9632
  %v9634 = vpop.f32.mrb[0].mxu0
  %9635 = vmatprep.mubr.bf16.mxu0 0
  %9636 = vmatmul.mubr.bf16.gmra.mrb[0].mxu0 %v9536
  %v9637 = vpop.f32.mrb[0].mxu0
  %v9638 = vadd.f32 0.0, %v9637
  %v9639 = vpop.f32.mrb[0].mxu0
  %v9640 = vpop.f32.mrb[0].mxu0
  %v9641 = vadd.f32 0.0, %v9640
  %v9642 = vpop.f32.mrb[0].mxu0
  %9643 = vmatprep.mubr.bf16.mxu0 0
  %9644 = vmatmul.mubr.bf16.gmra.mrb[0].mxu0 %v9539
  %v9645 = vpop.f32.mrb[0].mxu0
  %v9646 = vadd.f32 0.0, %v9645
  %v9647 = vpop.f32.mrb[0].mxu0
  %v9648 = vpop.f32.mrb[0].mxu0
  %v9649 = vadd.f32 0.0, %v9648
  %v9650 = vpop.f32.mrb[0].mxu0
  %9651 = vmatprep.mubr.bf16.mxu0 0
  %9652 = vmatmul.mubr.bf16.gmra.mrb[0].mxu0 %v9542
  %v9653 = vpop.f32.mrb[0].mxu0
  %v9654 = vadd.f32 0.0, %v9653
  %v9655 = vpop.f32.mrb[0].mxu0
  %v9656 = vpop.f32.mrb[0].mxu0
  %v9657 = vadd.f32 0.0, %v9656
  %v9658 = vpop.f32.mrb[0].mxu0
  %9659 = vmatprep.mubr.bf16.mxu0 0
  %9660 = vmatmul.mubr.bf16.gmra.mrb[0].mxu0 %v9545
  %v9661 = vpop.f32.mrb[0].mxu0
  %v9662 = vadd.f32 0.0, %v9661
  %v9663 = vpop.f32.mrb[0].mxu0
  %v9664 = vpop.f32.mrb[0].mxu0
  %v9665 = vadd.f32 0.0, %v9664
  %v9666 = vpop.f32.mrb[0].mxu0
  %9667 = vmatprep.mubr.bf16.mxu0 0
  %9668 = vmatmul.mubr.bf16.gmra.mrb[0].mxu0 %v9548
  %v9669 = vpop.f32.mrb[0].mxu0
  %v9670 = vadd.f32 0.0, %v9669
  %v9671 = vpop.f32.mrb[0].mxu0
  %v9672 = vpop.f32.mrb[0].mxu0
  %v9673 = vadd.f32 0.0, %v9672
  %v9674 = vpop.f32.mrb[0].mxu0
  %9675 = vmatprep.mubr.bf16.mxu0 0
  %9676 = vmatmul.mubr.bf16.gmra.mrb[0].mxu0 %v9551
  %v9677 = vpop.f32.mrb[0].mxu0
  %v9678 = vadd.f32 0.0, %v9677
  %v9679 = vpop.f32.mrb[0].mxu0
  %v9680 = vpop.f32.mrb[0].mxu0
  %v9681 = vadd.f32 0.0, %v9680
  %v9682 = vpop.f32.mrb[0].mxu0
  %9683 = vmatprep.mubr.bf16.mxu0 0
  %9684 = vmatmul.mubr.bf16.gmra.mrb[0].mxu0 %v9554
  %v9685 = vpop.f32.mrb[0].mxu0
  %v9686 = vadd.f32 0.0, %v9685
  %v9687 = vpop.f32.mrb[0].mxu0
  %v9688 = vpop.f32.mrb[0].mxu0
  %v9689 = vadd.f32 0.0, %v9688
  %v9690 = vpop.f32.mrb[0].mxu0
  %9691 = vmatprep.mubr.bf16.mxu0 0
  %9692 = vmatmul.mubr.bf16.gmra.mrb[0].mxu0 %v9557
  %v9693 = vpop.f32.mrb[0].mxu0
  %v9694 = vadd.f32 0.0, %v9693
  %v9695 = vpop.f32.mrb[0].mxu0
  %v9696 = vpop.f32.mrb[0].mxu0
  %v9697 = vadd.f32 0.0, %v9696
  %v9698 = vpop.f32.mrb[0].mxu0
  %9699 = vmatprep.mubr.bf16.mxu0 0
  %9700 = vmatmul.mubr.bf16.gmra.mrb[0].mxu0 %v9560
  %v9701 = vpop.f32.mrb[0].mxu0
  %v9702 = vadd.f32 0.0, %v9701
  %v9703 = vpop.f32.mrb[0].mxu0
  %v9704 = vpop.f32.mrb[0].mxu0
  %v9705 = vadd.f32 0.0, %v9704
  %v9706 = vpop.f32.mrb[0].mxu0
  %9707 = vmatprep.mubr.bf16.mxu0 0
  %9708 = vmatmul.mubr.bf16.gmra.mrb[0].mxu0 %v9563
  %v9709 = vpop.f32.mrb[0].mxu0
  %v9710 = vadd.f32 0.0, %v9709
  %v9711 = vpop.f32.mrb[0].mxu0
  %v9712 = vpop.f32.mrb[0].mxu0
  %v9713 = vadd.f32 0.0, %v9712
  %v9714 = vpop.f32.mrb[0].mxu0
  %9715 = vmatprep.mubr.bf16.mxu0 0
  %9716 = vmatmul.mubr.bf16.gmra.mrb[0].mxu0 %v9566
  %v9717 = vpop.f32.mrb[0].mxu0
  %v9718 = vadd.f32 0.0, %v9717
  %v9719 = vpop.f32.mrb[0].mxu0
  %v9720 = vpop.f32.mrb[0].mxu0
  %v9721 = vadd.f32 0.0, %v9720
  %v9722 = vpop.f32.mrb[0].mxu0
  %9723 = vmatprep.mubr.bf16.mxu0 0
  %9724 = vmatmul.mubr.bf16.gmra.mrb[0].mxu0 %v9569
  %v9725 = vpop.f32.mrb[0].mxu0
  %v9726 = vadd.f32 0.0, %v9725
  %v9727 = vpop.f32.mrb[0].mxu0
  %v9728 = vpop.f32.mrb[0].mxu0
  %v9729 = vadd.f32 0.0, %v9728
  %v9730 = vpop.f32.mrb[0].mxu0
  %9731 = vdwg.mxu0
  %9732 = vmatprep.subr.bf16.mxu0 0
  %9733 = vmatpush1.bf16.msra.mxu0 %v5652
  %9734 = vmatprep.subr.bf16.mxu0 0
  %9735 = vmatpush1.bf16.msra.mxu0 %v5653
  %9736 = vmatprep.subr.bf16.mxu0 0
  %9737 = vmatpush1.bf16.msra.mxu0 0
  %9738 = vmatprep.subr.bf16.mxu0 0
  %9739 = vmatpush1.bf16.msra.mxu0 0
  %9740 = vmatprep.subr.bf16.mxu0 0
  %9741 = vmatpush1.bf16.msra.mxu0 0
  %9742 = vmatprep.subr.bf16.mxu0 0
  %9743 = vmatpush1.bf16.msra.mxu0 0
  %9744 = vmatprep.subr.bf16.mxu0 0
  %9745 = vmatpush1.bf16.msra.mxu0 0
  %9746 = vmatprep.subr.bf16.mxu0 0
  %9747 = vmatpush1.bf16.msra.mxu0 0
  %9748 = vmatprep.subr.bf16.mxu0 0
  %9749 = vmatpush1.bf16.msra.mxu0 0
  %9750 = vmatprep.subr.bf16.mxu0 0
  %9751 = vmatpush1.bf16.msra.mxu0 0
  %9752 = vmatprep.subr.bf16.mxu0 0
  %9753 = vmatpush1.bf16.msra.mxu0 0
  %9754 = vmatprep.subr.bf16.mxu0 0
  %9755 = vmatpush1.bf16.msra.mxu0 0
  %9756 = vmatprep.subr.bf16.mxu0 0
  %9757 = vmatpush1.bf16.msra.mxu0 0
  %9758 = vmatprep.subr.bf16.mxu0 0
  %9759 = vmatpush1.bf16.msra.mxu0 0
  %9760 = vmatprep.subr.bf16.mxu0 0
  %9761 = vmatpush1.bf16.msra.mxu0 0
  %9762 = vmatprep.subr.bf16.mxu0 0
  %9763 = vmatpush1.bf16.msra.mxu0 0
  %9764 = vmatprep.mubr.bf16.mxu0 0
  %9765 = vmatmul.mubr.bf16.gmra.mrb[0].mxu0 %v6685
  %v9766 = vpop.f32.mrb[0].mxu0
  %v9767 = vadd.f32 %v9606, %v9766
  %v9768 = vpop.f32.mrb[0].mxu0
  %v9769 = vpop.f32.mrb[0].mxu0
  %v9770 = vadd.f32 %v9609, %v9769
  %v9771 = vpop.f32.mrb[0].mxu0
  %9772 = vmatprep.mubr.bf16.mxu0 0
  %9773 = vmatmul.mubr.bf16.gmra.mrb[0].mxu0 %v6688
  %v9774 = vpop.f32.mrb[0].mxu0
  %v9775 = vadd.f32 %v9614, %v9774
  %v9776 = vpop.f32.mrb[0].mxu0
  %v9777 = vpop.f32.mrb[0].mxu0
  %v9778 = vadd.f32 %v9617, %v9777
  %v9779 = vpop.f32.mrb[0].mxu0
  %9780 = vmatprep.mubr.bf16.mxu0 0
  %9781 = vmatmul.mubr.bf16.gmra.mrb[0].mxu0 %v6691
  %v9782 = vpop.f32.mrb[0].mxu0
  %v9783 = vadd.f32 %v9622, %v9782
  %v9784 = vpop.f32.mrb[0].mxu0
  %v9785 = vpop.f32.mrb[0].mxu0
  %v9786 = vadd.f32 %v9625, %v9785
  %v9787 = vpop.f32.mrb[0].mxu0
  %9788 = vmatprep.mubr.bf16.mxu0 0
  %9789 = vmatmul.mubr.bf16.gmra.mrb[0].mxu0 %v6694
  %v9790 = vpop.f32.mrb[0].mxu0
  %v9791 = vadd.f32 %v9630, %v9790
  %v9792 = vpop.f32.mrb[0].mxu0
  %v9793 = vpop.f32.mrb[0].mxu0
  %v9794 = vadd.f32 %v9633, %v9793
  %v9795 = vpop.f32.mrb[0].mxu0
  %9796 = vmatprep.mubr.bf16.mxu0 0
  %9797 = vmatmul.mubr.bf16.gmra.mrb[0].mxu0 %v6697
  %v9798 = vpop.f32.mrb[0].mxu0
  %v9799 = vadd.f32 %v9638, %v9798
  %v9800 = vpop.f32.mrb[0].mxu0
  %v9801 = vpop.f32.mrb[0].mxu0
  %v9802 = vadd.f32 %v9641, %v9801
  %v9803 = vpop.f32.mrb[0].mxu0
  %9804 = vmatprep.mubr.bf16.mxu0 0
  %9805 = vmatmul.mubr.bf16.gmra.mrb[0].mxu0 %v6700
  %v9806 = vpop.f32.mrb[0].mxu0
  %v9807 = vadd.f32 %v9646, %v9806
  %v9808 = vpop.f32.mrb[0].mxu0
  %v9809 = vpop.f32.mrb[0].mxu0
  %v9810 = vadd.f32 %v9649, %v9809
  %v9811 = vpop.f32.mrb[0].mxu0
  %9812 = vmatprep.mubr.bf16.mxu0 0
  %9813 = vmatmul.mubr.bf16.gmra.mrb[0].mxu0 %v6703
  %v9814 = vpop.f32.mrb[0].mxu0
  %v9815 = vadd.f32 %v9654, %v9814
  %v9816 = vpop.f32.mrb[0].mxu0
  %v9817 = vpop.f32.mrb[0].mxu0
  %v9818 = vadd.f32 %v9657, %v9817
  %v9819 = vpop.f32.mrb[0].mxu0
  %9820 = vmatprep.mubr.bf16.mxu0 0
  %9821 = vmatmul.mubr.bf16.gmra.mrb[0].mxu0 %v6706
  %v9822 = vpop.f32.mrb[0].mxu0
  %v9823 = vadd.f32 %v9662, %v9822
  %v9824 = vpop.f32.mrb[0].mxu0
  %v9825 = vpop.f32.mrb[0].mxu0
  %v9826 = vadd.f32 %v9665, %v9825
  %v9827 = vpop.f32.mrb[0].mxu0
  %9828 = vmatprep.mubr.bf16.mxu0 0
  %9829 = vmatmul.mubr.bf16.gmra.mrb[0].mxu0 %v6709
  %v9830 = vpop.f32.mrb[0].mxu0
  %v9831 = vadd.f32 %v9670, %v9830
  %v9832 = vpop.f32.mrb[0].mxu0
  %v9833 = vpop.f32.mrb[0].mxu0
  %v9834 = vadd.f32 %v9673, %v9833
  %v9835 = vpop.f32.mrb[0].mxu0
  %9836 = vmatprep.mubr.bf16.mxu0 0
  %9837 = vmatmul.mubr.bf16.gmra.mrb[0].mxu0 %v6712
  %v9838 = vpop.f32.mrb[0].mxu0
  %v9839 = vadd.f32 %v9678, %v9838
  %v9840 = vpop.f32.mrb[0].mxu0
  %v9841 = vpop.f32.mrb[0].mxu0
  %v9842 = vadd.f32 %v9681, %v9841
  %v9843 = vpop.f32.mrb[0].mxu0
  %9844 = vmatprep.mubr.bf16.mxu0 0
  %9845 = vmatmul.mubr.bf16.gmra.mrb[0].mxu0 %v6715
  %v9846 = vpop.f32.mrb[0].mxu0
  %v9847 = vadd.f32 %v9686, %v9846
  %v9848 = vpop.f32.mrb[0].mxu0
  %v9849 = vpop.f32.mrb[0].mxu0
  %v9850 = vadd.f32 %v9689, %v9849
  %v9851 = vpop.f32.mrb[0].mxu0
  %9852 = vmatprep.mubr.bf16.mxu0 0
  %9853 = vmatmul.mubr.bf16.gmra.mrb[0].mxu0 %v6718
  %v9854 = vpop.f32.mrb[0].mxu0
  %v9855 = vadd.f32 %v9694, %v9854
  %v9856 = vpop.f32.mrb[0].mxu0
  %v9857 = vpop.f32.mrb[0].mxu0
  %v9858 = vadd.f32 %v9697, %v9857
  %v9859 = vpop.f32.mrb[0].mxu0
  %9860 = vmatprep.mubr.bf16.mxu0 0
  %9861 = vmatmul.mubr.bf16.gmra.mrb[0].mxu0 %v6721
  %v9862 = vpop.f32.mrb[0].mxu0
  %v9863 = vadd.f32 %v9702, %v9862
  %v9864 = vpop.f32.mrb[0].mxu0
  %v9865 = vpop.f32.mrb[0].mxu0
  %v9866 = vadd.f32 %v9705, %v9865
  %v9867 = vpop.f32.mrb[0].mxu0
  %9868 = vmatprep.mubr.bf16.mxu0 0
  %9869 = vmatmul.mubr.bf16.gmra.mrb[0].mxu0 %v6724
  %v9870 = vpop.f32.mrb[0].mxu0
  %v9871 = vadd.f32 %v9710, %v9870
  %v9872 = vpop.f32.mrb[0].mxu0
  %v9873 = vpop.f32.mrb[0].mxu0
  %v9874 = vadd.f32 %v9713, %v9873
  %v9875 = vpop.f32.mrb[0].mxu0
  %9876 = vmatprep.mubr.bf16.mxu0 0
  %9877 = vmatmul.mubr.bf16.gmra.mrb[0].mxu0 %v6727
  %v9878 = vpop.f32.mrb[0].mxu0
  %v9879 = vadd.f32 %v9718, %v9878
  %v9880 = vpop.f32.mrb[0].mxu0
  %v9881 = vpop.f32.mrb[0].mxu0
  %v9882 = vadd.f32 %v9721, %v9881
  %v9883 = vpop.f32.mrb[0].mxu0
  %9884 = vmatprep.mubr.bf16.mxu0 0
  %9885 = vmatmul.mubr.bf16.gmra.mrb[0].mxu0 %v6730
  %v9886 = vpop.f32.mrb[0].mxu0
  %v9887 = vadd.f32 %v9726, %v9886
  %v9888 = vpop.f32.mrb[0].mxu0
  %v9889 = vpop.f32.mrb[0].mxu0
  %v9890 = vadd.f32 %v9729, %v9889
  %v9891 = vpop.f32.mrb[0].mxu0
  %9892 = vdwg.mxu0
  %v9893 = vadd.f32 %v9767, %v5820
  %v9894 = vadd.f32 %v9770, %v5820
  %v9895 = vadd.f32 %v9775, %v5820
  %v9896 = vadd.f32 %v9778, %v5820
  %v9897 = vadd.f32 %v9783, %v5820
  %v9898 = vadd.f32 %v9786, %v5820
  %v9899 = vadd.f32 %v9791, %v5820
  %v9900 = vadd.f32 %v9794, %v5820
  %v9901 = vadd.f32 %v9799, %v5820
  %v9902 = vadd.f32 %v9802, %v5820
  %v9903 = vadd.f32 %v9807, %v5820
  %v9904 = vadd.f32 %v9810, %v5820
  %v9905 = vadd.f32 %v9815, %v5820
  %v9906 = vadd.f32 %v9818, %v5820
  %v9907 = vadd.f32 %v9823, %v5820
  %v9908 = vadd.f32 %v9826, %v5820
  %v9909 = vadd.f32 %v9831, %v5820
  %v9910 = vadd.f32 %v9834, %v5820
  %v9911 = vadd.f32 %v9839, %v5820
  %v9912 = vadd.f32 %v9842, %v5820
  %v9913 = vadd.f32 %v9847, %v5820
  %v9914 = vadd.f32 %v9850, %v5820
  %v9915 = vadd.f32 %v9855, %v5820
  %v9916 = vadd.f32 %v9858, %v5820
  %v9917 = vadd.f32 %v9863, %v5820
  %v9918 = vadd.f32 %v9866, %v5820
  %v9919 = vadd.f32 %v9871, %v5820
  %v9920 = vadd.f32 %v9874, %v5820
  %v9921 = vadd.f32 %v9879, %v5820
  %v9922 = vadd.f32 %v9882, %v5820
  %v9923 = vadd.f32 %v9887, %v5820
  %v9924 = vadd.f32 %v9890, %v5820
  %v9925 = vsel %vm1711, %v9893, 0.0
  %9926 = vadd.xlane.f32.xlu0 %v9925
  %v9927 = vpop.xlane.xlu0 %9926
  %v9928 = vsel %vm1711, %v9894, 0.0
  %9929 = vadd.xlane.f32.xlu0 %v9928
  %v9930 = vpop.xlane.xlu0 %9929
  %v9931 = vsel %vm1711, %v9895, 0.0
  %9932 = vadd.xlane.f32.xlu0 %v9931
  %v9933 = vpop.xlane.xlu0 %9932
  %v9934 = vsel %vm1711, %v9896, 0.0
  %9935 = vadd.xlane.f32.xlu0 %v9934
  %v9936 = vpop.xlane.xlu0 %9935
  %v9937 = vsel %vm1711, %v9897, 0.0
  %9938 = vadd.xlane.f32.xlu0 %v9937
  %v9939 = vpop.xlane.xlu0 %9938
  %v9940 = vsel %vm1711, %v9898, 0.0
  %9941 = vadd.xlane.f32.xlu0 %v9940
  %v9942 = vpop.xlane.xlu0 %9941
  %v9943 = vsel %vm1711, %v9899, 0.0
  %9944 = vadd.xlane.f32.xlu0 %v9943
  %v9945 = vpop.xlane.xlu0 %9944
  %v9946 = vsel %vm1711, %v9900, 0.0
  %9947 = vadd.xlane.f32.xlu0 %v9946
  %v9948 = vpop.xlane.xlu0 %9947
  %v9949 = vsel %vm1711, %v9901, 0.0
  %9950 = vadd.xlane.f32.xlu0 %v9949
  %v9951 = vpop.xlane.xlu0 %9950
  %v9952 = vsel %vm1711, %v9902, 0.0
  %9953 = vadd.xlane.f32.xlu0 %v9952
  %v9954 = vpop.xlane.xlu0 %9953
  %v9955 = vsel %vm1711, %v9903, 0.0
  %9956 = vadd.xlane.f32.xlu0 %v9955
  %v9957 = vpop.xlane.xlu0 %9956
  %v9958 = vsel %vm1711, %v9904, 0.0
  %9959 = vadd.xlane.f32.xlu0 %v9958
  %v9960 = vpop.xlane.xlu0 %9959
  %v9961 = vsel %vm1711, %v9905, 0.0
  %9962 = vadd.xlane.f32.xlu0 %v9961
  %v9963 = vpop.xlane.xlu0 %9962
  %v9964 = vsel %vm1711, %v9906, 0.0
  %9965 = vadd.xlane.f32.xlu0 %v9964
  %v9966 = vpop.xlane.xlu0 %9965
  %v9967 = vsel %vm1711, %v9907, 0.0
  %9968 = vadd.xlane.f32.xlu0 %v9967
  %v9969 = vpop.xlane.xlu0 %9968
  %v9970 = vsel %vm1711, %v9908, 0.0
  %9971 = vadd.xlane.f32.xlu0 %v9970
  %v9972 = vpop.xlane.xlu0 %9971
  %v9973 = vsel %vm1711, %v9909, 0.0
  %9974 = vadd.xlane.f32.xlu0 %v9973
  %v9975 = vpop.xlane.xlu0 %9974
  %v9976 = vsel %vm1711, %v9910, 0.0
  %9977 = vadd.xlane.f32.xlu0 %v9976
  %v9978 = vpop.xlane.xlu0 %9977
  %v9979 = vsel %vm1711, %v9911, 0.0
  %9980 = vadd.xlane.f32.xlu0 %v9979
  %v9981 = vpop.xlane.xlu0 %9980
  %v9982 = vsel %vm1711, %v9912, 0.0
  %9983 = vadd.xlane.f32.xlu0 %v9982
  %v9984 = vpop.xlane.xlu0 %9983
  %v9985 = vsel %vm1711, %v9913, 0.0
  %9986 = vadd.xlane.f32.xlu0 %v9985
  %v9987 = vpop.xlane.xlu0 %9986
  %v9988 = vsel %vm1711, %v9914, 0.0
  %9989 = vadd.xlane.f32.xlu0 %v9988
  %v9990 = vpop.xlane.xlu0 %9989
  %v9991 = vsel %vm1711, %v9915, 0.0
  %9992 = vadd.xlane.f32.xlu0 %v9991
  %v9993 = vpop.xlane.xlu0 %9992
  %v9994 = vsel %vm1711, %v9916, 0.0
  %9995 = vadd.xlane.f32.xlu0 %v9994
  %v9996 = vpop.xlane.xlu0 %9995
  %v9997 = vsel %vm1711, %v9917, 0.0
  %9998 = vadd.xlane.f32.xlu0 %v9997
  %v9999 = vpop.xlane.xlu0 %9998
  %v10000 = vsel %vm1711, %v9918, 0.0
  %10001 = vadd.xlane.f32.xlu0 %v10000
  %v10002 = vpop.xlane.xlu0 %10001
  %v10003 = vsel %vm1711, %v9919, 0.0
  %10004 = vadd.xlane.f32.xlu0 %v10003
  %v10005 = vpop.xlane.xlu0 %10004
  %v10006 = vsel %vm1711, %v9920, 0.0
  %10007 = vadd.xlane.f32.xlu0 %v10006
  %v10008 = vpop.xlane.xlu0 %10007
  %v10009 = vsel %vm1711, %v9921, 0.0
  %10010 = vadd.xlane.f32.xlu0 %v10009
  %v10011 = vpop.xlane.xlu0 %10010
  %v10012 = vsel %vm1711, %v9922, 0.0
  %10013 = vadd.xlane.f32.xlu0 %v10012
  %v10014 = vpop.xlane.xlu0 %10013
  %v10015 = vsel %vm1711, %v9923, 0.0
  %10016 = vadd.xlane.f32.xlu0 %v10015
  %v10017 = vpop.xlane.xlu0 %10016
  %v10018 = vsel %vm1711, %v9924, 0.0
  %10019 = vadd.xlane.f32.xlu0 %v10018
  %v10020 = vpop.xlane.xlu0 %10019
  %v10021 = vmul.f32 %v9927, %v1808
  %v10022 = vmul.f32 %v9930, %v1808
  %v10023 = vmul.f32 %v9933, %v1808
  %v10024 = vmul.f32 %v9936, %v1808
  %v10025 = vmul.f32 %v9939, %v1808
  %v10026 = vmul.f32 %v9942, %v1808
  %v10027 = vmul.f32 %v9945, %v1808
  %v10028 = vmul.f32 %v9948, %v1808
  %v10029 = vmul.f32 %v9951, %v1808
  %v10030 = vmul.f32 %v9954, %v1808
  %v10031 = vmul.f32 %v9957, %v1808
  %v10032 = vmul.f32 %v9960, %v1808
  %v10033 = vmul.f32 %v9963, %v1808
  %v10034 = vmul.f32 %v9966, %v1808
  %v10035 = vmul.f32 %v9969, %v1808
  %v10036 = vmul.f32 %v9972, %v1808
  %v10037 = vmul.f32 %v9975, %v1808
  %v10038 = vmul.f32 %v9978, %v1808
  %v10039 = vmul.f32 %v9981, %v1808
  %v10040 = vmul.f32 %v9984, %v1808
  %v10041 = vmul.f32 %v9987, %v1808
  %v10042 = vmul.f32 %v9990, %v1808
  %v10043 = vmul.f32 %v9993, %v1808
  %v10044 = vmul.f32 %v9996, %v1808
  %v10045 = vmul.f32 %v9999, %v1808
  %v10046 = vmul.f32 %v10002, %v1808
  %v10047 = vmul.f32 %v10005, %v1808
  %v10048 = vmul.f32 %v10008, %v1808
  %v10049 = vmul.f32 %v10011, %v1808
  %v10050 = vmul.f32 %v10014, %v1808
  %v10051 = vmul.f32 %v10017, %v1808
  %v10052 = vmul.f32 %v10020, %v1808
  %v10053 = vsub.f32 %v9893, %v10021
  %v10054 = vsub.f32 %v9894, %v10022
  %v10055 = vsub.f32 %v9895, %v10023
  %v10056 = vsub.f32 %v9896, %v10024
  %v10057 = vsub.f32 %v9897, %v10025
  %v10058 = vsub.f32 %v9898, %v10026
  %v10059 = vsub.f32 %v9899, %v10027
  %v10060 = vsub.f32 %v9900, %v10028
  %v10061 = vsub.f32 %v9901, %v10029
  %v10062 = vsub.f32 %v9902, %v10030
  %v10063 = vsub.f32 %v9903, %v10031
  %v10064 = vsub.f32 %v9904, %v10032
  %v10065 = vsub.f32 %v9905, %v10033
  %v10066 = vsub.f32 %v9906, %v10034
  %v10067 = vsub.f32 %v9907, %v10035
  %v10068 = vsub.f32 %v9908, %v10036
  %v10069 = vsub.f32 %v9909, %v10037
  %v10070 = vsub.f32 %v9910, %v10038
  %v10071 = vsub.f32 %v9911, %v10039
  %v10072 = vsub.f32 %v9912, %v10040
  %v10073 = vsub.f32 %v9913, %v10041
  %v10074 = vsub.f32 %v9914, %v10042
  %v10075 = vsub.f32 %v9915, %v10043
  %v10076 = vsub.f32 %v9916, %v10044
  %v10077 = vsub.f32 %v9917, %v10045
  %v10078 = vsub.f32 %v9918, %v10046
  %v10079 = vsub.f32 %v9919, %v10047
  %v10080 = vsub.f32 %v9920, %v10048
  %v10081 = vsub.f32 %v9921, %v10049
  %v10082 = vsub.f32 %v9922, %v10050
  %v10083 = vsub.f32 %v9923, %v10051
  %v10084 = vsub.f32 %v9924, %v10052
  %v10085 = vmul.f32 %v10053, %v10053
  %v10086 = vmul.f32 %v10054, %v10054
  %v10087 = vmul.f32 %v10055, %v10055
  %v10088 = vmul.f32 %v10056, %v10056
  %v10089 = vmul.f32 %v10057, %v10057
  %v10090 = vmul.f32 %v10058, %v10058
  %v10091 = vmul.f32 %v10059, %v10059
  %v10092 = vmul.f32 %v10060, %v10060
  %v10093 = vmul.f32 %v10061, %v10061
  %v10094 = vmul.f32 %v10062, %v10062
  %v10095 = vmul.f32 %v10063, %v10063
  %v10096 = vmul.f32 %v10064, %v10064
  %v10097 = vmul.f32 %v10065, %v10065
  %v10098 = vmul.f32 %v10066, %v10066
  %v10099 = vmul.f32 %v10067, %v10067
  %v10100 = vmul.f32 %v10068, %v10068
  %v10101 = vmul.f32 %v10069, %v10069
  %v10102 = vmul.f32 %v10070, %v10070
  %v10103 = vmul.f32 %v10071, %v10071
  %v10104 = vmul.f32 %v10072, %v10072
  %v10105 = vmul.f32 %v10073, %v10073
  %v10106 = vmul.f32 %v10074, %v10074
  %v10107 = vmul.f32 %v10075, %v10075
  %v10108 = vmul.f32 %v10076, %v10076
  %v10109 = vmul.f32 %v10077, %v10077
  %v10110 = vmul.f32 %v10078, %v10078
  %v10111 = vmul.f32 %v10079, %v10079
  %v10112 = vmul.f32 %v10080, %v10080
  %v10113 = vmul.f32 %v10081, %v10081
  %v10114 = vmul.f32 %v10082, %v10082
  %v10115 = vmul.f32 %v10083, %v10083
  %v10116 = vmul.f32 %v10084, %v10084
  %v10117 = vsel %vm1711, %v10085, 0.0
  %10118 = vadd.xlane.f32.xlu0 %v10117
  %v10119 = vpop.xlane.xlu0 %10118
  %v10120 = vsel %vm1711, %v10086, 0.0
  %10121 = vadd.xlane.f32.xlu0 %v10120
  %v10122 = vpop.xlane.xlu0 %10121
  %v10123 = vsel %vm1711, %v10087, 0.0
  %10124 = vadd.xlane.f32.xlu0 %v10123
  %v10125 = vpop.xlane.xlu0 %10124
  %v10126 = vsel %vm1711, %v10088, 0.0
  %10127 = vadd.xlane.f32.xlu0 %v10126
  %v10128 = vpop.xlane.xlu0 %10127
  %v10129 = vsel %vm1711, %v10089, 0.0
  %10130 = vadd.xlane.f32.xlu0 %v10129
  %v10131 = vpop.xlane.xlu0 %10130
  %v10132 = vsel %vm1711, %v10090, 0.0
  %10133 = vadd.xlane.f32.xlu0 %v10132
  %v10134 = vpop.xlane.xlu0 %10133
  %v10135 = vsel %vm1711, %v10091, 0.0
  %10136 = vadd.xlane.f32.xlu0 %v10135
  %v10137 = vpop.xlane.xlu0 %10136
  %v10138 = vsel %vm1711, %v10092, 0.0
  %10139 = vadd.xlane.f32.xlu0 %v10138
  %v10140 = vpop.xlane.xlu0 %10139
  %v10141 = vsel %vm1711, %v10093, 0.0
  %10142 = vadd.xlane.f32.xlu0 %v10141
  %v10143 = vpop.xlane.xlu0 %10142
  %v10144 = vsel %vm1711, %v10094, 0.0
  %10145 = vadd.xlane.f32.xlu0 %v10144
  %v10146 = vpop.xlane.xlu0 %10145
  %v10147 = vsel %vm1711, %v10095, 0.0
  %10148 = vadd.xlane.f32.xlu0 %v10147
  %v10149 = vpop.xlane.xlu0 %10148
  %v10150 = vsel %vm1711, %v10096, 0.0
  %10151 = vadd.xlane.f32.xlu0 %v10150
  %v10152 = vpop.xlane.xlu0 %10151
  %v10153 = vsel %vm1711, %v10097, 0.0
  %10154 = vadd.xlane.f32.xlu0 %v10153
  %v10155 = vpop.xlane.xlu0 %10154
  %v10156 = vsel %vm1711, %v10098, 0.0
  %10157 = vadd.xlane.f32.xlu0 %v10156
  %v10158 = vpop.xlane.xlu0 %10157
  %v10159 = vsel %vm1711, %v10099, 0.0
  %10160 = vadd.xlane.f32.xlu0 %v10159
  %v10161 = vpop.xlane.xlu0 %10160
  %v10162 = vsel %vm1711, %v10100, 0.0
  %10163 = vadd.xlane.f32.xlu0 %v10162
  %v10164 = vpop.xlane.xlu0 %10163
  %v10165 = vsel %vm1711, %v10101, 0.0
  %10166 = vadd.xlane.f32.xlu0 %v10165
  %v10167 = vpop.xlane.xlu0 %10166
  %v10168 = vsel %vm1711, %v10102, 0.0
  %10169 = vadd.xlane.f32.xlu0 %v10168
  %v10170 = vpop.xlane.xlu0 %10169
  %v10171 = vsel %vm1711, %v10103, 0.0
  %10172 = vadd.xlane.f32.xlu0 %v10171
  %v10173 = vpop.xlane.xlu0 %10172
  %v10174 = vsel %vm1711, %v10104, 0.0
  %10175 = vadd.xlane.f32.xlu0 %v10174
  %v10176 = vpop.xlane.xlu0 %10175
  %v10177 = vsel %vm1711, %v10105, 0.0
  %10178 = vadd.xlane.f32.xlu0 %v10177
  %v10179 = vpop.xlane.xlu0 %10178
  %v10180 = vsel %vm1711, %v10106, 0.0
  %10181 = vadd.xlane.f32.xlu0 %v10180
  %v10182 = vpop.xlane.xlu0 %10181
  %v10183 = vsel %vm1711, %v10107, 0.0
  %10184 = vadd.xlane.f32.xlu0 %v10183
  %v10185 = vpop.xlane.xlu0 %10184
  %v10186 = vsel %vm1711, %v10108, 0.0
  %10187 = vadd.xlane.f32.xlu0 %v10186
  %v10188 = vpop.xlane.xlu0 %10187
  %v10189 = vsel %vm1711, %v10109, 0.0
  %10190 = vadd.xlane.f32.xlu0 %v10189
  %v10191 = vpop.xlane.xlu0 %10190
  %v10192 = vsel %vm1711, %v10110, 0.0
  %10193 = vadd.xlane.f32.xlu0 %v10192
  %v10194 = vpop.xlane.xlu0 %10193
  %v10195 = vsel %vm1711, %v10111, 0.0
  %10196 = vadd.xlane.f32.xlu0 %v10195
  %v10197 = vpop.xlane.xlu0 %10196
  %v10198 = vsel %vm1711, %v10112, 0.0
  %10199 = vadd.xlane.f32.xlu0 %v10198
  %v10200 = vpop.xlane.xlu0 %10199
  %v10201 = vsel %vm1711, %v10113, 0.0
  %10202 = vadd.xlane.f32.xlu0 %v10201
  %v10203 = vpop.xlane.xlu0 %10202
  %v10204 = vsel %vm1711, %v10114, 0.0
  %10205 = vadd.xlane.f32.xlu0 %v10204
  %v10206 = vpop.xlane.xlu0 %10205
  %v10207 = vsel %vm1711, %v10115, 0.0
  %10208 = vadd.xlane.f32.xlu0 %v10207
  %v10209 = vpop.xlane.xlu0 %10208
  %v10210 = vsel %vm1711, %v10116, 0.0
  %10211 = vadd.xlane.f32.xlu0 %v10210
  %v10212 = vpop.xlane.xlu0 %10211
  %v10213 = vmul.f32 %v10119, %v1808
  %v10214 = vmul.f32 %v10122, %v1808
  %v10215 = vmul.f32 %v10125, %v1808
  %v10216 = vmul.f32 %v10128, %v1808
  %v10217 = vmul.f32 %v10131, %v1808
  %v10218 = vmul.f32 %v10134, %v1808
  %v10219 = vmul.f32 %v10137, %v1808
  %v10220 = vmul.f32 %v10140, %v1808
  %v10221 = vmul.f32 %v10143, %v1808
  %v10222 = vmul.f32 %v10146, %v1808
  %v10223 = vmul.f32 %v10149, %v1808
  %v10224 = vmul.f32 %v10152, %v1808
  %v10225 = vmul.f32 %v10155, %v1808
  %v10226 = vmul.f32 %v10158, %v1808
  %v10227 = vmul.f32 %v10161, %v1808
  %v10228 = vmul.f32 %v10164, %v1808
  %v10229 = vmul.f32 %v10167, %v1808
  %v10230 = vmul.f32 %v10170, %v1808
  %v10231 = vmul.f32 %v10173, %v1808
  %v10232 = vmul.f32 %v10176, %v1808
  %v10233 = vmul.f32 %v10179, %v1808
  %v10234 = vmul.f32 %v10182, %v1808
  %v10235 = vmul.f32 %v10185, %v1808
  %v10236 = vmul.f32 %v10188, %v1808
  %v10237 = vmul.f32 %v10191, %v1808
  %v10238 = vmul.f32 %v10194, %v1808
  %v10239 = vmul.f32 %v10197, %v1808
  %v10240 = vmul.f32 %v10200, %v1808
  %v10241 = vmul.f32 %v10203, %v1808
  %v10242 = vmul.f32 %v10206, %v1808
  %v10243 = vmul.f32 %v10209, %v1808
  %v10244 = vmul.f32 %v10212, %v1808
  %v10245 = vadd.f32 %v10213, 1e-05
  %v10246 = vadd.f32 %v10214, 1e-05
  %v10247 = vadd.f32 %v10215, 1e-05
  %v10248 = vadd.f32 %v10216, 1e-05
  %v10249 = vadd.f32 %v10217, 1e-05
  %v10250 = vadd.f32 %v10218, 1e-05
  %v10251 = vadd.f32 %v10219, 1e-05
  %v10252 = vadd.f32 %v10220, 1e-05
  %v10253 = vadd.f32 %v10221, 1e-05
  %v10254 = vadd.f32 %v10222, 1e-05
  %v10255 = vadd.f32 %v10223, 1e-05
  %v10256 = vadd.f32 %v10224, 1e-05
  %v10257 = vadd.f32 %v10225, 1e-05
  %v10258 = vadd.f32 %v10226, 1e-05
  %v10259 = vadd.f32 %v10227, 1e-05
  %v10260 = vadd.f32 %v10228, 1e-05
  %v10261 = vadd.f32 %v10229, 1e-05
  %v10262 = vadd.f32 %v10230, 1e-05
  %v10263 = vadd.f32 %v10231, 1e-05
  %v10264 = vadd.f32 %v10232, 1e-05
  %v10265 = vadd.f32 %v10233, 1e-05
  %v10266 = vadd.f32 %v10234, 1e-05
  %v10267 = vadd.f32 %v10235, 1e-05
  %v10268 = vadd.f32 %v10236, 1e-05
  %v10269 = vadd.f32 %v10237, 1e-05
  %v10270 = vadd.f32 %v10238, 1e-05
  %v10271 = vadd.f32 %v10239, 1e-05
  %v10272 = vadd.f32 %v10240, 1e-05
  %v10273 = vadd.f32 %v10241, 1e-05
  %v10274 = vadd.f32 %v10242, 1e-05
  %v10275 = vadd.f32 %v10243, 1e-05
  %v10276 = vadd.f32 %v10244, 1e-05
  %v10277 = vrsqrt.pop %v10245
  %v10278 = vrsqrt.pop %v10246
  %v10279 = vrsqrt.pop %v10247
  %v10280 = vrsqrt.pop %v10248
  %v10281 = vrsqrt.pop %v10249
  %v10282 = vrsqrt.pop %v10250
  %v10283 = vrsqrt.pop %v10251
  %v10284 = vrsqrt.pop %v10252
  %v10285 = vrsqrt.pop %v10253
  %v10286 = vrsqrt.pop %v10254
  %v10287 = vrsqrt.pop %v10255
  %v10288 = vrsqrt.pop %v10256
  %v10289 = vrsqrt.pop %v10257
  %v10290 = vrsqrt.pop %v10258
  %v10291 = vrsqrt.pop %v10259
  %v10292 = vrsqrt.pop %v10260
  %v10293 = vrsqrt.pop %v10261
  %v10294 = vrsqrt.pop %v10262
  %v10295 = vrsqrt.pop %v10263
  %v10296 = vrsqrt.pop %v10264
  %v10297 = vrsqrt.pop %v10265
  %v10298 = vrsqrt.pop %v10266
  %v10299 = vrsqrt.pop %v10267
  %v10300 = vrsqrt.pop %v10268
  %v10301 = vrsqrt.pop %v10269
  %v10302 = vrsqrt.pop %v10270
  %v10303 = vrsqrt.pop %v10271
  %v10304 = vrsqrt.pop %v10272
  %v10305 = vrsqrt.pop %v10273
  %v10306 = vrsqrt.pop %v10274
  %v10307 = vrsqrt.pop %v10275
  %v10308 = vrsqrt.pop %v10276
  %v10309 = vmul.f32 %v10053, %v10277
  %v10310 = vmul.f32 %v10054, %v10278
  %v10311 = vmul.f32 %v10055, %v10279
  %v10312 = vmul.f32 %v10056, %v10280
  %v10313 = vmul.f32 %v10057, %v10281
  %v10314 = vmul.f32 %v10058, %v10282
  %v10315 = vmul.f32 %v10059, %v10283
  %v10316 = vmul.f32 %v10060, %v10284
  %v10317 = vmul.f32 %v10061, %v10285
  %v10318 = vmul.f32 %v10062, %v10286
  %v10319 = vmul.f32 %v10063, %v10287
  %v10320 = vmul.f32 %v10064, %v10288
  %v10321 = vmul.f32 %v10065, %v10289
  %v10322 = vmul.f32 %v10066, %v10290
  %v10323 = vmul.f32 %v10067, %v10291
  %v10324 = vmul.f32 %v10068, %v10292
  %v10325 = vmul.f32 %v10069, %v10293
  %v10326 = vmul.f32 %v10070, %v10294
  %v10327 = vmul.f32 %v10071, %v10295
  %v10328 = vmul.f32 %v10072, %v10296
  %v10329 = vmul.f32 %v10073, %v10297
  %v10330 = vmul.f32 %v10074, %v10298
  %v10331 = vmul.f32 %v10075, %v10299
  %v10332 = vmul.f32 %v10076, %v10300
  %v10333 = vmul.f32 %v10077, %v10301
  %v10334 = vmul.f32 %v10078, %v10302
  %v10335 = vmul.f32 %v10079, %v10303
  %v10336 = vmul.f32 %v10080, %v10304
  %v10337 = vmul.f32 %v10081, %v10305
  %v10338 = vmul.f32 %v10082, %v10306
  %v10339 = vmul.f32 %v10083, %v10307
  %v10340 = vmul.f32 %v10084, %v10308
  %v10341 = vmul.f32 %v10309, %v6272
  %v10342 = vmul.f32 %v10310, %v6272
  %v10343 = vmul.f32 %v10311, %v6272
  %v10344 = vmul.f32 %v10312, %v6272
  %v10345 = vmul.f32 %v10313, %v6272
  %v10346 = vmul.f32 %v10314, %v6272
  %v10347 = vmul.f32 %v10315, %v6272
  %v10348 = vmul.f32 %v10316, %v6272
  %v10349 = vmul.f32 %v10317, %v6272
  %v10350 = vmul.f32 %v10318, %v6272
  %v10351 = vmul.f32 %v10319, %v6272
  %v10352 = vmul.f32 %v10320, %v6272
  %v10353 = vmul.f32 %v10321, %v6272
  %v10354 = vmul.f32 %v10322, %v6272
  %v10355 = vmul.f32 %v10323, %v6272
  %v10356 = vmul.f32 %v10324, %v6272
  %v10357 = vmul.f32 %v10325, %v6272
  %v10358 = vmul.f32 %v10326, %v6272
  %v10359 = vmul.f32 %v10327, %v6272
  %v10360 = vmul.f32 %v10328, %v6272
  %v10361 = vmul.f32 %v10329, %v6272
  %v10362 = vmul.f32 %v10330, %v6272
  %v10363 = vmul.f32 %v10331, %v6272
  %v10364 = vmul.f32 %v10332, %v6272
  %v10365 = vmul.f32 %v10333, %v6272
  %v10366 = vmul.f32 %v10334, %v6272
  %v10367 = vmul.f32 %v10335, %v6272
  %v10368 = vmul.f32 %v10336, %v6272
  %v10369 = vmul.f32 %v10337, %v6272
  %v10370 = vmul.f32 %v10338, %v6272
  %v10371 = vmul.f32 %v10339, %v6272
  %v10372 = vmul.f32 %v10340, %v6272
  %v10373 = vadd.f32 %v10341, %v6308
  %v10374 = vadd.f32 %v10342, %v6308
  %v10375 = vadd.f32 %v10343, %v6308
  %v10376 = vadd.f32 %v10344, %v6308
  %v10377 = vadd.f32 %v10345, %v6308
  %v10378 = vadd.f32 %v10346, %v6308
  %v10379 = vadd.f32 %v10347, %v6308
  %v10380 = vadd.f32 %v10348, %v6308
  %v10381 = vadd.f32 %v10349, %v6308
  %v10382 = vadd.f32 %v10350, %v6308
  %v10383 = vadd.f32 %v10351, %v6308
  %v10384 = vadd.f32 %v10352, %v6308
  %v10385 = vadd.f32 %v10353, %v6308
  %v10386 = vadd.f32 %v10354, %v6308
  %v10387 = vadd.f32 %v10355, %v6308
  %v10388 = vadd.f32 %v10356, %v6308
  %v10389 = vadd.f32 %v10357, %v6308
  %v10390 = vadd.f32 %v10358, %v6308
  %v10391 = vadd.f32 %v10359, %v6308
  %v10392 = vadd.f32 %v10360, %v6308
  %v10393 = vadd.f32 %v10361, %v6308
  %v10394 = vadd.f32 %v10362, %v6308
  %v10395 = vadd.f32 %v10363, %v6308
  %v10396 = vadd.f32 %v10364, %v6308
  %v10397 = vadd.f32 %v10365, %v6308
  %v10398 = vadd.f32 %v10366, %v6308
  %v10399 = vadd.f32 %v10367, %v6308
  %v10400 = vadd.f32 %v10368, %v6308
  %v10401 = vadd.f32 %v10369, %v6308
  %v10402 = vadd.f32 %v10370, %v6308
  %v10403 = vadd.f32 %v10371, %v6308
  %v10404 = vadd.f32 %v10372, %v6308
  %v10405 = vmax.f32 %v10373, 0.0
  %v10406 = vmax.f32 %v10374, 0.0
  %v10407 = vmax.f32 %v10375, 0.0
  %v10408 = vmax.f32 %v10376, 0.0
  %v10409 = vmax.f32 %v10377, 0.0
  %v10410 = vmax.f32 %v10378, 0.0
  %v10411 = vmax.f32 %v10379, 0.0
  %v10412 = vmax.f32 %v10380, 0.0
  %v10413 = vmax.f32 %v10381, 0.0
  %v10414 = vmax.f32 %v10382, 0.0
  %v10415 = vmax.f32 %v10383, 0.0
  %v10416 = vmax.f32 %v10384, 0.0
  %v10417 = vmax.f32 %v10385, 0.0
  %v10418 = vmax.f32 %v10386, 0.0
  %v10419 = vmax.f32 %v10387, 0.0
  %v10420 = vmax.f32 %v10388, 0.0
  %v10421 = vmax.f32 %v10389, 0.0
  %v10422 = vmax.f32 %v10390, 0.0
  %v10423 = vmax.f32 %v10391, 0.0
  %v10424 = vmax.f32 %v10392, 0.0
  %v10425 = vmax.f32 %v10393, 0.0
  %v10426 = vmax.f32 %v10394, 0.0
  %v10427 = vmax.f32 %v10395, 0.0
  %v10428 = vmax.f32 %v10396, 0.0
  %v10429 = vmax.f32 %v10397, 0.0
  %v10430 = vmax.f32 %v10398, 0.0
  %v10431 = vmax.f32 %v10399, 0.0
  %v10432 = vmax.f32 %v10400, 0.0
  %v10433 = vmax.f32 %v10401, 0.0
  %v10434 = vmax.f32 %v10402, 0.0
  %v10435 = vmax.f32 %v10403, 0.0
  %v10436 = vmax.f32 %v10404, 0.0
  %v10437 = vpack.c.bf16 %v10406, %v10405
  %v10438 = vpack.c.bf16 %v10408, %v10407
  %v10439 = vpack.c.bf16 %v10410, %v10409
  %v10440 = vpack.c.bf16 %v10412, %v10411
  %v10441 = vpack.c.bf16 %v10414, %v10413
  %v10442 = vpack.c.bf16 %v10416, %v10415
  %v10443 = vpack.c.bf16 %v10418, %v10417
  %v10444 = vpack.c.bf16 %v10420, %v10419
  %v10445 = vpack.c.bf16 %v10422, %v10421
  %v10446 = vpack.c.bf16 %v10424, %v10423
  %v10447 = vpack.c.bf16 %v10426, %v10425
  %v10448 = vpack.c.bf16 %v10428, %v10427
  %v10449 = vpack.c.bf16 %v10430, %v10429
  %v10450 = vpack.c.bf16 %v10432, %v10431
  %v10451 = vpack.c.bf16 %v10434, %v10433
  %v10452 = vpack.c.bf16 %v10436, %v10435
  %v10454 = vsel %vm1711, %v10437, 0
  %v10457 = vsel %vm1711, %v10438, 0
  %v10460 = vsel %vm1711, %v10439, 0
  %v10463 = vsel %vm1711, %v10440, 0
  %v10466 = vsel %vm1711, %v10441, 0
  %v10469 = vsel %vm1711, %v10442, 0
  %v10472 = vsel %vm1711, %v10443, 0
  %v10475 = vsel %vm1711, %v10444, 0
  %v10478 = vsel %vm1711, %v10445, 0
  %v10481 = vsel %vm1711, %v10446, 0
  %v10484 = vsel %vm1711, %v10447, 0
  %v10487 = vsel %vm1711, %v10448, 0
  %v10490 = vsel %vm1711, %v10449, 0
  %v10493 = vsel %vm1711, %v10450, 0
  %v10496 = vsel %vm1711, %v10451, 0
  %v10499 = vsel %vm1711, %v10452, 0
  %10501 = vmatprep.subr.bf16.mxu0 0
  %10502 = vmatpush1.bf16.msra.mxu0 %v6406
  %10503 = vmatprep.subr.bf16.mxu0 0
  %10504 = vmatpush1.bf16.msra.mxu0 %v6407
  %10505 = vmatprep.subr.bf16.mxu0 0
  %10506 = vmatpush1.bf16.msra.mxu0 0
  %10507 = vmatprep.subr.bf16.mxu0 0
  %10508 = vmatpush1.bf16.msra.mxu0 0
  %10509 = vmatprep.subr.bf16.mxu0 0
  %10510 = vmatpush1.bf16.msra.mxu0 0
  %10511 = vmatprep.subr.bf16.mxu0 0
  %10512 = vmatpush1.bf16.msra.mxu0 0
  %10513 = vmatprep.subr.bf16.mxu0 0
  %10514 = vmatpush1.bf16.msra.mxu0 0
  %10515 = vmatprep.subr.bf16.mxu0 0
  %10516 = vmatpush1.bf16.msra.mxu0 0
  %10517 = vmatprep.subr.bf16.mxu0 0
  %10518 = vmatpush1.bf16.msra.mxu0 0
  %10519 = vmatprep.subr.bf16.mxu0 0
  %10520 = vmatpush1.bf16.msra.mxu0 0
  %10521 = vmatprep.subr.bf16.mxu0 0
  %10522 = vmatpush1.bf16.msra.mxu0 0
  %10523 = vmatprep.subr.bf16.mxu0 0
  %10524 = vmatpush1.bf16.msra.mxu0 0
  %10525 = vmatprep.subr.bf16.mxu0 0
  %10526 = vmatpush1.bf16.msra.mxu0 0
  %10527 = vmatprep.subr.bf16.mxu0 0
  %10528 = vmatpush1.bf16.msra.mxu0 0
  %10529 = vmatprep.subr.bf16.mxu0 0
  %10530 = vmatpush1.bf16.msra.mxu0 0
  %10531 = vmatprep.subr.bf16.mxu0 0
  %10532 = vmatpush1.bf16.msra.mxu0 0
  %10533 = vmatprep.mubr.bf16.mxu0 0
  %10534 = vmatmul.mubr.bf16.gmra.mrb[0].mxu0 %v10454
  %v10535 = vpop.f32.mrb[0].mxu0
  %v10536 = vadd.f32 %v6397, %v10535
  %v10537 = vpop.f32.mrb[0].mxu0
  %v10538 = vpop.f32.mrb[0].mxu0
  %v10539 = vadd.f32 %v6397, %v10538
  %v10540 = vpop.f32.mrb[0].mxu0
  %10541 = vmatprep.mubr.bf16.mxu0 0
  %10542 = vmatmul.mubr.bf16.gmra.mrb[0].mxu0 %v10457
  %v10543 = vpop.f32.mrb[0].mxu0
  %v10544 = vadd.f32 %v6397, %v10543
  %v10545 = vpop.f32.mrb[0].mxu0
  %v10546 = vpop.f32.mrb[0].mxu0
  %v10547 = vadd.f32 %v6397, %v10546
  %v10548 = vpop.f32.mrb[0].mxu0
  %10549 = vmatprep.mubr.bf16.mxu0 0
  %10550 = vmatmul.mubr.bf16.gmra.mrb[0].mxu0 %v10460
  %v10551 = vpop.f32.mrb[0].mxu0
  %v10552 = vadd.f32 %v6397, %v10551
  %v10553 = vpop.f32.mrb[0].mxu0
  %v10554 = vpop.f32.mrb[0].mxu0
  %v10555 = vadd.f32 %v6397, %v10554
  %v10556 = vpop.f32.mrb[0].mxu0
  %10557 = vmatprep.mubr.bf16.mxu0 0
  %10558 = vmatmul.mubr.bf16.gmra.mrb[0].mxu0 %v10463
  %v10559 = vpop.f32.mrb[0].mxu0
  %v10560 = vadd.f32 %v6397, %v10559
  %v10561 = vpop.f32.mrb[0].mxu0
  %v10562 = vpop.f32.mrb[0].mxu0
  %v10563 = vadd.f32 %v6397, %v10562
  %v10564 = vpop.f32.mrb[0].mxu0
  %10565 = vmatprep.mubr.bf16.mxu0 0
  %10566 = vmatmul.mubr.bf16.gmra.mrb[0].mxu0 %v10466
  %v10567 = vpop.f32.mrb[0].mxu0
  %v10568 = vadd.f32 %v6397, %v10567
  %v10569 = vpop.f32.mrb[0].mxu0
  %v10570 = vpop.f32.mrb[0].mxu0
  %v10571 = vadd.f32 %v6397, %v10570
  %v10572 = vpop.f32.mrb[0].mxu0
  %10573 = vmatprep.mubr.bf16.mxu0 0
  %10574 = vmatmul.mubr.bf16.gmra.mrb[0].mxu0 %v10469
  %v10575 = vpop.f32.mrb[0].mxu0
  %v10576 = vadd.f32 %v6397, %v10575
  %v10577 = vpop.f32.mrb[0].mxu0
  %v10578 = vpop.f32.mrb[0].mxu0
  %v10579 = vadd.f32 %v6397, %v10578
  %v10580 = vpop.f32.mrb[0].mxu0
  %10581 = vmatprep.mubr.bf16.mxu0 0
  %10582 = vmatmul.mubr.bf16.gmra.mrb[0].mxu0 %v10472
  %v10583 = vpop.f32.mrb[0].mxu0
  %v10584 = vadd.f32 %v6397, %v10583
  %v10585 = vpop.f32.mrb[0].mxu0
  %v10586 = vpop.f32.mrb[0].mxu0
  %v10587 = vadd.f32 %v6397, %v10586
  %v10588 = vpop.f32.mrb[0].mxu0
  %10589 = vmatprep.mubr.bf16.mxu0 0
  %10590 = vmatmul.mubr.bf16.gmra.mrb[0].mxu0 %v10475
  %v10591 = vpop.f32.mrb[0].mxu0
  %v10592 = vadd.f32 %v6397, %v10591
  %v10593 = vpop.f32.mrb[0].mxu0
  %v10594 = vpop.f32.mrb[0].mxu0
  %v10595 = vadd.f32 %v6397, %v10594
  %v10596 = vpop.f32.mrb[0].mxu0
  %10597 = vmatprep.mubr.bf16.mxu0 0
  %10598 = vmatmul.mubr.bf16.gmra.mrb[0].mxu0 %v10478
  %v10599 = vpop.f32.mrb[0].mxu0
  %v10600 = vadd.f32 %v6397, %v10599
  %v10601 = vpop.f32.mrb[0].mxu0
  %v10602 = vpop.f32.mrb[0].mxu0
  %v10603 = vadd.f32 %v6397, %v10602
  %v10604 = vpop.f32.mrb[0].mxu0
  %10605 = vmatprep.mubr.bf16.mxu0 0
  %10606 = vmatmul.mubr.bf16.gmra.mrb[0].mxu0 %v10481
  %v10607 = vpop.f32.mrb[0].mxu0
  %v10608 = vadd.f32 %v6397, %v10607
  %v10609 = vpop.f32.mrb[0].mxu0
  %v10610 = vpop.f32.mrb[0].mxu0
  %v10611 = vadd.f32 %v6397, %v10610
  %v10612 = vpop.f32.mrb[0].mxu0
  %10613 = vmatprep.mubr.bf16.mxu0 0
  %10614 = vmatmul.mubr.bf16.gmra.mrb[0].mxu0 %v10484
  %v10615 = vpop.f32.mrb[0].mxu0
  %v10616 = vadd.f32 %v6397, %v10615
  %v10617 = vpop.f32.mrb[0].mxu0
  %v10618 = vpop.f32.mrb[0].mxu0
  %v10619 = vadd.f32 %v6397, %v10618
  %v10620 = vpop.f32.mrb[0].mxu0
  %10621 = vmatprep.mubr.bf16.mxu0 0
  %10622 = vmatmul.mubr.bf16.gmra.mrb[0].mxu0 %v10487
  %v10623 = vpop.f32.mrb[0].mxu0
  %v10624 = vadd.f32 %v6397, %v10623
  %v10625 = vpop.f32.mrb[0].mxu0
  %v10626 = vpop.f32.mrb[0].mxu0
  %v10627 = vadd.f32 %v6397, %v10626
  %v10628 = vpop.f32.mrb[0].mxu0
  %10629 = vmatprep.mubr.bf16.mxu0 0
  %10630 = vmatmul.mubr.bf16.gmra.mrb[0].mxu0 %v10490
  %v10631 = vpop.f32.mrb[0].mxu0
  %v10632 = vadd.f32 %v6397, %v10631
  %v10633 = vpop.f32.mrb[0].mxu0
  %v10634 = vpop.f32.mrb[0].mxu0
  %v10635 = vadd.f32 %v6397, %v10634
  %v10636 = vpop.f32.mrb[0].mxu0
  %10637 = vmatprep.mubr.bf16.mxu0 0
  %10638 = vmatmul.mubr.bf16.gmra.mrb[0].mxu0 %v10493
  %v10639 = vpop.f32.mrb[0].mxu0
  %v10640 = vadd.f32 %v6397, %v10639
  %v10641 = vpop.f32.mrb[0].mxu0
  %v10642 = vpop.f32.mrb[0].mxu0
  %v10643 = vadd.f32 %v6397, %v10642
  %v10644 = vpop.f32.mrb[0].mxu0
  %10645 = vmatprep.mubr.bf16.mxu0 0
  %10646 = vmatmul.mubr.bf16.gmra.mrb[0].mxu0 %v10496
  %v10647 = vpop.f32.mrb[0].mxu0
  %v10648 = vadd.f32 %v6397, %v10647
  %v10649 = vpop.f32.mrb[0].mxu0
  %v10650 = vpop.f32.mrb[0].mxu0
  %v10651 = vadd.f32 %v6397, %v10650
  %v10652 = vpop.f32.mrb[0].mxu0
  %10653 = vmatprep.mubr.bf16.mxu0 0
  %10654 = vmatmul.mubr.bf16.gmra.mrb[0].mxu0 %v10499
  %v10655 = vpop.f32.mrb[0].mxu0
  %v10656 = vadd.f32 %v6397, %v10655
  %v10657 = vpop.f32.mrb[0].mxu0
  %v10658 = vpop.f32.mrb[0].mxu0
  %v10659 = vadd.f32 %v6397, %v10658
  %v10660 = vpop.f32.mrb[0].mxu0
  %10661 = vdwg.mxu0
  %v10662 = vadd.f32 %v10536, %v6619
  %v10663 = vadd.f32 %v10539, %v6620
  %v10664 = vadd.f32 %v10544, %v6621
  %v10665 = vadd.f32 %v10547, %v6622
  %v10666 = vadd.f32 %v10552, %v6623
  %v10667 = vadd.f32 %v10555, %v6624
  %v10668 = vadd.f32 %v10560, %v6625
  %v10669 = vadd.f32 %v10563, %v6626
  %v10670 = vadd.f32 %v10568, %v6627
  %v10671 = vadd.f32 %v10571, %v6628
  %v10672 = vadd.f32 %v10576, %v6629
  %v10673 = vadd.f32 %v10579, %v6630
  %v10674 = vadd.f32 %v10584, %v6631
  %v10675 = vadd.f32 %v10587, %v6632
  %v10676 = vadd.f32 %v10592, %v6633
  %v10677 = vadd.f32 %v10595, %v6634
  %v10678 = vadd.f32 %v10600, %v6635
  %v10679 = vadd.f32 %v10603, %v6636
  %v10680 = vadd.f32 %v10608, %v6637
  %v10681 = vadd.f32 %v10611, %v6638
  %v10682 = vadd.f32 %v10616, %v6639
  %v10683 = vadd.f32 %v10619, %v6640
  %v10684 = vadd.f32 %v10624, %v6641
  %v10685 = vadd.f32 %v10627, %v6642
  %v10686 = vadd.f32 %v10632, %v6643
  %v10687 = vadd.f32 %v10635, %v6644
  %v10688 = vadd.f32 %v10640, %v6645
  %v10689 = vadd.f32 %v10643, %v6646
  %v10690 = vadd.f32 %v10648, %v6647
  %v10691 = vadd.f32 %v10651, %v6648
  %v10692 = vadd.f32 %v10656, %v6649
  %v10693 = vadd.f32 %v10659, %v6650
  %v10694 = vpack.c.bf16 %v10663, %v10662
  %v10695 = vpack.c.bf16 %v10665, %v10664
  %v10696 = vpack.c.bf16 %v10667, %v10666
  %v10697 = vpack.c.bf16 %v10669, %v10668
  %v10698 = vpack.c.bf16 %v10671, %v10670
  %v10699 = vpack.c.bf16 %v10673, %v10672
  %v10700 = vpack.c.bf16 %v10675, %v10674
  %v10701 = vpack.c.bf16 %v10677, %v10676
  %v10702 = vpack.c.bf16 %v10679, %v10678
  %v10703 = vpack.c.bf16 %v10681, %v10680
  %v10704 = vpack.c.bf16 %v10683, %v10682
  %v10705 = vpack.c.bf16 %v10685, %v10684
  %v10706 = vpack.c.bf16 %v10687, %v10686
  %v10707 = vpack.c.bf16 %v10689, %v10688
  %v10708 = vpack.c.bf16 %v10691, %v10690
  %v10709 = vpack.c.bf16 %v10693, %v10692
  %v10710 = vlaneseq
  %v10711 = vshrl.u32 %v10710, 7
  %v10712 = vld [vmem:[%s3] sm:$0x3]
  %v10713 = vlaneseq
  %v10714 = vshrl.u32 %v10713, 7
  %v10715 = vsub.s32 0, %v10714
  %v10716 = vrot.slane %v10712, %v10715
  %v10717 = vlaneseq
  %v10718 = vshrl.u32 %v10717, 7
  %v10719 = vsub.s32 1, %v10718
  %v10720 = vrot.slane %v10712, %v10719
  %vm10721 = vcmp.eq.s32.totalorder %v10711, %v10716
  %vm10722 = vcmp.eq.s32.totalorder %v10711, %v10720
  %v10723 = vsel %vm10721, 1, 0
  %v10724 = vsel %vm10722, 1, 0
  %v10725 = vcvt.s32.f32 %v10723
  %v10726 = vcvt.s32.f32 %v10724
  %v10727 = vpack.c.bf16 %v10725, %v10725
  %v10728 = vpack.c.bf16 %v10726, %v10726
  %10729 = vmatprep.subr.bf16.mxu0 0
  %10730 = vmatpush1.bf16.msra.mxu0 %v10694
  %10731 = vmatprep.subr.bf16.mxu0 0
  %10732 = vmatpush1.bf16.msra.mxu0 %v10695
  %10733 = vmatprep.subr.bf16.mxu0 0
  %10734 = vmatpush1.bf16.msra.mxu0 %v10696
  %10735 = vmatprep.subr.bf16.mxu0 0
  %10736 = vmatpush1.bf16.msra.mxu0 %v10697
  %10737 = vmatprep.subr.bf16.mxu0 0
  %10738 = vmatpush1.bf16.msra.mxu0 %v10698
  %10739 = vmatprep.subr.bf16.mxu0 0
  %10740 = vmatpush1.bf16.msra.mxu0 %v10699
  %10741 = vmatprep.subr.bf16.mxu0 0
  %10742 = vmatpush1.bf16.msra.mxu0 %v10700
  %10743 = vmatprep.subr.bf16.mxu0 0
  %10744 = vmatpush1.bf16.msra.mxu0 %v10701
  %10745 = vmatprep.subr.bf16.mxu0 0
  %10746 = vmatpush1.bf16.msra.mxu0 %v10702
  %10747 = vmatprep.subr.bf16.mxu0 0
  %10748 = vmatpush1.bf16.msra.mxu0 %v10703
  %10749 = vmatprep.subr.bf16.mxu0 0
  %10750 = vmatpush1.bf16.msra.mxu0 %v10704
  %10751 = vmatprep.subr.bf16.mxu0 0
  %10752 = vmatpush1.bf16.msra.mxu0 %v10705
  %10753 = vmatprep.subr.bf16.mxu0 0
  %10754 = vmatpush1.bf16.msra.mxu0 %v10706
  %10755 = vmatprep.subr.bf16.mxu0 0
  %10756 = vmatpush1.bf16.msra.mxu0 %v10707
  %10757 = vmatprep.subr.bf16.mxu0 0
  %10758 = vmatpush1.bf16.msra.mxu0 %v10708
  %10759 = vmatprep.subr.bf16.mxu0 0
  %10760 = vmatpush1.bf16.msra.mxu0 %v10709
  %10761 = vmatprep.mubr.bf16.mxu0 %v10728
  %10762 = vmatmul.mubr.bf16.gmra.mrb[0].mxu0 %v10727
  %v10763 = vpop.f32.mrb[0].mxu0
  %v10764 = vadd.f32 0.0, %v10763
  %v10765 = vpop.f32.mrb[0].mxu0
  %v10766 = vpop.f32.mrb[0].mxu0
  %v10767 = vpop.f32.mrb[0].mxu0
  %10768 = vdwg.mxu0
  %v10769 = vunpack.c.l.bf16 %v10727
  %v10770 = vunpack.c.l.bf16 %v10728
  %vm10771 = vcmask 1043456
  %v10772 = vsel %vm10771, %v10769, 0.0
  %v10773 = vsel %vm10771, %v10770, 0.0
  %v10774 = vadd.f32 %v10772, %v10773
  %10775 = vadd.xlane.f32.xlu0 %v10774
  %v10776 = vpop.xlane.xlu0 %10775
  %v10777 = vmax.f32 %v10776, 1.0
  %v10778 = vrcp.pop %v10777
  %v10779 = vmul.f32 %v10764, %v10778
  %v10780 = vpack.c.bf16 %v10764, %v10764
  %s10781 = scalar_lea.vmem %s4, 96
  %v10782 = vld [vmem:[%s10781] sm:$0xf]
  %v10783 = vld [vmem:[%s10781 + $0x4] sm:$0xf]
  %v10784 = vld [vmem:[%s10781 + $0x8] sm:$0xf]
  %v10785 = vld [vmem:[%s10781 + $0xc] sm:$0xf]
  %v10786 = vpack.c.bf16 %v10779, %v10779
  %s10787 = scalar_lea.vmem %s4, 112
  %v10788 = vld [vmem:[%s10787] sm:$0xf]
  %v10789 = vld [vmem:[%s10787 + $0x4] sm:$0xf]
  %v10790 = vld [vmem:[%s10787 + $0x8] sm:$0xf]
  %v10791 = vld [vmem:[%s10787 + $0xc] sm:$0xf]
  %v10796 = vunpack.c.l.b16 %v10788
  %v10797 = vunpack.c.l.b16 %v10789
  %v10798 = vunpack.c.l.b16 %v10790
  %v10799 = vunpack.c.l.b16 %v10791
  %v10800 = vpack.c.b16 %v10797, %v10796
  %v10801 = vpack.c.b16 %v10799, %v10798
  %v10805 = vsel %vm1711, %v10786, 0
  %10807 = vmatprep.subr.bf16.mxu0 0
  %10808 = vmatpush1.bf16.msra.mxu0 %v10800
  %10809 = vmatprep.subr.bf16.mxu0 0
  %10810 = vmatpush1.bf16.msra.mxu0 %v10801
  %10811 = vmatprep.subr.bf16.mxu0 0
  %10812 = vmatpush1.bf16.msra.mxu0 0
  %10813 = vmatprep.subr.bf16.mxu0 0
  %10814 = vmatpush1.bf16.msra.mxu0 0
  %10815 = vmatprep.subr.bf16.mxu0 0
  %10816 = vmatpush1.bf16.msra.mxu0 0
  %10817 = vmatprep.subr.bf16.mxu0 0
  %10818 = vmatpush1.bf16.msra.mxu0 0
  %10819 = vmatprep.subr.bf16.mxu0 0
  %10820 = vmatpush1.bf16.msra.mxu0 0
  %10821 = vmatprep.subr.bf16.mxu0 0
  %10822 = vmatpush1.bf16.msra.mxu0 0
  %10823 = vmatprep.subr.bf16.mxu0 0
  %10824 = vmatpush1.bf16.msra.mxu0 0
  %10825 = vmatprep.subr.bf16.mxu0 0
  %10826 = vmatpush1.bf16.msra.mxu0 0
  %10827 = vmatprep.subr.bf16.mxu0 0
  %10828 = vmatpush1.bf16.msra.mxu0 0
  %10829 = vmatprep.subr.bf16.mxu0 0
  %10830 = vmatpush1.bf16.msra.mxu0 0
  %10831 = vmatprep.subr.bf16.mxu0 0
  %10832 = vmatpush1.bf16.msra.mxu0 0
  %10833 = vmatprep.subr.bf16.mxu0 0
  %10834 = vmatpush1.bf16.msra.mxu0 0
  %10835 = vmatprep.subr.bf16.mxu0 0
  %10836 = vmatpush1.bf16.msra.mxu0 0
  %10837 = vmatprep.subr.bf16.mxu0 0
  %10838 = vmatpush1.bf16.msra.mxu0 0
  %10839 = vmatprep.mubr.bf16.mxu0 0
  %10840 = vmatmul.mubr.bf16.gmra.mrb[0].mxu0 %v10805
  %v10841 = vpop.f32.mrb[0].mxu0
  %v10842 = vadd.f32 0.0, %v10841
  %v10843 = vpop.f32.mrb[0].mxu0
  %v10844 = vpop.f32.mrb[0].mxu0
  %v10845 = vpop.f32.mrb[0].mxu0
  %10846 = vdwg.mxu0
  %v10851 = vunpack.c.l.b16 %v10782
  %v10852 = vunpack.c.l.b16 %v10783
  %v10853 = vunpack.c.l.b16 %v10784
  %v10854 = vunpack.c.l.b16 %v10785
  %v10855 = vpack.c.b16 %v10852, %v10851
  %v10856 = vpack.c.b16 %v10854, %v10853
  %v10860 = vsel %vm1711, %v10780, 0
  %10862 = vmatprep.subr.bf16.mxu0 0
  %10863 = vmatpush1.bf16.msra.mxu0 %v10855
  %10864 = vmatprep.subr.bf16.mxu0 0
  %10865 = vmatpush1.bf16.msra.mxu0 %v10856
  %10866 = vmatprep.subr.bf16.mxu0 0
  %10867 = vmatpush1.bf16.msra.mxu0 0
  %10868 = vmatprep.subr.bf16.mxu0 0
  %10869 = vmatpush1.bf16.msra.mxu0 0
  %10870 = vmatprep.subr.bf16.mxu0 0
  %10871 = vmatpush1.bf16.msra.mxu0 0
  %10872 = vmatprep.subr.bf16.mxu0 0
  %10873 = vmatpush1.bf16.msra.mxu0 0
  %10874 = vmatprep.subr.bf16.mxu0 0
  %10875 = vmatpush1.bf16.msra.mxu0 0
  %10876 = vmatprep.subr.bf16.mxu0 0
  %10877 = vmatpush1.bf16.msra.mxu0 0
  %10878 = vmatprep.subr.bf16.mxu0 0
  %10879 = vmatpush1.bf16.msra.mxu0 0
  %10880 = vmatprep.subr.bf16.mxu0 0
  %10881 = vmatpush1.bf16.msra.mxu0 0
  %10882 = vmatprep.subr.bf16.mxu0 0
  %10883 = vmatpush1.bf16.msra.mxu0 0
  %10884 = vmatprep.subr.bf16.mxu0 0
  %10885 = vmatpush1.bf16.msra.mxu0 0
  %10886 = vmatprep.subr.bf16.mxu0 0
  %10887 = vmatpush1.bf16.msra.mxu0 0
  %10888 = vmatprep.subr.bf16.mxu0 0
  %10889 = vmatpush1.bf16.msra.mxu0 0
  %10890 = vmatprep.subr.bf16.mxu0 0
  %10891 = vmatpush1.bf16.msra.mxu0 0
  %10892 = vmatprep.subr.bf16.mxu0 0
  %10893 = vmatpush1.bf16.msra.mxu0 0
  %10894 = vmatprep.mubr.bf16.mxu0 0
  %10895 = vmatmul.mubr.bf16.gmra.mrb[0].mxu0 %v10860
  %v10896 = vpop.f32.mrb[0].mxu0
  %v10897 = vadd.f32 %v10842, %v10896
  %v10898 = vpop.f32.mrb[0].mxu0
  %v10899 = vpop.f32.mrb[0].mxu0
  %v10900 = vpop.f32.mrb[0].mxu0
  %10901 = vdwg.mxu0
  %v10902 = vlaneseq
  %v10903 = vshrl.u32 %v10902, 7
  %v10904 = vsub.s32 0, %v10903
  %v10905 = vrot.slane %v32, %v10904
  %v10906 = vadd.f32 %v10897, %v10905
  %vm10907 = vcmask 257024
  %v10908 = vsel %vm10907, %v10906, 0.0
  %10909 = vadd.xlane.f32.xlu0 %v10908
  %v10910 = vpop.xlane.xlu0 %10909
  %v10911 = vmul.f32 %v10910, %v1808
  %v10912 = vsub.f32 %v10906, %v10911
  %v10913 = vmul.f32 %v10912, %v10912
  %v10914 = vsel %vm10907, %v10913, 0.0
  %10915 = vadd.xlane.f32.xlu0 %v10914
  %v10916 = vpop.xlane.xlu0 %10915
  %v10917 = vmul.f32 %v10916, %v1808
  %v10918 = vadd.f32 %v10917, 1e-05
  %v10919 = vrsqrt.pop %v10918
  %v10920 = vmul.f32 %v10912, %v10919
  %v10921 = vlaneseq
  %v10922 = vshrl.u32 %v10921, 7
  %v10923 = vsub.s32 1, %v10922
  %v10924 = vrot.slane %v32, %v10923
  %v10925 = vmul.f32 %v10920, %v10924
  %v10926 = vlaneseq
  %v10927 = vshrl.u32 %v10926, 7
  %v10928 = vsub.s32 2, %v10927
  %v10929 = vrot.slane %v32, %v10928
  %v10930 = vadd.f32 %v10925, %v10929
  %v10931 = vmax.f32 %v10930, 0.0
  %v10932 = vpack.c.bf16 %v10931, %v10931
  %s10933 = scalar_lea.vmem %s4, 128
  %v10934 = vld [vmem:[%s10933] sm:$0xf]
  %v10935 = vld [vmem:[%s10933 + $0x4] sm:$0xf]
  %v10936 = vld [vmem:[%s10933 + $0x8] sm:$0xf]
  %v10937 = vld [vmem:[%s10933 + $0xc] sm:$0xf]
  %v10938 = vlaneseq
  %v10939 = vshrl.u32 %v10938, 7
  %v10940 = vsub.s32 3, %v10939
  %v10941 = vrot.slane %v32, %v10940
  %v10946 = vunpack.c.l.b16 %v10934
  %v10947 = vunpack.c.l.b16 %v10935
  %v10948 = vunpack.c.l.b16 %v10936
  %v10949 = vunpack.c.l.b16 %v10937
  %v10950 = vpack.c.b16 %v10947, %v10946
  %v10951 = vpack.c.b16 %v10949, %v10948
  %v10955 = vsel %vm1711, %v10932, 0
  %10957 = vmatprep.subr.bf16.mxu0 0
  %10958 = vmatpush1.bf16.msra.mxu0 %v10950
  %10959 = vmatprep.subr.bf16.mxu0 0
  %10960 = vmatpush1.bf16.msra.mxu0 %v10951
  %10961 = vmatprep.subr.bf16.mxu0 0
  %10962 = vmatpush1.bf16.msra.mxu0 0
  %10963 = vmatprep.subr.bf16.mxu0 0
  %10964 = vmatpush1.bf16.msra.mxu0 0
  %10965 = vmatprep.subr.bf16.mxu0 0
  %10966 = vmatpush1.bf16.msra.mxu0 0
  %10967 = vmatprep.subr.bf16.mxu0 0
  %10968 = vmatpush1.bf16.msra.mxu0 0
  %10969 = vmatprep.subr.bf16.mxu0 0
  %10970 = vmatpush1.bf16.msra.mxu0 0
  %10971 = vmatprep.subr.bf16.mxu0 0
  %10972 = vmatpush1.bf16.msra.mxu0 0
  %10973 = vmatprep.subr.bf16.mxu0 0
  %10974 = vmatpush1.bf16.msra.mxu0 0
  %10975 = vmatprep.subr.bf16.mxu0 0
  %10976 = vmatpush1.bf16.msra.mxu0 0
  %10977 = vmatprep.subr.bf16.mxu0 0
  %10978 = vmatpush1.bf16.msra.mxu0 0
  %10979 = vmatprep.subr.bf16.mxu0 0
  %10980 = vmatpush1.bf16.msra.mxu0 0
  %10981 = vmatprep.subr.bf16.mxu0 0
  %10982 = vmatpush1.bf16.msra.mxu0 0
  %10983 = vmatprep.subr.bf16.mxu0 0
  %10984 = vmatpush1.bf16.msra.mxu0 0
  %10985 = vmatprep.subr.bf16.mxu0 0
  %10986 = vmatpush1.bf16.msra.mxu0 0
  %10987 = vmatprep.subr.bf16.mxu0 0
  %10988 = vmatpush1.bf16.msra.mxu0 0
  %10989 = vmatprep.mubr.bf16.mxu0 0
  %10990 = vmatmul.mubr.bf16.gmra.mrb[0].mxu0 %v10955
  %v10991 = vpop.f32.mrb[0].mxu0
  %v10992 = vadd.f32 %v10941, %v10991
  %v10993 = vpop.f32.mrb[0].mxu0
  %v10994 = vpop.f32.mrb[0].mxu0
  %v10995 = vpop.f32.mrb[0].mxu0
  %10996 = vdwg.mxu0
  %v10997 = vsel %vm10907, %v10992, 0.0
  %10998 = vadd.xlane.f32.xlu0 %v10997
  %v10999 = vpop.xlane.xlu0 %10998
  %v11000 = vmul.f32 %v10999, %v1808
  %v11001 = vsub.f32 %v10992, %v11000
  %v11002 = vmul.f32 %v11001, %v11001
  %v11003 = vsel %vm10907, %v11002, 0.0
  %11004 = vadd.xlane.f32.xlu0 %v11003
  %v11005 = vpop.xlane.xlu0 %11004
  %v11006 = vmul.f32 %v11005, %v1808
  %v11007 = vadd.f32 %v11006, 1e-05
  %v11008 = vrsqrt.pop %v11007
  %v11009 = vmul.f32 %v11001, %v11008
  %v11010 = vlaneseq
  %v11011 = vshrl.u32 %v11010, 7
  %v11012 = vsub.s32 4, %v11011
  %v11013 = vrot.slane %v32, %v11012
  %v11014 = vmul.f32 %v11009, %v11013
  %v11015 = vlaneseq
  %v11016 = vshrl.u32 %v11015, 7
  %v11017 = vsub.s32 5, %v11016
  %v11018 = vrot.slane %v32, %v11017
  %v11019 = vadd.f32 %v11014, %v11018
  %v11020 = vmax.f32 %v11019, 0.0
  %v11021 = vpack.c.bf16 %v11020, %v11020
  %s11022 = scalar_lea.vmem %s4, 144
  %v11023 = vld [vmem:[%s11022] sm:$0xf]
  %v11024 = vld [vmem:[%s11022 + $0x4] sm:$0xf]
  %v11025 = vld [vmem:[%s11022 + $0x8] sm:$0xf]
  %v11026 = vld [vmem:[%s11022 + $0xc] sm:$0xf]
  %v11027 = vlaneseq
  %v11028 = vshrl.u32 %v11027, 7
  %v11029 = vsub.s32 6, %v11028
  %v11030 = vrot.slane %v32, %v11029
  %v11035 = vunpack.c.l.b16 %v11023
  %v11036 = vunpack.c.l.b16 %v11024
  %v11037 = vunpack.c.l.b16 %v11025
  %v11038 = vunpack.c.l.b16 %v11026
  %v11039 = vpack.c.b16 %v11036, %v11035
  %v11040 = vpack.c.b16 %v11038, %v11037
  %v11044 = vsel %vm1711, %v11021, 0
  %11046 = vmatprep.subr.bf16.mxu0 0
  %11047 = vmatpush1.bf16.msra.mxu0 %v11039
  %11048 = vmatprep.subr.bf16.mxu0 0
  %11049 = vmatpush1.bf16.msra.mxu0 %v11040
  %11050 = vmatprep.subr.bf16.mxu0 0
  %11051 = vmatpush1.bf16.msra.mxu0 0
  %11052 = vmatprep.subr.bf16.mxu0 0
  %11053 = vmatpush1.bf16.msra.mxu0 0
  %11054 = vmatprep.subr.bf16.mxu0 0
  %11055 = vmatpush1.bf16.msra.mxu0 0
  %11056 = vmatprep.subr.bf16.mxu0 0
  %11057 = vmatpush1.bf16.msra.mxu0 0
  %11058 = vmatprep.subr.bf16.mxu0 0
  %11059 = vmatpush1.bf16.msra.mxu0 0
  %11060 = vmatprep.subr.bf16.mxu0 0
  %11061 = vmatpush1.bf16.msra.mxu0 0
  %11062 = vmatprep.subr.bf16.mxu0 0
  %11063 = vmatpush1.bf16.msra.mxu0 0
  %11064 = vmatprep.subr.bf16.mxu0 0
  %11065 = vmatpush1.bf16.msra.mxu0 0
  %11066 = vmatprep.subr.bf16.mxu0 0
  %11067 = vmatpush1.bf16.msra.mxu0 0
  %11068 = vmatprep.subr.bf16.mxu0 0
  %11069 = vmatpush1.bf16.msra.mxu0 0
  %11070 = vmatprep.subr.bf16.mxu0 0
  %11071 = vmatpush1.bf16.msra.mxu0 0
  %11072 = vmatprep.subr.bf16.mxu0 0
  %11073 = vmatpush1.bf16.msra.mxu0 0
  %11074 = vmatprep.subr.bf16.mxu0 0
  %11075 = vmatpush1.bf16.msra.mxu0 0
  %11076 = vmatprep.subr.bf16.mxu0 0
  %11077 = vmatpush1.bf16.msra.mxu0 0
  %11078 = vmatprep.mubr.bf16.mxu0 0
  %11079 = vmatmul.mubr.bf16.gmra.mrb[0].mxu0 %v11044
  %v11080 = vpop.f32.mrb[0].mxu0
  %v11081 = vadd.f32 %v11030, %v11080
  %v11082 = vpop.f32.mrb[0].mxu0
  %v11083 = vpop.f32.mrb[0].mxu0
  %v11084 = vpop.f32.mrb[0].mxu0
  %11085 = vdwg.mxu0
  %v11086 = vxor.u32 %v11081, 2147483648
  %v11087 = vmul.f32 %v11086, 1.442695
  %v11088 = vpow.pop %v11087
  %v11089 = vadd.f32 %v11088, 1.0
  %v11090 = vrcp.pop %v11089
  %v11091 = vmul.f32 1.0, %v11090
  %vm11092 = vcmask 3072
  %11093 = vst.msk [vmem:[%s8] sm:$0xf] %vm11092, %v11091
  // Predicated region
  $region34: #{discriminator_forward.1} parent=0 // pred_check
    _
  $region35: #{discriminator_forward.1} parent=0 // pred_check_branch
    %11095 = sbr.rel (0) target = $region37
  $region36: #{discriminator_forward.1} parent=0 // pred_region
    _
  $region37: #{discriminator_forward.1} parent=0 // pred_fallthru
    _
  // Predicated region
  $region38: #{discriminator_forward.1} parent=0 // pred_check
    _
  $region39: #{discriminator_forward.1} parent=0 // pred_check_branch
    %11097 = sbr.rel (0) target = $region41
  $region40: #{discriminator_forward.1} parent=0 // pred_region
    _
  $region41: #{discriminator_forward.1} parent=0 // pred_fallthru
    _

</llo_original>
